<compile_context>
chip_gen: v7x
topology: tpu7x:2x2x1
jax: 0.10.0
libtpu: 0.0.40
codegen_flags: <defaults>
</compile_context>

<pallas_src>
import numpy as np

import jax
import jax.numpy as jnp
from jax import lax
from jax.experimental import pallas as pl
from jax.experimental.pallas import tpu as pltpu


# ----------------------------------------------------------------------------
# Fused Pallas kernel: conv1+pool1 -> conv2+pool2 -> linear, one batch tile.
# ----------------------------------------------------------------------------
def _cnn_kernel(x_ref, w1_ref, b1_ref, w2_ref, b2_ref, wf_ref, bf_ref,
                logits_ref, feat_ref):
    """One batch tile of `bt` images.

    x_ref:   (1, 4, 8*bt, 32) bf16; x[0, m, s*bt+t, :] = padded row 4s+m of
             image t (32x32 zero-padded 28x28 input), split by row % 4.
    w1_ref:  (192, 1024)  bf16 banded conv1(+pool) weight.
             rows:  r*32 + w_in   (r = row offset 0..5 in the pooling window)
             cols:  dh*512 + dw*256 + j*16 + co   (pool phase, pooled col, ch)
    w2_ref:  (1536, 1024) bf16 banded conv2(+pool) weight.
             rows:  d*256 + j1*16 + ci            (d = row offset 0..5)
             cols:  dh*512 + dw*256 + j2*32 + co
    wf_ref:  (1792, 128)  bf16 linear weight for the kernel's flat layout
             (row = i2*256 + j2*32 + co); cols 10..127 are zero.
    b*_ref:  f32 bias rows (padding lanes zero).
    Outputs: logits (1, bt, 128) f32, features (1, 7*bt, 256) f32.
    """
    bt = x_ref.shape[2] // 8
    f32, bf16 = jnp.float32, jnp.bfloat16

    xq = x_ref[0]                                            # (4, 8*bt, 32)

    # ---- conv1 + maxpool1 folded into one banded matmul ---------------------
    # a1 row (p*7+q)*bt + t  =  concat_r padded-row(4q + 2p + r) of image t,
    # i.e. everything pooled row i = 2q+p touches (even rows first, then odd).
    def half(p):
        pieces = []
        for r in range(6):
            c = 2 * p + r
            pieces.append(xq[c % 4, (c // 4) * bt:(c // 4 + 7) * bt])  # (7bt,32)
        return jnp.concatenate(pieces, axis=-1)                        # (7bt,192)

    a1 = jnp.concatenate([half(0), half(1)], axis=0)                   # (14bt,192)
    c1 = jnp.dot(a1, w1_ref[...], preferred_element_type=f32)          # (14bt,1024)
    # max over the 4 pool phases = the four 256-wide (aligned) column blocks
    p1 = jnp.maximum(jnp.maximum(c1[:, 0:256], c1[:, 256:512]),
                     jnp.maximum(c1[:, 512:768], c1[:, 768:1024]))
    # bias + ReLU after the pooled max (exact: bias uniform, ReLU monotone)
    y1 = jnp.maximum(p1 + b1_ref[...], 0.0).astype(bf16)               # (14bt,256)

    # ---- conv2 + maxpool2 ----------------------------------------------------
    nb = 7 * bt
    zrow = jnp.zeros((bt, 256), bf16)
    planes = (jnp.concatenate([zrow, y1[:nb], zrow], axis=0),   # even pooled1 rows
              jnp.concatenate([zrow, y1[nb:], zrow], axis=0))   # odd  pooled1 rows
    # a2 row i2*bt + t, lane d*256 + j1*16 + ci  =  y1 row (2*i2 + d - 2)
    a2 = jnp.concatenate(
        [planes[d % 2][(d // 2) * bt:(d // 2 + 7) * bt] for d in range(6)],
        axis=-1)                                                        # (7bt,1536)
    c2 = jnp.dot(a2, w2_ref[...], preferred_element_type=f32)           # (7bt,1024)
    p2 = jnp.maximum(jnp.maximum(c2[:, 0:256], c2[:, 256:512]),
                     jnp.maximum(c2[:, 512:768], c2[:, 768:1024]))
    y2 = jnp.maximum(p2 + b2_ref[...], 0.0)                             # (7bt,256) f32
    feat_ref[0] = y2

    # ---- flatten (aligned 256-lane concat) + linear --------------------------
    y2b = y2.astype(bf16)
    flat = jnp.concatenate([y2b[i * bt:(i + 1) * bt] for i in range(7)],
                           axis=-1)                                     # (bt, 1792)
    logits_ref[0] = (jnp.dot(flat, wf_ref[...], preferred_element_type=f32)
                     + bf_ref[...])


# ----------------------------------------------------------------------------
# Wrapper
# ----------------------------------------------------------------------------
def cnn_forward(x_nchw, params):
    b = x_nchw.shape[0]
    bt = min(32, ((b + 7) // 8) * 8)          # batch tile, multiple of 8
    b_pad = ((b + bt - 1) // bt) * bt         # pad batch instead of bt=1/2
    g = b_pad // bt

    x = x_nchw.astype(jnp.bfloat16)[:, 0]                    # (B, 28, 28) bf16
    if b_pad != b:
        x = jnp.pad(x, ((0, b_pad - b), (0, 0), (0, 0)))
    xp = jnp.pad(x, ((0, 0), (2, 2), (2, 2)))                # (Bp, 32, 32)
    # xin[gi, m, s*bt + t, :] = xp[gi*bt + t, 4s + m, :]  (layout-only, XLA side)
    xin = (xp.reshape(g, bt, 8, 4, 32)
             .transpose(0, 3, 2, 1, 4)
             .reshape(g, 4, 8 * bt, 32))

    logits, feats = pl.pallas_call(
        _cnn_kernel,
        grid=(g,),
        in_specs=[
            pl.BlockSpec((1, 4, 8 * bt, 32), lambda i: (i, 0, 0, 0)),
            pl.BlockSpec((192, 1024), lambda i: (0, 0)),
            pl.BlockSpec((1, 256), lambda i: (0, 0)),
            pl.BlockSpec((1536, 1024), lambda i: (0, 0)),
            pl.BlockSpec((1, 256), lambda i: (0, 0)),
            pl.BlockSpec((1792, 128), lambda i: (0, 0)),
            pl.BlockSpec((1, 128), lambda i: (0, 0)),
        ],
        out_specs=(
            pl.BlockSpec((1, bt, 128), lambda i: (i, 0, 0)),
            pl.BlockSpec((1, 7 * bt, 256), lambda i: (i, 0, 0)),
        ),
        out_shape=(
            jax.ShapeDtypeStruct((g, bt, 128), jnp.float32),
            jax.ShapeDtypeStruct((g, 7 * bt, 256), jnp.float32),
        ),
        compiler_params=pltpu.CompilerParams(
            dimension_semantics=("parallel",),
            vmem_limit_bytes=32 * 1024 * 1024,
        ),
    )(xin, params["w1m"], params["b1r"], params["w2m"], params["b2r"],
      params["wfm"], params["bfr"])

    logits = logits.reshape(g * bt, 128)[:b, :10]
    # features: (g, 7*bt, 256) -> PyTorch x.view(B, -1) (NCHW flatten) order
    f = feats.reshape(g, 7, bt, 256)[..., :224]              # [gi, i2, t, j2*32+co]
    f = (f.reshape(g, 7, bt, 7, 32)
          .transpose(0, 2, 4, 1, 3)                          # [gi, t, co, i2, j2]
          .reshape(g * bt, 32 * 7 * 7)[:b])
    return logits, f


# ----------------------------------------------------------------------------
# Init-time packing of PyTorch-layout weights into the banded matmul matrices.
# ----------------------------------------------------------------------------
def _build_conv1_matrix(w1):
    """(16,1,5,5) OIHW -> (192, 1024) banded conv1+pool weight (bf16)."""
    w = np.asarray(w1, np.float32)
    mat = np.zeros((192, 1024), np.float32)
    for dh in range(2):
        for dw in range(2):
            for j in range(14):
                base = dh * 512 + dw * 256 + j * 16
                for kh in range(5):
                    for kw in range(5):
                        mat[(dh + kh) * 32 + 2 * j + dw + kw,
                            base:base + 16] = w[:, 0, kh, kw]
    return jnp.asarray(mat, jnp.bfloat16)


def _build_conv2_matrix(w2):
    """(32,16,5,5) OIHW -> (1536, 1024) banded conv2+pool weight (bf16).

    Column (W) padding contributions are skipped here, so the kernel never
    zero-pads y1 in W; row (H) padding is handled by zero row-slabs in-kernel.
    """
    w = np.asarray(w2, np.float32)
    mat = np.zeros((1536, 1024), np.float32)
    for dh in range(2):
        for dw in range(2):
            for j2 in range(7):
                base = dh * 512 + dw * 256 + j2 * 32
                for kh in range(5):
                    d = dh + kh
                    for kw in range(5):
                        j1 = 2 * j2 + dw - 2 + kw
                        if 0 <= j1 <= 13:
                            mat[d * 256 + j1 * 16:d * 256 + j1 * 16 + 16,
                                base:base + 32] = w[:, :, kh, kw].T
    return jnp.asarray(mat, jnp.bfloat16)


def _build_linear_matrix(wf):
    """(10, 1568) PyTorch Linear (NCHW-flat in) -> (1792, 128) for the
    kernel's flat layout (row = i2*256 + j2*32 + co); padding rows/cols = 0."""
    w = np.asarray(wf, np.float32).reshape(10, 32, 7, 7).transpose(2, 3, 1, 0)
    mat = np.zeros((1792, 128), np.float32)
    for i2 in range(7):
        mat[i2 * 256:i2 * 256 + 224, :10] = w[i2].reshape(224, 10)
    return jnp.asarray(mat, jnp.bfloat16)


def _expand_bias(bvec, reps, width):
    row = np.zeros((1, width), np.float32)
    t = np.tile(np.asarray(bvec, np.float32), reps)
    row[0, :t.size] = t
    return jnp.asarray(row)


def init_params(key):
    k = jax.random.split(key, 6)
    w1 = 0.1 * jax.random.normal(k[0], (16, 1, 5, 5), jnp.float32)
    b1 = 0.1 * jax.random.normal(k[1], (16,), jnp.float32)
    w2 = 0.05 * jax.random.normal(k[2], (32, 16, 5, 5), jnp.float32)
    b2 = 0.05 * jax.random.normal(k[3], (32,), jnp.float32)
    wf = 0.02 * jax.random.normal(k[4], (10, 32 * 7 * 7), jnp.float32)
    bf = 0.02 * jax.random.normal(k[5], (10,), jnp.float32)
    raw = {"w1": w1, "b1": b1, "w2": w2, "b2": b2, "wf": wf, "bf": bf}
    packed = {
        "w1m": _build_conv1_matrix(w1),
        "b1r": _expand_bias(b1, 14, 256),
        "w2m": _build_conv2_matrix(w2),
        "b2r": _expand_bias(b2, 7, 256),
        "wfm": _build_linear_matrix(wf),
        "bfr": _expand_bias(bf, 1, 128),
    }
    return raw, packed


# ----------------------------------------------------------------------------
# Pure-JAX reference (f32) for a sanity check of the fused kernel.
# ----------------------------------------------------------------------------
def reference_forward(x_nchw, raw):
    dn = ("NCHW", "OIHW", "NCHW")
    y = lax.conv_general_dilated(x_nchw, raw["w1"], (1, 1), ((2, 2), (2, 2)),
                                 dimension_numbers=dn)
    y = jnp.maximum(y + raw["b1"].reshape(1, 16, 1, 1), 0.0)
    y = y.reshape(y.shape[0], 16, 14, 2, 14, 2).max(axis=(3, 5))
    y = lax.conv_general_dilated(y, raw["w2"], (1, 1), ((2, 2), (2, 2)),
                                 dimension_numbers=dn)
    y = jnp.maximum(y + raw["b2"].reshape(1, 32, 1, 1), 0.0)
    y = y.reshape(y.shape[0], 32, 7, 2, 7, 2).max(axis=(3, 5))
    flat = y.reshape(y.shape[0], -1)
    return flat @ raw["wf"].T + raw["bf"], flat


if __name__ == "__main__":
    key = jax.random.PRNGKey(0)
    pkey, xkey = jax.random.split(key)
    raw, packed = init_params(pkey)

    # MNIST-sized input implied by Linear(32*7*7, 10): (B, 1, 28, 28)
    x = jax.random.normal(xkey, (2, 1, 28, 28), jnp.float32)

    logits, feats = jax.jit(cnn_forward)(x, packed)
    jax.block_until_ready((logits, feats))

    assert logits.shape == (2, 10)
    assert feats.shape == (2, 32 * 7 * 7)

    # sanity check vs f32 reference (kernel uses bf16 MXU operands, f32 accum)
    ref_logits, ref_feats = reference_forward(x, raw)
    assert float(jnp.max(jnp.abs(logits - ref_logits))) < 5e-2
    assert float(jnp.max(jnp.abs(feats - ref_feats))) < 5e-2

    print("KERNEL_OK")
</pallas_src>

<mosaic_0001>
module attributes {stable_mosaic.version = 11 : i64} {
  func.func @_cnn_kernel(%arg0: i32, %arg1: memref<1x4x64x32xbf16, #tpu.memory_space<vmem>>, %arg2: memref<192x1024xbf16, #tpu.memory_space<vmem>>, %arg3: memref<1x256xf32, #tpu.memory_space<vmem>>, %arg4: memref<1536x1024xbf16, #tpu.memory_space<vmem>>, %arg5: memref<1x256xf32, #tpu.memory_space<vmem>>, %arg6: memref<1792x128xbf16, #tpu.memory_space<vmem>>, %arg7: memref<1x128xf32, #tpu.memory_space<vmem>>, %arg8: memref<1x8x128xf32, #tpu.memory_space<vmem>>, %arg9: memref<1x56x256xf32, #tpu.memory_space<vmem>>) attributes {dimension_semantics = [#tpu.dimension_semantics<parallel>], iteration_bounds = array<i64: 1>, scalar_prefetch = 0 : i64, scratch_operands = 0 : i64, tpu.core_type = #tpu.core_type<tc>, window_params = [{transform_indices = @transform_0, window_bounds = array<i64: 1, 4, 64, 32>}, {pipeline_mode = #tpu.pipeline_mode<synchronous>, transform_indices = @transform_1, window_bounds = array<i64: 192, 1024>}, {pipeline_mode = #tpu.pipeline_mode<synchronous>, transform_indices = @transform_2, window_bounds = array<i64: 1, 256>}, {pipeline_mode = #tpu.pipeline_mode<synchronous>, transform_indices = @transform_3, window_bounds = array<i64: 1536, 1024>}, {pipeline_mode = #tpu.pipeline_mode<synchronous>, transform_indices = @transform_4, window_bounds = array<i64: 1, 256>}, {pipeline_mode = #tpu.pipeline_mode<synchronous>, transform_indices = @transform_5, window_bounds = array<i64: 1792, 128>}, {pipeline_mode = #tpu.pipeline_mode<synchronous>, transform_indices = @transform_6, window_bounds = array<i64: 1, 128>}, {transform_indices = @transform_7, window_bounds = array<i64: 1, 8, 128>}, {transform_indices = @transform_8, window_bounds = array<i64: 1, 56, 256>}]} {
    %c0 = arith.constant 0 : index
    %c0_0 = arith.constant 0 : index
    %c0_1 = arith.constant 0 : index
    %c0_2 = arith.constant 0 : index
    %0 = vector.load %arg1[%c0, %c0_0, %c0_1, %c0_2] : memref<1x4x64x32xbf16, #tpu.memory_space<vmem>>, vector<1x4x64x32xbf16>
    %1 = vector.shape_cast %0 : vector<1x4x64x32xbf16> to vector<4x64x32xbf16>
    %2 = vector.extract_strided_slice %1 {offsets = [0, 0, 0], sizes = [1, 56, 32], strides = [1, 1, 1]} : vector<4x64x32xbf16> to vector<1x56x32xbf16>
    %3 = vector.shape_cast %2 : vector<1x56x32xbf16> to vector<56x32xbf16>
    %4 = vector.extract_strided_slice %1 {offsets = [1, 0, 0], sizes = [1, 56, 32], strides = [1, 1, 1]} : vector<4x64x32xbf16> to vector<1x56x32xbf16>
    %5 = vector.shape_cast %4 : vector<1x56x32xbf16> to vector<56x32xbf16>
    %6 = vector.extract_strided_slice %1 {offsets = [2, 0, 0], sizes = [1, 56, 32], strides = [1, 1, 1]} : vector<4x64x32xbf16> to vector<1x56x32xbf16>
    %7 = vector.shape_cast %6 : vector<1x56x32xbf16> to vector<56x32xbf16>
    %8 = vector.extract_strided_slice %1 {offsets = [3, 0, 0], sizes = [1, 56, 32], strides = [1, 1, 1]} : vector<4x64x32xbf16> to vector<1x56x32xbf16>
    %9 = vector.shape_cast %8 : vector<1x56x32xbf16> to vector<56x32xbf16>
    %10 = vector.extract_strided_slice %1 {offsets = [0, 8, 0], sizes = [1, 56, 32], strides = [1, 1, 1]} : vector<4x64x32xbf16> to vector<1x56x32xbf16>
    %11 = vector.shape_cast %10 : vector<1x56x32xbf16> to vector<56x32xbf16>
    %12 = vector.extract_strided_slice %1 {offsets = [1, 8, 0], sizes = [1, 56, 32], strides = [1, 1, 1]} : vector<4x64x32xbf16> to vector<1x56x32xbf16>
    %13 = vector.shape_cast %12 : vector<1x56x32xbf16> to vector<56x32xbf16>
    %14 = tpu.concatenate %3, %5, %7, %9, %11, %13 in 1 : vector<56x32xbf16>, vector<56x32xbf16>, vector<56x32xbf16>, vector<56x32xbf16>, vector<56x32xbf16>, vector<56x32xbf16> -> vector<56x192xbf16>
    %15 = vector.extract_strided_slice %1 {offsets = [2, 0, 0], sizes = [1, 56, 32], strides = [1, 1, 1]} : vector<4x64x32xbf16> to vector<1x56x32xbf16>
    %16 = vector.shape_cast %15 : vector<1x56x32xbf16> to vector<56x32xbf16>
    %17 = vector.extract_strided_slice %1 {offsets = [3, 0, 0], sizes = [1, 56, 32], strides = [1, 1, 1]} : vector<4x64x32xbf16> to vector<1x56x32xbf16>
    %18 = vector.shape_cast %17 : vector<1x56x32xbf16> to vector<56x32xbf16>
    %19 = vector.extract_strided_slice %1 {offsets = [0, 8, 0], sizes = [1, 56, 32], strides = [1, 1, 1]} : vector<4x64x32xbf16> to vector<1x56x32xbf16>
    %20 = vector.shape_cast %19 : vector<1x56x32xbf16> to vector<56x32xbf16>
    %21 = vector.extract_strided_slice %1 {offsets = [1, 8, 0], sizes = [1, 56, 32], strides = [1, 1, 1]} : vector<4x64x32xbf16> to vector<1x56x32xbf16>
    %22 = vector.shape_cast %21 : vector<1x56x32xbf16> to vector<56x32xbf16>
    %23 = vector.extract_strided_slice %1 {offsets = [2, 8, 0], sizes = [1, 56, 32], strides = [1, 1, 1]} : vector<4x64x32xbf16> to vector<1x56x32xbf16>
    %24 = vector.shape_cast %23 : vector<1x56x32xbf16> to vector<56x32xbf16>
    %25 = vector.extract_strided_slice %1 {offsets = [3, 8, 0], sizes = [1, 56, 32], strides = [1, 1, 1]} : vector<4x64x32xbf16> to vector<1x56x32xbf16>
    %26 = vector.shape_cast %25 : vector<1x56x32xbf16> to vector<56x32xbf16>
    %27 = tpu.concatenate %16, %18, %20, %22, %24, %26 in 1 : vector<56x32xbf16>, vector<56x32xbf16>, vector<56x32xbf16>, vector<56x32xbf16>, vector<56x32xbf16>, vector<56x32xbf16> -> vector<56x192xbf16>
    %28 = tpu.concatenate %14, %27 in 0 : vector<56x192xbf16>, vector<56x192xbf16> -> vector<112x192xbf16>
    %c0_3 = arith.constant 0 : index
    %c0_4 = arith.constant 0 : index
    %29 = vector.load %arg2[%c0_3, %c0_4] : memref<192x1024xbf16, #tpu.memory_space<vmem>>, vector<192x1024xbf16>
    %cst = arith.constant dense<0.000000e+00> : vector<112x1024xf32>
    %30 = tpu.matmul %28, %29, %cst {dimension_numbers = #tpu.dot_dimension_numbers<[1], [0], [0], [1], [0, 0, 1, 1], [], []>} : vector<112x192xbf16>, vector<192x1024xbf16>, vector<112x1024xf32> -> vector<112x1024xf32>
    %31 = vector.extract_strided_slice %30 {offsets = [0, 0], sizes = [112, 256], strides = [1, 1]} : vector<112x1024xf32> to vector<112x256xf32>
    %32 = vector.extract_strided_slice %30 {offsets = [0, 256], sizes = [112, 256], strides = [1, 1]} : vector<112x1024xf32> to vector<112x256xf32>
    %33 = arith.maximumf %31, %32 : vector<112x256xf32>
    %34 = vector.extract_strided_slice %30 {offsets = [0, 512], sizes = [112, 256], strides = [1, 1]} : vector<112x1024xf32> to vector<112x256xf32>
    %35 = vector.extract_strided_slice %30 {offsets = [0, 768], sizes = [112, 256], strides = [1, 1]} : vector<112x1024xf32> to vector<112x256xf32>
    %36 = arith.maximumf %34, %35 : vector<112x256xf32>
    %37 = arith.maximumf %33, %36 : vector<112x256xf32>
    %c0_5 = arith.constant 0 : index
    %c0_6 = arith.constant 0 : index
    %38 = vector.load %arg3[%c0_5, %c0_6] : memref<1x256xf32, #tpu.memory_space<vmem>>, vector<1x256xf32>
    %39 = vector.broadcast %38 : vector<1x256xf32> to vector<112x256xf32>
    %40 = arith.addf %37, %39 : vector<112x256xf32>
    %cst_7 = arith.constant 0.000000e+00 : f32
    %41 = vector.broadcast %cst_7 : f32 to vector<112x256xf32>
    %42 = arith.maximumf %40, %41 : vector<112x256xf32>
    %43 = arith.truncf %42 : vector<112x256xf32> to vector<112x256xbf16>
    %cst_8 = arith.constant 0.000000e+00 : bf16
    %44 = vector.broadcast %cst_8 : bf16 to vector<8x256xbf16>
    %45 = vector.extract_strided_slice %43 {offsets = [0, 0], sizes = [56, 256], strides = [1, 1]} : vector<112x256xbf16> to vector<56x256xbf16>
    %46 = tpu.concatenate %44, %45, %44 in 0 : vector<8x256xbf16>, vector<56x256xbf16>, vector<8x256xbf16> -> vector<72x256xbf16>
    %47 = vector.extract_strided_slice %43 {offsets = [56, 0], sizes = [56, 256], strides = [1, 1]} : vector<112x256xbf16> to vector<56x256xbf16>
    %48 = tpu.concatenate %44, %47, %44 in 0 : vector<8x256xbf16>, vector<56x256xbf16>, vector<8x256xbf16> -> vector<72x256xbf16>
    %49 = vector.extract_strided_slice %46 {offsets = [0, 0], sizes = [56, 256], strides = [1, 1]} : vector<72x256xbf16> to vector<56x256xbf16>
    %50 = vector.extract_strided_slice %48 {offsets = [0, 0], sizes = [56, 256], strides = [1, 1]} : vector<72x256xbf16> to vector<56x256xbf16>
    %51 = vector.extract_strided_slice %46 {offsets = [8, 0], sizes = [56, 256], strides = [1, 1]} : vector<72x256xbf16> to vector<56x256xbf16>
    %52 = vector.extract_strided_slice %48 {offsets = [8, 0], sizes = [56, 256], strides = [1, 1]} : vector<72x256xbf16> to vector<56x256xbf16>
    %53 = vector.extract_strided_slice %46 {offsets = [16, 0], sizes = [56, 256], strides = [1, 1]} : vector<72x256xbf16> to vector<56x256xbf16>
    %54 = vector.extract_strided_slice %48 {offsets = [16, 0], sizes = [56, 256], strides = [1, 1]} : vector<72x256xbf16> to vector<56x256xbf16>
    %55 = tpu.concatenate %49, %50, %51, %52, %53, %54 in 1 : vector<56x256xbf16>, vector<56x256xbf16>, vector<56x256xbf16>, vector<56x256xbf16>, vector<56x256xbf16>, vector<56x256xbf16> -> vector<56x1536xbf16>
    %c0_9 = arith.constant 0 : index
    %c0_10 = arith.constant 0 : index
    %56 = vector.load %arg4[%c0_9, %c0_10] : memref<1536x1024xbf16, #tpu.memory_space<vmem>>, vector<1536x1024xbf16>
    %cst_11 = arith.constant dense<0.000000e+00> : vector<56x1024xf32>
    %57 = tpu.matmul %55, %56, %cst_11 {dimension_numbers = #tpu.dot_dimension_numbers<[1], [0], [0], [1], [0, 0, 1, 1], [], []>} : vector<56x1536xbf16>, vector<1536x1024xbf16>, vector<56x1024xf32> -> vector<56x1024xf32>
    %58 = vector.extract_strided_slice %57 {offsets = [0, 0], sizes = [56, 256], strides = [1, 1]} : vector<56x1024xf32> to vector<56x256xf32>
    %59 = vector.extract_strided_slice %57 {offsets = [0, 256], sizes = [56, 256], strides = [1, 1]} : vector<56x1024xf32> to vector<56x256xf32>
    %60 = arith.maximumf %58, %59 : vector<56x256xf32>
    %61 = vector.extract_strided_slice %57 {offsets = [0, 512], sizes = [56, 256], strides = [1, 1]} : vector<56x1024xf32> to vector<56x256xf32>
    %62 = vector.extract_strided_slice %57 {offsets = [0, 768], sizes = [56, 256], strides = [1, 1]} : vector<56x1024xf32> to vector<56x256xf32>
    %63 = arith.maximumf %61, %62 : vector<56x256xf32>
    %64 = arith.maximumf %60, %63 : vector<56x256xf32>
    %c0_12 = arith.constant 0 : index
    %c0_13 = arith.constant 0 : index
    %65 = vector.load %arg5[%c0_12, %c0_13] : memref<1x256xf32, #tpu.memory_space<vmem>>, vector<1x256xf32>
    %66 = vector.broadcast %65 : vector<1x256xf32> to vector<56x256xf32>
    %67 = arith.addf %64, %66 : vector<56x256xf32>
    %cst_14 = arith.constant 0.000000e+00 : f32
    %68 = vector.broadcast %cst_14 : f32 to vector<56x256xf32>
    %69 = arith.maximumf %67, %68 : vector<56x256xf32>
    %c0_15 = arith.constant 0 : index
    %c0_16 = arith.constant 0 : index
    %c0_17 = arith.constant 0 : index
    %70 = vector.load %arg9[%c0_15, %c0_16, %c0_17] : memref<1x56x256xf32, #tpu.memory_space<vmem>>, vector<1x56x256xf32>
    %71 = vector.shape_cast %70 : vector<1x56x256xf32> to vector<56x256xf32>
    %72 = vector.shape_cast %69 : vector<56x256xf32> to vector<1x56x256xf32>
    tpu.vector_store %arg9[%c0_15, %c0_16, %c0_17], %72 {strides = array<i32>} : memref<1x56x256xf32, #tpu.memory_space<vmem>>, vector<1x56x256xf32>,
    %73 = arith.truncf %69 : vector<56x256xf32> to vector<56x256xbf16>
    %74 = vector.extract_strided_slice %73 {offsets = [0, 0], sizes = [8, 256], strides = [1, 1]} : vector<56x256xbf16> to vector<8x256xbf16>
    %75 = vector.extract_strided_slice %73 {offsets = [8, 0], sizes = [8, 256], strides = [1, 1]} : vector<56x256xbf16> to vector<8x256xbf16>
    %76 = vector.extract_strided_slice %73 {offsets = [16, 0], sizes = [8, 256], strides = [1, 1]} : vector<56x256xbf16> to vector<8x256xbf16>
    %77 = vector.extract_strided_slice %73 {offsets = [24, 0], sizes = [8, 256], strides = [1, 1]} : vector<56x256xbf16> to vector<8x256xbf16>
    %78 = vector.extract_strided_slice %73 {offsets = [32, 0], sizes = [8, 256], strides = [1, 1]} : vector<56x256xbf16> to vector<8x256xbf16>
    %79 = vector.extract_strided_slice %73 {offsets = [40, 0], sizes = [8, 256], strides = [1, 1]} : vector<56x256xbf16> to vector<8x256xbf16>
    %80 = vector.extract_strided_slice %73 {offsets = [48, 0], sizes = [8, 256], strides = [1, 1]} : vector<56x256xbf16> to vector<8x256xbf16>
    %81 = tpu.concatenate %74, %75, %76, %77, %78, %79, %80 in 1 : vector<8x256xbf16>, vector<8x256xbf16>, vector<8x256xbf16>, vector<8x256xbf16>, vector<8x256xbf16>, vector<8x256xbf16>, vector<8x256xbf16> -> vector<8x1792xbf16>
    %c0_18 = arith.constant 0 : index
    %c0_19 = arith.constant 0 : index
    %82 = vector.load %arg6[%c0_18, %c0_19] : memref<1792x128xbf16, #tpu.memory_space<vmem>>, vector<1792x128xbf16>
    %cst_20 = arith.constant dense<0.000000e+00> : vector<8x128xf32>
    %83 = tpu.matmul %81, %82, %cst_20 {dimension_numbers = #tpu.dot_dimension_numbers<[1], [0], [0], [1], [0, 0, 1, 1], [], []>} : vector<8x1792xbf16>, vector<1792x128xbf16>, vector<8x128xf32> -> vector<8x128xf32>
    %c0_21 = arith.constant 0 : index
    %c0_22 = arith.constant 0 : index
    %84 = vector.load %arg7[%c0_21, %c0_22] : memref<1x128xf32, #tpu.memory_space<vmem>>, vector<1x128xf32>
    %85 = vector.broadcast %84 : vector<1x128xf32> to vector<8x128xf32>
    %86 = arith.addf %83, %85 : vector<8x128xf32>
    %c0_23 = arith.constant 0 : index
    %c0_24 = arith.constant 0 : index
    %c0_25 = arith.constant 0 : index
    %87 = vector.load %arg8[%c0_23, %c0_24, %c0_25] : memref<1x8x128xf32, #tpu.memory_space<vmem>>, vector<1x8x128xf32>
    %88 = vector.shape_cast %87 : vector<1x8x128xf32> to vector<8x128xf32>
    %89 = vector.shape_cast %86 : vector<8x128xf32> to vector<1x8x128xf32>
    tpu.vector_store %arg8[%c0_23, %c0_24, %c0_25], %89 {strides = array<i32>} : memref<1x8x128xf32, #tpu.memory_space<vmem>>, vector<1x8x128xf32>,
    return
  }
  func.func @transform_0(%arg0: i32) -> (i32, i32, i32, i32) {
    %c0_i32 = arith.constant 0 : i32
    %c0_i32_0 = arith.constant 0 : i32
    %c0_i32_1 = arith.constant 0 : i32
    %c0_i32_2 = arith.constant 0 : i32
    return %arg0, %c0_i32, %c0_i32_0, %c0_i32_1 : i32, i32, i32, i32
  }
  func.func @transform_1(%arg0: i32) -> (i32, i32) {
    %c0_i32 = arith.constant 0 : i32
    %c0_i32_0 = arith.constant 0 : i32
    %c0_i32_1 = arith.constant 0 : i32
    return %c0_i32, %c0_i32_0 : i32, i32
  }
  func.func @transform_2(%arg0: i32) -> (i32, i32) {
    %c0_i32 = arith.constant 0 : i32
    %c0_i32_0 = arith.constant 0 : i32
    %c0_i32_1 = arith.constant 0 : i32
    return %c0_i32, %c0_i32_0 : i32, i32
  }
  func.func @transform_3(%arg0: i32) -> (i32, i32) {
    %c0_i32 = arith.constant 0 : i32
    %c0_i32_0 = arith.constant 0 : i32
    %c0_i32_1 = arith.constant 0 : i32
    return %c0_i32, %c0_i32_0 : i32, i32
  }
  func.func @transform_4(%arg0: i32) -> (i32, i32) {
    %c0_i32 = arith.constant 0 : i32
    %c0_i32_0 = arith.constant 0 : i32
    %c0_i32_1 = arith.constant 0 : i32
    return %c0_i32, %c0_i32_0 : i32, i32
  }
  func.func @transform_5(%arg0: i32) -> (i32, i32) {
    %c0_i32 = arith.constant 0 : i32
    %c0_i32_0 = arith.constant 0 : i32
    %c0_i32_1 = arith.constant 0 : i32
    return %c0_i32, %c0_i32_0 : i32, i32
  }
  func.func @transform_6(%arg0: i32) -> (i32, i32) {
    %c0_i32 = arith.constant 0 : i32
    %c0_i32_0 = arith.constant 0 : i32
    %c0_i32_1 = arith.constant 0 : i32
    return %c0_i32, %c0_i32_0 : i32, i32
  }
  func.func @transform_7(%arg0: i32) -> (i32, i32, i32) {
    %c0_i32 = arith.constant 0 : i32
    %c0_i32_0 = arith.constant 0 : i32
    %c0_i32_1 = arith.constant 0 : i32
    return %arg0, %c0_i32, %c0_i32_0 : i32, i32, i32
  }
  func.func @transform_8(%arg0: i32) -> (i32, i32, i32) {
    %c0_i32 = arith.constant 0 : i32
    %c0_i32_0 = arith.constant 0 : i32
    %c0_i32_1 = arith.constant 0 : i32
    return %arg0, %c0_i32, %c0_i32_0 : i32, i32, i32
  }
}

</mosaic_0001>

<llo_original>
// kernel: cnn_forward.1
$region0: #{cnn_forward.1}
  #allocation0 [shape = 'u32[]', space=smem, size = 0x4, offset = 0x4, fixed_abs, tag = 'smem constant byte address 0x4 - core index']
  #allocation1 [shape = 'u32[144,128]{1,0:T(1,128)}', space=vmem, size = 0x12000, scoped, tag = 'internal scratch']
  %s0 = inlined_call_operand.vmem [shape: bf16[1,4,64,32], index: 0, kind: input, shape index: {}]
  %s1 = inlined_call_operand.hbm [shape: bf16[192,1024], index: 1, kind: input, shape index: {}]
  %s2 = inlined_call_operand.hbm [shape: f32[1,256], index: 2, kind: input, shape index: {}]
  %s3 = inlined_call_operand.hbm [shape: bf16[1536,1024], index: 3, kind: input, shape index: {}]
  %s4 = inlined_call_operand.hbm [shape: f32[1,256], index: 4, kind: input, shape index: {}]
  %s5 = inlined_call_operand.hbm [shape: bf16[1792,128], index: 5, kind: input, shape index: {}]
  %s6 = inlined_call_operand.hbm [shape: f32[1,128], index: 6, kind: input, shape index: {}]
  %s7 = inlined_call_operand.vmem [shape: f32[1,8,128], index: 7, kind: output, shape index: {0}]
  %s8 = inlined_call_operand.vmem [shape: f32[1,56,256], index: 8, kind: output, shape index: {1}]
  %9 = xla_tuple %s7, %s8
  %s10 = sld [smem:[#allocation0]]
  $region70: #{cnn_forward.1} parent=0
    _
  %s12 = ssub.s32 1, %s10
  %s13 = scalar_select 0, %s12, %s10
  $region1: #{cnn_forward.1} parent=0
    #allocation2 [shape = 'u8[393216]{0}', space=vmem, size = 0x60000, scoped, tag = 'input window, operand 1, single buffered']
    #allocation3 [shape = 's32[1]{0}', space=sflag, size = 0x4, scoped, tag = 'scoped memory for cnn_forward.1']
    #allocation4 [shape = 'u8[1024]{0}', space=vmem, size = 0x400, scoped, tag = 'input window, operand 2, single buffered']
    #allocation5 [shape = 's32[1]{0}', space=sflag, size = 0x4, scoped, tag = 'scoped memory for cnn_forward.1']
    #allocation6 [shape = 'u8[3145728]{0}', space=vmem, size = 0x300000, scoped, tag = 'input window, operand 3, single buffered']
    #allocation7 [shape = 'u8[1024]{0}', space=vmem, size = 0x400, scoped, tag = 'input window, operand 4, single buffered']
    #allocation8 [shape = 's32[1]{0}', space=sflag, size = 0x4, scoped, tag = 'scoped memory for cnn_forward.1']
    #allocation9 [shape = 'u8[458752]{0}', space=vmem, size = 0x70000, scoped, tag = 'input window, operand 5, single buffered']
    #allocation10 [shape = 'u8[512]{0}', space=vmem, size = 0x400, scoped, tag = 'input window, operand 6, single buffered']
    #allocation11 [shape = 's32[1]{0}', space=sflag, size = 0x4, scoped, tag = 'scoped memory for cnn_forward.1']
    %14 = vsyncpa [#allocation3], 0
    %15 = vsyncpa [#allocation5], 0
    %16 = vsyncpa [#allocation8], 0
    %17 = vsyncpa [#allocation11], 0
    // Predicated region
    $region2: #{cnn_forward.1} parent=1 // pred_check
      _
    $region3: #{cnn_forward.1} parent=1 // pred_check_branch
      %19 = sbr.rel (0) target = $region5
    $region4: #{cnn_forward.1} parent=1 // pred_region
      _
    $region5: #{cnn_forward.1} parent=1 // pred_fallthru
      _
    // Predicated region
    $region6: #{cnn_forward.1} parent=1 // pred_check
      _
    $region7: #{cnn_forward.1} parent=1 // pred_check_branch
      %21 = sbr.rel (0) target = $region9
    $region8: #{cnn_forward.1} parent=1 // pred_region
      %s23 = ssub.s32 12288, 12288
      %24 = vsyncadd [#allocation3], %s23
      %s25 = sshll.u32 [#allocation2], 4
      %s26 = int_to_ptr.vmem [resolvable:$true] %s25
      %31 = dma.hbm_to_vmem [thread:$0]  %s1, 12288, %s26, [#allocation3], 512, 512, 32
    $region9: #{cnn_forward.1} parent=1 // pred_fallthru
      _
    // Predicated region
    $region10: #{cnn_forward.1} parent=1 // pred_check
      _
    $region11: #{cnn_forward.1} parent=1 // pred_check_branch
      %33 = sbr.rel (0) target = $region13
    $region12: #{cnn_forward.1} parent=1 // pred_region
      %s35 = ssub.s32 32, 32
      %36 = vsyncadd [#allocation5], %s35
      %s38 = sshll.u32 [#allocation4], 4
      %s39 = int_to_ptr.vmem [resolvable:$true] %s38
      %41 = dma.hbm_to_vmem [thread:$0]  %s2, 32, %s39, [#allocation5]
    $region13: #{cnn_forward.1} parent=1 // pred_fallthru
      _
    // Predicated region
    $region14: #{cnn_forward.1} parent=1 // pred_check
      _
    $region15: #{cnn_forward.1} parent=1 // pred_check_branch
      %43 = sbr.rel (0) target = $region17
    $region16: #{cnn_forward.1} parent=1 // pred_region
      %s45 = ssub.s32 98304, 98304
      %46 = vsyncadd [#allocation5], %s45
      %s47 = sshll.u32 [#allocation6], 4
      %s48 = int_to_ptr.vmem [resolvable:$true] %s47
      %53 = dma.hbm_to_vmem [thread:$0]  %s3, 98304, %s48, [#allocation5], 512, 512, 32
    $region17: #{cnn_forward.1} parent=1 // pred_fallthru
      _
    // Predicated region
    $region18: #{cnn_forward.1} parent=1 // pred_check
      _
    $region19: #{cnn_forward.1} parent=1 // pred_check_branch
      %55 = sbr.rel (0) target = $region21
    $region20: #{cnn_forward.1} parent=1 // pred_region
      %s57 = ssub.s32 32, 32
      %58 = vsyncadd [#allocation8], %s57
      %s60 = sshll.u32 [#allocation7], 4
      %s61 = int_to_ptr.vmem [resolvable:$true] %s60
      %63 = dma.hbm_to_vmem [thread:$0]  %s4, 32, %s61, [#allocation8]
    $region21: #{cnn_forward.1} parent=1 // pred_fallthru
      _
    // Predicated region
    $region22: #{cnn_forward.1} parent=1 // pred_check
      _
    $region23: #{cnn_forward.1} parent=1 // pred_check_branch
      %65 = sbr.rel (0) target = $region25
    $region24: #{cnn_forward.1} parent=1 // pred_region
      %s67 = ssub.s32 14336, 14336
      %68 = vsyncadd [#allocation8], %s67
      %s69 = sshll.u32 [#allocation9], 4
      %s70 = int_to_ptr.vmem [resolvable:$true] %s69
      %75 = dma.hbm_to_vmem [thread:$0]  %s5, 14336, %s70, [#allocation8], 64, 64, 4
    $region25: #{cnn_forward.1} parent=1 // pred_fallthru
      _
    // Predicated region
    $region26: #{cnn_forward.1} parent=1 // pred_check
      _
    $region27: #{cnn_forward.1} parent=1 // pred_check_branch
      %77 = sbr.rel (0) target = $region29
    $region28: #{cnn_forward.1} parent=1 // pred_region
      %s79 = ssub.s32 16, 16
      %80 = vsyncadd [#allocation11], %s79
      %s82 = sshll.u32 [#allocation10], 4
      %s83 = int_to_ptr.vmem [resolvable:$true] %s82
      %85 = dma.hbm_to_vmem [thread:$0]  %s6, 16, %s83, [#allocation11]
    $region29: #{cnn_forward.1} parent=1 // pred_fallthru
      _
    // Predicated region
    $region30: #{cnn_forward.1} parent=1 // pred_check
      _
    $region31: #{cnn_forward.1} parent=1 // pred_check_branch
      %87 = sbr.rel (0) target = $region33
    $region32: #{cnn_forward.1} parent=1 // pred_region
      %88 = dma.done [#allocation3], 12288
    $region33: #{cnn_forward.1} parent=1 // pred_fallthru
      _
    // Predicated region
    $region34: #{cnn_forward.1} parent=1 // pred_check
      _
    $region35: #{cnn_forward.1} parent=1 // pred_check_branch
      %90 = sbr.rel (0) target = $region37
    $region36: #{cnn_forward.1} parent=1 // pred_region
      %91 = dma.done [#allocation5], 32
    $region37: #{cnn_forward.1} parent=1 // pred_fallthru
      _
    // Predicated region
    $region38: #{cnn_forward.1} parent=1 // pred_check
      _
    $region39: #{cnn_forward.1} parent=1 // pred_check_branch
      %93 = sbr.rel (0) target = $region41
    $region40: #{cnn_forward.1} parent=1 // pred_region
      %94 = dma.done [#allocation5], 98304
    $region41: #{cnn_forward.1} parent=1 // pred_fallthru
      _
    // Predicated region
    $region42: #{cnn_forward.1} parent=1 // pred_check
      _
    $region43: #{cnn_forward.1} parent=1 // pred_check_branch
      %96 = sbr.rel (0) target = $region45
    $region44: #{cnn_forward.1} parent=1 // pred_region
      %97 = dma.done [#allocation8], 32
    $region45: #{cnn_forward.1} parent=1 // pred_fallthru
      _
    // Predicated region
    $region46: #{cnn_forward.1} parent=1 // pred_check
      _
    $region47: #{cnn_forward.1} parent=1 // pred_check_branch
      %99 = sbr.rel (0) target = $region49
    $region48: #{cnn_forward.1} parent=1 // pred_region
      %100 = dma.done [#allocation8], 14336
    $region49: #{cnn_forward.1} parent=1 // pred_fallthru
      _
    // Predicated region
    $region50: #{cnn_forward.1} parent=1 // pred_check
      _
    $region51: #{cnn_forward.1} parent=1 // pred_check_branch
      %102 = sbr.rel (0) target = $region53
    $region52: #{cnn_forward.1} parent=1 // pred_region
      %103 = dma.done [#allocation11], 16
    $region53: #{cnn_forward.1} parent=1 // pred_fallthru
      _
    %v105 = vld [vmem:[%s0] sm:$0xf]
    %v106 = vld [vmem:[%s0 + $0x4] sm:$0xf]
    %v107 = vld [vmem:[%s0 + $0x8] sm:$0xf]
    %v108 = vld [vmem:[%s0 + $0xc] sm:$0xf]
    %v109 = vld [vmem:[%s0 + $0x10] sm:$0xf]
    %v110 = vld [vmem:[%s0 + $0x14] sm:$0xf]
    %v111 = vld [vmem:[%s0 + $0x18] sm:$0xf]
    %v112 = vld [vmem:[%s0 + $0x1c] sm:$0xf]
    %v113 = vld [vmem:[%s0 + $0x20] sm:$0xf]
    %v114 = vld [vmem:[%s0 + $0x24] sm:$0xf]
    %v115 = vld [vmem:[%s0 + $0x28] sm:$0xf]
    %v116 = vld [vmem:[%s0 + $0x2c] sm:$0xf]
    %v117 = vld [vmem:[%s0 + $0x30] sm:$0xf]
    %v118 = vld [vmem:[%s0 + $0x34] sm:$0xf]
    %v119 = vld [vmem:[%s0 + $0x38] sm:$0xf]
    %v120 = vld [vmem:[%s0 + $0x3c] sm:$0xf]
    %v121 = vld [vmem:[%s0 + $0x40] sm:$0xf]
    %v122 = vld [vmem:[%s0 + $0x44] sm:$0xf]
    %v123 = vld [vmem:[%s0 + $0x48] sm:$0xf]
    %v124 = vld [vmem:[%s0 + $0x4c] sm:$0xf]
    %v125 = vld [vmem:[%s0 + $0x50] sm:$0xf]
    %v126 = vld [vmem:[%s0 + $0x54] sm:$0xf]
    %v127 = vld [vmem:[%s0 + $0x58] sm:$0xf]
    %v128 = vld [vmem:[%s0 + $0x5c] sm:$0xf]
    %v129 = vld [vmem:[%s0 + $0x60] sm:$0xf]
    %v130 = vld [vmem:[%s0 + $0x64] sm:$0xf]
    %v131 = vld [vmem:[%s0 + $0x68] sm:$0xf]
    %v132 = vld [vmem:[%s0 + $0x6c] sm:$0xf]
    %v133 = vld [vmem:[%s0 + $0x70] sm:$0xf]
    %v134 = vld [vmem:[%s0 + $0x74] sm:$0xf]
    %v135 = vld [vmem:[%s0 + $0x78] sm:$0xf]
    %v136 = vld [vmem:[%s0 + $0x7c] sm:$0xf]
    %v144 = vunpack.c.l.b16 %v105
    %v145 = vunpack.c.l.b16 %v106
    %v146 = vunpack.c.l.b16 %v107
    %v147 = vunpack.c.l.b16 %v108
    %v148 = vunpack.c.l.b16 %v109
    %v149 = vunpack.c.l.b16 %v110
    %v150 = vunpack.c.l.b16 %v111
    %v151 = vpack.c.b16 %v145, %v144
    %v152 = vpack.c.b16 %v147, %v146
    %v153 = vpack.c.b16 %v149, %v148
    %v154 = vpack.c.b16 %v150, %v150
    %v162 = vunpack.c.l.b16 %v113
    %v163 = vunpack.c.l.b16 %v114
    %v164 = vunpack.c.l.b16 %v115
    %v165 = vunpack.c.l.b16 %v116
    %v166 = vunpack.c.l.b16 %v117
    %v167 = vunpack.c.l.b16 %v118
    %v168 = vunpack.c.l.b16 %v119
    %v169 = vpack.c.b16 %v163, %v162
    %v170 = vpack.c.b16 %v165, %v164
    %v171 = vpack.c.b16 %v167, %v166
    %v172 = vpack.c.b16 %v168, %v168
    %173 = vrot.lane.b32.xlu0 %v169, 32
    %v174 = vpop.permute.xlu0 %173
    %175 = vrot.lane.b32.xlu0 %v170, 32
    %v176 = vpop.permute.xlu0 %175
    %177 = vrot.lane.b32.xlu0 %v171, 32
    %v178 = vpop.permute.xlu0 %177
    %179 = vrot.lane.b32.xlu0 %v172, 32
    %v180 = vpop.permute.xlu0 %179
    %v188 = vunpack.c.l.b16 %v121
    %v189 = vunpack.c.l.b16 %v122
    %v190 = vunpack.c.l.b16 %v123
    %v191 = vunpack.c.l.b16 %v124
    %v192 = vunpack.c.l.b16 %v125
    %v193 = vunpack.c.l.b16 %v126
    %v194 = vunpack.c.l.b16 %v127
    %v195 = vpack.c.b16 %v189, %v188
    %v196 = vpack.c.b16 %v191, %v190
    %v197 = vpack.c.b16 %v193, %v192
    %v198 = vpack.c.b16 %v194, %v194
    %199 = vrot.lane.b32.xlu0 %v195, 64
    %v200 = vpop.permute.xlu0 %199
    %201 = vrot.lane.b32.xlu0 %v196, 64
    %v202 = vpop.permute.xlu0 %201
    %203 = vrot.lane.b32.xlu0 %v197, 64
    %v204 = vpop.permute.xlu0 %203
    %205 = vrot.lane.b32.xlu0 %v198, 64
    %v206 = vpop.permute.xlu0 %205
    %v214 = vunpack.c.l.b16 %v129
    %v215 = vunpack.c.l.b16 %v130
    %v216 = vunpack.c.l.b16 %v131
    %v217 = vunpack.c.l.b16 %v132
    %v218 = vunpack.c.l.b16 %v133
    %v219 = vunpack.c.l.b16 %v134
    %v220 = vunpack.c.l.b16 %v135
    %v221 = vpack.c.b16 %v215, %v214
    %v222 = vpack.c.b16 %v217, %v216
    %v223 = vpack.c.b16 %v219, %v218
    %v224 = vpack.c.b16 %v220, %v220
    %225 = vrot.lane.b32.xlu0 %v221, 96
    %v226 = vpop.permute.xlu0 %225
    %227 = vrot.lane.b32.xlu0 %v222, 96
    %v228 = vpop.permute.xlu0 %227
    %229 = vrot.lane.b32.xlu0 %v223, 96
    %v230 = vpop.permute.xlu0 %229
    %231 = vrot.lane.b32.xlu0 %v224, 96
    %v232 = vpop.permute.xlu0 %231
    %v234 = vunpack.c.l.b16 %v112
    %v235 = vpack.c.b16 %v146, %v145
    %v236 = vpack.c.b16 %v148, %v147
    %v237 = vpack.c.b16 %v150, %v149
    %v238 = vpack.c.b16 %v234, %v234
    %v240 = vunpack.c.l.b16 %v120
    %v241 = vpack.c.b16 %v164, %v163
    %v242 = vpack.c.b16 %v166, %v165
    %v243 = vpack.c.b16 %v168, %v167
    %v244 = vpack.c.b16 %v240, %v240
    %245 = vrot.lane.b32.xlu0 %v241, 32
    %v246 = vpop.permute.xlu0 %245
    %247 = vrot.lane.b32.xlu0 %v242, 32
    %v248 = vpop.permute.xlu0 %247
    %249 = vrot.lane.b32.xlu0 %v243, 32
    %v250 = vpop.permute.xlu0 %249
    %251 = vrot.lane.b32.xlu0 %v244, 32
    %v252 = vpop.permute.xlu0 %251
    %vm253 = vcmask 261120
    %v256 = vsel %vm253, %v151, %v174
    %v259 = vsel %vm253, %v152, %v176
    %v262 = vsel %vm253, %v153, %v178
    %v265 = vsel %vm253, %v154, %v180
    %vm266 = vcmask 523264
    %v268 = vsel %vm266, %v256, %v200
    %v270 = vsel %vm266, %v259, %v202
    %v272 = vsel %vm266, %v262, %v204
    %v274 = vsel %vm266, %v265, %v206
    %vm275 = vcmask 785408
    %v277 = vsel %vm275, %v268, %v226
    %v280 = vsel %vm275, %v270, %v228
    %v283 = vsel %vm275, %v272, %v230
    %v286 = vsel %vm275, %v274, %v232
    %v289 = vsel %vm253, %v235, %v246
    %v292 = vsel %vm253, %v236, %v248
    %v295 = vsel %vm253, %v237, %v250
    %v298 = vsel %vm253, %v238, %v252
    %299 = vrot.lane.b32.xlu0 %v221, 32
    %v300 = vpop.permute.xlu0 %299
    %301 = vrot.lane.b32.xlu0 %v222, 32
    %v302 = vpop.permute.xlu0 %301
    %303 = vrot.lane.b32.xlu0 %v223, 32
    %v304 = vpop.permute.xlu0 %303
    %305 = vrot.lane.b32.xlu0 %v224, 32
    %v306 = vpop.permute.xlu0 %305
    %307 = vrot.lane.b32.xlu0 %v235, 64
    %v308 = vpop.permute.xlu0 %307
    %309 = vrot.lane.b32.xlu0 %v236, 64
    %v310 = vpop.permute.xlu0 %309
    %311 = vrot.lane.b32.xlu0 %v237, 64
    %v312 = vpop.permute.xlu0 %311
    %313 = vrot.lane.b32.xlu0 %v238, 64
    %v314 = vpop.permute.xlu0 %313
    %315 = vrot.lane.b32.xlu0 %v241, 96
    %v316 = vpop.permute.xlu0 %315
    %317 = vrot.lane.b32.xlu0 %v242, 96
    %v318 = vpop.permute.xlu0 %317
    %319 = vrot.lane.b32.xlu0 %v243, 96
    %v320 = vpop.permute.xlu0 %319
    %321 = vrot.lane.b32.xlu0 %v244, 96
    %v322 = vpop.permute.xlu0 %321
    %v324 = vunpack.c.l.b16 %v128
    %v325 = vpack.c.b16 %v190, %v189
    %v326 = vpack.c.b16 %v192, %v191
    %v327 = vpack.c.b16 %v194, %v193
    %v328 = vpack.c.b16 %v324, %v324
    %v330 = vunpack.c.l.b16 %v136
    %v331 = vpack.c.b16 %v216, %v215
    %v332 = vpack.c.b16 %v218, %v217
    %v333 = vpack.c.b16 %v220, %v219
    %v334 = vpack.c.b16 %v330, %v330
    %335 = vrot.lane.b32.xlu0 %v331, 32
    %v336 = vpop.permute.xlu0 %335
    %337 = vrot.lane.b32.xlu0 %v332, 32
    %v338 = vpop.permute.xlu0 %337
    %339 = vrot.lane.b32.xlu0 %v333, 32
    %v340 = vpop.permute.xlu0 %339
    %341 = vrot.lane.b32.xlu0 %v334, 32
    %v342 = vpop.permute.xlu0 %341
    %v345 = vsel %vm253, %v195, %v300
    %v348 = vsel %vm253, %v196, %v302
    %v351 = vsel %vm253, %v197, %v304
    %v354 = vsel %vm253, %v198, %v306
    %v356 = vsel %vm266, %v345, %v308
    %v358 = vsel %vm266, %v348, %v310
    %v360 = vsel %vm266, %v351, %v312
    %v362 = vsel %vm266, %v354, %v314
    %v364 = vsel %vm275, %v356, %v316
    %v366 = vsel %vm275, %v358, %v318
    %v368 = vsel %vm275, %v360, %v320
    %v370 = vsel %vm275, %v362, %v322
    %v373 = vsel %vm253, %v325, %v336
    %v376 = vsel %vm253, %v326, %v338
    %v379 = vsel %vm253, %v327, %v340
    %v382 = vsel %vm253, %v328, %v342
    %vm391 = vcmask 1043456
    %v392 = vrot.slane %v364, 4
    %v393 = vrot.slane %v373, 4
    %v394 = vrot.slane %v366, 4
    %v395 = vsel %vm391, %v392, %v394
    %v396 = vrot.slane %v376, 4
    %v397 = vsel %vm391, %v393, %v396
    %v398 = vrot.slane %v368, 4
    %v399 = vsel %vm391, %v394, %v398
    %v400 = vrot.slane %v379, 4
    %v401 = vsel %vm391, %v396, %v400
    %v402 = vrot.slane %v370, 4
    %v403 = vsel %vm391, %v398, %v402
    %v404 = vrot.slane %v382, 4
    %v405 = vsel %vm391, %v400, %v404
    %vm409 = vcmask 1043456
    %v411 = vsel %vm409, %v286, %v392
    %v414 = vsel %vm409, %v298, %v393
    %v415 = vld [vmem:[#allocation2] sm:$0xff]
    %v416 = vld [vmem:[#allocation2 + $0x8] sm:$0xff]
    %v417 = vld [vmem:[#allocation2 + $0x10] sm:$0xff]
    %v418 = vld [vmem:[#allocation2 + $0x18] sm:$0xff]
    %v419 = vld [vmem:[#allocation2 + $0x20] sm:$0xff]
    %v420 = vld [vmem:[#allocation2 + $0x28] sm:$0xff]
    %v421 = vld [vmem:[#allocation2 + $0x30] sm:$0xff]
    %v422 = vld [vmem:[#allocation2 + $0x38] sm:$0xff]
    %v423 = vld [vmem:[#allocation2 + $0x40] sm:$0xff]
    %v424 = vld [vmem:[#allocation2 + $0x48] sm:$0xff]
    %v425 = vld [vmem:[#allocation2 + $0x50] sm:$0xff]
    %v426 = vld [vmem:[#allocation2 + $0x58] sm:$0xff]
    %v427 = vld [vmem:[#allocation2 + $0x60] sm:$0xff]
    %v428 = vld [vmem:[#allocation2 + $0x68] sm:$0xff]
    %v429 = vld [vmem:[#allocation2 + $0x70] sm:$0xff]
    %v430 = vld [vmem:[#allocation2 + $0x78] sm:$0xff]
    %v431 = vld [vmem:[#allocation2 + $0x80] sm:$0xff]
    %v432 = vld [vmem:[#allocation2 + $0x88] sm:$0xff]
    %v433 = vld [vmem:[#allocation2 + $0x90] sm:$0xff]
    %v434 = vld [vmem:[#allocation2 + $0x98] sm:$0xff]
    %v435 = vld [vmem:[#allocation2 + $0xa0] sm:$0xff]
    %v436 = vld [vmem:[#allocation2 + $0xa8] sm:$0xff]
    %v437 = vld [vmem:[#allocation2 + $0xb0] sm:$0xff]
    %v438 = vld [vmem:[#allocation2 + $0xb8] sm:$0xff]
    %v439 = vld [vmem:[#allocation2 + $0xc0] sm:$0xff]
    %v440 = vld [vmem:[#allocation2 + $0xc8] sm:$0xff]
    %v441 = vld [vmem:[#allocation2 + $0xd0] sm:$0xff]
    %v442 = vld [vmem:[#allocation2 + $0xd8] sm:$0xff]
    %v443 = vld [vmem:[#allocation2 + $0xe0] sm:$0xff]
    %v444 = vld [vmem:[#allocation2 + $0xe8] sm:$0xff]
    %v445 = vld [vmem:[#allocation2 + $0xf0] sm:$0xff]
    %v446 = vld [vmem:[#allocation2 + $0xf8] sm:$0xff]
    %v447 = vld [vmem:[#allocation2 + $0x100] sm:$0xff]
    %v448 = vld [vmem:[#allocation2 + $0x108] sm:$0xff]
    %v449 = vld [vmem:[#allocation2 + $0x110] sm:$0xff]
    %v450 = vld [vmem:[#allocation2 + $0x118] sm:$0xff]
    %v451 = vld [vmem:[#allocation2 + $0x120] sm:$0xff]
    %v452 = vld [vmem:[#allocation2 + $0x128] sm:$0xff]
    %v453 = vld [vmem:[#allocation2 + $0x130] sm:$0xff]
    %v454 = vld [vmem:[#allocation2 + $0x138] sm:$0xff]
    %v455 = vld [vmem:[#allocation2 + $0x140] sm:$0xff]
    %v456 = vld [vmem:[#allocation2 + $0x148] sm:$0xff]
    %v457 = vld [vmem:[#allocation2 + $0x150] sm:$0xff]
    %v458 = vld [vmem:[#allocation2 + $0x158] sm:$0xff]
    %v459 = vld [vmem:[#allocation2 + $0x160] sm:$0xff]
    %v460 = vld [vmem:[#allocation2 + $0x168] sm:$0xff]
    %v461 = vld [vmem:[#allocation2 + $0x170] sm:$0xff]
    %v462 = vld [vmem:[#allocation2 + $0x178] sm:$0xff]
    %v463 = vld [vmem:[#allocation2 + $0x180] sm:$0xff]
    %v464 = vld [vmem:[#allocation2 + $0x188] sm:$0xff]
    %v465 = vld [vmem:[#allocation2 + $0x190] sm:$0xff]
    %v466 = vld [vmem:[#allocation2 + $0x198] sm:$0xff]
    %v467 = vld [vmem:[#allocation2 + $0x1a0] sm:$0xff]
    %v468 = vld [vmem:[#allocation2 + $0x1a8] sm:$0xff]
    %v469 = vld [vmem:[#allocation2 + $0x1b0] sm:$0xff]
    %v470 = vld [vmem:[#allocation2 + $0x1b8] sm:$0xff]
    %v471 = vld [vmem:[#allocation2 + $0x1c0] sm:$0xff]
    %v472 = vld [vmem:[#allocation2 + $0x1c8] sm:$0xff]
    %v473 = vld [vmem:[#allocation2 + $0x1d0] sm:$0xff]
    %v474 = vld [vmem:[#allocation2 + $0x1d8] sm:$0xff]
    %v475 = vld [vmem:[#allocation2 + $0x1e0] sm:$0xff]
    %v476 = vld [vmem:[#allocation2 + $0x1e8] sm:$0xff]
    %v477 = vld [vmem:[#allocation2 + $0x1f0] sm:$0xff]
    %v478 = vld [vmem:[#allocation2 + $0x1f8] sm:$0xff]
    %v479 = vld [vmem:[#allocation2 + $0x200] sm:$0xff]
    %v480 = vld [vmem:[#allocation2 + $0x208] sm:$0xff]
    %v481 = vld [vmem:[#allocation2 + $0x210] sm:$0xff]
    %v482 = vld [vmem:[#allocation2 + $0x218] sm:$0xff]
    %v483 = vld [vmem:[#allocation2 + $0x220] sm:$0xff]
    %v484 = vld [vmem:[#allocation2 + $0x228] sm:$0xff]
    %v485 = vld [vmem:[#allocation2 + $0x230] sm:$0xff]
    %v486 = vld [vmem:[#allocation2 + $0x238] sm:$0xff]
    %v487 = vld [vmem:[#allocation2 + $0x240] sm:$0xff]
    %v488 = vld [vmem:[#allocation2 + $0x248] sm:$0xff]
    %v489 = vld [vmem:[#allocation2 + $0x250] sm:$0xff]
    %v490 = vld [vmem:[#allocation2 + $0x258] sm:$0xff]
    %v491 = vld [vmem:[#allocation2 + $0x260] sm:$0xff]
    %v492 = vld [vmem:[#allocation2 + $0x268] sm:$0xff]
    %v493 = vld [vmem:[#allocation2 + $0x270] sm:$0xff]
    %v494 = vld [vmem:[#allocation2 + $0x278] sm:$0xff]
    %v495 = vld [vmem:[#allocation2 + $0x280] sm:$0xff]
    %v496 = vld [vmem:[#allocation2 + $0x288] sm:$0xff]
    %v497 = vld [vmem:[#allocation2 + $0x290] sm:$0xff]
    %v498 = vld [vmem:[#allocation2 + $0x298] sm:$0xff]
    %v499 = vld [vmem:[#allocation2 + $0x2a0] sm:$0xff]
    %v500 = vld [vmem:[#allocation2 + $0x2a8] sm:$0xff]
    %v501 = vld [vmem:[#allocation2 + $0x2b0] sm:$0xff]
    %v502 = vld [vmem:[#allocation2 + $0x2b8] sm:$0xff]
    %v503 = vld [vmem:[#allocation2 + $0x2c0] sm:$0xff]
    %v504 = vld [vmem:[#allocation2 + $0x2c8] sm:$0xff]
    %v505 = vld [vmem:[#allocation2 + $0x2d0] sm:$0xff]
    %v506 = vld [vmem:[#allocation2 + $0x2d8] sm:$0xff]
    %v507 = vld [vmem:[#allocation2 + $0x2e0] sm:$0xff]
    %v508 = vld [vmem:[#allocation2 + $0x2e8] sm:$0xff]
    %v509 = vld [vmem:[#allocation2 + $0x2f0] sm:$0xff]
    %v510 = vld [vmem:[#allocation2 + $0x2f8] sm:$0xff]
    %v607 = vunpack.c.l.b16 %v415
    %v608 = vunpack.c.h.b16 %v415
    %v609 = vunpack.c.l.b16 %v416
    %v610 = vunpack.c.h.b16 %v416
    %v611 = vunpack.c.l.b16 %v417
    %v612 = vunpack.c.h.b16 %v417
    %v613 = vunpack.c.l.b16 %v418
    %v614 = vunpack.c.h.b16 %v418
    %v615 = vunpack.c.l.b16 %v419
    %v616 = vunpack.c.h.b16 %v419
    %v617 = vunpack.c.l.b16 %v420
    %v618 = vunpack.c.h.b16 %v420
    %v619 = vunpack.c.l.b16 %v421
    %v620 = vunpack.c.h.b16 %v421
    %v621 = vunpack.c.l.b16 %v422
    %v622 = vunpack.c.h.b16 %v422
    %v623 = vunpack.c.l.b16 %v423
    %v624 = vunpack.c.h.b16 %v423
    %v625 = vunpack.c.l.b16 %v424
    %v626 = vunpack.c.h.b16 %v424
    %v627 = vunpack.c.l.b16 %v425
    %v628 = vunpack.c.h.b16 %v425
    %v629 = vunpack.c.l.b16 %v426
    %v630 = vunpack.c.h.b16 %v426
    %v631 = vunpack.c.l.b16 %v427
    %v632 = vunpack.c.h.b16 %v427
    %v633 = vunpack.c.l.b16 %v428
    %v634 = vunpack.c.h.b16 %v428
    %v635 = vunpack.c.l.b16 %v429
    %v636 = vunpack.c.h.b16 %v429
    %v637 = vunpack.c.l.b16 %v430
    %v638 = vunpack.c.h.b16 %v430
    %v639 = vunpack.c.l.b16 %v431
    %v640 = vunpack.c.h.b16 %v431
    %v641 = vunpack.c.l.b16 %v432
    %v642 = vunpack.c.h.b16 %v432
    %v643 = vunpack.c.l.b16 %v433
    %v644 = vunpack.c.h.b16 %v433
    %v645 = vunpack.c.l.b16 %v434
    %v646 = vunpack.c.h.b16 %v434
    %v647 = vunpack.c.l.b16 %v435
    %v648 = vunpack.c.h.b16 %v435
    %v649 = vunpack.c.l.b16 %v436
    %v650 = vunpack.c.h.b16 %v436
    %v651 = vunpack.c.l.b16 %v437
    %v652 = vunpack.c.h.b16 %v437
    %v653 = vunpack.c.l.b16 %v438
    %v654 = vunpack.c.h.b16 %v438
    %v655 = vunpack.c.l.b16 %v439
    %v656 = vunpack.c.h.b16 %v439
    %v657 = vunpack.c.l.b16 %v440
    %v658 = vunpack.c.h.b16 %v440
    %v659 = vunpack.c.l.b16 %v441
    %v660 = vunpack.c.h.b16 %v441
    %v661 = vunpack.c.l.b16 %v442
    %v662 = vunpack.c.h.b16 %v442
    %v663 = vunpack.c.l.b16 %v443
    %v664 = vunpack.c.h.b16 %v443
    %v665 = vunpack.c.l.b16 %v444
    %v666 = vunpack.c.h.b16 %v444
    %v667 = vunpack.c.l.b16 %v445
    %v668 = vunpack.c.h.b16 %v445
    %v669 = vunpack.c.l.b16 %v446
    %v670 = vunpack.c.h.b16 %v446
    %v671 = vunpack.c.l.b16 %v447
    %v672 = vunpack.c.h.b16 %v447
    %v673 = vunpack.c.l.b16 %v448
    %v674 = vunpack.c.h.b16 %v448
    %v675 = vunpack.c.l.b16 %v449
    %v676 = vunpack.c.h.b16 %v449
    %v677 = vunpack.c.l.b16 %v450
    %v678 = vunpack.c.h.b16 %v450
    %v679 = vunpack.c.l.b16 %v451
    %v680 = vunpack.c.h.b16 %v451
    %v681 = vunpack.c.l.b16 %v452
    %v682 = vunpack.c.h.b16 %v452
    %v683 = vunpack.c.l.b16 %v453
    %v684 = vunpack.c.h.b16 %v453
    %v685 = vunpack.c.l.b16 %v454
    %v686 = vunpack.c.h.b16 %v454
    %v687 = vunpack.c.l.b16 %v455
    %v688 = vunpack.c.h.b16 %v455
    %v689 = vunpack.c.l.b16 %v456
    %v690 = vunpack.c.h.b16 %v456
    %v691 = vunpack.c.l.b16 %v457
    %v692 = vunpack.c.h.b16 %v457
    %v693 = vunpack.c.l.b16 %v458
    %v694 = vunpack.c.h.b16 %v458
    %v695 = vunpack.c.l.b16 %v459
    %v696 = vunpack.c.h.b16 %v459
    %v697 = vunpack.c.l.b16 %v460
    %v698 = vunpack.c.h.b16 %v460
    %v699 = vunpack.c.l.b16 %v461
    %v700 = vunpack.c.h.b16 %v461
    %v701 = vunpack.c.l.b16 %v462
    %v702 = vunpack.c.h.b16 %v462
    %v703 = vunpack.c.l.b16 %v463
    %v704 = vunpack.c.h.b16 %v463
    %v705 = vunpack.c.l.b16 %v464
    %v706 = vunpack.c.h.b16 %v464
    %v707 = vunpack.c.l.b16 %v465
    %v708 = vunpack.c.h.b16 %v465
    %v709 = vunpack.c.l.b16 %v466
    %v710 = vunpack.c.h.b16 %v466
    %v711 = vunpack.c.l.b16 %v467
    %v712 = vunpack.c.h.b16 %v467
    %v713 = vunpack.c.l.b16 %v468
    %v714 = vunpack.c.h.b16 %v468
    %v715 = vunpack.c.l.b16 %v469
    %v716 = vunpack.c.h.b16 %v469
    %v717 = vunpack.c.l.b16 %v470
    %v718 = vunpack.c.h.b16 %v470
    %v719 = vunpack.c.l.b16 %v471
    %v720 = vunpack.c.h.b16 %v471
    %v721 = vunpack.c.l.b16 %v472
    %v722 = vunpack.c.h.b16 %v472
    %v723 = vunpack.c.l.b16 %v473
    %v724 = vunpack.c.h.b16 %v473
    %v725 = vunpack.c.l.b16 %v474
    %v726 = vunpack.c.h.b16 %v474
    %v727 = vunpack.c.l.b16 %v475
    %v728 = vunpack.c.h.b16 %v475
    %v729 = vunpack.c.l.b16 %v476
    %v730 = vunpack.c.h.b16 %v476
    %v731 = vunpack.c.l.b16 %v477
    %v732 = vunpack.c.h.b16 %v477
    %v733 = vunpack.c.l.b16 %v478
    %v734 = vunpack.c.h.b16 %v478
    %v735 = vunpack.c.l.b16 %v479
    %v736 = vunpack.c.h.b16 %v479
    %v737 = vunpack.c.l.b16 %v480
    %v738 = vunpack.c.h.b16 %v480
    %v739 = vunpack.c.l.b16 %v481
    %v740 = vunpack.c.h.b16 %v481
    %v741 = vunpack.c.l.b16 %v482
    %v742 = vunpack.c.h.b16 %v482
    %v743 = vunpack.c.l.b16 %v483
    %v744 = vunpack.c.h.b16 %v483
    %v745 = vunpack.c.l.b16 %v484
    %v746 = vunpack.c.h.b16 %v484
    %v747 = vunpack.c.l.b16 %v485
    %v748 = vunpack.c.h.b16 %v485
    %v749 = vunpack.c.l.b16 %v486
    %v750 = vunpack.c.h.b16 %v486
    %v751 = vunpack.c.l.b16 %v487
    %v752 = vunpack.c.h.b16 %v487
    %v753 = vunpack.c.l.b16 %v488
    %v754 = vunpack.c.h.b16 %v488
    %v755 = vunpack.c.l.b16 %v489
    %v756 = vunpack.c.h.b16 %v489
    %v757 = vunpack.c.l.b16 %v490
    %v758 = vunpack.c.h.b16 %v490
    %v759 = vunpack.c.l.b16 %v491
    %v760 = vunpack.c.h.b16 %v491
    %v761 = vunpack.c.l.b16 %v492
    %v762 = vunpack.c.h.b16 %v492
    %v763 = vunpack.c.l.b16 %v493
    %v764 = vunpack.c.h.b16 %v493
    %v765 = vunpack.c.l.b16 %v494
    %v766 = vunpack.c.h.b16 %v494
    %v767 = vunpack.c.l.b16 %v495
    %v768 = vunpack.c.h.b16 %v495
    %v769 = vunpack.c.l.b16 %v496
    %v770 = vunpack.c.h.b16 %v496
    %v771 = vunpack.c.l.b16 %v497
    %v772 = vunpack.c.h.b16 %v497
    %v773 = vunpack.c.l.b16 %v498
    %v774 = vunpack.c.h.b16 %v498
    %v775 = vunpack.c.l.b16 %v499
    %v776 = vunpack.c.h.b16 %v499
    %v777 = vunpack.c.l.b16 %v500
    %v778 = vunpack.c.h.b16 %v500
    %v779 = vunpack.c.l.b16 %v501
    %v780 = vunpack.c.h.b16 %v501
    %v781 = vunpack.c.l.b16 %v502
    %v782 = vunpack.c.h.b16 %v502
    %v783 = vunpack.c.l.b16 %v503
    %v784 = vunpack.c.h.b16 %v503
    %v785 = vunpack.c.l.b16 %v504
    %v786 = vunpack.c.h.b16 %v504
    %v787 = vunpack.c.l.b16 %v505
    %v788 = vunpack.c.h.b16 %v505
    %v789 = vunpack.c.l.b16 %v506
    %v790 = vunpack.c.h.b16 %v506
    %v791 = vunpack.c.l.b16 %v507
    %v792 = vunpack.c.h.b16 %v507
    %v793 = vunpack.c.l.b16 %v508
    %v794 = vunpack.c.h.b16 %v508
    %v795 = vunpack.c.l.b16 %v509
    %v796 = vunpack.c.h.b16 %v509
    %v797 = vunpack.c.l.b16 %v510
    %v798 = vunpack.c.h.b16 %v510
    %v799 = vpack.c.b16 %v615, %v607
    %v800 = vpack.c.b16 %v616, %v608
    %v801 = vpack.c.b16 %v617, %v609
    %v802 = vpack.c.b16 %v618, %v610
    %v803 = vpack.c.b16 %v619, %v611
    %v804 = vpack.c.b16 %v620, %v612
    %v805 = vpack.c.b16 %v621, %v613
    %v806 = vpack.c.b16 %v622, %v614
    %v807 = vpack.c.b16 %v631, %v623
    %v808 = vpack.c.b16 %v632, %v624
    %v809 = vpack.c.b16 %v633, %v625
    %v810 = vpack.c.b16 %v634, %v626
    %v811 = vpack.c.b16 %v635, %v627
    %v812 = vpack.c.b16 %v636, %v628
    %v813 = vpack.c.b16 %v637, %v629
    %v814 = vpack.c.b16 %v638, %v630
    %v815 = vpack.c.b16 %v647, %v639
    %v816 = vpack.c.b16 %v648, %v640
    %v817 = vpack.c.b16 %v649, %v641
    %v818 = vpack.c.b16 %v650, %v642
    %v819 = vpack.c.b16 %v651, %v643
    %v820 = vpack.c.b16 %v652, %v644
    %v821 = vpack.c.b16 %v653, %v645
    %v822 = vpack.c.b16 %v654, %v646
    %v823 = vpack.c.b16 %v663, %v655
    %v824 = vpack.c.b16 %v664, %v656
    %v825 = vpack.c.b16 %v665, %v657
    %v826 = vpack.c.b16 %v666, %v658
    %v827 = vpack.c.b16 %v667, %v659
    %v828 = vpack.c.b16 %v668, %v660
    %v829 = vpack.c.b16 %v669, %v661
    %v830 = vpack.c.b16 %v670, %v662
    %v831 = vpack.c.b16 %v679, %v671
    %v832 = vpack.c.b16 %v680, %v672
    %v833 = vpack.c.b16 %v681, %v673
    %v834 = vpack.c.b16 %v682, %v674
    %v835 = vpack.c.b16 %v683, %v675
    %v836 = vpack.c.b16 %v684, %v676
    %v837 = vpack.c.b16 %v685, %v677
    %v838 = vpack.c.b16 %v686, %v678
    %v839 = vpack.c.b16 %v695, %v687
    %v840 = vpack.c.b16 %v696, %v688
    %v841 = vpack.c.b16 %v697, %v689
    %v842 = vpack.c.b16 %v698, %v690
    %v843 = vpack.c.b16 %v699, %v691
    %v844 = vpack.c.b16 %v700, %v692
    %v845 = vpack.c.b16 %v701, %v693
    %v846 = vpack.c.b16 %v702, %v694
    %v847 = vpack.c.b16 %v711, %v703
    %v848 = vpack.c.b16 %v712, %v704
    %v849 = vpack.c.b16 %v713, %v705
    %v850 = vpack.c.b16 %v714, %v706
    %v851 = vpack.c.b16 %v715, %v707
    %v852 = vpack.c.b16 %v716, %v708
    %v853 = vpack.c.b16 %v717, %v709
    %v854 = vpack.c.b16 %v718, %v710
    %v855 = vpack.c.b16 %v727, %v719
    %v856 = vpack.c.b16 %v728, %v720
    %v857 = vpack.c.b16 %v729, %v721
    %v858 = vpack.c.b16 %v730, %v722
    %v859 = vpack.c.b16 %v731, %v723
    %v860 = vpack.c.b16 %v732, %v724
    %v861 = vpack.c.b16 %v733, %v725
    %v862 = vpack.c.b16 %v734, %v726
    %v863 = vpack.c.b16 %v743, %v735
    %v864 = vpack.c.b16 %v744, %v736
    %v865 = vpack.c.b16 %v745, %v737
    %v866 = vpack.c.b16 %v746, %v738
    %v867 = vpack.c.b16 %v747, %v739
    %v868 = vpack.c.b16 %v748, %v740
    %v869 = vpack.c.b16 %v749, %v741
    %v870 = vpack.c.b16 %v750, %v742
    %v871 = vpack.c.b16 %v759, %v751
    %v872 = vpack.c.b16 %v760, %v752
    %v873 = vpack.c.b16 %v761, %v753
    %v874 = vpack.c.b16 %v762, %v754
    %v875 = vpack.c.b16 %v763, %v755
    %v876 = vpack.c.b16 %v764, %v756
    %v877 = vpack.c.b16 %v765, %v757
    %v878 = vpack.c.b16 %v766, %v758
    %v879 = vpack.c.b16 %v775, %v767
    %v880 = vpack.c.b16 %v776, %v768
    %v881 = vpack.c.b16 %v777, %v769
    %v882 = vpack.c.b16 %v778, %v770
    %v883 = vpack.c.b16 %v779, %v771
    %v884 = vpack.c.b16 %v780, %v772
    %v885 = vpack.c.b16 %v781, %v773
    %v886 = vpack.c.b16 %v782, %v774
    %v887 = vpack.c.b16 %v791, %v783
    %v888 = vpack.c.b16 %v792, %v784
    %v889 = vpack.c.b16 %v793, %v785
    %v890 = vpack.c.b16 %v794, %v786
    %v891 = vpack.c.b16 %v795, %v787
    %v892 = vpack.c.b16 %v796, %v788
    %v893 = vpack.c.b16 %v797, %v789
    %v894 = vpack.c.b16 %v798, %v790
    %v991 = vsel %vm266, %v289, 0
    %v993 = vsel %vm266, %v292, 0
    %v995 = vsel %vm266, %v295, 0
    %v997 = vsel %vm266, %v414, 0
    %v1000 = vsel %vm266, %v397, 0
    %v1003 = vsel %vm266, %v401, 0
    %v1006 = vsel %vm266, %v405, 0
    %1008 = vmatprep.subr.bf16.mxu0 %v800
    %1009 = vmatpush1.bf16.msra.mxu0 %v799
    %1010 = vmatprep.subr.bf16.mxu0 %v808
    %1011 = vmatpush1.bf16.msra.mxu0 %v807
    %1012 = vmatprep.subr.bf16.mxu0 %v816
    %1013 = vmatpush1.bf16.msra.mxu0 %v815
    %1014 = vmatprep.subr.bf16.mxu0 %v824
    %1015 = vmatpush1.bf16.msra.mxu0 %v823
    %1016 = vmatprep.subr.bf16.mxu0 %v832
    %1017 = vmatpush1.bf16.msra.mxu0 %v831
    %1018 = vmatprep.subr.bf16.mxu0 %v840
    %1019 = vmatpush1.bf16.msra.mxu0 %v839
    %1020 = vmatprep.subr.bf16.mxu0 %v848
    %1021 = vmatpush1.bf16.msra.mxu0 %v847
    %1022 = vmatprep.subr.bf16.mxu0 %v856
    %1023 = vmatpush1.bf16.msra.mxu0 %v855
    %1024 = vmatprep.subr.bf16.mxu0 %v864
    %1025 = vmatpush1.bf16.msra.mxu0 %v863
    %1026 = vmatprep.subr.bf16.mxu0 %v872
    %1027 = vmatpush1.bf16.msra.mxu0 %v871
    %1028 = vmatprep.subr.bf16.mxu0 %v880
    %1029 = vmatpush1.bf16.msra.mxu0 %v879
    %1030 = vmatprep.subr.bf16.mxu0 %v888
    %1031 = vmatpush1.bf16.msra.mxu0 %v887
    %1032 = vmatprep.subr.bf16.mxu0 0
    %1033 = vmatpush1.bf16.msra.mxu0 0
    %1034 = vmatprep.subr.bf16.mxu0 0
    %1035 = vmatpush1.bf16.msra.mxu0 0
    %1036 = vmatprep.subr.bf16.mxu0 0
    %1037 = vmatpush1.bf16.msra.mxu0 0
    %1038 = vmatprep.subr.bf16.mxu0 0
    %1039 = vmatpush1.bf16.msra.mxu0 0
    %1040 = vmatprep.mubr.bf16.mxu0 %v991
    %1041 = vmatmul.mubr.bf16.gmra.mrb[0].mxu0 %v277
    %v1042 = vpop.f32.mrb[0].mxu0
    %v1043 = vadd.f32 0.0, %v1042
    %v1044 = vpop.f32.mrb[0].mxu0
    %v1045 = vadd.f32 0.0, %v1044
    %v1046 = vpop.f32.mrb[0].mxu0
    %v1047 = vadd.f32 0.0, %v1046
    %v1048 = vpop.f32.mrb[0].mxu0
    %v1049 = vadd.f32 0.0, %v1048
    %1050 = vmatprep.mubr.bf16.mxu0 %v993
    %1051 = vmatmul.mubr.bf16.gmra.mrb[0].mxu0 %v280
    %v1052 = vpop.f32.mrb[0].mxu0
    %v1053 = vadd.f32 0.0, %v1052
    %v1054 = vpop.f32.mrb[0].mxu0
    %v1055 = vadd.f32 0.0, %v1054
    %v1056 = vpop.f32.mrb[0].mxu0
    %v1057 = vadd.f32 0.0, %v1056
    %v1058 = vpop.f32.mrb[0].mxu0
    %v1059 = vadd.f32 0.0, %v1058
    %1060 = vmatprep.mubr.bf16.mxu0 %v995
    %1061 = vmatmul.mubr.bf16.gmra.mrb[0].mxu0 %v283
    %v1062 = vpop.f32.mrb[0].mxu0
    %v1063 = vadd.f32 0.0, %v1062
    %v1064 = vpop.f32.mrb[0].mxu0
    %v1065 = vadd.f32 0.0, %v1064
    %v1066 = vpop.f32.mrb[0].mxu0
    %v1067 = vadd.f32 0.0, %v1066
    %v1068 = vpop.f32.mrb[0].mxu0
    %v1069 = vadd.f32 0.0, %v1068
    %1070 = vmatprep.mubr.bf16.mxu0 %v997
    %1071 = vmatmul.mubr.bf16.gmra.mrb[0].mxu0 %v411
    %v1072 = vpop.f32.mrb[0].mxu0
    %v1073 = vadd.f32 0.0, %v1072
    %v1074 = vpop.f32.mrb[0].mxu0
    %v1075 = vadd.f32 0.0, %v1074
    %v1076 = vpop.f32.mrb[0].mxu0
    %v1077 = vadd.f32 0.0, %v1076
    %v1078 = vpop.f32.mrb[0].mxu0
    %v1079 = vadd.f32 0.0, %v1078
    %1080 = vmatprep.mubr.bf16.mxu0 %v1000
    %1081 = vmatmul.mubr.bf16.gmra.mrb[0].mxu0 %v395
    %v1082 = vpop.f32.mrb[0].mxu0
    %v1083 = vadd.f32 0.0, %v1082
    %v1084 = vpop.f32.mrb[0].mxu0
    %v1085 = vadd.f32 0.0, %v1084
    %v1086 = vpop.f32.mrb[0].mxu0
    %v1087 = vadd.f32 0.0, %v1086
    %v1088 = vpop.f32.mrb[0].mxu0
    %v1089 = vadd.f32 0.0, %v1088
    %1090 = vmatprep.mubr.bf16.mxu0 %v1003
    %1091 = vmatmul.mubr.bf16.gmra.mrb[0].mxu0 %v399
    %v1092 = vpop.f32.mrb[0].mxu0
    %v1093 = vadd.f32 0.0, %v1092
    %v1094 = vpop.f32.mrb[0].mxu0
    %v1095 = vadd.f32 0.0, %v1094
    %v1096 = vpop.f32.mrb[0].mxu0
    %v1097 = vadd.f32 0.0, %v1096
    %v1098 = vpop.f32.mrb[0].mxu0
    %v1099 = vadd.f32 0.0, %v1098
    %1100 = vmatprep.mubr.bf16.mxu0 %v1006
    %1101 = vmatmul.mubr.bf16.gmra.mrb[0].mxu0 %v403
    %v1102 = vpop.f32.mrb[0].mxu0
    %v1103 = vadd.f32 0.0, %v1102
    %v1104 = vpop.f32.mrb[0].mxu0
    %v1105 = vadd.f32 0.0, %v1104
    %v1106 = vpop.f32.mrb[0].mxu0
    %v1107 = vadd.f32 0.0, %v1106
    %v1108 = vpop.f32.mrb[0].mxu0
    %v1109 = vadd.f32 0.0, %v1108
    %1110 = vdwg.mxu0
    %1111 = vmatprep.subr.bf16.mxu0 %v802
    %1112 = vmatpush1.bf16.msra.mxu0 %v801
    %1113 = vmatprep.subr.bf16.mxu0 %v810
    %1114 = vmatpush1.bf16.msra.mxu0 %v809
    %1115 = vmatprep.subr.bf16.mxu0 %v818
    %1116 = vmatpush1.bf16.msra.mxu0 %v817
    %1117 = vmatprep.subr.bf16.mxu0 %v826
    %1118 = vmatpush1.bf16.msra.mxu0 %v825
    %1119 = vmatprep.subr.bf16.mxu0 %v834
    %1120 = vmatpush1.bf16.msra.mxu0 %v833
    %1121 = vmatprep.subr.bf16.mxu0 %v842
    %1122 = vmatpush1.bf16.msra.mxu0 %v841
    %1123 = vmatprep.subr.bf16.mxu0 %v850
    %1124 = vmatpush1.bf16.msra.mxu0 %v849
    %1125 = vmatprep.subr.bf16.mxu0 %v858
    %1126 = vmatpush1.bf16.msra.mxu0 %v857
    %1127 = vmatprep.subr.bf16.mxu0 %v866
    %1128 = vmatpush1.bf16.msra.mxu0 %v865
    %1129 = vmatprep.subr.bf16.mxu0 %v874
    %1130 = vmatpush1.bf16.msra.mxu0 %v873
    %1131 = vmatprep.subr.bf16.mxu0 %v882
    %1132 = vmatpush1.bf16.msra.mxu0 %v881
    %1133 = vmatprep.subr.bf16.mxu0 %v890
    %1134 = vmatpush1.bf16.msra.mxu0 %v889
    %1135 = vmatprep.subr.bf16.mxu0 0
    %1136 = vmatpush1.bf16.msra.mxu0 0
    %1137 = vmatprep.subr.bf16.mxu0 0
    %1138 = vmatpush1.bf16.msra.mxu0 0
    %1139 = vmatprep.subr.bf16.mxu0 0
    %1140 = vmatpush1.bf16.msra.mxu0 0
    %1141 = vmatprep.subr.bf16.mxu0 0
    %1142 = vmatpush1.bf16.msra.mxu0 0
    %1143 = vmatprep.mubr.bf16.mxu0 %v991
    %1144 = vmatmul.mubr.bf16.gmra.mrb[0].mxu0 %v277
    %v1145 = vpop.f32.mrb[0].mxu0
    %v1146 = vadd.f32 0.0, %v1145
    %v1147 = vpop.f32.mrb[0].mxu0
    %v1148 = vadd.f32 0.0, %v1147
    %v1149 = vpop.f32.mrb[0].mxu0
    %v1150 = vadd.f32 0.0, %v1149
    %v1151 = vpop.f32.mrb[0].mxu0
    %v1152 = vadd.f32 0.0, %v1151
    %1153 = vmatprep.mubr.bf16.mxu0 %v993
    %1154 = vmatmul.mubr.bf16.gmra.mrb[0].mxu0 %v280
    %v1155 = vpop.f32.mrb[0].mxu0
    %v1156 = vadd.f32 0.0, %v1155
    %v1157 = vpop.f32.mrb[0].mxu0
    %v1158 = vadd.f32 0.0, %v1157
    %v1159 = vpop.f32.mrb[0].mxu0
    %v1160 = vadd.f32 0.0, %v1159
    %v1161 = vpop.f32.mrb[0].mxu0
    %v1162 = vadd.f32 0.0, %v1161
    %1163 = vmatprep.mubr.bf16.mxu0 %v995
    %1164 = vmatmul.mubr.bf16.gmra.mrb[0].mxu0 %v283
    %v1165 = vpop.f32.mrb[0].mxu0
    %v1166 = vadd.f32 0.0, %v1165
    %v1167 = vpop.f32.mrb[0].mxu0
    %v1168 = vadd.f32 0.0, %v1167
    %v1169 = vpop.f32.mrb[0].mxu0
    %v1170 = vadd.f32 0.0, %v1169
    %v1171 = vpop.f32.mrb[0].mxu0
    %v1172 = vadd.f32 0.0, %v1171
    %1173 = vmatprep.mubr.bf16.mxu0 %v997
    %1174 = vmatmul.mubr.bf16.gmra.mrb[0].mxu0 %v411
    %v1175 = vpop.f32.mrb[0].mxu0
    %v1176 = vadd.f32 0.0, %v1175
    %v1177 = vpop.f32.mrb[0].mxu0
    %v1178 = vadd.f32 0.0, %v1177
    %v1179 = vpop.f32.mrb[0].mxu0
    %v1180 = vadd.f32 0.0, %v1179
    %v1181 = vpop.f32.mrb[0].mxu0
    %v1182 = vadd.f32 0.0, %v1181
    %1183 = vmatprep.mubr.bf16.mxu0 %v1000
    %1184 = vmatmul.mubr.bf16.gmra.mrb[0].mxu0 %v395
    %v1185 = vpop.f32.mrb[0].mxu0
    %v1186 = vadd.f32 0.0, %v1185
    %v1187 = vpop.f32.mrb[0].mxu0
    %v1188 = vadd.f32 0.0, %v1187
    %v1189 = vpop.f32.mrb[0].mxu0
    %v1190 = vadd.f32 0.0, %v1189
    %v1191 = vpop.f32.mrb[0].mxu0
    %v1192 = vadd.f32 0.0, %v1191
    %1193 = vmatprep.mubr.bf16.mxu0 %v1003
    %1194 = vmatmul.mubr.bf16.gmra.mrb[0].mxu0 %v399
    %v1195 = vpop.f32.mrb[0].mxu0
    %v1196 = vadd.f32 0.0, %v1195
    %v1197 = vpop.f32.mrb[0].mxu0
    %v1198 = vadd.f32 0.0, %v1197
    %v1199 = vpop.f32.mrb[0].mxu0
    %v1200 = vadd.f32 0.0, %v1199
    %v1201 = vpop.f32.mrb[0].mxu0
    %v1202 = vadd.f32 0.0, %v1201
    %1203 = vmatprep.mubr.bf16.mxu0 %v1006
    %1204 = vmatmul.mubr.bf16.gmra.mrb[0].mxu0 %v403
    %v1205 = vpop.f32.mrb[0].mxu0
    %v1206 = vadd.f32 0.0, %v1205
    %v1207 = vpop.f32.mrb[0].mxu0
    %v1208 = vadd.f32 0.0, %v1207
    %v1209 = vpop.f32.mrb[0].mxu0
    %v1210 = vadd.f32 0.0, %v1209
    %v1211 = vpop.f32.mrb[0].mxu0
    %v1212 = vadd.f32 0.0, %v1211
    %1213 = vdwg.mxu0
    %1214 = vmatprep.subr.bf16.mxu0 %v804
    %1215 = vmatpush1.bf16.msra.mxu0 %v803
    %1216 = vmatprep.subr.bf16.mxu0 %v812
    %1217 = vmatpush1.bf16.msra.mxu0 %v811
    %1218 = vmatprep.subr.bf16.mxu0 %v820
    %1219 = vmatpush1.bf16.msra.mxu0 %v819
    %1220 = vmatprep.subr.bf16.mxu0 %v828
    %1221 = vmatpush1.bf16.msra.mxu0 %v827
    %1222 = vmatprep.subr.bf16.mxu0 %v836
    %1223 = vmatpush1.bf16.msra.mxu0 %v835
    %1224 = vmatprep.subr.bf16.mxu0 %v844
    %1225 = vmatpush1.bf16.msra.mxu0 %v843
    %1226 = vmatprep.subr.bf16.mxu0 %v852
    %1227 = vmatpush1.bf16.msra.mxu0 %v851
    %1228 = vmatprep.subr.bf16.mxu0 %v860
    %1229 = vmatpush1.bf16.msra.mxu0 %v859
    %1230 = vmatprep.subr.bf16.mxu0 %v868
    %1231 = vmatpush1.bf16.msra.mxu0 %v867
    %1232 = vmatprep.subr.bf16.mxu0 %v876
    %1233 = vmatpush1.bf16.msra.mxu0 %v875
    %1234 = vmatprep.subr.bf16.mxu0 %v884
    %1235 = vmatpush1.bf16.msra.mxu0 %v883
    %1236 = vmatprep.subr.bf16.mxu0 %v892
    %1237 = vmatpush1.bf16.msra.mxu0 %v891
    %1238 = vmatprep.subr.bf16.mxu0 0
    %1239 = vmatpush1.bf16.msra.mxu0 0
    %1240 = vmatprep.subr.bf16.mxu0 0
    %1241 = vmatpush1.bf16.msra.mxu0 0
    %1242 = vmatprep.subr.bf16.mxu0 0
    %1243 = vmatpush1.bf16.msra.mxu0 0
    %1244 = vmatprep.subr.bf16.mxu0 0
    %1245 = vmatpush1.bf16.msra.mxu0 0
    %1246 = vmatprep.mubr.bf16.mxu0 %v991
    %1247 = vmatmul.mubr.bf16.gmra.mrb[0].mxu0 %v277
    %v1248 = vpop.f32.mrb[0].mxu0
    %v1249 = vadd.f32 0.0, %v1248
    %v1250 = vpop.f32.mrb[0].mxu0
    %v1251 = vadd.f32 0.0, %v1250
    %v1252 = vpop.f32.mrb[0].mxu0
    %v1253 = vadd.f32 0.0, %v1252
    %v1254 = vpop.f32.mrb[0].mxu0
    %v1255 = vadd.f32 0.0, %v1254
    %1256 = vmatprep.mubr.bf16.mxu0 %v993
    %1257 = vmatmul.mubr.bf16.gmra.mrb[0].mxu0 %v280
    %v1258 = vpop.f32.mrb[0].mxu0
    %v1259 = vadd.f32 0.0, %v1258
    %v1260 = vpop.f32.mrb[0].mxu0
    %v1261 = vadd.f32 0.0, %v1260
    %v1262 = vpop.f32.mrb[0].mxu0
    %v1263 = vadd.f32 0.0, %v1262
    %v1264 = vpop.f32.mrb[0].mxu0
    %v1265 = vadd.f32 0.0, %v1264
    %1266 = vmatprep.mubr.bf16.mxu0 %v995
    %1267 = vmatmul.mubr.bf16.gmra.mrb[0].mxu0 %v283
    %v1268 = vpop.f32.mrb[0].mxu0
    %v1269 = vadd.f32 0.0, %v1268
    %v1270 = vpop.f32.mrb[0].mxu0
    %v1271 = vadd.f32 0.0, %v1270
    %v1272 = vpop.f32.mrb[0].mxu0
    %v1273 = vadd.f32 0.0, %v1272
    %v1274 = vpop.f32.mrb[0].mxu0
    %v1275 = vadd.f32 0.0, %v1274
    %1276 = vmatprep.mubr.bf16.mxu0 %v997
    %1277 = vmatmul.mubr.bf16.gmra.mrb[0].mxu0 %v411
    %v1278 = vpop.f32.mrb[0].mxu0
    %v1279 = vadd.f32 0.0, %v1278
    %v1280 = vpop.f32.mrb[0].mxu0
    %v1281 = vadd.f32 0.0, %v1280
    %v1282 = vpop.f32.mrb[0].mxu0
    %v1283 = vadd.f32 0.0, %v1282
    %v1284 = vpop.f32.mrb[0].mxu0
    %v1285 = vadd.f32 0.0, %v1284
    %1286 = vmatprep.mubr.bf16.mxu0 %v1000
    %1287 = vmatmul.mubr.bf16.gmra.mrb[0].mxu0 %v395
    %v1288 = vpop.f32.mrb[0].mxu0
    %v1289 = vadd.f32 0.0, %v1288
    %v1290 = vpop.f32.mrb[0].mxu0
    %v1291 = vadd.f32 0.0, %v1290
    %v1292 = vpop.f32.mrb[0].mxu0
    %v1293 = vadd.f32 0.0, %v1292
    %v1294 = vpop.f32.mrb[0].mxu0
    %v1295 = vadd.f32 0.0, %v1294
    %1296 = vmatprep.mubr.bf16.mxu0 %v1003
    %1297 = vmatmul.mubr.bf16.gmra.mrb[0].mxu0 %v399
    %v1298 = vpop.f32.mrb[0].mxu0
    %v1299 = vadd.f32 0.0, %v1298
    %v1300 = vpop.f32.mrb[0].mxu0
    %v1301 = vadd.f32 0.0, %v1300
    %v1302 = vpop.f32.mrb[0].mxu0
    %v1303 = vadd.f32 0.0, %v1302
    %v1304 = vpop.f32.mrb[0].mxu0
    %v1305 = vadd.f32 0.0, %v1304
    %1306 = vmatprep.mubr.bf16.mxu0 %v1006
    %1307 = vmatmul.mubr.bf16.gmra.mrb[0].mxu0 %v403
    %v1308 = vpop.f32.mrb[0].mxu0
    %v1309 = vadd.f32 0.0, %v1308
    %v1310 = vpop.f32.mrb[0].mxu0
    %v1311 = vadd.f32 0.0, %v1310
    %v1312 = vpop.f32.mrb[0].mxu0
    %v1313 = vadd.f32 0.0, %v1312
    %v1314 = vpop.f32.mrb[0].mxu0
    %v1315 = vadd.f32 0.0, %v1314
    %1316 = vdwg.mxu0
    %1317 = vmatprep.subr.bf16.mxu0 %v806
    %1318 = vmatpush1.bf16.msra.mxu0 %v805
    %1319 = vmatprep.subr.bf16.mxu0 %v814
    %1320 = vmatpush1.bf16.msra.mxu0 %v813
    %1321 = vmatprep.subr.bf16.mxu0 %v822
    %1322 = vmatpush1.bf16.msra.mxu0 %v821
    %1323 = vmatprep.subr.bf16.mxu0 %v830
    %1324 = vmatpush1.bf16.msra.mxu0 %v829
    %1325 = vmatprep.subr.bf16.mxu0 %v838
    %1326 = vmatpush1.bf16.msra.mxu0 %v837
    %1327 = vmatprep.subr.bf16.mxu0 %v846
    %1328 = vmatpush1.bf16.msra.mxu0 %v845
    %1329 = vmatprep.subr.bf16.mxu0 %v854
    %1330 = vmatpush1.bf16.msra.mxu0 %v853
    %1331 = vmatprep.subr.bf16.mxu0 %v862
    %1332 = vmatpush1.bf16.msra.mxu0 %v861
    %1333 = vmatprep.subr.bf16.mxu0 %v870
    %1334 = vmatpush1.bf16.msra.mxu0 %v869
    %1335 = vmatprep.subr.bf16.mxu0 %v878
    %1336 = vmatpush1.bf16.msra.mxu0 %v877
    %1337 = vmatprep.subr.bf16.mxu0 %v886
    %1338 = vmatpush1.bf16.msra.mxu0 %v885
    %1339 = vmatprep.subr.bf16.mxu0 %v894
    %1340 = vmatpush1.bf16.msra.mxu0 %v893
    %1341 = vmatprep.subr.bf16.mxu0 0
    %1342 = vmatpush1.bf16.msra.mxu0 0
    %1343 = vmatprep.subr.bf16.mxu0 0
    %1344 = vmatpush1.bf16.msra.mxu0 0
    %1345 = vmatprep.subr.bf16.mxu0 0
    %1346 = vmatpush1.bf16.msra.mxu0 0
    %1347 = vmatprep.subr.bf16.mxu0 0
    %1348 = vmatpush1.bf16.msra.mxu0 0
    %1349 = vmatprep.mubr.bf16.mxu0 %v991
    %1350 = vmatmul.mubr.bf16.gmra.mrb[0].mxu0 %v277
    %v1351 = vpop.f32.mrb[0].mxu0
    %v1352 = vadd.f32 0.0, %v1351
    %v1353 = vpop.f32.mrb[0].mxu0
    %v1354 = vadd.f32 0.0, %v1353
    %v1355 = vpop.f32.mrb[0].mxu0
    %v1356 = vadd.f32 0.0, %v1355
    %v1357 = vpop.f32.mrb[0].mxu0
    %v1358 = vadd.f32 0.0, %v1357
    %1359 = vmatprep.mubr.bf16.mxu0 %v993
    %1360 = vmatmul.mubr.bf16.gmra.mrb[0].mxu0 %v280
    %v1361 = vpop.f32.mrb[0].mxu0
    %v1362 = vadd.f32 0.0, %v1361
    %v1363 = vpop.f32.mrb[0].mxu0
    %v1364 = vadd.f32 0.0, %v1363
    %v1365 = vpop.f32.mrb[0].mxu0
    %v1366 = vadd.f32 0.0, %v1365
    %v1367 = vpop.f32.mrb[0].mxu0
    %v1368 = vadd.f32 0.0, %v1367
    %1369 = vmatprep.mubr.bf16.mxu0 %v995
    %1370 = vmatmul.mubr.bf16.gmra.mrb[0].mxu0 %v283
    %v1371 = vpop.f32.mrb[0].mxu0
    %v1372 = vadd.f32 0.0, %v1371
    %v1373 = vpop.f32.mrb[0].mxu0
    %v1374 = vadd.f32 0.0, %v1373
    %v1375 = vpop.f32.mrb[0].mxu0
    %v1376 = vadd.f32 0.0, %v1375
    %v1377 = vpop.f32.mrb[0].mxu0
    %v1378 = vadd.f32 0.0, %v1377
    %1379 = vmatprep.mubr.bf16.mxu0 %v997
    %1380 = vmatmul.mubr.bf16.gmra.mrb[0].mxu0 %v411
    %v1381 = vpop.f32.mrb[0].mxu0
    %v1382 = vadd.f32 0.0, %v1381
    %v1383 = vpop.f32.mrb[0].mxu0
    %v1384 = vadd.f32 0.0, %v1383
    %v1385 = vpop.f32.mrb[0].mxu0
    %v1386 = vadd.f32 0.0, %v1385
    %v1387 = vpop.f32.mrb[0].mxu0
    %v1388 = vadd.f32 0.0, %v1387
    %1389 = vmatprep.mubr.bf16.mxu0 %v1000
    %1390 = vmatmul.mubr.bf16.gmra.mrb[0].mxu0 %v395
    %v1391 = vpop.f32.mrb[0].mxu0
    %v1392 = vadd.f32 0.0, %v1391
    %v1393 = vpop.f32.mrb[0].mxu0
    %v1394 = vadd.f32 0.0, %v1393
    %v1395 = vpop.f32.mrb[0].mxu0
    %v1396 = vadd.f32 0.0, %v1395
    %v1397 = vpop.f32.mrb[0].mxu0
    %v1398 = vadd.f32 0.0, %v1397
    %1399 = vmatprep.mubr.bf16.mxu0 %v1003
    %1400 = vmatmul.mubr.bf16.gmra.mrb[0].mxu0 %v399
    %v1401 = vpop.f32.mrb[0].mxu0
    %v1402 = vadd.f32 0.0, %v1401
    %v1403 = vpop.f32.mrb[0].mxu0
    %v1404 = vadd.f32 0.0, %v1403
    %v1405 = vpop.f32.mrb[0].mxu0
    %v1406 = vadd.f32 0.0, %v1405
    %v1407 = vpop.f32.mrb[0].mxu0
    %v1408 = vadd.f32 0.0, %v1407
    %1409 = vmatprep.mubr.bf16.mxu0 %v1006
    %1410 = vmatmul.mubr.bf16.gmra.mrb[0].mxu0 %v403
    %v1411 = vpop.f32.mrb[0].mxu0
    %v1412 = vadd.f32 0.0, %v1411
    %v1413 = vpop.f32.mrb[0].mxu0
    %v1414 = vadd.f32 0.0, %v1413
    %v1415 = vpop.f32.mrb[0].mxu0
    %v1416 = vadd.f32 0.0, %v1415
    %v1417 = vpop.f32.mrb[0].mxu0
    %v1418 = vadd.f32 0.0, %v1417
    %1419 = vdwg.mxu0
    %v1420 = vmax.f32 %v1043, %v1146
    %v1421 = vmax.f32 %v1045, %v1148
    %v1422 = vmax.f32 %v1047, %v1150
    %v1423 = vmax.f32 %v1049, %v1152
    %v1424 = vmax.f32 %v1053, %v1156
    %v1425 = vmax.f32 %v1055, %v1158
    %v1426 = vmax.f32 %v1057, %v1160
    %v1427 = vmax.f32 %v1059, %v1162
    %v1428 = vmax.f32 %v1063, %v1166
    %v1429 = vmax.f32 %v1065, %v1168
    %v1430 = vmax.f32 %v1067, %v1170
    %v1431 = vmax.f32 %v1069, %v1172
    %v1432 = vmax.f32 %v1073, %v1176
    %v1433 = vmax.f32 %v1075, %v1178
    %v1434 = vmax.f32 %v1077, %v1180
    %v1435 = vmax.f32 %v1079, %v1182
    %v1436 = vmax.f32 %v1083, %v1186
    %v1437 = vmax.f32 %v1085, %v1188
    %v1438 = vmax.f32 %v1087, %v1190
    %v1439 = vmax.f32 %v1089, %v1192
    %v1440 = vmax.f32 %v1093, %v1196
    %v1441 = vmax.f32 %v1095, %v1198
    %v1442 = vmax.f32 %v1097, %v1200
    %v1443 = vmax.f32 %v1099, %v1202
    %v1444 = vmax.f32 %v1103, %v1206
    %v1445 = vmax.f32 %v1105, %v1208
    %v1446 = vmax.f32 %v1107, %v1210
    %v1447 = vmax.f32 %v1109, %v1212
    %v1448 = vmax.f32 %v1249, %v1352
    %v1449 = vmax.f32 %v1251, %v1354
    %v1450 = vmax.f32 %v1253, %v1356
    %v1451 = vmax.f32 %v1255, %v1358
    %v1452 = vmax.f32 %v1259, %v1362
    %v1453 = vmax.f32 %v1261, %v1364
    %v1454 = vmax.f32 %v1263, %v1366
    %v1455 = vmax.f32 %v1265, %v1368
    %v1456 = vmax.f32 %v1269, %v1372
    %v1457 = vmax.f32 %v1271, %v1374
    %v1458 = vmax.f32 %v1273, %v1376
    %v1459 = vmax.f32 %v1275, %v1378
    %v1460 = vmax.f32 %v1279, %v1382
    %v1461 = vmax.f32 %v1281, %v1384
    %v1462 = vmax.f32 %v1283, %v1386
    %v1463 = vmax.f32 %v1285, %v1388
    %v1464 = vmax.f32 %v1289, %v1392
    %v1465 = vmax.f32 %v1291, %v1394
    %v1466 = vmax.f32 %v1293, %v1396
    %v1467 = vmax.f32 %v1295, %v1398
    %v1468 = vmax.f32 %v1299, %v1402
    %v1469 = vmax.f32 %v1301, %v1404
    %v1470 = vmax.f32 %v1303, %v1406
    %v1471 = vmax.f32 %v1305, %v1408
    %v1472 = vmax.f32 %v1309, %v1412
    %v1473 = vmax.f32 %v1311, %v1414
    %v1474 = vmax.f32 %v1313, %v1416
    %v1475 = vmax.f32 %v1315, %v1418
    %v1476 = vmax.f32 %v1420, %v1448
    %v1477 = vmax.f32 %v1421, %v1449
    %v1478 = vmax.f32 %v1422, %v1450
    %v1479 = vmax.f32 %v1423, %v1451
    %v1480 = vmax.f32 %v1424, %v1452
    %v1481 = vmax.f32 %v1425, %v1453
    %v1482 = vmax.f32 %v1426, %v1454
    %v1483 = vmax.f32 %v1427, %v1455
    %v1484 = vmax.f32 %v1428, %v1456
    %v1485 = vmax.f32 %v1429, %v1457
    %v1486 = vmax.f32 %v1430, %v1458
    %v1487 = vmax.f32 %v1431, %v1459
    %v1488 = vmax.f32 %v1432, %v1460
    %v1489 = vmax.f32 %v1433, %v1461
    %v1490 = vmax.f32 %v1434, %v1462
    %v1491 = vmax.f32 %v1435, %v1463
    %v1492 = vmax.f32 %v1436, %v1464
    %v1493 = vmax.f32 %v1437, %v1465
    %v1494 = vmax.f32 %v1438, %v1466
    %v1495 = vmax.f32 %v1439, %v1467
    %v1496 = vmax.f32 %v1440, %v1468
    %v1497 = vmax.f32 %v1441, %v1469
    %v1498 = vmax.f32 %v1442, %v1470
    %v1499 = vmax.f32 %v1443, %v1471
    %v1500 = vmax.f32 %v1444, %v1472
    %v1501 = vmax.f32 %v1445, %v1473
    %v1502 = vmax.f32 %v1446, %v1474
    %v1503 = vmax.f32 %v1447, %v1475
    %v1504 = vld [vmem:[#allocation4] sm:$0x3]
    %v1506 = vlaneseq
    %v1507 = vshrl.u32 %v1506, 7
    %v1508 = vsub.s32 0, %v1507
    %v1509 = vrot.slane %v1504, %v1508
    %v1510 = vlaneseq
    %v1511 = vshrl.u32 %v1510, 7
    %v1512 = vsub.s32 1, %v1511
    %v1513 = vrot.slane %v1504, %v1512
    %v1516 = vadd.f32 %v1476, %v1509
    %v1517 = vadd.f32 %v1477, %v1513
    %v1518 = vadd.f32 %v1478, %v1509
    %v1519 = vadd.f32 %v1479, %v1513
    %v1520 = vadd.f32 %v1480, %v1509
    %v1521 = vadd.f32 %v1481, %v1513
    %v1522 = vadd.f32 %v1482, %v1509
    %v1523 = vadd.f32 %v1483, %v1513
    %v1524 = vadd.f32 %v1484, %v1509
    %v1525 = vadd.f32 %v1485, %v1513
    %v1526 = vadd.f32 %v1486, %v1509
    %v1527 = vadd.f32 %v1487, %v1513
    %v1528 = vadd.f32 %v1488, %v1509
    %v1529 = vadd.f32 %v1489, %v1513
    %v1530 = vadd.f32 %v1490, %v1509
    %v1531 = vadd.f32 %v1491, %v1513
    %v1532 = vadd.f32 %v1492, %v1509
    %v1533 = vadd.f32 %v1493, %v1513
    %v1534 = vadd.f32 %v1494, %v1509
    %v1535 = vadd.f32 %v1495, %v1513
    %v1536 = vadd.f32 %v1496, %v1509
    %v1537 = vadd.f32 %v1497, %v1513
    %v1538 = vadd.f32 %v1498, %v1509
    %v1539 = vadd.f32 %v1499, %v1513
    %v1540 = vadd.f32 %v1500, %v1509
    %v1541 = vadd.f32 %v1501, %v1513
    %v1542 = vadd.f32 %v1502, %v1509
    %v1543 = vadd.f32 %v1503, %v1513
    %v1544 = vmax.f32 %v1516, 0.0
    %v1545 = vmax.f32 %v1517, 0.0
    %v1546 = vmax.f32 %v1518, 0.0
    %v1547 = vmax.f32 %v1519, 0.0
    %v1548 = vmax.f32 %v1520, 0.0
    %v1549 = vmax.f32 %v1521, 0.0
    %v1550 = vmax.f32 %v1522, 0.0
    %v1551 = vmax.f32 %v1523, 0.0
    %v1552 = vmax.f32 %v1524, 0.0
    %v1553 = vmax.f32 %v1525, 0.0
    %v1554 = vmax.f32 %v1526, 0.0
    %v1555 = vmax.f32 %v1527, 0.0
    %v1556 = vmax.f32 %v1528, 0.0
    %v1557 = vmax.f32 %v1529, 0.0
    %v1558 = vmax.f32 %v1530, 0.0
    %v1559 = vmax.f32 %v1531, 0.0
    %v1560 = vmax.f32 %v1532, 0.0
    %v1561 = vmax.f32 %v1533, 0.0
    %v1562 = vmax.f32 %v1534, 0.0
    %v1563 = vmax.f32 %v1535, 0.0
    %v1564 = vmax.f32 %v1536, 0.0
    %v1565 = vmax.f32 %v1537, 0.0
    %v1566 = vmax.f32 %v1538, 0.0
    %v1567 = vmax.f32 %v1539, 0.0
    %v1568 = vmax.f32 %v1540, 0.0
    %v1569 = vmax.f32 %v1541, 0.0
    %v1570 = vmax.f32 %v1542, 0.0
    %v1571 = vmax.f32 %v1543, 0.0
    %v1572 = vpack.c.bf16 %v1546, %v1544
    %v1573 = vpack.c.bf16 %v1547, %v1545
    %v1574 = vpack.c.bf16 %v1550, %v1548
    %v1575 = vpack.c.bf16 %v1551, %v1549
    %v1576 = vpack.c.bf16 %v1554, %v1552
    %v1577 = vpack.c.bf16 %v1555, %v1553
    %v1578 = vpack.c.bf16 %v1558, %v1556
    %v1579 = vpack.c.bf16 %v1559, %v1557
    %v1580 = vpack.c.bf16 %v1562, %v1560
    %v1581 = vpack.c.bf16 %v1563, %v1561
    %v1582 = vpack.c.bf16 %v1566, %v1564
    %v1583 = vpack.c.bf16 %v1567, %v1565
    %v1584 = vpack.c.bf16 %v1570, %v1568
    %v1585 = vpack.c.bf16 %v1571, %v1569
    %v1594 = vrot.slane %v1572, 4
    %v1595 = vrot.slane %v1573, 4
    %v1596 = vrot.slane %v1574, 4
    %v1597 = vsel %vm391, %v1594, %v1596
    %v1598 = vrot.slane %v1575, 4
    %v1599 = vsel %vm391, %v1595, %v1598
    %v1600 = vrot.slane %v1576, 4
    %v1601 = vsel %vm391, %v1596, %v1600
    %v1602 = vrot.slane %v1577, 4
    %v1603 = vsel %vm391, %v1598, %v1602
    %v1604 = vrot.slane %v1578, 4
    %v1605 = vsel %vm391, %v1600, %v1604
    %v1606 = vrot.slane %v1579, 4
    %v1607 = vsel %vm391, %v1602, %v1606
    %v1616 = vsel %vm409, 0, %v1594
    %v1619 = vsel %vm409, 0, %v1595
    %v1622 = vsel %vm409, 0, %v1578
    %v1625 = vsel %vm409, 0, %v1579
    %v1629 = vrot.slane %v1616, 4
    %v1630 = vrot.slane %v1597, 4
    %v1631 = vsel %vm391, %v1629, %v1630
    %v1632 = vrot.slane %v1619, 4
    %v1633 = vrot.slane %v1599, 4
    %v1634 = vsel %vm391, %v1632, %v1633
    %v1635 = vrot.slane %v1601, 4
    %v1636 = vsel %vm391, %v1630, %v1635
    %v1637 = vrot.slane %v1603, 4
    %v1638 = vsel %vm391, %v1633, %v1637
    %v1639 = vrot.slane %v1605, 4
    %v1640 = vsel %vm391, %v1635, %v1639
    %v1641 = vrot.slane %v1607, 4
    %v1642 = vsel %vm391, %v1637, %v1641
    %v1659 = vrot.slane %v1622, 4
    %v1660 = vrot.slane %v1580, 4
    %v1661 = vsel %vm391, %v1659, %v1660
    %v1662 = vrot.slane %v1625, 4
    %v1663 = vrot.slane %v1581, 4
    %v1664 = vsel %vm391, %v1662, %v1663
    %v1665 = vrot.slane %v1582, 4
    %v1666 = vsel %vm391, %v1660, %v1665
    %v1667 = vrot.slane %v1583, 4
    %v1668 = vsel %vm391, %v1663, %v1667
    %v1669 = vrot.slane %v1584, 4
    %v1670 = vsel %vm391, %v1665, %v1669
    %v1671 = vrot.slane %v1585, 4
    %v1672 = vsel %vm391, %v1667, %v1671
    %v1681 = vld [vmem:[#allocation6] sm:$0xff]
    %v1682 = vld [vmem:[#allocation6 + $0x8] sm:$0xff]
    %v1683 = vld [vmem:[#allocation6 + $0x10] sm:$0xff]
    %v1684 = vld [vmem:[#allocation6 + $0x18] sm:$0xff]
    %v1685 = vld [vmem:[#allocation6 + $0x20] sm:$0xff]
    %v1686 = vld [vmem:[#allocation6 + $0x28] sm:$0xff]
    %v1687 = vld [vmem:[#allocation6 + $0x30] sm:$0xff]
    %v1688 = vld [vmem:[#allocation6 + $0x38] sm:$0xff]
    %v1689 = vld [vmem:[#allocation6 + $0x40] sm:$0xff]
    %v1690 = vld [vmem:[#allocation6 + $0x48] sm:$0xff]
    %v1691 = vld [vmem:[#allocation6 + $0x50] sm:$0xff]
    %v1692 = vld [vmem:[#allocation6 + $0x58] sm:$0xff]
    %v1693 = vld [vmem:[#allocation6 + $0x60] sm:$0xff]
    %v1694 = vld [vmem:[#allocation6 + $0x68] sm:$0xff]
    %v1695 = vld [vmem:[#allocation6 + $0x70] sm:$0xff]
    %v1696 = vld [vmem:[#allocation6 + $0x78] sm:$0xff]
    %v1697 = vld [vmem:[#allocation6 + $0x80] sm:$0xff]
    %v1698 = vld [vmem:[#allocation6 + $0x88] sm:$0xff]
    %v1699 = vld [vmem:[#allocation6 + $0x90] sm:$0xff]
    %v1700 = vld [vmem:[#allocation6 + $0x98] sm:$0xff]
    %v1701 = vld [vmem:[#allocation6 + $0xa0] sm:$0xff]
    %v1702 = vld [vmem:[#allocation6 + $0xa8] sm:$0xff]
    %v1703 = vld [vmem:[#allocation6 + $0xb0] sm:$0xff]
    %v1704 = vld [vmem:[#allocation6 + $0xb8] sm:$0xff]
    %v1705 = vld [vmem:[#allocation6 + $0xc0] sm:$0xff]
    %v1706 = vld [vmem:[#allocation6 + $0xc8] sm:$0xff]
    %v1707 = vld [vmem:[#allocation6 + $0xd0] sm:$0xff]
    %v1708 = vld [vmem:[#allocation6 + $0xd8] sm:$0xff]
    %v1709 = vld [vmem:[#allocation6 + $0xe0] sm:$0xff]
    %v1710 = vld [vmem:[#allocation6 + $0xe8] sm:$0xff]
    %v1711 = vld [vmem:[#allocation6 + $0xf0] sm:$0xff]
    %v1712 = vld [vmem:[#allocation6 + $0xf8] sm:$0xff]
    %v1713 = vld [vmem:[#allocation6 + $0x100] sm:$0xff]
    %v1714 = vld [vmem:[#allocation6 + $0x108] sm:$0xff]
    %v1715 = vld [vmem:[#allocation6 + $0x110] sm:$0xff]
    %v1716 = vld [vmem:[#allocation6 + $0x118] sm:$0xff]
    %v1717 = vld [vmem:[#allocation6 + $0x120] sm:$0xff]
    %v1718 = vld [vmem:[#allocation6 + $0x128] sm:$0xff]
    %v1719 = vld [vmem:[#allocation6 + $0x130] sm:$0xff]
    %v1720 = vld [vmem:[#allocation6 + $0x138] sm:$0xff]
    %v1721 = vld [vmem:[#allocation6 + $0x140] sm:$0xff]
    %v1722 = vld [vmem:[#allocation6 + $0x148] sm:$0xff]
    %v1723 = vld [vmem:[#allocation6 + $0x150] sm:$0xff]
    %v1724 = vld [vmem:[#allocation6 + $0x158] sm:$0xff]
    %v1725 = vld [vmem:[#allocation6 + $0x160] sm:$0xff]
    %v1726 = vld [vmem:[#allocation6 + $0x168] sm:$0xff]
    %v1727 = vld [vmem:[#allocation6 + $0x170] sm:$0xff]
    %v1728 = vld [vmem:[#allocation6 + $0x178] sm:$0xff]
    %v1729 = vld [vmem:[#allocation6 + $0x180] sm:$0xff]
    %v1730 = vld [vmem:[#allocation6 + $0x188] sm:$0xff]
    %v1731 = vld [vmem:[#allocation6 + $0x190] sm:$0xff]
    %v1732 = vld [vmem:[#allocation6 + $0x198] sm:$0xff]
    %v1733 = vld [vmem:[#allocation6 + $0x1a0] sm:$0xff]
    %v1734 = vld [vmem:[#allocation6 + $0x1a8] sm:$0xff]
    %v1735 = vld [vmem:[#allocation6 + $0x1b0] sm:$0xff]
    %v1736 = vld [vmem:[#allocation6 + $0x1b8] sm:$0xff]
    %v1737 = vld [vmem:[#allocation6 + $0x1c0] sm:$0xff]
    %v1738 = vld [vmem:[#allocation6 + $0x1c8] sm:$0xff]
    %v1739 = vld [vmem:[#allocation6 + $0x1d0] sm:$0xff]
    %v1740 = vld [vmem:[#allocation6 + $0x1d8] sm:$0xff]
    %v1741 = vld [vmem:[#allocation6 + $0x1e0] sm:$0xff]
    %v1742 = vld [vmem:[#allocation6 + $0x1e8] sm:$0xff]
    %v1743 = vld [vmem:[#allocation6 + $0x1f0] sm:$0xff]
    %v1744 = vld [vmem:[#allocation6 + $0x1f8] sm:$0xff]
    %v1745 = vld [vmem:[#allocation6 + $0x200] sm:$0xff]
    %v1746 = vld [vmem:[#allocation6 + $0x208] sm:$0xff]
    %v1747 = vld [vmem:[#allocation6 + $0x210] sm:$0xff]
    %v1748 = vld [vmem:[#allocation6 + $0x218] sm:$0xff]
    %v1749 = vld [vmem:[#allocation6 + $0x220] sm:$0xff]
    %v1750 = vld [vmem:[#allocation6 + $0x228] sm:$0xff]
    %v1751 = vld [vmem:[#allocation6 + $0x230] sm:$0xff]
    %v1752 = vld [vmem:[#allocation6 + $0x238] sm:$0xff]
    %v1753 = vld [vmem:[#allocation6 + $0x240] sm:$0xff]
    %v1754 = vld [vmem:[#allocation6 + $0x248] sm:$0xff]
    %v1755 = vld [vmem:[#allocation6 + $0x250] sm:$0xff]
    %v1756 = vld [vmem:[#allocation6 + $0x258] sm:$0xff]
    %v1757 = vld [vmem:[#allocation6 + $0x260] sm:$0xff]
    %v1758 = vld [vmem:[#allocation6 + $0x268] sm:$0xff]
    %v1759 = vld [vmem:[#allocation6 + $0x270] sm:$0xff]
    %v1760 = vld [vmem:[#allocation6 + $0x278] sm:$0xff]
    %v1761 = vld [vmem:[#allocation6 + $0x280] sm:$0xff]
    %v1762 = vld [vmem:[#allocation6 + $0x288] sm:$0xff]
    %v1763 = vld [vmem:[#allocation6 + $0x290] sm:$0xff]
    %v1764 = vld [vmem:[#allocation6 + $0x298] sm:$0xff]
    %v1765 = vld [vmem:[#allocation6 + $0x2a0] sm:$0xff]
    %v1766 = vld [vmem:[#allocation6 + $0x2a8] sm:$0xff]
    %v1767 = vld [vmem:[#allocation6 + $0x2b0] sm:$0xff]
    %v1768 = vld [vmem:[#allocation6 + $0x2b8] sm:$0xff]
    %v1769 = vld [vmem:[#allocation6 + $0x2c0] sm:$0xff]
    %v1770 = vld [vmem:[#allocation6 + $0x2c8] sm:$0xff]
    %v1771 = vld [vmem:[#allocation6 + $0x2d0] sm:$0xff]
    %v1772 = vld [vmem:[#allocation6 + $0x2d8] sm:$0xff]
    %v1773 = vld [vmem:[#allocation6 + $0x2e0] sm:$0xff]
    %v1774 = vld [vmem:[#allocation6 + $0x2e8] sm:$0xff]
    %v1775 = vld [vmem:[#allocation6 + $0x2f0] sm:$0xff]
    %v1776 = vld [vmem:[#allocation6 + $0x2f8] sm:$0xff]
    %v1777 = vld [vmem:[#allocation6 + $0x300] sm:$0xff]
    %v1778 = vld [vmem:[#allocation6 + $0x308] sm:$0xff]
    %v1779 = vld [vmem:[#allocation6 + $0x310] sm:$0xff]
    %v1780 = vld [vmem:[#allocation6 + $0x318] sm:$0xff]
    %v1781 = vld [vmem:[#allocation6 + $0x320] sm:$0xff]
    %v1782 = vld [vmem:[#allocation6 + $0x328] sm:$0xff]
    %v1783 = vld [vmem:[#allocation6 + $0x330] sm:$0xff]
    %v1784 = vld [vmem:[#allocation6 + $0x338] sm:$0xff]
    %v1785 = vld [vmem:[#allocation6 + $0x340] sm:$0xff]
    %v1786 = vld [vmem:[#allocation6 + $0x348] sm:$0xff]
    %v1787 = vld [vmem:[#allocation6 + $0x350] sm:$0xff]
    %v1788 = vld [vmem:[#allocation6 + $0x358] sm:$0xff]
    %v1789 = vld [vmem:[#allocation6 + $0x360] sm:$0xff]
    %v1790 = vld [vmem:[#allocation6 + $0x368] sm:$0xff]
    %v1791 = vld [vmem:[#allocation6 + $0x370] sm:$0xff]
    %v1792 = vld [vmem:[#allocation6 + $0x378] sm:$0xff]
    %v1793 = vld [vmem:[#allocation6 + $0x380] sm:$0xff]
    %v1794 = vld [vmem:[#allocation6 + $0x388] sm:$0xff]
    %v1795 = vld [vmem:[#allocation6 + $0x390] sm:$0xff]
    %v1796 = vld [vmem:[#allocation6 + $0x398] sm:$0xff]
    %v1797 = vld [vmem:[#allocation6 + $0x3a0] sm:$0xff]
    %v1798 = vld [vmem:[#allocation6 + $0x3a8] sm:$0xff]
    %v1799 = vld [vmem:[#allocation6 + $0x3b0] sm:$0xff]
    %v1800 = vld [vmem:[#allocation6 + $0x3b8] sm:$0xff]
    %v1801 = vld [vmem:[#allocation6 + $0x3c0] sm:$0xff]
    %v1802 = vld [vmem:[#allocation6 + $0x3c8] sm:$0xff]
    %v1803 = vld [vmem:[#allocation6 + $0x3d0] sm:$0xff]
    %v1804 = vld [vmem:[#allocation6 + $0x3d8] sm:$0xff]
    %v1805 = vld [vmem:[#allocation6 + $0x3e0] sm:$0xff]
    %v1806 = vld [vmem:[#allocation6 + $0x3e8] sm:$0xff]
    %v1807 = vld [vmem:[#allocation6 + $0x3f0] sm:$0xff]
    %v1808 = vld [vmem:[#allocation6 + $0x3f8] sm:$0xff]
    %v1809 = vld [vmem:[#allocation6 + $0x400] sm:$0xff]
    %v1810 = vld [vmem:[#allocation6 + $0x408] sm:$0xff]
    %v1811 = vld [vmem:[#allocation6 + $0x410] sm:$0xff]
    %v1812 = vld [vmem:[#allocation6 + $0x418] sm:$0xff]
    %v1813 = vld [vmem:[#allocation6 + $0x420] sm:$0xff]
    %v1814 = vld [vmem:[#allocation6 + $0x428] sm:$0xff]
    %v1815 = vld [vmem:[#allocation6 + $0x430] sm:$0xff]
    %v1816 = vld [vmem:[#allocation6 + $0x438] sm:$0xff]
    %v1817 = vld [vmem:[#allocation6 + $0x440] sm:$0xff]
    %v1818 = vld [vmem:[#allocation6 + $0x448] sm:$0xff]
    %v1819 = vld [vmem:[#allocation6 + $0x450] sm:$0xff]
    %v1820 = vld [vmem:[#allocation6 + $0x458] sm:$0xff]
    %v1821 = vld [vmem:[#allocation6 + $0x460] sm:$0xff]
    %v1822 = vld [vmem:[#allocation6 + $0x468] sm:$0xff]
    %v1823 = vld [vmem:[#allocation6 + $0x470] sm:$0xff]
    %v1824 = vld [vmem:[#allocation6 + $0x478] sm:$0xff]
    %v1825 = vld [vmem:[#allocation6 + $0x480] sm:$0xff]
    %v1826 = vld [vmem:[#allocation6 + $0x488] sm:$0xff]
    %v1827 = vld [vmem:[#allocation6 + $0x490] sm:$0xff]
    %v1828 = vld [vmem:[#allocation6 + $0x498] sm:$0xff]
    %v1829 = vld [vmem:[#allocation6 + $0x4a0] sm:$0xff]
    %v1830 = vld [vmem:[#allocation6 + $0x4a8] sm:$0xff]
    %v1831 = vld [vmem:[#allocation6 + $0x4b0] sm:$0xff]
    %v1832 = vld [vmem:[#allocation6 + $0x4b8] sm:$0xff]
    %v1833 = vld [vmem:[#allocation6 + $0x4c0] sm:$0xff]
    %v1834 = vld [vmem:[#allocation6 + $0x4c8] sm:$0xff]
    %v1835 = vld [vmem:[#allocation6 + $0x4d0] sm:$0xff]
    %v1836 = vld [vmem:[#allocation6 + $0x4d8] sm:$0xff]
    %v1837 = vld [vmem:[#allocation6 + $0x4e0] sm:$0xff]
    %v1838 = vld [vmem:[#allocation6 + $0x4e8] sm:$0xff]
    %v1839 = vld [vmem:[#allocation6 + $0x4f0] sm:$0xff]
    %v1840 = vld [vmem:[#allocation6 + $0x4f8] sm:$0xff]
    %v1841 = vld [vmem:[#allocation6 + $0x500] sm:$0xff]
    %v1842 = vld [vmem:[#allocation6 + $0x508] sm:$0xff]
    %v1843 = vld [vmem:[#allocation6 + $0x510] sm:$0xff]
    %v1844 = vld [vmem:[#allocation6 + $0x518] sm:$0xff]
    %v1845 = vld [vmem:[#allocation6 + $0x520] sm:$0xff]
    %v1846 = vld [vmem:[#allocation6 + $0x528] sm:$0xff]
    %v1847 = vld [vmem:[#allocation6 + $0x530] sm:$0xff]
    %v1848 = vld [vmem:[#allocation6 + $0x538] sm:$0xff]
    %v1849 = vld [vmem:[#allocation6 + $0x540] sm:$0xff]
    %v1850 = vld [vmem:[#allocation6 + $0x548] sm:$0xff]
    %v1851 = vld [vmem:[#allocation6 + $0x550] sm:$0xff]
    %v1852 = vld [vmem:[#allocation6 + $0x558] sm:$0xff]
    %v1853 = vld [vmem:[#allocation6 + $0x560] sm:$0xff]
    %v1854 = vld [vmem:[#allocation6 + $0x568] sm:$0xff]
    %v1855 = vld [vmem:[#allocation6 + $0x570] sm:$0xff]
    %v1856 = vld [vmem:[#allocation6 + $0x578] sm:$0xff]
    %v1857 = vld [vmem:[#allocation6 + $0x580] sm:$0xff]
    %v1858 = vld [vmem:[#allocation6 + $0x588] sm:$0xff]
    %v1859 = vld [vmem:[#allocation6 + $0x590] sm:$0xff]
    %v1860 = vld [vmem:[#allocation6 + $0x598] sm:$0xff]
    %v1861 = vld [vmem:[#allocation6 + $0x5a0] sm:$0xff]
    %v1862 = vld [vmem:[#allocation6 + $0x5a8] sm:$0xff]
    %v1863 = vld [vmem:[#allocation6 + $0x5b0] sm:$0xff]
    %v1864 = vld [vmem:[#allocation6 + $0x5b8] sm:$0xff]
    %v1865 = vld [vmem:[#allocation6 + $0x5c0] sm:$0xff]
    %v1866 = vld [vmem:[#allocation6 + $0x5c8] sm:$0xff]
    %v1867 = vld [vmem:[#allocation6 + $0x5d0] sm:$0xff]
    %v1868 = vld [vmem:[#allocation6 + $0x5d8] sm:$0xff]
    %v1869 = vld [vmem:[#allocation6 + $0x5e0] sm:$0xff]
    %v1870 = vld [vmem:[#allocation6 + $0x5e8] sm:$0xff]
    %v1871 = vld [vmem:[#allocation6 + $0x5f0] sm:$0xff]
    %v1872 = vld [vmem:[#allocation6 + $0x5f8] sm:$0xff]
    %v1873 = vld [vmem:[#allocation6 + $0x600] sm:$0xff]
    %v1874 = vld [vmem:[#allocation6 + $0x608] sm:$0xff]
    %v1875 = vld [vmem:[#allocation6 + $0x610] sm:$0xff]
    %v1876 = vld [vmem:[#allocation6 + $0x618] sm:$0xff]
    %v1877 = vld [vmem:[#allocation6 + $0x620] sm:$0xff]
    %v1878 = vld [vmem:[#allocation6 + $0x628] sm:$0xff]
    %v1879 = vld [vmem:[#allocation6 + $0x630] sm:$0xff]
    %v1880 = vld [vmem:[#allocation6 + $0x638] sm:$0xff]
    %v1881 = vld [vmem:[#allocation6 + $0x640] sm:$0xff]
    %v1882 = vld [vmem:[#allocation6 + $0x648] sm:$0xff]
    %v1883 = vld [vmem:[#allocation6 + $0x650] sm:$0xff]
    %v1884 = vld [vmem:[#allocation6 + $0x658] sm:$0xff]
    %v1885 = vld [vmem:[#allocation6 + $0x660] sm:$0xff]
    %v1886 = vld [vmem:[#allocation6 + $0x668] sm:$0xff]
    %v1887 = vld [vmem:[#allocation6 + $0x670] sm:$0xff]
    %v1888 = vld [vmem:[#allocation6 + $0x678] sm:$0xff]
    %v1889 = vld [vmem:[#allocation6 + $0x680] sm:$0xff]
    %v1890 = vld [vmem:[#allocation6 + $0x688] sm:$0xff]
    %v1891 = vld [vmem:[#allocation6 + $0x690] sm:$0xff]
    %v1892 = vld [vmem:[#allocation6 + $0x698] sm:$0xff]
    %v1893 = vld [vmem:[#allocation6 + $0x6a0] sm:$0xff]
    %v1894 = vld [vmem:[#allocation6 + $0x6a8] sm:$0xff]
    %v1895 = vld [vmem:[#allocation6 + $0x6b0] sm:$0xff]
    %v1896 = vld [vmem:[#allocation6 + $0x6b8] sm:$0xff]
    %v1897 = vld [vmem:[#allocation6 + $0x6c0] sm:$0xff]
    %v1898 = vld [vmem:[#allocation6 + $0x6c8] sm:$0xff]
    %v1899 = vld [vmem:[#allocation6 + $0x6d0] sm:$0xff]
    %v1900 = vld [vmem:[#allocation6 + $0x6d8] sm:$0xff]
    %v1901 = vld [vmem:[#allocation6 + $0x6e0] sm:$0xff]
    %v1902 = vld [vmem:[#allocation6 + $0x6e8] sm:$0xff]
    %v1903 = vld [vmem:[#allocation6 + $0x6f0] sm:$0xff]
    %v1904 = vld [vmem:[#allocation6 + $0x6f8] sm:$0xff]
    %v1905 = vld [vmem:[#allocation6 + $0x700] sm:$0xff]
    %v1906 = vld [vmem:[#allocation6 + $0x708] sm:$0xff]
    %v1907 = vld [vmem:[#allocation6 + $0x710] sm:$0xff]
    %v1908 = vld [vmem:[#allocation6 + $0x718] sm:$0xff]
    %v1909 = vld [vmem:[#allocation6 + $0x720] sm:$0xff]
    %v1910 = vld [vmem:[#allocation6 + $0x728] sm:$0xff]
    %v1911 = vld [vmem:[#allocation6 + $0x730] sm:$0xff]
    %v1912 = vld [vmem:[#allocation6 + $0x738] sm:$0xff]
    %v1913 = vld [vmem:[#allocation6 + $0x740] sm:$0xff]
    %v1914 = vld [vmem:[#allocation6 + $0x748] sm:$0xff]
    %v1915 = vld [vmem:[#allocation6 + $0x750] sm:$0xff]
    %v1916 = vld [vmem:[#allocation6 + $0x758] sm:$0xff]
    %v1917 = vld [vmem:[#allocation6 + $0x760] sm:$0xff]
    %v1918 = vld [vmem:[#allocation6 + $0x768] sm:$0xff]
    %v1919 = vld [vmem:[#allocation6 + $0x770] sm:$0xff]
    %v1920 = vld [vmem:[#allocation6 + $0x778] sm:$0xff]
    %v1921 = vld [vmem:[#allocation6 + $0x780] sm:$0xff]
    %v1922 = vld [vmem:[#allocation6 + $0x788] sm:$0xff]
    %v1923 = vld [vmem:[#allocation6 + $0x790] sm:$0xff]
    %v1924 = vld [vmem:[#allocation6 + $0x798] sm:$0xff]
    %v1925 = vld [vmem:[#allocation6 + $0x7a0] sm:$0xff]
    %v1926 = vld [vmem:[#allocation6 + $0x7a8] sm:$0xff]
    %v1927 = vld [vmem:[#allocation6 + $0x7b0] sm:$0xff]
    %v1928 = vld [vmem:[#allocation6 + $0x7b8] sm:$0xff]
    %v1929 = vld [vmem:[#allocation6 + $0x7c0] sm:$0xff]
    %v1930 = vld [vmem:[#allocation6 + $0x7c8] sm:$0xff]
    %v1931 = vld [vmem:[#allocation6 + $0x7d0] sm:$0xff]
    %v1932 = vld [vmem:[#allocation6 + $0x7d8] sm:$0xff]
    %v1933 = vld [vmem:[#allocation6 + $0x7e0] sm:$0xff]
    %v1934 = vld [vmem:[#allocation6 + $0x7e8] sm:$0xff]
    %v1935 = vld [vmem:[#allocation6 + $0x7f0] sm:$0xff]
    %v1936 = vld [vmem:[#allocation6 + $0x7f8] sm:$0xff]
    %v1937 = vld [vmem:[#allocation6 + $0x800] sm:$0xff]
    %v1938 = vld [vmem:[#allocation6 + $0x808] sm:$0xff]
    %v1939 = vld [vmem:[#allocation6 + $0x810] sm:$0xff]
    %v1940 = vld [vmem:[#allocation6 + $0x818] sm:$0xff]
    %v1941 = vld [vmem:[#allocation6 + $0x820] sm:$0xff]
    %v1942 = vld [vmem:[#allocation6 + $0x828] sm:$0xff]
    %v1943 = vld [vmem:[#allocation6 + $0x830] sm:$0xff]
    %v1944 = vld [vmem:[#allocation6 + $0x838] sm:$0xff]
    %v1945 = vld [vmem:[#allocation6 + $0x840] sm:$0xff]
    %v1946 = vld [vmem:[#allocation6 + $0x848] sm:$0xff]
    %v1947 = vld [vmem:[#allocation6 + $0x850] sm:$0xff]
    %v1948 = vld [vmem:[#allocation6 + $0x858] sm:$0xff]
    %v1949 = vld [vmem:[#allocation6 + $0x860] sm:$0xff]
    %v1950 = vld [vmem:[#allocation6 + $0x868] sm:$0xff]
    %v1951 = vld [vmem:[#allocation6 + $0x870] sm:$0xff]
    %v1952 = vld [vmem:[#allocation6 + $0x878] sm:$0xff]
    %v1953 = vld [vmem:[#allocation6 + $0x880] sm:$0xff]
    %v1954 = vld [vmem:[#allocation6 + $0x888] sm:$0xff]
    %v1955 = vld [vmem:[#allocation6 + $0x890] sm:$0xff]
    %v1956 = vld [vmem:[#allocation6 + $0x898] sm:$0xff]
    %v1957 = vld [vmem:[#allocation6 + $0x8a0] sm:$0xff]
    %v1958 = vld [vmem:[#allocation6 + $0x8a8] sm:$0xff]
    %v1959 = vld [vmem:[#allocation6 + $0x8b0] sm:$0xff]
    %v1960 = vld [vmem:[#allocation6 + $0x8b8] sm:$0xff]
    %v1961 = vld [vmem:[#allocation6 + $0x8c0] sm:$0xff]
    %v1962 = vld [vmem:[#allocation6 + $0x8c8] sm:$0xff]
    %v1963 = vld [vmem:[#allocation6 + $0x8d0] sm:$0xff]
    %v1964 = vld [vmem:[#allocation6 + $0x8d8] sm:$0xff]
    %v1965 = vld [vmem:[#allocation6 + $0x8e0] sm:$0xff]
    %v1966 = vld [vmem:[#allocation6 + $0x8e8] sm:$0xff]
    %v1967 = vld [vmem:[#allocation6 + $0x8f0] sm:$0xff]
    %v1968 = vld [vmem:[#allocation6 + $0x8f8] sm:$0xff]
    %v1969 = vld [vmem:[#allocation6 + $0x900] sm:$0xff]
    %v1970 = vld [vmem:[#allocation6 + $0x908] sm:$0xff]
    %v1971 = vld [vmem:[#allocation6 + $0x910] sm:$0xff]
    %v1972 = vld [vmem:[#allocation6 + $0x918] sm:$0xff]
    %v1973 = vld [vmem:[#allocation6 + $0x920] sm:$0xff]
    %v1974 = vld [vmem:[#allocation6 + $0x928] sm:$0xff]
    %v1975 = vld [vmem:[#allocation6 + $0x930] sm:$0xff]
    %v1976 = vld [vmem:[#allocation6 + $0x938] sm:$0xff]
    %v1977 = vld [vmem:[#allocation6 + $0x940] sm:$0xff]
    %v1978 = vld [vmem:[#allocation6 + $0x948] sm:$0xff]
    %v1979 = vld [vmem:[#allocation6 + $0x950] sm:$0xff]
    %v1980 = vld [vmem:[#allocation6 + $0x958] sm:$0xff]
    %v1981 = vld [vmem:[#allocation6 + $0x960] sm:$0xff]
    %v1982 = vld [vmem:[#allocation6 + $0x968] sm:$0xff]
    %v1983 = vld [vmem:[#allocation6 + $0x970] sm:$0xff]
    %v1984 = vld [vmem:[#allocation6 + $0x978] sm:$0xff]
    %v1985 = vld [vmem:[#allocation6 + $0x980] sm:$0xff]
    %v1986 = vld [vmem:[#allocation6 + $0x988] sm:$0xff]
    %v1987 = vld [vmem:[#allocation6 + $0x990] sm:$0xff]
    %v1988 = vld [vmem:[#allocation6 + $0x998] sm:$0xff]
    %v1989 = vld [vmem:[#allocation6 + $0x9a0] sm:$0xff]
    %v1990 = vld [vmem:[#allocation6 + $0x9a8] sm:$0xff]
    %v1991 = vld [vmem:[#allocation6 + $0x9b0] sm:$0xff]
    %v1992 = vld [vmem:[#allocation6 + $0x9b8] sm:$0xff]
    %v1993 = vld [vmem:[#allocation6 + $0x9c0] sm:$0xff]
    %v1994 = vld [vmem:[#allocation6 + $0x9c8] sm:$0xff]
    %v1995 = vld [vmem:[#allocation6 + $0x9d0] sm:$0xff]
    %v1996 = vld [vmem:[#allocation6 + $0x9d8] sm:$0xff]
    %v1997 = vld [vmem:[#allocation6 + $0x9e0] sm:$0xff]
    %v1998 = vld [vmem:[#allocation6 + $0x9e8] sm:$0xff]
    %v1999 = vld [vmem:[#allocation6 + $0x9f0] sm:$0xff]
    %v2000 = vld [vmem:[#allocation6 + $0x9f8] sm:$0xff]
    %v2001 = vld [vmem:[#allocation6 + $0xa00] sm:$0xff]
    %v2002 = vld [vmem:[#allocation6 + $0xa08] sm:$0xff]
    %v2003 = vld [vmem:[#allocation6 + $0xa10] sm:$0xff]
    %v2004 = vld [vmem:[#allocation6 + $0xa18] sm:$0xff]
    %v2005 = vld [vmem:[#allocation6 + $0xa20] sm:$0xff]
    %v2006 = vld [vmem:[#allocation6 + $0xa28] sm:$0xff]
    %v2007 = vld [vmem:[#allocation6 + $0xa30] sm:$0xff]
    %v2008 = vld [vmem:[#allocation6 + $0xa38] sm:$0xff]
    %v2009 = vld [vmem:[#allocation6 + $0xa40] sm:$0xff]
    %v2010 = vld [vmem:[#allocation6 + $0xa48] sm:$0xff]
    %v2011 = vld [vmem:[#allocation6 + $0xa50] sm:$0xff]
    %v2012 = vld [vmem:[#allocation6 + $0xa58] sm:$0xff]
    %v2013 = vld [vmem:[#allocation6 + $0xa60] sm:$0xff]
    %v2014 = vld [vmem:[#allocation6 + $0xa68] sm:$0xff]
    %v2015 = vld [vmem:[#allocation6 + $0xa70] sm:$0xff]
    %v2016 = vld [vmem:[#allocation6 + $0xa78] sm:$0xff]
    %v2017 = vld [vmem:[#allocation6 + $0xa80] sm:$0xff]
    %v2018 = vld [vmem:[#allocation6 + $0xa88] sm:$0xff]
    %v2019 = vld [vmem:[#allocation6 + $0xa90] sm:$0xff]
    %v2020 = vld [vmem:[#allocation6 + $0xa98] sm:$0xff]
    %v2021 = vld [vmem:[#allocation6 + $0xaa0] sm:$0xff]
    %v2022 = vld [vmem:[#allocation6 + $0xaa8] sm:$0xff]
    %v2023 = vld [vmem:[#allocation6 + $0xab0] sm:$0xff]
    %v2024 = vld [vmem:[#allocation6 + $0xab8] sm:$0xff]
    %v2025 = vld [vmem:[#allocation6 + $0xac0] sm:$0xff]
    %v2026 = vld [vmem:[#allocation6 + $0xac8] sm:$0xff]
    %v2027 = vld [vmem:[#allocation6 + $0xad0] sm:$0xff]
    %v2028 = vld [vmem:[#allocation6 + $0xad8] sm:$0xff]
    %v2029 = vld [vmem:[#allocation6 + $0xae0] sm:$0xff]
    %v2030 = vld [vmem:[#allocation6 + $0xae8] sm:$0xff]
    %v2031 = vld [vmem:[#allocation6 + $0xaf0] sm:$0xff]
    %v2032 = vld [vmem:[#allocation6 + $0xaf8] sm:$0xff]
    %v2033 = vld [vmem:[#allocation6 + $0xb00] sm:$0xff]
    %v2034 = vld [vmem:[#allocation6 + $0xb08] sm:$0xff]
    %v2035 = vld [vmem:[#allocation6 + $0xb10] sm:$0xff]
    %v2036 = vld [vmem:[#allocation6 + $0xb18] sm:$0xff]
    %v2037 = vld [vmem:[#allocation6 + $0xb20] sm:$0xff]
    %v2038 = vld [vmem:[#allocation6 + $0xb28] sm:$0xff]
    %v2039 = vld [vmem:[#allocation6 + $0xb30] sm:$0xff]
    %v2040 = vld [vmem:[#allocation6 + $0xb38] sm:$0xff]
    %v2041 = vld [vmem:[#allocation6 + $0xb40] sm:$0xff]
    %v2042 = vld [vmem:[#allocation6 + $0xb48] sm:$0xff]
    %v2043 = vld [vmem:[#allocation6 + $0xb50] sm:$0xff]
    %v2044 = vld [vmem:[#allocation6 + $0xb58] sm:$0xff]
    %v2045 = vld [vmem:[#allocation6 + $0xb60] sm:$0xff]
    %v2046 = vld [vmem:[#allocation6 + $0xb68] sm:$0xff]
    %v2047 = vld [vmem:[#allocation6 + $0xb70] sm:$0xff]
    %v2048 = vld [vmem:[#allocation6 + $0xb78] sm:$0xff]
    %v2049 = vld [vmem:[#allocation6 + $0xb80] sm:$0xff]
    %v2050 = vld [vmem:[#allocation6 + $0xb88] sm:$0xff]
    %v2051 = vld [vmem:[#allocation6 + $0xb90] sm:$0xff]
    %v2052 = vld [vmem:[#allocation6 + $0xb98] sm:$0xff]
    %v2053 = vld [vmem:[#allocation6 + $0xba0] sm:$0xff]
    %v2054 = vld [vmem:[#allocation6 + $0xba8] sm:$0xff]
    %v2055 = vld [vmem:[#allocation6 + $0xbb0] sm:$0xff]
    %v2056 = vld [vmem:[#allocation6 + $0xbb8] sm:$0xff]
    %v2057 = vld [vmem:[#allocation6 + $0xbc0] sm:$0xff]
    %v2058 = vld [vmem:[#allocation6 + $0xbc8] sm:$0xff]
    %v2059 = vld [vmem:[#allocation6 + $0xbd0] sm:$0xff]
    %v2060 = vld [vmem:[#allocation6 + $0xbd8] sm:$0xff]
    %v2061 = vld [vmem:[#allocation6 + $0xbe0] sm:$0xff]
    %v2062 = vld [vmem:[#allocation6 + $0xbe8] sm:$0xff]
    %v2063 = vld [vmem:[#allocation6 + $0xbf0] sm:$0xff]
    %v2064 = vld [vmem:[#allocation6 + $0xbf8] sm:$0xff]
    %v2065 = vld [vmem:[#allocation6 + $0xc00] sm:$0xff]
    %v2066 = vld [vmem:[#allocation6 + $0xc08] sm:$0xff]
    %v2067 = vld [vmem:[#allocation6 + $0xc10] sm:$0xff]
    %v2068 = vld [vmem:[#allocation6 + $0xc18] sm:$0xff]
    %v2069 = vld [vmem:[#allocation6 + $0xc20] sm:$0xff]
    %v2070 = vld [vmem:[#allocation6 + $0xc28] sm:$0xff]
    %v2071 = vld [vmem:[#allocation6 + $0xc30] sm:$0xff]
    %v2072 = vld [vmem:[#allocation6 + $0xc38] sm:$0xff]
    %v2073 = vld [vmem:[#allocation6 + $0xc40] sm:$0xff]
    %v2074 = vld [vmem:[#allocation6 + $0xc48] sm:$0xff]
    %v2075 = vld [vmem:[#allocation6 + $0xc50] sm:$0xff]
    %v2076 = vld [vmem:[#allocation6 + $0xc58] sm:$0xff]
    %v2077 = vld [vmem:[#allocation6 + $0xc60] sm:$0xff]
    %v2078 = vld [vmem:[#allocation6 + $0xc68] sm:$0xff]
    %v2079 = vld [vmem:[#allocation6 + $0xc70] sm:$0xff]
    %v2080 = vld [vmem:[#allocation6 + $0xc78] sm:$0xff]
    %v2081 = vld [vmem:[#allocation6 + $0xc80] sm:$0xff]
    %v2082 = vld [vmem:[#allocation6 + $0xc88] sm:$0xff]
    %v2083 = vld [vmem:[#allocation6 + $0xc90] sm:$0xff]
    %v2084 = vld [vmem:[#allocation6 + $0xc98] sm:$0xff]
    %v2085 = vld [vmem:[#allocation6 + $0xca0] sm:$0xff]
    %v2086 = vld [vmem:[#allocation6 + $0xca8] sm:$0xff]
    %v2087 = vld [vmem:[#allocation6 + $0xcb0] sm:$0xff]
    %v2088 = vld [vmem:[#allocation6 + $0xcb8] sm:$0xff]
    %v2089 = vld [vmem:[#allocation6 + $0xcc0] sm:$0xff]
    %v2090 = vld [vmem:[#allocation6 + $0xcc8] sm:$0xff]
    %v2091 = vld [vmem:[#allocation6 + $0xcd0] sm:$0xff]
    %v2092 = vld [vmem:[#allocation6 + $0xcd8] sm:$0xff]
    %v2093 = vld [vmem:[#allocation6 + $0xce0] sm:$0xff]
    %v2094 = vld [vmem:[#allocation6 + $0xce8] sm:$0xff]
    %v2095 = vld [vmem:[#allocation6 + $0xcf0] sm:$0xff]
    %v2096 = vld [vmem:[#allocation6 + $0xcf8] sm:$0xff]
    %v2097 = vld [vmem:[#allocation6 + $0xd00] sm:$0xff]
    %v2098 = vld [vmem:[#allocation6 + $0xd08] sm:$0xff]
    %v2099 = vld [vmem:[#allocation6 + $0xd10] sm:$0xff]
    %v2100 = vld [vmem:[#allocation6 + $0xd18] sm:$0xff]
    %v2101 = vld [vmem:[#allocation6 + $0xd20] sm:$0xff]
    %v2102 = vld [vmem:[#allocation6 + $0xd28] sm:$0xff]
    %v2103 = vld [vmem:[#allocation6 + $0xd30] sm:$0xff]
    %v2104 = vld [vmem:[#allocation6 + $0xd38] sm:$0xff]
    %v2105 = vld [vmem:[#allocation6 + $0xd40] sm:$0xff]
    %v2106 = vld [vmem:[#allocation6 + $0xd48] sm:$0xff]
    %v2107 = vld [vmem:[#allocation6 + $0xd50] sm:$0xff]
    %v2108 = vld [vmem:[#allocation6 + $0xd58] sm:$0xff]
    %v2109 = vld [vmem:[#allocation6 + $0xd60] sm:$0xff]
    %v2110 = vld [vmem:[#allocation6 + $0xd68] sm:$0xff]
    %v2111 = vld [vmem:[#allocation6 + $0xd70] sm:$0xff]
    %v2112 = vld [vmem:[#allocation6 + $0xd78] sm:$0xff]
    %v2113 = vld [vmem:[#allocation6 + $0xd80] sm:$0xff]
    %v2114 = vld [vmem:[#allocation6 + $0xd88] sm:$0xff]
    %v2115 = vld [vmem:[#allocation6 + $0xd90] sm:$0xff]
    %v2116 = vld [vmem:[#allocation6 + $0xd98] sm:$0xff]
    %v2117 = vld [vmem:[#allocation6 + $0xda0] sm:$0xff]
    %v2118 = vld [vmem:[#allocation6 + $0xda8] sm:$0xff]
    %v2119 = vld [vmem:[#allocation6 + $0xdb0] sm:$0xff]
    %v2120 = vld [vmem:[#allocation6 + $0xdb8] sm:$0xff]
    %v2121 = vld [vmem:[#allocation6 + $0xdc0] sm:$0xff]
    %v2122 = vld [vmem:[#allocation6 + $0xdc8] sm:$0xff]
    %v2123 = vld [vmem:[#allocation6 + $0xdd0] sm:$0xff]
    %v2124 = vld [vmem:[#allocation6 + $0xdd8] sm:$0xff]
    %v2125 = vld [vmem:[#allocation6 + $0xde0] sm:$0xff]
    %v2126 = vld [vmem:[#allocation6 + $0xde8] sm:$0xff]
    %v2127 = vld [vmem:[#allocation6 + $0xdf0] sm:$0xff]
    %v2128 = vld [vmem:[#allocation6 + $0xdf8] sm:$0xff]
    %v2129 = vld [vmem:[#allocation6 + $0xe00] sm:$0xff]
    %v2130 = vld [vmem:[#allocation6 + $0xe08] sm:$0xff]
    %v2131 = vld [vmem:[#allocation6 + $0xe10] sm:$0xff]
    %v2132 = vld [vmem:[#allocation6 + $0xe18] sm:$0xff]
    %v2133 = vld [vmem:[#allocation6 + $0xe20] sm:$0xff]
    %v2134 = vld [vmem:[#allocation6 + $0xe28] sm:$0xff]
    %v2135 = vld [vmem:[#allocation6 + $0xe30] sm:$0xff]
    %v2136 = vld [vmem:[#allocation6 + $0xe38] sm:$0xff]
    %v2137 = vld [vmem:[#allocation6 + $0xe40] sm:$0xff]
    %v2138 = vld [vmem:[#allocation6 + $0xe48] sm:$0xff]
    %v2139 = vld [vmem:[#allocation6 + $0xe50] sm:$0xff]
    %v2140 = vld [vmem:[#allocation6 + $0xe58] sm:$0xff]
    %v2141 = vld [vmem:[#allocation6 + $0xe60] sm:$0xff]
    %v2142 = vld [vmem:[#allocation6 + $0xe68] sm:$0xff]
    %v2143 = vld [vmem:[#allocation6 + $0xe70] sm:$0xff]
    %v2144 = vld [vmem:[#allocation6 + $0xe78] sm:$0xff]
    %v2145 = vld [vmem:[#allocation6 + $0xe80] sm:$0xff]
    %v2146 = vld [vmem:[#allocation6 + $0xe88] sm:$0xff]
    %v2147 = vld [vmem:[#allocation6 + $0xe90] sm:$0xff]
    %v2148 = vld [vmem:[#allocation6 + $0xe98] sm:$0xff]
    %v2149 = vld [vmem:[#allocation6 + $0xea0] sm:$0xff]
    %v2150 = vld [vmem:[#allocation6 + $0xea8] sm:$0xff]
    %v2151 = vld [vmem:[#allocation6 + $0xeb0] sm:$0xff]
    %v2152 = vld [vmem:[#allocation6 + $0xeb8] sm:$0xff]
    %v2153 = vld [vmem:[#allocation6 + $0xec0] sm:$0xff]
    %v2154 = vld [vmem:[#allocation6 + $0xec8] sm:$0xff]
    %v2155 = vld [vmem:[#allocation6 + $0xed0] sm:$0xff]
    %v2156 = vld [vmem:[#allocation6 + $0xed8] sm:$0xff]
    %v2157 = vld [vmem:[#allocation6 + $0xee0] sm:$0xff]
    %v2158 = vld [vmem:[#allocation6 + $0xee8] sm:$0xff]
    %v2159 = vld [vmem:[#allocation6 + $0xef0] sm:$0xff]
    %v2160 = vld [vmem:[#allocation6 + $0xef8] sm:$0xff]
    %v2161 = vld [vmem:[#allocation6 + $0xf00] sm:$0xff]
    %v2162 = vld [vmem:[#allocation6 + $0xf08] sm:$0xff]
    %v2163 = vld [vmem:[#allocation6 + $0xf10] sm:$0xff]
    %v2164 = vld [vmem:[#allocation6 + $0xf18] sm:$0xff]
    %v2165 = vld [vmem:[#allocation6 + $0xf20] sm:$0xff]
    %v2166 = vld [vmem:[#allocation6 + $0xf28] sm:$0xff]
    %v2167 = vld [vmem:[#allocation6 + $0xf30] sm:$0xff]
    %v2168 = vld [vmem:[#allocation6 + $0xf38] sm:$0xff]
    %v2169 = vld [vmem:[#allocation6 + $0xf40] sm:$0xff]
    %v2170 = vld [vmem:[#allocation6 + $0xf48] sm:$0xff]
    %v2171 = vld [vmem:[#allocation6 + $0xf50] sm:$0xff]
    %v2172 = vld [vmem:[#allocation6 + $0xf58] sm:$0xff]
    %v2173 = vld [vmem:[#allocation6 + $0xf60] sm:$0xff]
    %v2174 = vld [vmem:[#allocation6 + $0xf68] sm:$0xff]
    %v2175 = vld [vmem:[#allocation6 + $0xf70] sm:$0xff]
    %v2176 = vld [vmem:[#allocation6 + $0xf78] sm:$0xff]
    %v2177 = vld [vmem:[#allocation6 + $0xf80] sm:$0xff]
    %v2178 = vld [vmem:[#allocation6 + $0xf88] sm:$0xff]
    %v2179 = vld [vmem:[#allocation6 + $0xf90] sm:$0xff]
    %v2180 = vld [vmem:[#allocation6 + $0xf98] sm:$0xff]
    %v2181 = vld [vmem:[#allocation6 + $0xfa0] sm:$0xff]
    %v2182 = vld [vmem:[#allocation6 + $0xfa8] sm:$0xff]
    %v2183 = vld [vmem:[#allocation6 + $0xfb0] sm:$0xff]
    %v2184 = vld [vmem:[#allocation6 + $0xfb8] sm:$0xff]
    %v2185 = vld [vmem:[#allocation6 + $0xfc0] sm:$0xff]
    %v2186 = vld [vmem:[#allocation6 + $0xfc8] sm:$0xff]
    %v2187 = vld [vmem:[#allocation6 + $0xfd0] sm:$0xff]
    %v2188 = vld [vmem:[#allocation6 + $0xfd8] sm:$0xff]
    %v2189 = vld [vmem:[#allocation6 + $0xfe0] sm:$0xff]
    %v2190 = vld [vmem:[#allocation6 + $0xfe8] sm:$0xff]
    %v2191 = vld [vmem:[#allocation6 + $0xff0] sm:$0xff]
    %v2192 = vld [vmem:[#allocation6 + $0xff8] sm:$0xff]
    %v2193 = vld [vmem:[#allocation6 + $0x1000] sm:$0xff]
    %v2194 = vld [vmem:[#allocation6 + $0x1008] sm:$0xff]
    %v2195 = vld [vmem:[#allocation6 + $0x1010] sm:$0xff]
    %v2196 = vld [vmem:[#allocation6 + $0x1018] sm:$0xff]
    %v2197 = vld [vmem:[#allocation6 + $0x1020] sm:$0xff]
    %v2198 = vld [vmem:[#allocation6 + $0x1028] sm:$0xff]
    %v2199 = vld [vmem:[#allocation6 + $0x1030] sm:$0xff]
    %v2200 = vld [vmem:[#allocation6 + $0x1038] sm:$0xff]
    %v2201 = vld [vmem:[#allocation6 + $0x1040] sm:$0xff]
    %v2202 = vld [vmem:[#allocation6 + $0x1048] sm:$0xff]
    %v2203 = vld [vmem:[#allocation6 + $0x1050] sm:$0xff]
    %v2204 = vld [vmem:[#allocation6 + $0x1058] sm:$0xff]
    %v2205 = vld [vmem:[#allocation6 + $0x1060] sm:$0xff]
    %v2206 = vld [vmem:[#allocation6 + $0x1068] sm:$0xff]
    %v2207 = vld [vmem:[#allocation6 + $0x1070] sm:$0xff]
    %v2208 = vld [vmem:[#allocation6 + $0x1078] sm:$0xff]
    %v2209 = vld [vmem:[#allocation6 + $0x1080] sm:$0xff]
    %v2210 = vld [vmem:[#allocation6 + $0x1088] sm:$0xff]
    %v2211 = vld [vmem:[#allocation6 + $0x1090] sm:$0xff]
    %v2212 = vld [vmem:[#allocation6 + $0x1098] sm:$0xff]
    %v2213 = vld [vmem:[#allocation6 + $0x10a0] sm:$0xff]
    %v2214 = vld [vmem:[#allocation6 + $0x10a8] sm:$0xff]
    %v2215 = vld [vmem:[#allocation6 + $0x10b0] sm:$0xff]
    %v2216 = vld [vmem:[#allocation6 + $0x10b8] sm:$0xff]
    %v2217 = vld [vmem:[#allocation6 + $0x10c0] sm:$0xff]
    %v2218 = vld [vmem:[#allocation6 + $0x10c8] sm:$0xff]
    %v2219 = vld [vmem:[#allocation6 + $0x10d0] sm:$0xff]
    %v2220 = vld [vmem:[#allocation6 + $0x10d8] sm:$0xff]
    %v2221 = vld [vmem:[#allocation6 + $0x10e0] sm:$0xff]
    %v2222 = vld [vmem:[#allocation6 + $0x10e8] sm:$0xff]
    %v2223 = vld [vmem:[#allocation6 + $0x10f0] sm:$0xff]
    %v2224 = vld [vmem:[#allocation6 + $0x10f8] sm:$0xff]
    %v2225 = vld [vmem:[#allocation6 + $0x1100] sm:$0xff]
    %v2226 = vld [vmem:[#allocation6 + $0x1108] sm:$0xff]
    %v2227 = vld [vmem:[#allocation6 + $0x1110] sm:$0xff]
    %v2228 = vld [vmem:[#allocation6 + $0x1118] sm:$0xff]
    %v2229 = vld [vmem:[#allocation6 + $0x1120] sm:$0xff]
    %v2230 = vld [vmem:[#allocation6 + $0x1128] sm:$0xff]
    %v2231 = vld [vmem:[#allocation6 + $0x1130] sm:$0xff]
    %v2232 = vld [vmem:[#allocation6 + $0x1138] sm:$0xff]
    %v2233 = vld [vmem:[#allocation6 + $0x1140] sm:$0xff]
    %v2234 = vld [vmem:[#allocation6 + $0x1148] sm:$0xff]
    %v2235 = vld [vmem:[#allocation6 + $0x1150] sm:$0xff]
    %v2236 = vld [vmem:[#allocation6 + $0x1158] sm:$0xff]
    %v2237 = vld [vmem:[#allocation6 + $0x1160] sm:$0xff]
    %v2238 = vld [vmem:[#allocation6 + $0x1168] sm:$0xff]
    %v2239 = vld [vmem:[#allocation6 + $0x1170] sm:$0xff]
    %v2240 = vld [vmem:[#allocation6 + $0x1178] sm:$0xff]
    %v2241 = vld [vmem:[#allocation6 + $0x1180] sm:$0xff]
    %v2242 = vld [vmem:[#allocation6 + $0x1188] sm:$0xff]
    %v2243 = vld [vmem:[#allocation6 + $0x1190] sm:$0xff]
    %v2244 = vld [vmem:[#allocation6 + $0x1198] sm:$0xff]
    %v2245 = vld [vmem:[#allocation6 + $0x11a0] sm:$0xff]
    %v2246 = vld [vmem:[#allocation6 + $0x11a8] sm:$0xff]
    %v2247 = vld [vmem:[#allocation6 + $0x11b0] sm:$0xff]
    %v2248 = vld [vmem:[#allocation6 + $0x11b8] sm:$0xff]
    %v2249 = vld [vmem:[#allocation6 + $0x11c0] sm:$0xff]
    %v2250 = vld [vmem:[#allocation6 + $0x11c8] sm:$0xff]
    %v2251 = vld [vmem:[#allocation6 + $0x11d0] sm:$0xff]
    %v2252 = vld [vmem:[#allocation6 + $0x11d8] sm:$0xff]
    %v2253 = vld [vmem:[#allocation6 + $0x11e0] sm:$0xff]
    %v2254 = vld [vmem:[#allocation6 + $0x11e8] sm:$0xff]
    %v2255 = vld [vmem:[#allocation6 + $0x11f0] sm:$0xff]
    %v2256 = vld [vmem:[#allocation6 + $0x11f8] sm:$0xff]
    %v2257 = vld [vmem:[#allocation6 + $0x1200] sm:$0xff]
    %v2258 = vld [vmem:[#allocation6 + $0x1208] sm:$0xff]
    %v2259 = vld [vmem:[#allocation6 + $0x1210] sm:$0xff]
    %v2260 = vld [vmem:[#allocation6 + $0x1218] sm:$0xff]
    %v2261 = vld [vmem:[#allocation6 + $0x1220] sm:$0xff]
    %v2262 = vld [vmem:[#allocation6 + $0x1228] sm:$0xff]
    %v2263 = vld [vmem:[#allocation6 + $0x1230] sm:$0xff]
    %v2264 = vld [vmem:[#allocation6 + $0x1238] sm:$0xff]
    %v2265 = vld [vmem:[#allocation6 + $0x1240] sm:$0xff]
    %v2266 = vld [vmem:[#allocation6 + $0x1248] sm:$0xff]
    %v2267 = vld [vmem:[#allocation6 + $0x1250] sm:$0xff]
    %v2268 = vld [vmem:[#allocation6 + $0x1258] sm:$0xff]
    %v2269 = vld [vmem:[#allocation6 + $0x1260] sm:$0xff]
    %v2270 = vld [vmem:[#allocation6 + $0x1268] sm:$0xff]
    %v2271 = vld [vmem:[#allocation6 + $0x1270] sm:$0xff]
    %v2272 = vld [vmem:[#allocation6 + $0x1278] sm:$0xff]
    %v2273 = vld [vmem:[#allocation6 + $0x1280] sm:$0xff]
    %v2274 = vld [vmem:[#allocation6 + $0x1288] sm:$0xff]
    %v2275 = vld [vmem:[#allocation6 + $0x1290] sm:$0xff]
    %v2276 = vld [vmem:[#allocation6 + $0x1298] sm:$0xff]
    %v2277 = vld [vmem:[#allocation6 + $0x12a0] sm:$0xff]
    %v2278 = vld [vmem:[#allocation6 + $0x12a8] sm:$0xff]
    %v2279 = vld [vmem:[#allocation6 + $0x12b0] sm:$0xff]
    %v2280 = vld [vmem:[#allocation6 + $0x12b8] sm:$0xff]
    %v2281 = vld [vmem:[#allocation6 + $0x12c0] sm:$0xff]
    %v2282 = vld [vmem:[#allocation6 + $0x12c8] sm:$0xff]
    %v2283 = vld [vmem:[#allocation6 + $0x12d0] sm:$0xff]
    %v2284 = vld [vmem:[#allocation6 + $0x12d8] sm:$0xff]
    %v2285 = vld [vmem:[#allocation6 + $0x12e0] sm:$0xff]
    %v2286 = vld [vmem:[#allocation6 + $0x12e8] sm:$0xff]
    %v2287 = vld [vmem:[#allocation6 + $0x12f0] sm:$0xff]
    %v2288 = vld [vmem:[#allocation6 + $0x12f8] sm:$0xff]
    %v2289 = vld [vmem:[#allocation6 + $0x1300] sm:$0xff]
    %v2290 = vld [vmem:[#allocation6 + $0x1308] sm:$0xff]
    %v2291 = vld [vmem:[#allocation6 + $0x1310] sm:$0xff]
    %v2292 = vld [vmem:[#allocation6 + $0x1318] sm:$0xff]
    %v2293 = vld [vmem:[#allocation6 + $0x1320] sm:$0xff]
    %v2294 = vld [vmem:[#allocation6 + $0x1328] sm:$0xff]
    %v2295 = vld [vmem:[#allocation6 + $0x1330] sm:$0xff]
    %v2296 = vld [vmem:[#allocation6 + $0x1338] sm:$0xff]
    %v2297 = vld [vmem:[#allocation6 + $0x1340] sm:$0xff]
    %v2298 = vld [vmem:[#allocation6 + $0x1348] sm:$0xff]
    %v2299 = vld [vmem:[#allocation6 + $0x1350] sm:$0xff]
    %v2300 = vld [vmem:[#allocation6 + $0x1358] sm:$0xff]
    %v2301 = vld [vmem:[#allocation6 + $0x1360] sm:$0xff]
    %v2302 = vld [vmem:[#allocation6 + $0x1368] sm:$0xff]
    %v2303 = vld [vmem:[#allocation6 + $0x1370] sm:$0xff]
    %v2304 = vld [vmem:[#allocation6 + $0x1378] sm:$0xff]
    %v2305 = vld [vmem:[#allocation6 + $0x1380] sm:$0xff]
    %v2306 = vld [vmem:[#allocation6 + $0x1388] sm:$0xff]
    %v2307 = vld [vmem:[#allocation6 + $0x1390] sm:$0xff]
    %v2308 = vld [vmem:[#allocation6 + $0x1398] sm:$0xff]
    %v2309 = vld [vmem:[#allocation6 + $0x13a0] sm:$0xff]
    %v2310 = vld [vmem:[#allocation6 + $0x13a8] sm:$0xff]
    %v2311 = vld [vmem:[#allocation6 + $0x13b0] sm:$0xff]
    %v2312 = vld [vmem:[#allocation6 + $0x13b8] sm:$0xff]
    %v2313 = vld [vmem:[#allocation6 + $0x13c0] sm:$0xff]
    %v2314 = vld [vmem:[#allocation6 + $0x13c8] sm:$0xff]
    %v2315 = vld [vmem:[#allocation6 + $0x13d0] sm:$0xff]
    %v2316 = vld [vmem:[#allocation6 + $0x13d8] sm:$0xff]
    %v2317 = vld [vmem:[#allocation6 + $0x13e0] sm:$0xff]
    %v2318 = vld [vmem:[#allocation6 + $0x13e8] sm:$0xff]
    %v2319 = vld [vmem:[#allocation6 + $0x13f0] sm:$0xff]
    %v2320 = vld [vmem:[#allocation6 + $0x13f8] sm:$0xff]
    %v2321 = vld [vmem:[#allocation6 + $0x1400] sm:$0xff]
    %v2322 = vld [vmem:[#allocation6 + $0x1408] sm:$0xff]
    %v2323 = vld [vmem:[#allocation6 + $0x1410] sm:$0xff]
    %v2324 = vld [vmem:[#allocation6 + $0x1418] sm:$0xff]
    %v2325 = vld [vmem:[#allocation6 + $0x1420] sm:$0xff]
    %v2326 = vld [vmem:[#allocation6 + $0x1428] sm:$0xff]
    %v2327 = vld [vmem:[#allocation6 + $0x1430] sm:$0xff]
    %v2328 = vld [vmem:[#allocation6 + $0x1438] sm:$0xff]
    %v2329 = vld [vmem:[#allocation6 + $0x1440] sm:$0xff]
    %v2330 = vld [vmem:[#allocation6 + $0x1448] sm:$0xff]
    %v2331 = vld [vmem:[#allocation6 + $0x1450] sm:$0xff]
    %v2332 = vld [vmem:[#allocation6 + $0x1458] sm:$0xff]
    %v2333 = vld [vmem:[#allocation6 + $0x1460] sm:$0xff]
    %v2334 = vld [vmem:[#allocation6 + $0x1468] sm:$0xff]
    %v2335 = vld [vmem:[#allocation6 + $0x1470] sm:$0xff]
    %v2336 = vld [vmem:[#allocation6 + $0x1478] sm:$0xff]
    %v2337 = vld [vmem:[#allocation6 + $0x1480] sm:$0xff]
    %v2338 = vld [vmem:[#allocation6 + $0x1488] sm:$0xff]
    %v2339 = vld [vmem:[#allocation6 + $0x1490] sm:$0xff]
    %v2340 = vld [vmem:[#allocation6 + $0x1498] sm:$0xff]
    %v2341 = vld [vmem:[#allocation6 + $0x14a0] sm:$0xff]
    %v2342 = vld [vmem:[#allocation6 + $0x14a8] sm:$0xff]
    %v2343 = vld [vmem:[#allocation6 + $0x14b0] sm:$0xff]
    %v2344 = vld [vmem:[#allocation6 + $0x14b8] sm:$0xff]
    %v2345 = vld [vmem:[#allocation6 + $0x14c0] sm:$0xff]
    %v2346 = vld [vmem:[#allocation6 + $0x14c8] sm:$0xff]
    %v2347 = vld [vmem:[#allocation6 + $0x14d0] sm:$0xff]
    %v2348 = vld [vmem:[#allocation6 + $0x14d8] sm:$0xff]
    %v2349 = vld [vmem:[#allocation6 + $0x14e0] sm:$0xff]
    %v2350 = vld [vmem:[#allocation6 + $0x14e8] sm:$0xff]
    %v2351 = vld [vmem:[#allocation6 + $0x14f0] sm:$0xff]
    %v2352 = vld [vmem:[#allocation6 + $0x14f8] sm:$0xff]
    %v2353 = vld [vmem:[#allocation6 + $0x1500] sm:$0xff]
    %v2354 = vld [vmem:[#allocation6 + $0x1508] sm:$0xff]
    %v2355 = vld [vmem:[#allocation6 + $0x1510] sm:$0xff]
    %v2356 = vld [vmem:[#allocation6 + $0x1518] sm:$0xff]
    %v2357 = vld [vmem:[#allocation6 + $0x1520] sm:$0xff]
    %v2358 = vld [vmem:[#allocation6 + $0x1528] sm:$0xff]
    %v2359 = vld [vmem:[#allocation6 + $0x1530] sm:$0xff]
    %v2360 = vld [vmem:[#allocation6 + $0x1538] sm:$0xff]
    %v2361 = vld [vmem:[#allocation6 + $0x1540] sm:$0xff]
    %v2362 = vld [vmem:[#allocation6 + $0x1548] sm:$0xff]
    %v2363 = vld [vmem:[#allocation6 + $0x1550] sm:$0xff]
    %v2364 = vld [vmem:[#allocation6 + $0x1558] sm:$0xff]
    %v2365 = vld [vmem:[#allocation6 + $0x1560] sm:$0xff]
    %v2366 = vld [vmem:[#allocation6 + $0x1568] sm:$0xff]
    %v2367 = vld [vmem:[#allocation6 + $0x1570] sm:$0xff]
    %v2368 = vld [vmem:[#allocation6 + $0x1578] sm:$0xff]
    %v2369 = vld [vmem:[#allocation6 + $0x1580] sm:$0xff]
    %v2370 = vld [vmem:[#allocation6 + $0x1588] sm:$0xff]
    %v2371 = vld [vmem:[#allocation6 + $0x1590] sm:$0xff]
    %v2372 = vld [vmem:[#allocation6 + $0x1598] sm:$0xff]
    %v2373 = vld [vmem:[#allocation6 + $0x15a0] sm:$0xff]
    %v2374 = vld [vmem:[#allocation6 + $0x15a8] sm:$0xff]
    %v2375 = vld [vmem:[#allocation6 + $0x15b0] sm:$0xff]
    %v2376 = vld [vmem:[#allocation6 + $0x15b8] sm:$0xff]
    %v2377 = vld [vmem:[#allocation6 + $0x15c0] sm:$0xff]
    %v2378 = vld [vmem:[#allocation6 + $0x15c8] sm:$0xff]
    %v2379 = vld [vmem:[#allocation6 + $0x15d0] sm:$0xff]
    %v2380 = vld [vmem:[#allocation6 + $0x15d8] sm:$0xff]
    %v2381 = vld [vmem:[#allocation6 + $0x15e0] sm:$0xff]
    %v2382 = vld [vmem:[#allocation6 + $0x15e8] sm:$0xff]
    %v2383 = vld [vmem:[#allocation6 + $0x15f0] sm:$0xff]
    %v2384 = vld [vmem:[#allocation6 + $0x15f8] sm:$0xff]
    %v2385 = vld [vmem:[#allocation6 + $0x1600] sm:$0xff]
    %v2386 = vld [vmem:[#allocation6 + $0x1608] sm:$0xff]
    %v2387 = vld [vmem:[#allocation6 + $0x1610] sm:$0xff]
    %v2388 = vld [vmem:[#allocation6 + $0x1618] sm:$0xff]
    %v2389 = vld [vmem:[#allocation6 + $0x1620] sm:$0xff]
    %v2390 = vld [vmem:[#allocation6 + $0x1628] sm:$0xff]
    %v2391 = vld [vmem:[#allocation6 + $0x1630] sm:$0xff]
    %v2392 = vld [vmem:[#allocation6 + $0x1638] sm:$0xff]
    %v2393 = vld [vmem:[#allocation6 + $0x1640] sm:$0xff]
    %v2394 = vld [vmem:[#allocation6 + $0x1648] sm:$0xff]
    %v2395 = vld [vmem:[#allocation6 + $0x1650] sm:$0xff]
    %v2396 = vld [vmem:[#allocation6 + $0x1658] sm:$0xff]
    %v2397 = vld [vmem:[#allocation6 + $0x1660] sm:$0xff]
    %v2398 = vld [vmem:[#allocation6 + $0x1668] sm:$0xff]
    %v2399 = vld [vmem:[#allocation6 + $0x1670] sm:$0xff]
    %v2400 = vld [vmem:[#allocation6 + $0x1678] sm:$0xff]
    %v2401 = vld [vmem:[#allocation6 + $0x1680] sm:$0xff]
    %v2402 = vld [vmem:[#allocation6 + $0x1688] sm:$0xff]
    %v2403 = vld [vmem:[#allocation6 + $0x1690] sm:$0xff]
    %v2404 = vld [vmem:[#allocation6 + $0x1698] sm:$0xff]
    %v2405 = vld [vmem:[#allocation6 + $0x16a0] sm:$0xff]
    %v2406 = vld [vmem:[#allocation6 + $0x16a8] sm:$0xff]
    %v2407 = vld [vmem:[#allocation6 + $0x16b0] sm:$0xff]
    %v2408 = vld [vmem:[#allocation6 + $0x16b8] sm:$0xff]
    %v2409 = vld [vmem:[#allocation6 + $0x16c0] sm:$0xff]
    %v2410 = vld [vmem:[#allocation6 + $0x16c8] sm:$0xff]
    %v2411 = vld [vmem:[#allocation6 + $0x16d0] sm:$0xff]
    %v2412 = vld [vmem:[#allocation6 + $0x16d8] sm:$0xff]
    %v2413 = vld [vmem:[#allocation6 + $0x16e0] sm:$0xff]
    %v2414 = vld [vmem:[#allocation6 + $0x16e8] sm:$0xff]
    %v2415 = vld [vmem:[#allocation6 + $0x16f0] sm:$0xff]
    %v2416 = vld [vmem:[#allocation6 + $0x16f8] sm:$0xff]
    %v2417 = vld [vmem:[#allocation6 + $0x1700] sm:$0xff]
    %v2418 = vld [vmem:[#allocation6 + $0x1708] sm:$0xff]
    %v2419 = vld [vmem:[#allocation6 + $0x1710] sm:$0xff]
    %v2420 = vld [vmem:[#allocation6 + $0x1718] sm:$0xff]
    %v2421 = vld [vmem:[#allocation6 + $0x1720] sm:$0xff]
    %v2422 = vld [vmem:[#allocation6 + $0x1728] sm:$0xff]
    %v2423 = vld [vmem:[#allocation6 + $0x1730] sm:$0xff]
    %v2424 = vld [vmem:[#allocation6 + $0x1738] sm:$0xff]
    %v2425 = vld [vmem:[#allocation6 + $0x1740] sm:$0xff]
    %v2426 = vld [vmem:[#allocation6 + $0x1748] sm:$0xff]
    %v2427 = vld [vmem:[#allocation6 + $0x1750] sm:$0xff]
    %v2428 = vld [vmem:[#allocation6 + $0x1758] sm:$0xff]
    %v2429 = vld [vmem:[#allocation6 + $0x1760] sm:$0xff]
    %v2430 = vld [vmem:[#allocation6 + $0x1768] sm:$0xff]
    %v2431 = vld [vmem:[#allocation6 + $0x1770] sm:$0xff]
    %v2432 = vld [vmem:[#allocation6 + $0x1778] sm:$0xff]
    %v2433 = vld [vmem:[#allocation6 + $0x1780] sm:$0xff]
    %v2434 = vld [vmem:[#allocation6 + $0x1788] sm:$0xff]
    %v2435 = vld [vmem:[#allocation6 + $0x1790] sm:$0xff]
    %v2436 = vld [vmem:[#allocation6 + $0x1798] sm:$0xff]
    %v2437 = vld [vmem:[#allocation6 + $0x17a0] sm:$0xff]
    %v2438 = vld [vmem:[#allocation6 + $0x17a8] sm:$0xff]
    %v2439 = vld [vmem:[#allocation6 + $0x17b0] sm:$0xff]
    %v2440 = vld [vmem:[#allocation6 + $0x17b8] sm:$0xff]
    %v2441 = vld [vmem:[#allocation6 + $0x17c0] sm:$0xff]
    %v2442 = vld [vmem:[#allocation6 + $0x17c8] sm:$0xff]
    %v2443 = vld [vmem:[#allocation6 + $0x17d0] sm:$0xff]
    %v2444 = vld [vmem:[#allocation6 + $0x17d8] sm:$0xff]
    %v2445 = vld [vmem:[#allocation6 + $0x17e0] sm:$0xff]
    %v2446 = vld [vmem:[#allocation6 + $0x17e8] sm:$0xff]
    %v2447 = vld [vmem:[#allocation6 + $0x17f0] sm:$0xff]
    %v2448 = vld [vmem:[#allocation6 + $0x17f8] sm:$0xff]
    %v3217 = vunpack.c.l.b16 %v1681
    %v3218 = vunpack.c.h.b16 %v1681
    %v3219 = vunpack.c.l.b16 %v1682
    %v3220 = vunpack.c.h.b16 %v1682
    %v3221 = vunpack.c.l.b16 %v1683
    %v3222 = vunpack.c.h.b16 %v1683
    %v3223 = vunpack.c.l.b16 %v1684
    %v3224 = vunpack.c.h.b16 %v1684
    %v3225 = vunpack.c.l.b16 %v1685
    %v3226 = vunpack.c.h.b16 %v1685
    %v3227 = vunpack.c.l.b16 %v1686
    %v3228 = vunpack.c.h.b16 %v1686
    %v3229 = vunpack.c.l.b16 %v1687
    %v3230 = vunpack.c.h.b16 %v1687
    %v3231 = vunpack.c.l.b16 %v1688
    %v3232 = vunpack.c.h.b16 %v1688
    %v3233 = vunpack.c.l.b16 %v1689
    %v3234 = vunpack.c.h.b16 %v1689
    %v3235 = vunpack.c.l.b16 %v1690
    %v3236 = vunpack.c.h.b16 %v1690
    %v3237 = vunpack.c.l.b16 %v1691
    %v3238 = vunpack.c.h.b16 %v1691
    %v3239 = vunpack.c.l.b16 %v1692
    %v3240 = vunpack.c.h.b16 %v1692
    %v3241 = vunpack.c.l.b16 %v1693
    %v3242 = vunpack.c.h.b16 %v1693
    %v3243 = vunpack.c.l.b16 %v1694
    %v3244 = vunpack.c.h.b16 %v1694
    %v3245 = vunpack.c.l.b16 %v1695
    %v3246 = vunpack.c.h.b16 %v1695
    %v3247 = vunpack.c.l.b16 %v1696
    %v3248 = vunpack.c.h.b16 %v1696
    %v3249 = vunpack.c.l.b16 %v1697
    %v3250 = vunpack.c.h.b16 %v1697
    %v3251 = vunpack.c.l.b16 %v1698
    %v3252 = vunpack.c.h.b16 %v1698
    %v3253 = vunpack.c.l.b16 %v1699
    %v3254 = vunpack.c.h.b16 %v1699
    %v3255 = vunpack.c.l.b16 %v1700
    %v3256 = vunpack.c.h.b16 %v1700
    %v3257 = vunpack.c.l.b16 %v1701
    %v3258 = vunpack.c.h.b16 %v1701
    %v3259 = vunpack.c.l.b16 %v1702
    %v3260 = vunpack.c.h.b16 %v1702
    %v3261 = vunpack.c.l.b16 %v1703
    %v3262 = vunpack.c.h.b16 %v1703
    %v3263 = vunpack.c.l.b16 %v1704
    %v3264 = vunpack.c.h.b16 %v1704
    %v3265 = vunpack.c.l.b16 %v1705
    %v3266 = vunpack.c.h.b16 %v1705
    %v3267 = vunpack.c.l.b16 %v1706
    %v3268 = vunpack.c.h.b16 %v1706
    %v3269 = vunpack.c.l.b16 %v1707
    %v3270 = vunpack.c.h.b16 %v1707
    %v3271 = vunpack.c.l.b16 %v1708
    %v3272 = vunpack.c.h.b16 %v1708
    %v3273 = vunpack.c.l.b16 %v1709
    %v3274 = vunpack.c.h.b16 %v1709
    %v3275 = vunpack.c.l.b16 %v1710
    %v3276 = vunpack.c.h.b16 %v1710
    %v3277 = vunpack.c.l.b16 %v1711
    %v3278 = vunpack.c.h.b16 %v1711
    %v3279 = vunpack.c.l.b16 %v1712
    %v3280 = vunpack.c.h.b16 %v1712
    %v3281 = vunpack.c.l.b16 %v1713
    %v3282 = vunpack.c.h.b16 %v1713
    %v3283 = vunpack.c.l.b16 %v1714
    %v3284 = vunpack.c.h.b16 %v1714
    %v3285 = vunpack.c.l.b16 %v1715
    %v3286 = vunpack.c.h.b16 %v1715
    %v3287 = vunpack.c.l.b16 %v1716
    %v3288 = vunpack.c.h.b16 %v1716
    %v3289 = vunpack.c.l.b16 %v1717
    %v3290 = vunpack.c.h.b16 %v1717
    %v3291 = vunpack.c.l.b16 %v1718
    %v3292 = vunpack.c.h.b16 %v1718
    %v3293 = vunpack.c.l.b16 %v1719
    %v3294 = vunpack.c.h.b16 %v1719
    %v3295 = vunpack.c.l.b16 %v1720
    %v3296 = vunpack.c.h.b16 %v1720
    %v3297 = vunpack.c.l.b16 %v1721
    %v3298 = vunpack.c.h.b16 %v1721
    %v3299 = vunpack.c.l.b16 %v1722
    %v3300 = vunpack.c.h.b16 %v1722
    %v3301 = vunpack.c.l.b16 %v1723
    %v3302 = vunpack.c.h.b16 %v1723
    %v3303 = vunpack.c.l.b16 %v1724
    %v3304 = vunpack.c.h.b16 %v1724
    %v3305 = vunpack.c.l.b16 %v1725
    %v3306 = vunpack.c.h.b16 %v1725
    %v3307 = vunpack.c.l.b16 %v1726
    %v3308 = vunpack.c.h.b16 %v1726
    %v3309 = vunpack.c.l.b16 %v1727
    %v3310 = vunpack.c.h.b16 %v1727
    %v3311 = vunpack.c.l.b16 %v1728
    %v3312 = vunpack.c.h.b16 %v1728
    %v3313 = vunpack.c.l.b16 %v1729
    %v3314 = vunpack.c.h.b16 %v1729
    %v3315 = vunpack.c.l.b16 %v1730
    %v3316 = vunpack.c.h.b16 %v1730
    %v3317 = vunpack.c.l.b16 %v1731
    %v3318 = vunpack.c.h.b16 %v1731
    %v3319 = vunpack.c.l.b16 %v1732
    %v3320 = vunpack.c.h.b16 %v1732
    %v3321 = vunpack.c.l.b16 %v1733
    %v3322 = vunpack.c.h.b16 %v1733
    %v3323 = vunpack.c.l.b16 %v1734
    %v3324 = vunpack.c.h.b16 %v1734
    %v3325 = vunpack.c.l.b16 %v1735
    %v3326 = vunpack.c.h.b16 %v1735
    %v3327 = vunpack.c.l.b16 %v1736
    %v3328 = vunpack.c.h.b16 %v1736
    %v3329 = vunpack.c.l.b16 %v1737
    %v3330 = vunpack.c.h.b16 %v1737
    %v3331 = vunpack.c.l.b16 %v1738
    %v3332 = vunpack.c.h.b16 %v1738
    %v3333 = vunpack.c.l.b16 %v1739
    %v3334 = vunpack.c.h.b16 %v1739
    %v3335 = vunpack.c.l.b16 %v1740
    %v3336 = vunpack.c.h.b16 %v1740
    %v3337 = vunpack.c.l.b16 %v1741
    %v3338 = vunpack.c.h.b16 %v1741
    %v3339 = vunpack.c.l.b16 %v1742
    %v3340 = vunpack.c.h.b16 %v1742
    %v3341 = vunpack.c.l.b16 %v1743
    %v3342 = vunpack.c.h.b16 %v1743
    %v3343 = vunpack.c.l.b16 %v1744
    %v3344 = vunpack.c.h.b16 %v1744
    %v3345 = vunpack.c.l.b16 %v1745
    %v3346 = vunpack.c.h.b16 %v1745
    %v3347 = vunpack.c.l.b16 %v1746
    %v3348 = vunpack.c.h.b16 %v1746
    %v3349 = vunpack.c.l.b16 %v1747
    %v3350 = vunpack.c.h.b16 %v1747
    %v3351 = vunpack.c.l.b16 %v1748
    %v3352 = vunpack.c.h.b16 %v1748
    %v3353 = vunpack.c.l.b16 %v1749
    %v3354 = vunpack.c.h.b16 %v1749
    %v3355 = vunpack.c.l.b16 %v1750
    %v3356 = vunpack.c.h.b16 %v1750
    %v3357 = vunpack.c.l.b16 %v1751
    %v3358 = vunpack.c.h.b16 %v1751
    %v3359 = vunpack.c.l.b16 %v1752
    %v3360 = vunpack.c.h.b16 %v1752
    %v3361 = vunpack.c.l.b16 %v1753
    %v3362 = vunpack.c.h.b16 %v1753
    %v3363 = vunpack.c.l.b16 %v1754
    %v3364 = vunpack.c.h.b16 %v1754
    %v3365 = vunpack.c.l.b16 %v1755
    %v3366 = vunpack.c.h.b16 %v1755
    %v3367 = vunpack.c.l.b16 %v1756
    %v3368 = vunpack.c.h.b16 %v1756
    %v3369 = vunpack.c.l.b16 %v1757
    %v3370 = vunpack.c.h.b16 %v1757
    %v3371 = vunpack.c.l.b16 %v1758
    %v3372 = vunpack.c.h.b16 %v1758
    %v3373 = vunpack.c.l.b16 %v1759
    %v3374 = vunpack.c.h.b16 %v1759
    %v3375 = vunpack.c.l.b16 %v1760
    %v3376 = vunpack.c.h.b16 %v1760
    %v3377 = vunpack.c.l.b16 %v1761
    %v3378 = vunpack.c.h.b16 %v1761
    %v3379 = vunpack.c.l.b16 %v1762
    %v3380 = vunpack.c.h.b16 %v1762
    %v3381 = vunpack.c.l.b16 %v1763
    %v3382 = vunpack.c.h.b16 %v1763
    %v3383 = vunpack.c.l.b16 %v1764
    %v3384 = vunpack.c.h.b16 %v1764
    %v3385 = vunpack.c.l.b16 %v1765
    %v3386 = vunpack.c.h.b16 %v1765
    %v3387 = vunpack.c.l.b16 %v1766
    %v3388 = vunpack.c.h.b16 %v1766
    %v3389 = vunpack.c.l.b16 %v1767
    %v3390 = vunpack.c.h.b16 %v1767
    %v3391 = vunpack.c.l.b16 %v1768
    %v3392 = vunpack.c.h.b16 %v1768
    %v3393 = vunpack.c.l.b16 %v1769
    %v3394 = vunpack.c.h.b16 %v1769
    %v3395 = vunpack.c.l.b16 %v1770
    %v3396 = vunpack.c.h.b16 %v1770
    %v3397 = vunpack.c.l.b16 %v1771
    %v3398 = vunpack.c.h.b16 %v1771
    %v3399 = vunpack.c.l.b16 %v1772
    %v3400 = vunpack.c.h.b16 %v1772
    %v3401 = vunpack.c.l.b16 %v1773
    %v3402 = vunpack.c.h.b16 %v1773
    %v3403 = vunpack.c.l.b16 %v1774
    %v3404 = vunpack.c.h.b16 %v1774
    %v3405 = vunpack.c.l.b16 %v1775
    %v3406 = vunpack.c.h.b16 %v1775
    %v3407 = vunpack.c.l.b16 %v1776
    %v3408 = vunpack.c.h.b16 %v1776
    %v3409 = vunpack.c.l.b16 %v1777
    %v3410 = vunpack.c.h.b16 %v1777
    %v3411 = vunpack.c.l.b16 %v1778
    %v3412 = vunpack.c.h.b16 %v1778
    %v3413 = vunpack.c.l.b16 %v1779
    %v3414 = vunpack.c.h.b16 %v1779
    %v3415 = vunpack.c.l.b16 %v1780
    %v3416 = vunpack.c.h.b16 %v1780
    %v3417 = vunpack.c.l.b16 %v1781
    %v3418 = vunpack.c.h.b16 %v1781
    %v3419 = vunpack.c.l.b16 %v1782
    %v3420 = vunpack.c.h.b16 %v1782
    %v3421 = vunpack.c.l.b16 %v1783
    %v3422 = vunpack.c.h.b16 %v1783
    %v3423 = vunpack.c.l.b16 %v1784
    %v3424 = vunpack.c.h.b16 %v1784
    %v3425 = vunpack.c.l.b16 %v1785
    %v3426 = vunpack.c.h.b16 %v1785
    %v3427 = vunpack.c.l.b16 %v1786
    %v3428 = vunpack.c.h.b16 %v1786
    %v3429 = vunpack.c.l.b16 %v1787
    %v3430 = vunpack.c.h.b16 %v1787
    %v3431 = vunpack.c.l.b16 %v1788
    %v3432 = vunpack.c.h.b16 %v1788
    %v3433 = vunpack.c.l.b16 %v1789
    %v3434 = vunpack.c.h.b16 %v1789
    %v3435 = vunpack.c.l.b16 %v1790
    %v3436 = vunpack.c.h.b16 %v1790
    %v3437 = vunpack.c.l.b16 %v1791
    %v3438 = vunpack.c.h.b16 %v1791
    %v3439 = vunpack.c.l.b16 %v1792
    %v3440 = vunpack.c.h.b16 %v1792
    %v3441 = vunpack.c.l.b16 %v1793
    %v3442 = vunpack.c.h.b16 %v1793
    %v3443 = vunpack.c.l.b16 %v1794
    %v3444 = vunpack.c.h.b16 %v1794
    %v3445 = vunpack.c.l.b16 %v1795
    %v3446 = vunpack.c.h.b16 %v1795
    %v3447 = vunpack.c.l.b16 %v1796
    %v3448 = vunpack.c.h.b16 %v1796
    %v3449 = vunpack.c.l.b16 %v1797
    %v3450 = vunpack.c.h.b16 %v1797
    %v3451 = vunpack.c.l.b16 %v1798
    %v3452 = vunpack.c.h.b16 %v1798
    %v3453 = vunpack.c.l.b16 %v1799
    %v3454 = vunpack.c.h.b16 %v1799
    %v3455 = vunpack.c.l.b16 %v1800
    %v3456 = vunpack.c.h.b16 %v1800
    %v3457 = vunpack.c.l.b16 %v1801
    %v3458 = vunpack.c.h.b16 %v1801
    %v3459 = vunpack.c.l.b16 %v1802
    %v3460 = vunpack.c.h.b16 %v1802
    %v3461 = vunpack.c.l.b16 %v1803
    %v3462 = vunpack.c.h.b16 %v1803
    %v3463 = vunpack.c.l.b16 %v1804
    %v3464 = vunpack.c.h.b16 %v1804
    %v3465 = vunpack.c.l.b16 %v1805
    %v3466 = vunpack.c.h.b16 %v1805
    %v3467 = vunpack.c.l.b16 %v1806
    %v3468 = vunpack.c.h.b16 %v1806
    %v3469 = vunpack.c.l.b16 %v1807
    %v3470 = vunpack.c.h.b16 %v1807
    %v3471 = vunpack.c.l.b16 %v1808
    %v3472 = vunpack.c.h.b16 %v1808
    %v3473 = vunpack.c.l.b16 %v1809
    %v3474 = vunpack.c.h.b16 %v1809
    %v3475 = vunpack.c.l.b16 %v1810
    %v3476 = vunpack.c.h.b16 %v1810
    %v3477 = vunpack.c.l.b16 %v1811
    %v3478 = vunpack.c.h.b16 %v1811
    %v3479 = vunpack.c.l.b16 %v1812
    %v3480 = vunpack.c.h.b16 %v1812
    %v3481 = vunpack.c.l.b16 %v1813
    %v3482 = vunpack.c.h.b16 %v1813
    %v3483 = vunpack.c.l.b16 %v1814
    %v3484 = vunpack.c.h.b16 %v1814
    %v3485 = vunpack.c.l.b16 %v1815
    %v3486 = vunpack.c.h.b16 %v1815
    %v3487 = vunpack.c.l.b16 %v1816
    %v3488 = vunpack.c.h.b16 %v1816
    %v3489 = vunpack.c.l.b16 %v1817
    %v3490 = vunpack.c.h.b16 %v1817
    %v3491 = vunpack.c.l.b16 %v1818
    %v3492 = vunpack.c.h.b16 %v1818
    %v3493 = vunpack.c.l.b16 %v1819
    %v3494 = vunpack.c.h.b16 %v1819
    %v3495 = vunpack.c.l.b16 %v1820
    %v3496 = vunpack.c.h.b16 %v1820
    %v3497 = vunpack.c.l.b16 %v1821
    %v3498 = vunpack.c.h.b16 %v1821
    %v3499 = vunpack.c.l.b16 %v1822
    %v3500 = vunpack.c.h.b16 %v1822
    %v3501 = vunpack.c.l.b16 %v1823
    %v3502 = vunpack.c.h.b16 %v1823
    %v3503 = vunpack.c.l.b16 %v1824
    %v3504 = vunpack.c.h.b16 %v1824
    %v3505 = vunpack.c.l.b16 %v1825
    %v3506 = vunpack.c.h.b16 %v1825
    %v3507 = vunpack.c.l.b16 %v1826
    %v3508 = vunpack.c.h.b16 %v1826
    %v3509 = vunpack.c.l.b16 %v1827
    %v3510 = vunpack.c.h.b16 %v1827
    %v3511 = vunpack.c.l.b16 %v1828
    %v3512 = vunpack.c.h.b16 %v1828
    %v3513 = vunpack.c.l.b16 %v1829
    %v3514 = vunpack.c.h.b16 %v1829
    %v3515 = vunpack.c.l.b16 %v1830
    %v3516 = vunpack.c.h.b16 %v1830
    %v3517 = vunpack.c.l.b16 %v1831
    %v3518 = vunpack.c.h.b16 %v1831
    %v3519 = vunpack.c.l.b16 %v1832
    %v3520 = vunpack.c.h.b16 %v1832
    %v3521 = vunpack.c.l.b16 %v1833
    %v3522 = vunpack.c.h.b16 %v1833
    %v3523 = vunpack.c.l.b16 %v1834
    %v3524 = vunpack.c.h.b16 %v1834
    %v3525 = vunpack.c.l.b16 %v1835
    %v3526 = vunpack.c.h.b16 %v1835
    %v3527 = vunpack.c.l.b16 %v1836
    %v3528 = vunpack.c.h.b16 %v1836
    %v3529 = vunpack.c.l.b16 %v1837
    %v3530 = vunpack.c.h.b16 %v1837
    %v3531 = vunpack.c.l.b16 %v1838
    %v3532 = vunpack.c.h.b16 %v1838
    %v3533 = vunpack.c.l.b16 %v1839
    %v3534 = vunpack.c.h.b16 %v1839
    %v3535 = vunpack.c.l.b16 %v1840
    %v3536 = vunpack.c.h.b16 %v1840
    %v3537 = vunpack.c.l.b16 %v1841
    %v3538 = vunpack.c.h.b16 %v1841
    %v3539 = vunpack.c.l.b16 %v1842
    %v3540 = vunpack.c.h.b16 %v1842
    %v3541 = vunpack.c.l.b16 %v1843
    %v3542 = vunpack.c.h.b16 %v1843
    %v3543 = vunpack.c.l.b16 %v1844
    %v3544 = vunpack.c.h.b16 %v1844
    %v3545 = vunpack.c.l.b16 %v1845
    %v3546 = vunpack.c.h.b16 %v1845
    %v3547 = vunpack.c.l.b16 %v1846
    %v3548 = vunpack.c.h.b16 %v1846
    %v3549 = vunpack.c.l.b16 %v1847
    %v3550 = vunpack.c.h.b16 %v1847
    %v3551 = vunpack.c.l.b16 %v1848
    %v3552 = vunpack.c.h.b16 %v1848
    %v3553 = vunpack.c.l.b16 %v1849
    %v3554 = vunpack.c.h.b16 %v1849
    %v3555 = vunpack.c.l.b16 %v1850
    %v3556 = vunpack.c.h.b16 %v1850
    %v3557 = vunpack.c.l.b16 %v1851
    %v3558 = vunpack.c.h.b16 %v1851
    %v3559 = vunpack.c.l.b16 %v1852
    %v3560 = vunpack.c.h.b16 %v1852
    %v3561 = vunpack.c.l.b16 %v1853
    %v3562 = vunpack.c.h.b16 %v1853
    %v3563 = vunpack.c.l.b16 %v1854
    %v3564 = vunpack.c.h.b16 %v1854
    %v3565 = vunpack.c.l.b16 %v1855
    %v3566 = vunpack.c.h.b16 %v1855
    %v3567 = vunpack.c.l.b16 %v1856
    %v3568 = vunpack.c.h.b16 %v1856
    %v3569 = vunpack.c.l.b16 %v1857
    %v3570 = vunpack.c.h.b16 %v1857
    %v3571 = vunpack.c.l.b16 %v1858
    %v3572 = vunpack.c.h.b16 %v1858
    %v3573 = vunpack.c.l.b16 %v1859
    %v3574 = vunpack.c.h.b16 %v1859
    %v3575 = vunpack.c.l.b16 %v1860
    %v3576 = vunpack.c.h.b16 %v1860
    %v3577 = vunpack.c.l.b16 %v1861
    %v3578 = vunpack.c.h.b16 %v1861
    %v3579 = vunpack.c.l.b16 %v1862
    %v3580 = vunpack.c.h.b16 %v1862
    %v3581 = vunpack.c.l.b16 %v1863
    %v3582 = vunpack.c.h.b16 %v1863
    %v3583 = vunpack.c.l.b16 %v1864
    %v3584 = vunpack.c.h.b16 %v1864
    %v3585 = vunpack.c.l.b16 %v1865
    %v3586 = vunpack.c.h.b16 %v1865
    %v3587 = vunpack.c.l.b16 %v1866
    %v3588 = vunpack.c.h.b16 %v1866
    %v3589 = vunpack.c.l.b16 %v1867
    %v3590 = vunpack.c.h.b16 %v1867
    %v3591 = vunpack.c.l.b16 %v1868
    %v3592 = vunpack.c.h.b16 %v1868
    %v3593 = vunpack.c.l.b16 %v1869
    %v3594 = vunpack.c.h.b16 %v1869
    %v3595 = vunpack.c.l.b16 %v1870
    %v3596 = vunpack.c.h.b16 %v1870
    %v3597 = vunpack.c.l.b16 %v1871
    %v3598 = vunpack.c.h.b16 %v1871
    %v3599 = vunpack.c.l.b16 %v1872
    %v3600 = vunpack.c.h.b16 %v1872
    %v3601 = vunpack.c.l.b16 %v1873
    %v3602 = vunpack.c.h.b16 %v1873
    %v3603 = vunpack.c.l.b16 %v1874
    %v3604 = vunpack.c.h.b16 %v1874
    %v3605 = vunpack.c.l.b16 %v1875
    %v3606 = vunpack.c.h.b16 %v1875
    %v3607 = vunpack.c.l.b16 %v1876
    %v3608 = vunpack.c.h.b16 %v1876
    %v3609 = vunpack.c.l.b16 %v1877
    %v3610 = vunpack.c.h.b16 %v1877
    %v3611 = vunpack.c.l.b16 %v1878
    %v3612 = vunpack.c.h.b16 %v1878
    %v3613 = vunpack.c.l.b16 %v1879
    %v3614 = vunpack.c.h.b16 %v1879
    %v3615 = vunpack.c.l.b16 %v1880
    %v3616 = vunpack.c.h.b16 %v1880
    %v3617 = vunpack.c.l.b16 %v1881
    %v3618 = vunpack.c.h.b16 %v1881
    %v3619 = vunpack.c.l.b16 %v1882
    %v3620 = vunpack.c.h.b16 %v1882
    %v3621 = vunpack.c.l.b16 %v1883
    %v3622 = vunpack.c.h.b16 %v1883
    %v3623 = vunpack.c.l.b16 %v1884
    %v3624 = vunpack.c.h.b16 %v1884
    %v3625 = vunpack.c.l.b16 %v1885
    %v3626 = vunpack.c.h.b16 %v1885
    %v3627 = vunpack.c.l.b16 %v1886
    %v3628 = vunpack.c.h.b16 %v1886
    %v3629 = vunpack.c.l.b16 %v1887
    %v3630 = vunpack.c.h.b16 %v1887
    %v3631 = vunpack.c.l.b16 %v1888
    %v3632 = vunpack.c.h.b16 %v1888
    %v3633 = vunpack.c.l.b16 %v1889
    %v3634 = vunpack.c.h.b16 %v1889
    %v3635 = vunpack.c.l.b16 %v1890
    %v3636 = vunpack.c.h.b16 %v1890
    %v3637 = vunpack.c.l.b16 %v1891
    %v3638 = vunpack.c.h.b16 %v1891
    %v3639 = vunpack.c.l.b16 %v1892
    %v3640 = vunpack.c.h.b16 %v1892
    %v3641 = vunpack.c.l.b16 %v1893
    %v3642 = vunpack.c.h.b16 %v1893
    %v3643 = vunpack.c.l.b16 %v1894
    %v3644 = vunpack.c.h.b16 %v1894
    %v3645 = vunpack.c.l.b16 %v1895
    %v3646 = vunpack.c.h.b16 %v1895
    %v3647 = vunpack.c.l.b16 %v1896
    %v3648 = vunpack.c.h.b16 %v1896
    %v3649 = vunpack.c.l.b16 %v1897
    %v3650 = vunpack.c.h.b16 %v1897
    %v3651 = vunpack.c.l.b16 %v1898
    %v3652 = vunpack.c.h.b16 %v1898
    %v3653 = vunpack.c.l.b16 %v1899
    %v3654 = vunpack.c.h.b16 %v1899
    %v3655 = vunpack.c.l.b16 %v1900
    %v3656 = vunpack.c.h.b16 %v1900
    %v3657 = vunpack.c.l.b16 %v1901
    %v3658 = vunpack.c.h.b16 %v1901
    %v3659 = vunpack.c.l.b16 %v1902
    %v3660 = vunpack.c.h.b16 %v1902
    %v3661 = vunpack.c.l.b16 %v1903
    %v3662 = vunpack.c.h.b16 %v1903
    %v3663 = vunpack.c.l.b16 %v1904
    %v3664 = vunpack.c.h.b16 %v1904
    %v3665 = vunpack.c.l.b16 %v1905
    %v3666 = vunpack.c.h.b16 %v1905
    %v3667 = vunpack.c.l.b16 %v1906
    %v3668 = vunpack.c.h.b16 %v1906
    %v3669 = vunpack.c.l.b16 %v1907
    %v3670 = vunpack.c.h.b16 %v1907
    %v3671 = vunpack.c.l.b16 %v1908
    %v3672 = vunpack.c.h.b16 %v1908
    %v3673 = vunpack.c.l.b16 %v1909
    %v3674 = vunpack.c.h.b16 %v1909
    %v3675 = vunpack.c.l.b16 %v1910
    %v3676 = vunpack.c.h.b16 %v1910
    %v3677 = vunpack.c.l.b16 %v1911
    %v3678 = vunpack.c.h.b16 %v1911
    %v3679 = vunpack.c.l.b16 %v1912
    %v3680 = vunpack.c.h.b16 %v1912
    %v3681 = vunpack.c.l.b16 %v1913
    %v3682 = vunpack.c.h.b16 %v1913
    %v3683 = vunpack.c.l.b16 %v1914
    %v3684 = vunpack.c.h.b16 %v1914
    %v3685 = vunpack.c.l.b16 %v1915
    %v3686 = vunpack.c.h.b16 %v1915
    %v3687 = vunpack.c.l.b16 %v1916
    %v3688 = vunpack.c.h.b16 %v1916
    %v3689 = vunpack.c.l.b16 %v1917
    %v3690 = vunpack.c.h.b16 %v1917
    %v3691 = vunpack.c.l.b16 %v1918
    %v3692 = vunpack.c.h.b16 %v1918
    %v3693 = vunpack.c.l.b16 %v1919
    %v3694 = vunpack.c.h.b16 %v1919
    %v3695 = vunpack.c.l.b16 %v1920
    %v3696 = vunpack.c.h.b16 %v1920
    %v3697 = vunpack.c.l.b16 %v1921
    %v3698 = vunpack.c.h.b16 %v1921
    %v3699 = vunpack.c.l.b16 %v1922
    %v3700 = vunpack.c.h.b16 %v1922
    %v3701 = vunpack.c.l.b16 %v1923
    %v3702 = vunpack.c.h.b16 %v1923
    %v3703 = vunpack.c.l.b16 %v1924
    %v3704 = vunpack.c.h.b16 %v1924
    %v3705 = vunpack.c.l.b16 %v1925
    %v3706 = vunpack.c.h.b16 %v1925
    %v3707 = vunpack.c.l.b16 %v1926
    %v3708 = vunpack.c.h.b16 %v1926
    %v3709 = vunpack.c.l.b16 %v1927
    %v3710 = vunpack.c.h.b16 %v1927
    %v3711 = vunpack.c.l.b16 %v1928
    %v3712 = vunpack.c.h.b16 %v1928
    %v3713 = vunpack.c.l.b16 %v1929
    %v3714 = vunpack.c.h.b16 %v1929
    %v3715 = vunpack.c.l.b16 %v1930
    %v3716 = vunpack.c.h.b16 %v1930
    %v3717 = vunpack.c.l.b16 %v1931
    %v3718 = vunpack.c.h.b16 %v1931
    %v3719 = vunpack.c.l.b16 %v1932
    %v3720 = vunpack.c.h.b16 %v1932
    %v3721 = vunpack.c.l.b16 %v1933
    %v3722 = vunpack.c.h.b16 %v1933
    %v3723 = vunpack.c.l.b16 %v1934
    %v3724 = vunpack.c.h.b16 %v1934
    %v3725 = vunpack.c.l.b16 %v1935
    %v3726 = vunpack.c.h.b16 %v1935
    %v3727 = vunpack.c.l.b16 %v1936
    %v3728 = vunpack.c.h.b16 %v1936
    %v3729 = vunpack.c.l.b16 %v1937
    %v3730 = vunpack.c.h.b16 %v1937
    %v3731 = vunpack.c.l.b16 %v1938
    %v3732 = vunpack.c.h.b16 %v1938
    %v3733 = vunpack.c.l.b16 %v1939
    %v3734 = vunpack.c.h.b16 %v1939
    %v3735 = vunpack.c.l.b16 %v1940
    %v3736 = vunpack.c.h.b16 %v1940
    %v3737 = vunpack.c.l.b16 %v1941
    %v3738 = vunpack.c.h.b16 %v1941
    %v3739 = vunpack.c.l.b16 %v1942
    %v3740 = vunpack.c.h.b16 %v1942
    %v3741 = vunpack.c.l.b16 %v1943
    %v3742 = vunpack.c.h.b16 %v1943
    %v3743 = vunpack.c.l.b16 %v1944
    %v3744 = vunpack.c.h.b16 %v1944
    %v3745 = vunpack.c.l.b16 %v1945
    %v3746 = vunpack.c.h.b16 %v1945
    %v3747 = vunpack.c.l.b16 %v1946
    %v3748 = vunpack.c.h.b16 %v1946
    %v3749 = vunpack.c.l.b16 %v1947
    %v3750 = vunpack.c.h.b16 %v1947
    %v3751 = vunpack.c.l.b16 %v1948
    %v3752 = vunpack.c.h.b16 %v1948
    %v3753 = vunpack.c.l.b16 %v1949
    %v3754 = vunpack.c.h.b16 %v1949
    %v3755 = vunpack.c.l.b16 %v1950
    %v3756 = vunpack.c.h.b16 %v1950
    %v3757 = vunpack.c.l.b16 %v1951
    %v3758 = vunpack.c.h.b16 %v1951
    %v3759 = vunpack.c.l.b16 %v1952
    %v3760 = vunpack.c.h.b16 %v1952
    %v3761 = vunpack.c.l.b16 %v1953
    %v3762 = vunpack.c.h.b16 %v1953
    %v3763 = vunpack.c.l.b16 %v1954
    %v3764 = vunpack.c.h.b16 %v1954
    %v3765 = vunpack.c.l.b16 %v1955
    %v3766 = vunpack.c.h.b16 %v1955
    %v3767 = vunpack.c.l.b16 %v1956
    %v3768 = vunpack.c.h.b16 %v1956
    %v3769 = vunpack.c.l.b16 %v1957
    %v3770 = vunpack.c.h.b16 %v1957
    %v3771 = vunpack.c.l.b16 %v1958
    %v3772 = vunpack.c.h.b16 %v1958
    %v3773 = vunpack.c.l.b16 %v1959
    %v3774 = vunpack.c.h.b16 %v1959
    %v3775 = vunpack.c.l.b16 %v1960
    %v3776 = vunpack.c.h.b16 %v1960
    %v3777 = vunpack.c.l.b16 %v1961
    %v3778 = vunpack.c.h.b16 %v1961
    %v3779 = vunpack.c.l.b16 %v1962
    %v3780 = vunpack.c.h.b16 %v1962
    %v3781 = vunpack.c.l.b16 %v1963
    %v3782 = vunpack.c.h.b16 %v1963
    %v3783 = vunpack.c.l.b16 %v1964
    %v3784 = vunpack.c.h.b16 %v1964
    %v3785 = vunpack.c.l.b16 %v1965
    %v3786 = vunpack.c.h.b16 %v1965
    %v3787 = vunpack.c.l.b16 %v1966
    %v3788 = vunpack.c.h.b16 %v1966
    %v3789 = vunpack.c.l.b16 %v1967
    %v3790 = vunpack.c.h.b16 %v1967
    %v3791 = vunpack.c.l.b16 %v1968
    %v3792 = vunpack.c.h.b16 %v1968
    %v3793 = vunpack.c.l.b16 %v1969
    %v3794 = vunpack.c.h.b16 %v1969
    %v3795 = vunpack.c.l.b16 %v1970
    %v3796 = vunpack.c.h.b16 %v1970
    %v3797 = vunpack.c.l.b16 %v1971
    %v3798 = vunpack.c.h.b16 %v1971
    %v3799 = vunpack.c.l.b16 %v1972
    %v3800 = vunpack.c.h.b16 %v1972
    %v3801 = vunpack.c.l.b16 %v1973
    %v3802 = vunpack.c.h.b16 %v1973
    %v3803 = vunpack.c.l.b16 %v1974
    %v3804 = vunpack.c.h.b16 %v1974
    %v3805 = vunpack.c.l.b16 %v1975
    %v3806 = vunpack.c.h.b16 %v1975
    %v3807 = vunpack.c.l.b16 %v1976
    %v3808 = vunpack.c.h.b16 %v1976
    %v3809 = vunpack.c.l.b16 %v1977
    %v3810 = vunpack.c.h.b16 %v1977
    %v3811 = vunpack.c.l.b16 %v1978
    %v3812 = vunpack.c.h.b16 %v1978
    %v3813 = vunpack.c.l.b16 %v1979
    %v3814 = vunpack.c.h.b16 %v1979
    %v3815 = vunpack.c.l.b16 %v1980
    %v3816 = vunpack.c.h.b16 %v1980
    %v3817 = vunpack.c.l.b16 %v1981
    %v3818 = vunpack.c.h.b16 %v1981
    %v3819 = vunpack.c.l.b16 %v1982
    %v3820 = vunpack.c.h.b16 %v1982
    %v3821 = vunpack.c.l.b16 %v1983
    %v3822 = vunpack.c.h.b16 %v1983
    %v3823 = vunpack.c.l.b16 %v1984
    %v3824 = vunpack.c.h.b16 %v1984
    %v3825 = vunpack.c.l.b16 %v1985
    %v3826 = vunpack.c.h.b16 %v1985
    %v3827 = vunpack.c.l.b16 %v1986
    %v3828 = vunpack.c.h.b16 %v1986
    %v3829 = vunpack.c.l.b16 %v1987
    %v3830 = vunpack.c.h.b16 %v1987
    %v3831 = vunpack.c.l.b16 %v1988
    %v3832 = vunpack.c.h.b16 %v1988
    %v3833 = vunpack.c.l.b16 %v1989
    %v3834 = vunpack.c.h.b16 %v1989
    %v3835 = vunpack.c.l.b16 %v1990
    %v3836 = vunpack.c.h.b16 %v1990
    %v3837 = vunpack.c.l.b16 %v1991
    %v3838 = vunpack.c.h.b16 %v1991
    %v3839 = vunpack.c.l.b16 %v1992
    %v3840 = vunpack.c.h.b16 %v1992
    %v3841 = vunpack.c.l.b16 %v1993
    %v3842 = vunpack.c.h.b16 %v1993
    %v3843 = vunpack.c.l.b16 %v1994
    %v3844 = vunpack.c.h.b16 %v1994
    %v3845 = vunpack.c.l.b16 %v1995
    %v3846 = vunpack.c.h.b16 %v1995
    %v3847 = vunpack.c.l.b16 %v1996
    %v3848 = vunpack.c.h.b16 %v1996
    %v3849 = vunpack.c.l.b16 %v1997
    %v3850 = vunpack.c.h.b16 %v1997
    %v3851 = vunpack.c.l.b16 %v1998
    %v3852 = vunpack.c.h.b16 %v1998
    %v3853 = vunpack.c.l.b16 %v1999
    %v3854 = vunpack.c.h.b16 %v1999
    %v3855 = vunpack.c.l.b16 %v2000
    %v3856 = vunpack.c.h.b16 %v2000
    %v3857 = vunpack.c.l.b16 %v2001
    %v3858 = vunpack.c.h.b16 %v2001
    %v3859 = vunpack.c.l.b16 %v2002
    %v3860 = vunpack.c.h.b16 %v2002
    %v3861 = vunpack.c.l.b16 %v2003
    %v3862 = vunpack.c.h.b16 %v2003
    %v3863 = vunpack.c.l.b16 %v2004
    %v3864 = vunpack.c.h.b16 %v2004
    %v3865 = vunpack.c.l.b16 %v2005
    %v3866 = vunpack.c.h.b16 %v2005
    %v3867 = vunpack.c.l.b16 %v2006
    %v3868 = vunpack.c.h.b16 %v2006
    %v3869 = vunpack.c.l.b16 %v2007
    %v3870 = vunpack.c.h.b16 %v2007
    %v3871 = vunpack.c.l.b16 %v2008
    %v3872 = vunpack.c.h.b16 %v2008
    %v3873 = vunpack.c.l.b16 %v2009
    %v3874 = vunpack.c.h.b16 %v2009
    %v3875 = vunpack.c.l.b16 %v2010
    %v3876 = vunpack.c.h.b16 %v2010
    %v3877 = vunpack.c.l.b16 %v2011
    %v3878 = vunpack.c.h.b16 %v2011
    %v3879 = vunpack.c.l.b16 %v2012
    %v3880 = vunpack.c.h.b16 %v2012
    %v3881 = vunpack.c.l.b16 %v2013
    %v3882 = vunpack.c.h.b16 %v2013
    %v3883 = vunpack.c.l.b16 %v2014
    %v3884 = vunpack.c.h.b16 %v2014
    %v3885 = vunpack.c.l.b16 %v2015
    %v3886 = vunpack.c.h.b16 %v2015
    %v3887 = vunpack.c.l.b16 %v2016
    %v3888 = vunpack.c.h.b16 %v2016
    %v3889 = vunpack.c.l.b16 %v2017
    %v3890 = vunpack.c.h.b16 %v2017
    %v3891 = vunpack.c.l.b16 %v2018
    %v3892 = vunpack.c.h.b16 %v2018
    %v3893 = vunpack.c.l.b16 %v2019
    %v3894 = vunpack.c.h.b16 %v2019
    %v3895 = vunpack.c.l.b16 %v2020
    %v3896 = vunpack.c.h.b16 %v2020
    %v3897 = vunpack.c.l.b16 %v2021
    %v3898 = vunpack.c.h.b16 %v2021
    %v3899 = vunpack.c.l.b16 %v2022
    %v3900 = vunpack.c.h.b16 %v2022
    %v3901 = vunpack.c.l.b16 %v2023
    %v3902 = vunpack.c.h.b16 %v2023
    %v3903 = vunpack.c.l.b16 %v2024
    %v3904 = vunpack.c.h.b16 %v2024
    %v3905 = vunpack.c.l.b16 %v2025
    %v3906 = vunpack.c.h.b16 %v2025
    %v3907 = vunpack.c.l.b16 %v2026
    %v3908 = vunpack.c.h.b16 %v2026
    %v3909 = vunpack.c.l.b16 %v2027
    %v3910 = vunpack.c.h.b16 %v2027
    %v3911 = vunpack.c.l.b16 %v2028
    %v3912 = vunpack.c.h.b16 %v2028
    %v3913 = vunpack.c.l.b16 %v2029
    %v3914 = vunpack.c.h.b16 %v2029
    %v3915 = vunpack.c.l.b16 %v2030
    %v3916 = vunpack.c.h.b16 %v2030
    %v3917 = vunpack.c.l.b16 %v2031
    %v3918 = vunpack.c.h.b16 %v2031
    %v3919 = vunpack.c.l.b16 %v2032
    %v3920 = vunpack.c.h.b16 %v2032
    %v3921 = vunpack.c.l.b16 %v2033
    %v3922 = vunpack.c.h.b16 %v2033
    %v3923 = vunpack.c.l.b16 %v2034
    %v3924 = vunpack.c.h.b16 %v2034
    %v3925 = vunpack.c.l.b16 %v2035
    %v3926 = vunpack.c.h.b16 %v2035
    %v3927 = vunpack.c.l.b16 %v2036
    %v3928 = vunpack.c.h.b16 %v2036
    %v3929 = vunpack.c.l.b16 %v2037
    %v3930 = vunpack.c.h.b16 %v2037
    %v3931 = vunpack.c.l.b16 %v2038
    %v3932 = vunpack.c.h.b16 %v2038
    %v3933 = vunpack.c.l.b16 %v2039
    %v3934 = vunpack.c.h.b16 %v2039
    %v3935 = vunpack.c.l.b16 %v2040
    %v3936 = vunpack.c.h.b16 %v2040
    %v3937 = vunpack.c.l.b16 %v2041
    %v3938 = vunpack.c.h.b16 %v2041
    %v3939 = vunpack.c.l.b16 %v2042
    %v3940 = vunpack.c.h.b16 %v2042
    %v3941 = vunpack.c.l.b16 %v2043
    %v3942 = vunpack.c.h.b16 %v2043
    %v3943 = vunpack.c.l.b16 %v2044
    %v3944 = vunpack.c.h.b16 %v2044
    %v3945 = vunpack.c.l.b16 %v2045
    %v3946 = vunpack.c.h.b16 %v2045
    %v3947 = vunpack.c.l.b16 %v2046
    %v3948 = vunpack.c.h.b16 %v2046
    %v3949 = vunpack.c.l.b16 %v2047
    %v3950 = vunpack.c.h.b16 %v2047
    %v3951 = vunpack.c.l.b16 %v2048
    %v3952 = vunpack.c.h.b16 %v2048
    %v3953 = vunpack.c.l.b16 %v2049
    %v3954 = vunpack.c.h.b16 %v2049
    %v3955 = vunpack.c.l.b16 %v2050
    %v3956 = vunpack.c.h.b16 %v2050
    %v3957 = vunpack.c.l.b16 %v2051
    %v3958 = vunpack.c.h.b16 %v2051
    %v3959 = vunpack.c.l.b16 %v2052
    %v3960 = vunpack.c.h.b16 %v2052
    %v3961 = vunpack.c.l.b16 %v2053
    %v3962 = vunpack.c.h.b16 %v2053
    %v3963 = vunpack.c.l.b16 %v2054
    %v3964 = vunpack.c.h.b16 %v2054
    %v3965 = vunpack.c.l.b16 %v2055
    %v3966 = vunpack.c.h.b16 %v2055
    %v3967 = vunpack.c.l.b16 %v2056
    %v3968 = vunpack.c.h.b16 %v2056
    %v3969 = vunpack.c.l.b16 %v2057
    %v3970 = vunpack.c.h.b16 %v2057
    %v3971 = vunpack.c.l.b16 %v2058
    %v3972 = vunpack.c.h.b16 %v2058
    %v3973 = vunpack.c.l.b16 %v2059
    %v3974 = vunpack.c.h.b16 %v2059
    %v3975 = vunpack.c.l.b16 %v2060
    %v3976 = vunpack.c.h.b16 %v2060
    %v3977 = vunpack.c.l.b16 %v2061
    %v3978 = vunpack.c.h.b16 %v2061
    %v3979 = vunpack.c.l.b16 %v2062
    %v3980 = vunpack.c.h.b16 %v2062
    %v3981 = vunpack.c.l.b16 %v2063
    %v3982 = vunpack.c.h.b16 %v2063
    %v3983 = vunpack.c.l.b16 %v2064
    %v3984 = vunpack.c.h.b16 %v2064
    %v3985 = vunpack.c.l.b16 %v2065
    %v3986 = vunpack.c.h.b16 %v2065
    %v3987 = vunpack.c.l.b16 %v2066
    %v3988 = vunpack.c.h.b16 %v2066
    %v3989 = vunpack.c.l.b16 %v2067
    %v3990 = vunpack.c.h.b16 %v2067
    %v3991 = vunpack.c.l.b16 %v2068
    %v3992 = vunpack.c.h.b16 %v2068
    %v3993 = vunpack.c.l.b16 %v2069
    %v3994 = vunpack.c.h.b16 %v2069
    %v3995 = vunpack.c.l.b16 %v2070
    %v3996 = vunpack.c.h.b16 %v2070
    %v3997 = vunpack.c.l.b16 %v2071
    %v3998 = vunpack.c.h.b16 %v2071
    %v3999 = vunpack.c.l.b16 %v2072
    %v4000 = vunpack.c.h.b16 %v2072
    %v4001 = vunpack.c.l.b16 %v2073
    %v4002 = vunpack.c.h.b16 %v2073
    %v4003 = vunpack.c.l.b16 %v2074
    %v4004 = vunpack.c.h.b16 %v2074
    %v4005 = vunpack.c.l.b16 %v2075
    %v4006 = vunpack.c.h.b16 %v2075
    %v4007 = vunpack.c.l.b16 %v2076
    %v4008 = vunpack.c.h.b16 %v2076
    %v4009 = vunpack.c.l.b16 %v2077
    %v4010 = vunpack.c.h.b16 %v2077
    %v4011 = vunpack.c.l.b16 %v2078
    %v4012 = vunpack.c.h.b16 %v2078
    %v4013 = vunpack.c.l.b16 %v2079
    %v4014 = vunpack.c.h.b16 %v2079
    %v4015 = vunpack.c.l.b16 %v2080
    %v4016 = vunpack.c.h.b16 %v2080
    %v4017 = vunpack.c.l.b16 %v2081
    %v4018 = vunpack.c.h.b16 %v2081
    %v4019 = vunpack.c.l.b16 %v2082
    %v4020 = vunpack.c.h.b16 %v2082
    %v4021 = vunpack.c.l.b16 %v2083
    %v4022 = vunpack.c.h.b16 %v2083
    %v4023 = vunpack.c.l.b16 %v2084
    %v4024 = vunpack.c.h.b16 %v2084
    %v4025 = vunpack.c.l.b16 %v2085
    %v4026 = vunpack.c.h.b16 %v2085
    %v4027 = vunpack.c.l.b16 %v2086
    %v4028 = vunpack.c.h.b16 %v2086
    %v4029 = vunpack.c.l.b16 %v2087
    %v4030 = vunpack.c.h.b16 %v2087
    %v4031 = vunpack.c.l.b16 %v2088
    %v4032 = vunpack.c.h.b16 %v2088
    %v4033 = vunpack.c.l.b16 %v2089
    %v4034 = vunpack.c.h.b16 %v2089
    %v4035 = vunpack.c.l.b16 %v2090
    %v4036 = vunpack.c.h.b16 %v2090
    %v4037 = vunpack.c.l.b16 %v2091
    %v4038 = vunpack.c.h.b16 %v2091
    %v4039 = vunpack.c.l.b16 %v2092
    %v4040 = vunpack.c.h.b16 %v2092
    %v4041 = vunpack.c.l.b16 %v2093
    %v4042 = vunpack.c.h.b16 %v2093
    %v4043 = vunpack.c.l.b16 %v2094
    %v4044 = vunpack.c.h.b16 %v2094
    %v4045 = vunpack.c.l.b16 %v2095
    %v4046 = vunpack.c.h.b16 %v2095
    %v4047 = vunpack.c.l.b16 %v2096
    %v4048 = vunpack.c.h.b16 %v2096
    %v4049 = vunpack.c.l.b16 %v2097
    %v4050 = vunpack.c.h.b16 %v2097
    %v4051 = vunpack.c.l.b16 %v2098
    %v4052 = vunpack.c.h.b16 %v2098
    %v4053 = vunpack.c.l.b16 %v2099
    %v4054 = vunpack.c.h.b16 %v2099
    %v4055 = vunpack.c.l.b16 %v2100
    %v4056 = vunpack.c.h.b16 %v2100
    %v4057 = vunpack.c.l.b16 %v2101
    %v4058 = vunpack.c.h.b16 %v2101
    %v4059 = vunpack.c.l.b16 %v2102
    %v4060 = vunpack.c.h.b16 %v2102
    %v4061 = vunpack.c.l.b16 %v2103
    %v4062 = vunpack.c.h.b16 %v2103
    %v4063 = vunpack.c.l.b16 %v2104
    %v4064 = vunpack.c.h.b16 %v2104
    %v4065 = vunpack.c.l.b16 %v2105
    %v4066 = vunpack.c.h.b16 %v2105
    %v4067 = vunpack.c.l.b16 %v2106
    %v4068 = vunpack.c.h.b16 %v2106
    %v4069 = vunpack.c.l.b16 %v2107
    %v4070 = vunpack.c.h.b16 %v2107
    %v4071 = vunpack.c.l.b16 %v2108
    %v4072 = vunpack.c.h.b16 %v2108
    %v4073 = vunpack.c.l.b16 %v2109
    %v4074 = vunpack.c.h.b16 %v2109
    %v4075 = vunpack.c.l.b16 %v2110
    %v4076 = vunpack.c.h.b16 %v2110
    %v4077 = vunpack.c.l.b16 %v2111
    %v4078 = vunpack.c.h.b16 %v2111
    %v4079 = vunpack.c.l.b16 %v2112
    %v4080 = vunpack.c.h.b16 %v2112
    %v4081 = vunpack.c.l.b16 %v2113
    %v4082 = vunpack.c.h.b16 %v2113
    %v4083 = vunpack.c.l.b16 %v2114
    %v4084 = vunpack.c.h.b16 %v2114
    %v4085 = vunpack.c.l.b16 %v2115
    %v4086 = vunpack.c.h.b16 %v2115
    %v4087 = vunpack.c.l.b16 %v2116
    %v4088 = vunpack.c.h.b16 %v2116
    %v4089 = vunpack.c.l.b16 %v2117
    %v4090 = vunpack.c.h.b16 %v2117
    %v4091 = vunpack.c.l.b16 %v2118
    %v4092 = vunpack.c.h.b16 %v2118
    %v4093 = vunpack.c.l.b16 %v2119
    %v4094 = vunpack.c.h.b16 %v2119
    %v4095 = vunpack.c.l.b16 %v2120
    %v4096 = vunpack.c.h.b16 %v2120
    %v4097 = vunpack.c.l.b16 %v2121
    %v4098 = vunpack.c.h.b16 %v2121
    %v4099 = vunpack.c.l.b16 %v2122
    %v4100 = vunpack.c.h.b16 %v2122
    %v4101 = vunpack.c.l.b16 %v2123
    %v4102 = vunpack.c.h.b16 %v2123
    %v4103 = vunpack.c.l.b16 %v2124
    %v4104 = vunpack.c.h.b16 %v2124
    %v4105 = vunpack.c.l.b16 %v2125
    %v4106 = vunpack.c.h.b16 %v2125
    %v4107 = vunpack.c.l.b16 %v2126
    %v4108 = vunpack.c.h.b16 %v2126
    %v4109 = vunpack.c.l.b16 %v2127
    %v4110 = vunpack.c.h.b16 %v2127
    %v4111 = vunpack.c.l.b16 %v2128
    %v4112 = vunpack.c.h.b16 %v2128
    %v4113 = vunpack.c.l.b16 %v2129
    %v4114 = vunpack.c.h.b16 %v2129
    %v4115 = vunpack.c.l.b16 %v2130
    %v4116 = vunpack.c.h.b16 %v2130
    %v4117 = vunpack.c.l.b16 %v2131
    %v4118 = vunpack.c.h.b16 %v2131
    %v4119 = vunpack.c.l.b16 %v2132
    %v4120 = vunpack.c.h.b16 %v2132
    %v4121 = vunpack.c.l.b16 %v2133
    %v4122 = vunpack.c.h.b16 %v2133
    %v4123 = vunpack.c.l.b16 %v2134
    %v4124 = vunpack.c.h.b16 %v2134
    %v4125 = vunpack.c.l.b16 %v2135
    %v4126 = vunpack.c.h.b16 %v2135
    %v4127 = vunpack.c.l.b16 %v2136
    %v4128 = vunpack.c.h.b16 %v2136
    %v4129 = vunpack.c.l.b16 %v2137
    %v4130 = vunpack.c.h.b16 %v2137
    %v4131 = vunpack.c.l.b16 %v2138
    %v4132 = vunpack.c.h.b16 %v2138
    %v4133 = vunpack.c.l.b16 %v2139
    %v4134 = vunpack.c.h.b16 %v2139
    %v4135 = vunpack.c.l.b16 %v2140
    %v4136 = vunpack.c.h.b16 %v2140
    %v4137 = vunpack.c.l.b16 %v2141
    %v4138 = vunpack.c.h.b16 %v2141
    %v4139 = vunpack.c.l.b16 %v2142
    %v4140 = vunpack.c.h.b16 %v2142
    %v4141 = vunpack.c.l.b16 %v2143
    %v4142 = vunpack.c.h.b16 %v2143
    %v4143 = vunpack.c.l.b16 %v2144
    %v4144 = vunpack.c.h.b16 %v2144
    %v4145 = vunpack.c.l.b16 %v2145
    %v4146 = vunpack.c.h.b16 %v2145
    %v4147 = vunpack.c.l.b16 %v2146
    %v4148 = vunpack.c.h.b16 %v2146
    %v4149 = vunpack.c.l.b16 %v2147
    %v4150 = vunpack.c.h.b16 %v2147
    %v4151 = vunpack.c.l.b16 %v2148
    %v4152 = vunpack.c.h.b16 %v2148
    %v4153 = vunpack.c.l.b16 %v2149
    %v4154 = vunpack.c.h.b16 %v2149
    %v4155 = vunpack.c.l.b16 %v2150
    %v4156 = vunpack.c.h.b16 %v2150
    %v4157 = vunpack.c.l.b16 %v2151
    %v4158 = vunpack.c.h.b16 %v2151
    %v4159 = vunpack.c.l.b16 %v2152
    %v4160 = vunpack.c.h.b16 %v2152
    %v4161 = vunpack.c.l.b16 %v2153
    %v4162 = vunpack.c.h.b16 %v2153
    %v4163 = vunpack.c.l.b16 %v2154
    %v4164 = vunpack.c.h.b16 %v2154
    %v4165 = vunpack.c.l.b16 %v2155
    %v4166 = vunpack.c.h.b16 %v2155
    %v4167 = vunpack.c.l.b16 %v2156
    %v4168 = vunpack.c.h.b16 %v2156
    %v4169 = vunpack.c.l.b16 %v2157
    %v4170 = vunpack.c.h.b16 %v2157
    %v4171 = vunpack.c.l.b16 %v2158
    %v4172 = vunpack.c.h.b16 %v2158
    %v4173 = vunpack.c.l.b16 %v2159
    %v4174 = vunpack.c.h.b16 %v2159
    %v4175 = vunpack.c.l.b16 %v2160
    %v4176 = vunpack.c.h.b16 %v2160
    %v4177 = vunpack.c.l.b16 %v2161
    %v4178 = vunpack.c.h.b16 %v2161
    %v4179 = vunpack.c.l.b16 %v2162
    %v4180 = vunpack.c.h.b16 %v2162
    %v4181 = vunpack.c.l.b16 %v2163
    %v4182 = vunpack.c.h.b16 %v2163
    %v4183 = vunpack.c.l.b16 %v2164
    %v4184 = vunpack.c.h.b16 %v2164
    %v4185 = vunpack.c.l.b16 %v2165
    %v4186 = vunpack.c.h.b16 %v2165
    %v4187 = vunpack.c.l.b16 %v2166
    %v4188 = vunpack.c.h.b16 %v2166
    %v4189 = vunpack.c.l.b16 %v2167
    %v4190 = vunpack.c.h.b16 %v2167
    %v4191 = vunpack.c.l.b16 %v2168
    %v4192 = vunpack.c.h.b16 %v2168
    %v4193 = vunpack.c.l.b16 %v2169
    %v4194 = vunpack.c.h.b16 %v2169
    %v4195 = vunpack.c.l.b16 %v2170
    %v4196 = vunpack.c.h.b16 %v2170
    %v4197 = vunpack.c.l.b16 %v2171
    %v4198 = vunpack.c.h.b16 %v2171
    %v4199 = vunpack.c.l.b16 %v2172
    %v4200 = vunpack.c.h.b16 %v2172
    %v4201 = vunpack.c.l.b16 %v2173
    %v4202 = vunpack.c.h.b16 %v2173
    %v4203 = vunpack.c.l.b16 %v2174
    %v4204 = vunpack.c.h.b16 %v2174
    %v4205 = vunpack.c.l.b16 %v2175
    %v4206 = vunpack.c.h.b16 %v2175
    %v4207 = vunpack.c.l.b16 %v2176
    %v4208 = vunpack.c.h.b16 %v2176
    %v4209 = vunpack.c.l.b16 %v2177
    %v4210 = vunpack.c.h.b16 %v2177
    %v4211 = vunpack.c.l.b16 %v2178
    %v4212 = vunpack.c.h.b16 %v2178
    %v4213 = vunpack.c.l.b16 %v2179
    %v4214 = vunpack.c.h.b16 %v2179
    %v4215 = vunpack.c.l.b16 %v2180
    %v4216 = vunpack.c.h.b16 %v2180
    %v4217 = vunpack.c.l.b16 %v2181
    %v4218 = vunpack.c.h.b16 %v2181
    %v4219 = vunpack.c.l.b16 %v2182
    %v4220 = vunpack.c.h.b16 %v2182
    %v4221 = vunpack.c.l.b16 %v2183
    %v4222 = vunpack.c.h.b16 %v2183
    %v4223 = vunpack.c.l.b16 %v2184
    %v4224 = vunpack.c.h.b16 %v2184
    %v4225 = vunpack.c.l.b16 %v2185
    %v4226 = vunpack.c.h.b16 %v2185
    %v4227 = vunpack.c.l.b16 %v2186
    %v4228 = vunpack.c.h.b16 %v2186
    %v4229 = vunpack.c.l.b16 %v2187
    %v4230 = vunpack.c.h.b16 %v2187
    %v4231 = vunpack.c.l.b16 %v2188
    %v4232 = vunpack.c.h.b16 %v2188
    %v4233 = vunpack.c.l.b16 %v2189
    %v4234 = vunpack.c.h.b16 %v2189
    %v4235 = vunpack.c.l.b16 %v2190
    %v4236 = vunpack.c.h.b16 %v2190
    %v4237 = vunpack.c.l.b16 %v2191
    %v4238 = vunpack.c.h.b16 %v2191
    %v4239 = vunpack.c.l.b16 %v2192
    %v4240 = vunpack.c.h.b16 %v2192
    %v4241 = vunpack.c.l.b16 %v2193
    %v4242 = vunpack.c.h.b16 %v2193
    %v4243 = vunpack.c.l.b16 %v2194
    %v4244 = vunpack.c.h.b16 %v2194
    %v4245 = vunpack.c.l.b16 %v2195
    %v4246 = vunpack.c.h.b16 %v2195
    %v4247 = vunpack.c.l.b16 %v2196
    %v4248 = vunpack.c.h.b16 %v2196
    %v4249 = vunpack.c.l.b16 %v2197
    %v4250 = vunpack.c.h.b16 %v2197
    %v4251 = vunpack.c.l.b16 %v2198
    %v4252 = vunpack.c.h.b16 %v2198
    %v4253 = vunpack.c.l.b16 %v2199
    %v4254 = vunpack.c.h.b16 %v2199
    %v4255 = vunpack.c.l.b16 %v2200
    %v4256 = vunpack.c.h.b16 %v2200
    %v4257 = vunpack.c.l.b16 %v2201
    %v4258 = vunpack.c.h.b16 %v2201
    %v4259 = vunpack.c.l.b16 %v2202
    %v4260 = vunpack.c.h.b16 %v2202
    %v4261 = vunpack.c.l.b16 %v2203
    %v4262 = vunpack.c.h.b16 %v2203
    %v4263 = vunpack.c.l.b16 %v2204
    %v4264 = vunpack.c.h.b16 %v2204
    %v4265 = vunpack.c.l.b16 %v2205
    %v4266 = vunpack.c.h.b16 %v2205
    %v4267 = vunpack.c.l.b16 %v2206
    %v4268 = vunpack.c.h.b16 %v2206
    %v4269 = vunpack.c.l.b16 %v2207
    %v4270 = vunpack.c.h.b16 %v2207
    %v4271 = vunpack.c.l.b16 %v2208
    %v4272 = vunpack.c.h.b16 %v2208
    %v4273 = vunpack.c.l.b16 %v2209
    %v4274 = vunpack.c.h.b16 %v2209
    %v4275 = vunpack.c.l.b16 %v2210
    %v4276 = vunpack.c.h.b16 %v2210
    %v4277 = vunpack.c.l.b16 %v2211
    %v4278 = vunpack.c.h.b16 %v2211
    %v4279 = vunpack.c.l.b16 %v2212
    %v4280 = vunpack.c.h.b16 %v2212
    %v4281 = vunpack.c.l.b16 %v2213
    %v4282 = vunpack.c.h.b16 %v2213
    %v4283 = vunpack.c.l.b16 %v2214
    %v4284 = vunpack.c.h.b16 %v2214
    %v4285 = vunpack.c.l.b16 %v2215
    %v4286 = vunpack.c.h.b16 %v2215
    %v4287 = vunpack.c.l.b16 %v2216
    %v4288 = vunpack.c.h.b16 %v2216
    %v4289 = vunpack.c.l.b16 %v2217
    %v4290 = vunpack.c.h.b16 %v2217
    %v4291 = vunpack.c.l.b16 %v2218
    %v4292 = vunpack.c.h.b16 %v2218
    %v4293 = vunpack.c.l.b16 %v2219
    %v4294 = vunpack.c.h.b16 %v2219
    %v4295 = vunpack.c.l.b16 %v2220
    %v4296 = vunpack.c.h.b16 %v2220
    %v4297 = vunpack.c.l.b16 %v2221
    %v4298 = vunpack.c.h.b16 %v2221
    %v4299 = vunpack.c.l.b16 %v2222
    %v4300 = vunpack.c.h.b16 %v2222
    %v4301 = vunpack.c.l.b16 %v2223
    %v4302 = vunpack.c.h.b16 %v2223
    %v4303 = vunpack.c.l.b16 %v2224
    %v4304 = vunpack.c.h.b16 %v2224
    %v4305 = vunpack.c.l.b16 %v2225
    %v4306 = vunpack.c.h.b16 %v2225
    %v4307 = vunpack.c.l.b16 %v2226
    %v4308 = vunpack.c.h.b16 %v2226
    %v4309 = vunpack.c.l.b16 %v2227
    %v4310 = vunpack.c.h.b16 %v2227
    %v4311 = vunpack.c.l.b16 %v2228
    %v4312 = vunpack.c.h.b16 %v2228
    %v4313 = vunpack.c.l.b16 %v2229
    %v4314 = vunpack.c.h.b16 %v2229
    %v4315 = vunpack.c.l.b16 %v2230
    %v4316 = vunpack.c.h.b16 %v2230
    %v4317 = vunpack.c.l.b16 %v2231
    %v4318 = vunpack.c.h.b16 %v2231
    %v4319 = vunpack.c.l.b16 %v2232
    %v4320 = vunpack.c.h.b16 %v2232
    %v4321 = vunpack.c.l.b16 %v2233
    %v4322 = vunpack.c.h.b16 %v2233
    %v4323 = vunpack.c.l.b16 %v2234
    %v4324 = vunpack.c.h.b16 %v2234
    %v4325 = vunpack.c.l.b16 %v2235
    %v4326 = vunpack.c.h.b16 %v2235
    %v4327 = vunpack.c.l.b16 %v2236
    %v4328 = vunpack.c.h.b16 %v2236
    %v4329 = vunpack.c.l.b16 %v2237
    %v4330 = vunpack.c.h.b16 %v2237
    %v4331 = vunpack.c.l.b16 %v2238
    %v4332 = vunpack.c.h.b16 %v2238
    %v4333 = vunpack.c.l.b16 %v2239
    %v4334 = vunpack.c.h.b16 %v2239
    %v4335 = vunpack.c.l.b16 %v2240
    %v4336 = vunpack.c.h.b16 %v2240
    %v4337 = vunpack.c.l.b16 %v2241
    %v4338 = vunpack.c.h.b16 %v2241
    %v4339 = vunpack.c.l.b16 %v2242
    %v4340 = vunpack.c.h.b16 %v2242
    %v4341 = vunpack.c.l.b16 %v2243
    %v4342 = vunpack.c.h.b16 %v2243
    %v4343 = vunpack.c.l.b16 %v2244
    %v4344 = vunpack.c.h.b16 %v2244
    %v4345 = vunpack.c.l.b16 %v2245
    %v4346 = vunpack.c.h.b16 %v2245
    %v4347 = vunpack.c.l.b16 %v2246
    %v4348 = vunpack.c.h.b16 %v2246
    %v4349 = vunpack.c.l.b16 %v2247
    %v4350 = vunpack.c.h.b16 %v2247
    %v4351 = vunpack.c.l.b16 %v2248
    %v4352 = vunpack.c.h.b16 %v2248
    %v4353 = vunpack.c.l.b16 %v2249
    %v4354 = vunpack.c.h.b16 %v2249
    %v4355 = vunpack.c.l.b16 %v2250
    %v4356 = vunpack.c.h.b16 %v2250
    %v4357 = vunpack.c.l.b16 %v2251
    %v4358 = vunpack.c.h.b16 %v2251
    %v4359 = vunpack.c.l.b16 %v2252
    %v4360 = vunpack.c.h.b16 %v2252
    %v4361 = vunpack.c.l.b16 %v2253
    %v4362 = vunpack.c.h.b16 %v2253
    %v4363 = vunpack.c.l.b16 %v2254
    %v4364 = vunpack.c.h.b16 %v2254
    %v4365 = vunpack.c.l.b16 %v2255
    %v4366 = vunpack.c.h.b16 %v2255
    %v4367 = vunpack.c.l.b16 %v2256
    %v4368 = vunpack.c.h.b16 %v2256
    %v4369 = vunpack.c.l.b16 %v2257
    %v4370 = vunpack.c.h.b16 %v2257
    %v4371 = vunpack.c.l.b16 %v2258
    %v4372 = vunpack.c.h.b16 %v2258
    %v4373 = vunpack.c.l.b16 %v2259
    %v4374 = vunpack.c.h.b16 %v2259
    %v4375 = vunpack.c.l.b16 %v2260
    %v4376 = vunpack.c.h.b16 %v2260
    %v4377 = vunpack.c.l.b16 %v2261
    %v4378 = vunpack.c.h.b16 %v2261
    %v4379 = vunpack.c.l.b16 %v2262
    %v4380 = vunpack.c.h.b16 %v2262
    %v4381 = vunpack.c.l.b16 %v2263
    %v4382 = vunpack.c.h.b16 %v2263
    %v4383 = vunpack.c.l.b16 %v2264
    %v4384 = vunpack.c.h.b16 %v2264
    %v4385 = vunpack.c.l.b16 %v2265
    %v4386 = vunpack.c.h.b16 %v2265
    %v4387 = vunpack.c.l.b16 %v2266
    %v4388 = vunpack.c.h.b16 %v2266
    %v4389 = vunpack.c.l.b16 %v2267
    %v4390 = vunpack.c.h.b16 %v2267
    %v4391 = vunpack.c.l.b16 %v2268
    %v4392 = vunpack.c.h.b16 %v2268
    %v4393 = vunpack.c.l.b16 %v2269
    %v4394 = vunpack.c.h.b16 %v2269
    %v4395 = vunpack.c.l.b16 %v2270
    %v4396 = vunpack.c.h.b16 %v2270
    %v4397 = vunpack.c.l.b16 %v2271
    %v4398 = vunpack.c.h.b16 %v2271
    %v4399 = vunpack.c.l.b16 %v2272
    %v4400 = vunpack.c.h.b16 %v2272
    %v4401 = vunpack.c.l.b16 %v2273
    %v4402 = vunpack.c.h.b16 %v2273
    %v4403 = vunpack.c.l.b16 %v2274
    %v4404 = vunpack.c.h.b16 %v2274
    %v4405 = vunpack.c.l.b16 %v2275
    %v4406 = vunpack.c.h.b16 %v2275
    %v4407 = vunpack.c.l.b16 %v2276
    %v4408 = vunpack.c.h.b16 %v2276
    %v4409 = vunpack.c.l.b16 %v2277
    %v4410 = vunpack.c.h.b16 %v2277
    %v4411 = vunpack.c.l.b16 %v2278
    %v4412 = vunpack.c.h.b16 %v2278
    %v4413 = vunpack.c.l.b16 %v2279
    %v4414 = vunpack.c.h.b16 %v2279
    %v4415 = vunpack.c.l.b16 %v2280
    %v4416 = vunpack.c.h.b16 %v2280
    %v4417 = vunpack.c.l.b16 %v2281
    %v4418 = vunpack.c.h.b16 %v2281
    %v4419 = vunpack.c.l.b16 %v2282
    %v4420 = vunpack.c.h.b16 %v2282
    %v4421 = vunpack.c.l.b16 %v2283
    %v4422 = vunpack.c.h.b16 %v2283
    %v4423 = vunpack.c.l.b16 %v2284
    %v4424 = vunpack.c.h.b16 %v2284
    %v4425 = vunpack.c.l.b16 %v2285
    %v4426 = vunpack.c.h.b16 %v2285
    %v4427 = vunpack.c.l.b16 %v2286
    %v4428 = vunpack.c.h.b16 %v2286
    %v4429 = vunpack.c.l.b16 %v2287
    %v4430 = vunpack.c.h.b16 %v2287
    %v4431 = vunpack.c.l.b16 %v2288
    %v4432 = vunpack.c.h.b16 %v2288
    %v4433 = vunpack.c.l.b16 %v2289
    %v4434 = vunpack.c.h.b16 %v2289
    %v4435 = vunpack.c.l.b16 %v2290
    %v4436 = vunpack.c.h.b16 %v2290
    %v4437 = vunpack.c.l.b16 %v2291
    %v4438 = vunpack.c.h.b16 %v2291
    %v4439 = vunpack.c.l.b16 %v2292
    %v4440 = vunpack.c.h.b16 %v2292
    %v4441 = vunpack.c.l.b16 %v2293
    %v4442 = vunpack.c.h.b16 %v2293
    %v4443 = vunpack.c.l.b16 %v2294
    %v4444 = vunpack.c.h.b16 %v2294
    %v4445 = vunpack.c.l.b16 %v2295
    %v4446 = vunpack.c.h.b16 %v2295
    %v4447 = vunpack.c.l.b16 %v2296
    %v4448 = vunpack.c.h.b16 %v2296
    %v4449 = vunpack.c.l.b16 %v2297
    %v4450 = vunpack.c.h.b16 %v2297
    %v4451 = vunpack.c.l.b16 %v2298
    %v4452 = vunpack.c.h.b16 %v2298
    %v4453 = vunpack.c.l.b16 %v2299
    %v4454 = vunpack.c.h.b16 %v2299
    %v4455 = vunpack.c.l.b16 %v2300
    %v4456 = vunpack.c.h.b16 %v2300
    %v4457 = vunpack.c.l.b16 %v2301
    %v4458 = vunpack.c.h.b16 %v2301
    %v4459 = vunpack.c.l.b16 %v2302
    %v4460 = vunpack.c.h.b16 %v2302
    %v4461 = vunpack.c.l.b16 %v2303
    %v4462 = vunpack.c.h.b16 %v2303
    %v4463 = vunpack.c.l.b16 %v2304
    %v4464 = vunpack.c.h.b16 %v2304
    %v4465 = vunpack.c.l.b16 %v2305
    %v4466 = vunpack.c.h.b16 %v2305
    %v4467 = vunpack.c.l.b16 %v2306
    %v4468 = vunpack.c.h.b16 %v2306
    %v4469 = vunpack.c.l.b16 %v2307
    %v4470 = vunpack.c.h.b16 %v2307
    %v4471 = vunpack.c.l.b16 %v2308
    %v4472 = vunpack.c.h.b16 %v2308
    %v4473 = vunpack.c.l.b16 %v2309
    %v4474 = vunpack.c.h.b16 %v2309
    %v4475 = vunpack.c.l.b16 %v2310
    %v4476 = vunpack.c.h.b16 %v2310
    %v4477 = vunpack.c.l.b16 %v2311
    %v4478 = vunpack.c.h.b16 %v2311
    %v4479 = vunpack.c.l.b16 %v2312
    %v4480 = vunpack.c.h.b16 %v2312
    %v4481 = vunpack.c.l.b16 %v2313
    %v4482 = vunpack.c.h.b16 %v2313
    %v4483 = vunpack.c.l.b16 %v2314
    %v4484 = vunpack.c.h.b16 %v2314
    %v4485 = vunpack.c.l.b16 %v2315
    %v4486 = vunpack.c.h.b16 %v2315
    %v4487 = vunpack.c.l.b16 %v2316
    %v4488 = vunpack.c.h.b16 %v2316
    %v4489 = vunpack.c.l.b16 %v2317
    %v4490 = vunpack.c.h.b16 %v2317
    %v4491 = vunpack.c.l.b16 %v2318
    %v4492 = vunpack.c.h.b16 %v2318
    %v4493 = vunpack.c.l.b16 %v2319
    %v4494 = vunpack.c.h.b16 %v2319
    %v4495 = vunpack.c.l.b16 %v2320
    %v4496 = vunpack.c.h.b16 %v2320
    %v4497 = vunpack.c.l.b16 %v2321
    %v4498 = vunpack.c.h.b16 %v2321
    %v4499 = vunpack.c.l.b16 %v2322
    %v4500 = vunpack.c.h.b16 %v2322
    %v4501 = vunpack.c.l.b16 %v2323
    %v4502 = vunpack.c.h.b16 %v2323
    %v4503 = vunpack.c.l.b16 %v2324
    %v4504 = vunpack.c.h.b16 %v2324
    %v4505 = vunpack.c.l.b16 %v2325
    %v4506 = vunpack.c.h.b16 %v2325
    %v4507 = vunpack.c.l.b16 %v2326
    %v4508 = vunpack.c.h.b16 %v2326
    %v4509 = vunpack.c.l.b16 %v2327
    %v4510 = vunpack.c.h.b16 %v2327
    %v4511 = vunpack.c.l.b16 %v2328
    %v4512 = vunpack.c.h.b16 %v2328
    %v4513 = vunpack.c.l.b16 %v2329
    %v4514 = vunpack.c.h.b16 %v2329
    %v4515 = vunpack.c.l.b16 %v2330
    %v4516 = vunpack.c.h.b16 %v2330
    %v4517 = vunpack.c.l.b16 %v2331
    %v4518 = vunpack.c.h.b16 %v2331
    %v4519 = vunpack.c.l.b16 %v2332
    %v4520 = vunpack.c.h.b16 %v2332
    %v4521 = vunpack.c.l.b16 %v2333
    %v4522 = vunpack.c.h.b16 %v2333
    %v4523 = vunpack.c.l.b16 %v2334
    %v4524 = vunpack.c.h.b16 %v2334
    %v4525 = vunpack.c.l.b16 %v2335
    %v4526 = vunpack.c.h.b16 %v2335
    %v4527 = vunpack.c.l.b16 %v2336
    %v4528 = vunpack.c.h.b16 %v2336
    %v4529 = vunpack.c.l.b16 %v2337
    %v4530 = vunpack.c.h.b16 %v2337
    %v4531 = vunpack.c.l.b16 %v2338
    %v4532 = vunpack.c.h.b16 %v2338
    %v4533 = vunpack.c.l.b16 %v2339
    %v4534 = vunpack.c.h.b16 %v2339
    %v4535 = vunpack.c.l.b16 %v2340
    %v4536 = vunpack.c.h.b16 %v2340
    %v4537 = vunpack.c.l.b16 %v2341
    %v4538 = vunpack.c.h.b16 %v2341
    %v4539 = vunpack.c.l.b16 %v2342
    %v4540 = vunpack.c.h.b16 %v2342
    %v4541 = vunpack.c.l.b16 %v2343
    %v4542 = vunpack.c.h.b16 %v2343
    %v4543 = vunpack.c.l.b16 %v2344
    %v4544 = vunpack.c.h.b16 %v2344
    %v4545 = vunpack.c.l.b16 %v2345
    %v4546 = vunpack.c.h.b16 %v2345
    %v4547 = vunpack.c.l.b16 %v2346
    %v4548 = vunpack.c.h.b16 %v2346
    %v4549 = vunpack.c.l.b16 %v2347
    %v4550 = vunpack.c.h.b16 %v2347
    %v4551 = vunpack.c.l.b16 %v2348
    %v4552 = vunpack.c.h.b16 %v2348
    %v4553 = vunpack.c.l.b16 %v2349
    %v4554 = vunpack.c.h.b16 %v2349
    %v4555 = vunpack.c.l.b16 %v2350
    %v4556 = vunpack.c.h.b16 %v2350
    %v4557 = vunpack.c.l.b16 %v2351
    %v4558 = vunpack.c.h.b16 %v2351
    %v4559 = vunpack.c.l.b16 %v2352
    %v4560 = vunpack.c.h.b16 %v2352
    %v4561 = vunpack.c.l.b16 %v2353
    %v4562 = vunpack.c.h.b16 %v2353
    %v4563 = vunpack.c.l.b16 %v2354
    %v4564 = vunpack.c.h.b16 %v2354
    %v4565 = vunpack.c.l.b16 %v2355
    %v4566 = vunpack.c.h.b16 %v2355
    %v4567 = vunpack.c.l.b16 %v2356
    %v4568 = vunpack.c.h.b16 %v2356
    %v4569 = vunpack.c.l.b16 %v2357
    %v4570 = vunpack.c.h.b16 %v2357
    %v4571 = vunpack.c.l.b16 %v2358
    %v4572 = vunpack.c.h.b16 %v2358
    %v4573 = vunpack.c.l.b16 %v2359
    %v4574 = vunpack.c.h.b16 %v2359
    %v4575 = vunpack.c.l.b16 %v2360
    %v4576 = vunpack.c.h.b16 %v2360
    %v4577 = vunpack.c.l.b16 %v2361
    %v4578 = vunpack.c.h.b16 %v2361
    %v4579 = vunpack.c.l.b16 %v2362
    %v4580 = vunpack.c.h.b16 %v2362
    %v4581 = vunpack.c.l.b16 %v2363
    %v4582 = vunpack.c.h.b16 %v2363
    %v4583 = vunpack.c.l.b16 %v2364
    %v4584 = vunpack.c.h.b16 %v2364
    %v4585 = vunpack.c.l.b16 %v2365
    %v4586 = vunpack.c.h.b16 %v2365
    %v4587 = vunpack.c.l.b16 %v2366
    %v4588 = vunpack.c.h.b16 %v2366
    %v4589 = vunpack.c.l.b16 %v2367
    %v4590 = vunpack.c.h.b16 %v2367
    %v4591 = vunpack.c.l.b16 %v2368
    %v4592 = vunpack.c.h.b16 %v2368
    %v4593 = vunpack.c.l.b16 %v2369
    %v4594 = vunpack.c.h.b16 %v2369
    %v4595 = vunpack.c.l.b16 %v2370
    %v4596 = vunpack.c.h.b16 %v2370
    %v4597 = vunpack.c.l.b16 %v2371
    %v4598 = vunpack.c.h.b16 %v2371
    %v4599 = vunpack.c.l.b16 %v2372
    %v4600 = vunpack.c.h.b16 %v2372
    %v4601 = vunpack.c.l.b16 %v2373
    %v4602 = vunpack.c.h.b16 %v2373
    %v4603 = vunpack.c.l.b16 %v2374
    %v4604 = vunpack.c.h.b16 %v2374
    %v4605 = vunpack.c.l.b16 %v2375
    %v4606 = vunpack.c.h.b16 %v2375
    %v4607 = vunpack.c.l.b16 %v2376
    %v4608 = vunpack.c.h.b16 %v2376
    %v4609 = vunpack.c.l.b16 %v2377
    %v4610 = vunpack.c.h.b16 %v2377
    %v4611 = vunpack.c.l.b16 %v2378
    %v4612 = vunpack.c.h.b16 %v2378
    %v4613 = vunpack.c.l.b16 %v2379
    %v4614 = vunpack.c.h.b16 %v2379
    %v4615 = vunpack.c.l.b16 %v2380
    %v4616 = vunpack.c.h.b16 %v2380
    %v4617 = vunpack.c.l.b16 %v2381
    %v4618 = vunpack.c.h.b16 %v2381
    %v4619 = vunpack.c.l.b16 %v2382
    %v4620 = vunpack.c.h.b16 %v2382
    %v4621 = vunpack.c.l.b16 %v2383
    %v4622 = vunpack.c.h.b16 %v2383
    %v4623 = vunpack.c.l.b16 %v2384
    %v4624 = vunpack.c.h.b16 %v2384
    %v4625 = vunpack.c.l.b16 %v2385
    %v4626 = vunpack.c.h.b16 %v2385
    %v4627 = vunpack.c.l.b16 %v2386
    %v4628 = vunpack.c.h.b16 %v2386
    %v4629 = vunpack.c.l.b16 %v2387
    %v4630 = vunpack.c.h.b16 %v2387
    %v4631 = vunpack.c.l.b16 %v2388
    %v4632 = vunpack.c.h.b16 %v2388
    %v4633 = vunpack.c.l.b16 %v2389
    %v4634 = vunpack.c.h.b16 %v2389
    %v4635 = vunpack.c.l.b16 %v2390
    %v4636 = vunpack.c.h.b16 %v2390
    %v4637 = vunpack.c.l.b16 %v2391
    %v4638 = vunpack.c.h.b16 %v2391
    %v4639 = vunpack.c.l.b16 %v2392
    %v4640 = vunpack.c.h.b16 %v2392
    %v4641 = vunpack.c.l.b16 %v2393
    %v4642 = vunpack.c.h.b16 %v2393
    %v4643 = vunpack.c.l.b16 %v2394
    %v4644 = vunpack.c.h.b16 %v2394
    %v4645 = vunpack.c.l.b16 %v2395
    %v4646 = vunpack.c.h.b16 %v2395
    %v4647 = vunpack.c.l.b16 %v2396
    %v4648 = vunpack.c.h.b16 %v2396
    %v4649 = vunpack.c.l.b16 %v2397
    %v4650 = vunpack.c.h.b16 %v2397
    %v4651 = vunpack.c.l.b16 %v2398
    %v4652 = vunpack.c.h.b16 %v2398
    %v4653 = vunpack.c.l.b16 %v2399
    %v4654 = vunpack.c.h.b16 %v2399
    %v4655 = vunpack.c.l.b16 %v2400
    %v4656 = vunpack.c.h.b16 %v2400
    %v4657 = vunpack.c.l.b16 %v2401
    %v4658 = vunpack.c.h.b16 %v2401
    %v4659 = vunpack.c.l.b16 %v2402
    %v4660 = vunpack.c.h.b16 %v2402
    %v4661 = vunpack.c.l.b16 %v2403
    %v4662 = vunpack.c.h.b16 %v2403
    %v4663 = vunpack.c.l.b16 %v2404
    %v4664 = vunpack.c.h.b16 %v2404
    %v4665 = vunpack.c.l.b16 %v2405
    %v4666 = vunpack.c.h.b16 %v2405
    %v4667 = vunpack.c.l.b16 %v2406
    %v4668 = vunpack.c.h.b16 %v2406
    %v4669 = vunpack.c.l.b16 %v2407
    %v4670 = vunpack.c.h.b16 %v2407
    %v4671 = vunpack.c.l.b16 %v2408
    %v4672 = vunpack.c.h.b16 %v2408
    %v4673 = vunpack.c.l.b16 %v2409
    %v4674 = vunpack.c.h.b16 %v2409
    %v4675 = vunpack.c.l.b16 %v2410
    %v4676 = vunpack.c.h.b16 %v2410
    %v4677 = vunpack.c.l.b16 %v2411
    %v4678 = vunpack.c.h.b16 %v2411
    %v4679 = vunpack.c.l.b16 %v2412
    %v4680 = vunpack.c.h.b16 %v2412
    %v4681 = vunpack.c.l.b16 %v2413
    %v4682 = vunpack.c.h.b16 %v2413
    %v4683 = vunpack.c.l.b16 %v2414
    %v4684 = vunpack.c.h.b16 %v2414
    %v4685 = vunpack.c.l.b16 %v2415
    %v4686 = vunpack.c.h.b16 %v2415
    %v4687 = vunpack.c.l.b16 %v2416
    %v4688 = vunpack.c.h.b16 %v2416
    %v4689 = vunpack.c.l.b16 %v2417
    %v4690 = vunpack.c.h.b16 %v2417
    %v4691 = vunpack.c.l.b16 %v2418
    %v4692 = vunpack.c.h.b16 %v2418
    %v4693 = vunpack.c.l.b16 %v2419
    %v4694 = vunpack.c.h.b16 %v2419
    %v4695 = vunpack.c.l.b16 %v2420
    %v4696 = vunpack.c.h.b16 %v2420
    %v4697 = vunpack.c.l.b16 %v2421
    %v4698 = vunpack.c.h.b16 %v2421
    %v4699 = vunpack.c.l.b16 %v2422
    %v4700 = vunpack.c.h.b16 %v2422
    %v4701 = vunpack.c.l.b16 %v2423
    %v4702 = vunpack.c.h.b16 %v2423
    %v4703 = vunpack.c.l.b16 %v2424
    %v4704 = vunpack.c.h.b16 %v2424
    %v4705 = vunpack.c.l.b16 %v2425
    %v4706 = vunpack.c.h.b16 %v2425
    %v4707 = vunpack.c.l.b16 %v2426
    %v4708 = vunpack.c.h.b16 %v2426
    %v4709 = vunpack.c.l.b16 %v2427
    %v4710 = vunpack.c.h.b16 %v2427
    %v4711 = vunpack.c.l.b16 %v2428
    %v4712 = vunpack.c.h.b16 %v2428
    %v4713 = vunpack.c.l.b16 %v2429
    %v4714 = vunpack.c.h.b16 %v2429
    %v4715 = vunpack.c.l.b16 %v2430
    %v4716 = vunpack.c.h.b16 %v2430
    %v4717 = vunpack.c.l.b16 %v2431
    %v4718 = vunpack.c.h.b16 %v2431
    %v4719 = vunpack.c.l.b16 %v2432
    %v4720 = vunpack.c.h.b16 %v2432
    %v4721 = vunpack.c.l.b16 %v2433
    %v4722 = vunpack.c.h.b16 %v2433
    %v4723 = vunpack.c.l.b16 %v2434
    %v4724 = vunpack.c.h.b16 %v2434
    %v4725 = vunpack.c.l.b16 %v2435
    %v4726 = vunpack.c.h.b16 %v2435
    %v4727 = vunpack.c.l.b16 %v2436
    %v4728 = vunpack.c.h.b16 %v2436
    %v4729 = vunpack.c.l.b16 %v2437
    %v4730 = vunpack.c.h.b16 %v2437
    %v4731 = vunpack.c.l.b16 %v2438
    %v4732 = vunpack.c.h.b16 %v2438
    %v4733 = vunpack.c.l.b16 %v2439
    %v4734 = vunpack.c.h.b16 %v2439
    %v4735 = vunpack.c.l.b16 %v2440
    %v4736 = vunpack.c.h.b16 %v2440
    %v4737 = vunpack.c.l.b16 %v2441
    %v4738 = vunpack.c.h.b16 %v2441
    %v4739 = vunpack.c.l.b16 %v2442
    %v4740 = vunpack.c.h.b16 %v2442
    %v4741 = vunpack.c.l.b16 %v2443
    %v4742 = vunpack.c.h.b16 %v2443
    %v4743 = vunpack.c.l.b16 %v2444
    %v4744 = vunpack.c.h.b16 %v2444
    %v4745 = vunpack.c.l.b16 %v2445
    %v4746 = vunpack.c.h.b16 %v2445
    %v4747 = vunpack.c.l.b16 %v2446
    %v4748 = vunpack.c.h.b16 %v2446
    %v4749 = vunpack.c.l.b16 %v2447
    %v4750 = vunpack.c.h.b16 %v2447
    %v4751 = vunpack.c.l.b16 %v2448
    %v4752 = vunpack.c.h.b16 %v2448
    %v4753 = vpack.c.b16 %v3225, %v3217
    %v4754 = vpack.c.b16 %v3226, %v3218
    %v4755 = vpack.c.b16 %v3227, %v3219
    %v4756 = vpack.c.b16 %v3228, %v3220
    %v4757 = vpack.c.b16 %v3229, %v3221
    %v4758 = vpack.c.b16 %v3230, %v3222
    %v4759 = vpack.c.b16 %v3231, %v3223
    %v4760 = vpack.c.b16 %v3232, %v3224
    %v4761 = vpack.c.b16 %v3241, %v3233
    %v4762 = vpack.c.b16 %v3242, %v3234
    %v4763 = vpack.c.b16 %v3243, %v3235
    %v4764 = vpack.c.b16 %v3244, %v3236
    %v4765 = vpack.c.b16 %v3245, %v3237
    %v4766 = vpack.c.b16 %v3246, %v3238
    %v4767 = vpack.c.b16 %v3247, %v3239
    %v4768 = vpack.c.b16 %v3248, %v3240
    %v4769 = vpack.c.b16 %v3257, %v3249
    %v4770 = vpack.c.b16 %v3258, %v3250
    %v4771 = vpack.c.b16 %v3259, %v3251
    %v4772 = vpack.c.b16 %v3260, %v3252
    %v4773 = vpack.c.b16 %v3261, %v3253
    %v4774 = vpack.c.b16 %v3262, %v3254
    %v4775 = vpack.c.b16 %v3263, %v3255
    %v4776 = vpack.c.b16 %v3264, %v3256
    %v4777 = vpack.c.b16 %v3273, %v3265
    %v4778 = vpack.c.b16 %v3274, %v3266
    %v4779 = vpack.c.b16 %v3275, %v3267
    %v4780 = vpack.c.b16 %v3276, %v3268
    %v4781 = vpack.c.b16 %v3277, %v3269
    %v4782 = vpack.c.b16 %v3278, %v3270
    %v4783 = vpack.c.b16 %v3279, %v3271
    %v4784 = vpack.c.b16 %v3280, %v3272
    %v4785 = vpack.c.b16 %v3289, %v3281
    %v4786 = vpack.c.b16 %v3290, %v3282
    %v4787 = vpack.c.b16 %v3291, %v3283
    %v4788 = vpack.c.b16 %v3292, %v3284
    %v4789 = vpack.c.b16 %v3293, %v3285
    %v4790 = vpack.c.b16 %v3294, %v3286
    %v4791 = vpack.c.b16 %v3295, %v3287
    %v4792 = vpack.c.b16 %v3296, %v3288
    %v4793 = vpack.c.b16 %v3305, %v3297
    %v4794 = vpack.c.b16 %v3306, %v3298
    %v4795 = vpack.c.b16 %v3307, %v3299
    %v4796 = vpack.c.b16 %v3308, %v3300
    %v4797 = vpack.c.b16 %v3309, %v3301
    %v4798 = vpack.c.b16 %v3310, %v3302
    %v4799 = vpack.c.b16 %v3311, %v3303
    %v4800 = vpack.c.b16 %v3312, %v3304
    %v4801 = vpack.c.b16 %v3321, %v3313
    %v4802 = vpack.c.b16 %v3322, %v3314
    %v4803 = vpack.c.b16 %v3323, %v3315
    %v4804 = vpack.c.b16 %v3324, %v3316
    %v4805 = vpack.c.b16 %v3325, %v3317
    %v4806 = vpack.c.b16 %v3326, %v3318
    %v4807 = vpack.c.b16 %v3327, %v3319
    %v4808 = vpack.c.b16 %v3328, %v3320
    %v4809 = vpack.c.b16 %v3337, %v3329
    %v4810 = vpack.c.b16 %v3338, %v3330
    %v4811 = vpack.c.b16 %v3339, %v3331
    %v4812 = vpack.c.b16 %v3340, %v3332
    %v4813 = vpack.c.b16 %v3341, %v3333
    %v4814 = vpack.c.b16 %v3342, %v3334
    %v4815 = vpack.c.b16 %v3343, %v3335
    %v4816 = vpack.c.b16 %v3344, %v3336
    %v4817 = vpack.c.b16 %v3353, %v3345
    %v4818 = vpack.c.b16 %v3354, %v3346
    %v4819 = vpack.c.b16 %v3355, %v3347
    %v4820 = vpack.c.b16 %v3356, %v3348
    %v4821 = vpack.c.b16 %v3357, %v3349
    %v4822 = vpack.c.b16 %v3358, %v3350
    %v4823 = vpack.c.b16 %v3359, %v3351
    %v4824 = vpack.c.b16 %v3360, %v3352
    %v4825 = vpack.c.b16 %v3369, %v3361
    %v4826 = vpack.c.b16 %v3370, %v3362
    %v4827 = vpack.c.b16 %v3371, %v3363
    %v4828 = vpack.c.b16 %v3372, %v3364
    %v4829 = vpack.c.b16 %v3373, %v3365
    %v4830 = vpack.c.b16 %v3374, %v3366
    %v4831 = vpack.c.b16 %v3375, %v3367
    %v4832 = vpack.c.b16 %v3376, %v3368
    %v4833 = vpack.c.b16 %v3385, %v3377
    %v4834 = vpack.c.b16 %v3386, %v3378
    %v4835 = vpack.c.b16 %v3387, %v3379
    %v4836 = vpack.c.b16 %v3388, %v3380
    %v4837 = vpack.c.b16 %v3389, %v3381
    %v4838 = vpack.c.b16 %v3390, %v3382
    %v4839 = vpack.c.b16 %v3391, %v3383
    %v4840 = vpack.c.b16 %v3392, %v3384
    %v4841 = vpack.c.b16 %v3401, %v3393
    %v4842 = vpack.c.b16 %v3402, %v3394
    %v4843 = vpack.c.b16 %v3403, %v3395
    %v4844 = vpack.c.b16 %v3404, %v3396
    %v4845 = vpack.c.b16 %v3405, %v3397
    %v4846 = vpack.c.b16 %v3406, %v3398
    %v4847 = vpack.c.b16 %v3407, %v3399
    %v4848 = vpack.c.b16 %v3408, %v3400
    %v4849 = vpack.c.b16 %v3417, %v3409
    %v4850 = vpack.c.b16 %v3418, %v3410
    %v4851 = vpack.c.b16 %v3419, %v3411
    %v4852 = vpack.c.b16 %v3420, %v3412
    %v4853 = vpack.c.b16 %v3421, %v3413
    %v4854 = vpack.c.b16 %v3422, %v3414
    %v4855 = vpack.c.b16 %v3423, %v3415
    %v4856 = vpack.c.b16 %v3424, %v3416
    %v4857 = vpack.c.b16 %v3433, %v3425
    %v4858 = vpack.c.b16 %v3434, %v3426
    %v4859 = vpack.c.b16 %v3435, %v3427
    %v4860 = vpack.c.b16 %v3436, %v3428
    %v4861 = vpack.c.b16 %v3437, %v3429
    %v4862 = vpack.c.b16 %v3438, %v3430
    %v4863 = vpack.c.b16 %v3439, %v3431
    %v4864 = vpack.c.b16 %v3440, %v3432
    %v4865 = vpack.c.b16 %v3449, %v3441
    %v4866 = vpack.c.b16 %v3450, %v3442
    %v4867 = vpack.c.b16 %v3451, %v3443
    %v4868 = vpack.c.b16 %v3452, %v3444
    %v4869 = vpack.c.b16 %v3453, %v3445
    %v4870 = vpack.c.b16 %v3454, %v3446
    %v4871 = vpack.c.b16 %v3455, %v3447
    %v4872 = vpack.c.b16 %v3456, %v3448
    %v4873 = vpack.c.b16 %v3465, %v3457
    %v4874 = vpack.c.b16 %v3466, %v3458
    %v4875 = vpack.c.b16 %v3467, %v3459
    %v4876 = vpack.c.b16 %v3468, %v3460
    %v4877 = vpack.c.b16 %v3469, %v3461
    %v4878 = vpack.c.b16 %v3470, %v3462
    %v4879 = vpack.c.b16 %v3471, %v3463
    %v4880 = vpack.c.b16 %v3472, %v3464
    %v4881 = vpack.c.b16 %v3481, %v3473
    %v4882 = vpack.c.b16 %v3482, %v3474
    %v4883 = vpack.c.b16 %v3483, %v3475
    %v4884 = vpack.c.b16 %v3484, %v3476
    %v4885 = vpack.c.b16 %v3485, %v3477
    %v4886 = vpack.c.b16 %v3486, %v3478
    %v4887 = vpack.c.b16 %v3487, %v3479
    %v4888 = vpack.c.b16 %v3488, %v3480
    %v4889 = vpack.c.b16 %v3497, %v3489
    %v4890 = vpack.c.b16 %v3498, %v3490
    %v4891 = vpack.c.b16 %v3499, %v3491
    %v4892 = vpack.c.b16 %v3500, %v3492
    %v4893 = vpack.c.b16 %v3501, %v3493
    %v4894 = vpack.c.b16 %v3502, %v3494
    %v4895 = vpack.c.b16 %v3503, %v3495
    %v4896 = vpack.c.b16 %v3504, %v3496
    %v4897 = vpack.c.b16 %v3513, %v3505
    %v4898 = vpack.c.b16 %v3514, %v3506
    %v4899 = vpack.c.b16 %v3515, %v3507
    %v4900 = vpack.c.b16 %v3516, %v3508
    %v4901 = vpack.c.b16 %v3517, %v3509
    %v4902 = vpack.c.b16 %v3518, %v3510
    %v4903 = vpack.c.b16 %v3519, %v3511
    %v4904 = vpack.c.b16 %v3520, %v3512
    %v4905 = vpack.c.b16 %v3529, %v3521
    %v4906 = vpack.c.b16 %v3530, %v3522
    %v4907 = vpack.c.b16 %v3531, %v3523
    %v4908 = vpack.c.b16 %v3532, %v3524
    %v4909 = vpack.c.b16 %v3533, %v3525
    %v4910 = vpack.c.b16 %v3534, %v3526
    %v4911 = vpack.c.b16 %v3535, %v3527
    %v4912 = vpack.c.b16 %v3536, %v3528
    %v4913 = vpack.c.b16 %v3545, %v3537
    %v4914 = vpack.c.b16 %v3546, %v3538
    %v4915 = vpack.c.b16 %v3547, %v3539
    %v4916 = vpack.c.b16 %v3548, %v3540
    %v4917 = vpack.c.b16 %v3549, %v3541
    %v4918 = vpack.c.b16 %v3550, %v3542
    %v4919 = vpack.c.b16 %v3551, %v3543
    %v4920 = vpack.c.b16 %v3552, %v3544
    %v4921 = vpack.c.b16 %v3561, %v3553
    %v4922 = vpack.c.b16 %v3562, %v3554
    %v4923 = vpack.c.b16 %v3563, %v3555
    %v4924 = vpack.c.b16 %v3564, %v3556
    %v4925 = vpack.c.b16 %v3565, %v3557
    %v4926 = vpack.c.b16 %v3566, %v3558
    %v4927 = vpack.c.b16 %v3567, %v3559
    %v4928 = vpack.c.b16 %v3568, %v3560
    %v4929 = vpack.c.b16 %v3577, %v3569
    %v4930 = vpack.c.b16 %v3578, %v3570
    %v4931 = vpack.c.b16 %v3579, %v3571
    %v4932 = vpack.c.b16 %v3580, %v3572
    %v4933 = vpack.c.b16 %v3581, %v3573
    %v4934 = vpack.c.b16 %v3582, %v3574
    %v4935 = vpack.c.b16 %v3583, %v3575
    %v4936 = vpack.c.b16 %v3584, %v3576
    %v4937 = vpack.c.b16 %v3593, %v3585
    %v4938 = vpack.c.b16 %v3594, %v3586
    %v4939 = vpack.c.b16 %v3595, %v3587
    %v4940 = vpack.c.b16 %v3596, %v3588
    %v4941 = vpack.c.b16 %v3597, %v3589
    %v4942 = vpack.c.b16 %v3598, %v3590
    %v4943 = vpack.c.b16 %v3599, %v3591
    %v4944 = vpack.c.b16 %v3600, %v3592
    %v4945 = vpack.c.b16 %v3609, %v3601
    %v4946 = vpack.c.b16 %v3610, %v3602
    %v4947 = vpack.c.b16 %v3611, %v3603
    %v4948 = vpack.c.b16 %v3612, %v3604
    %v4949 = vpack.c.b16 %v3613, %v3605
    %v4950 = vpack.c.b16 %v3614, %v3606
    %v4951 = vpack.c.b16 %v3615, %v3607
    %v4952 = vpack.c.b16 %v3616, %v3608
    %v4953 = vpack.c.b16 %v3625, %v3617
    %v4954 = vpack.c.b16 %v3626, %v3618
    %v4955 = vpack.c.b16 %v3627, %v3619
    %v4956 = vpack.c.b16 %v3628, %v3620
    %v4957 = vpack.c.b16 %v3629, %v3621
    %v4958 = vpack.c.b16 %v3630, %v3622
    %v4959 = vpack.c.b16 %v3631, %v3623
    %v4960 = vpack.c.b16 %v3632, %v3624
    %v4961 = vpack.c.b16 %v3641, %v3633
    %v4962 = vpack.c.b16 %v3642, %v3634
    %v4963 = vpack.c.b16 %v3643, %v3635
    %v4964 = vpack.c.b16 %v3644, %v3636
    %v4965 = vpack.c.b16 %v3645, %v3637
    %v4966 = vpack.c.b16 %v3646, %v3638
    %v4967 = vpack.c.b16 %v3647, %v3639
    %v4968 = vpack.c.b16 %v3648, %v3640
    %v4969 = vpack.c.b16 %v3657, %v3649
    %v4970 = vpack.c.b16 %v3658, %v3650
    %v4971 = vpack.c.b16 %v3659, %v3651
    %v4972 = vpack.c.b16 %v3660, %v3652
    %v4973 = vpack.c.b16 %v3661, %v3653
    %v4974 = vpack.c.b16 %v3662, %v3654
    %v4975 = vpack.c.b16 %v3663, %v3655
    %v4976 = vpack.c.b16 %v3664, %v3656
    %v4977 = vpack.c.b16 %v3673, %v3665
    %v4978 = vpack.c.b16 %v3674, %v3666
    %v4979 = vpack.c.b16 %v3675, %v3667
    %v4980 = vpack.c.b16 %v3676, %v3668
    %v4981 = vpack.c.b16 %v3677, %v3669
    %v4982 = vpack.c.b16 %v3678, %v3670
    %v4983 = vpack.c.b16 %v3679, %v3671
    %v4984 = vpack.c.b16 %v3680, %v3672
    %v4985 = vpack.c.b16 %v3689, %v3681
    %v4986 = vpack.c.b16 %v3690, %v3682
    %v4987 = vpack.c.b16 %v3691, %v3683
    %v4988 = vpack.c.b16 %v3692, %v3684
    %v4989 = vpack.c.b16 %v3693, %v3685
    %v4990 = vpack.c.b16 %v3694, %v3686
    %v4991 = vpack.c.b16 %v3695, %v3687
    %v4992 = vpack.c.b16 %v3696, %v3688
    %v4993 = vpack.c.b16 %v3705, %v3697
    %v4994 = vpack.c.b16 %v3706, %v3698
    %v4995 = vpack.c.b16 %v3707, %v3699
    %v4996 = vpack.c.b16 %v3708, %v3700
    %v4997 = vpack.c.b16 %v3709, %v3701
    %v4998 = vpack.c.b16 %v3710, %v3702
    %v4999 = vpack.c.b16 %v3711, %v3703
    %v5000 = vpack.c.b16 %v3712, %v3704
    %v5001 = vpack.c.b16 %v3721, %v3713
    %v5002 = vpack.c.b16 %v3722, %v3714
    %v5003 = vpack.c.b16 %v3723, %v3715
    %v5004 = vpack.c.b16 %v3724, %v3716
    %v5005 = vpack.c.b16 %v3725, %v3717
    %v5006 = vpack.c.b16 %v3726, %v3718
    %v5007 = vpack.c.b16 %v3727, %v3719
    %v5008 = vpack.c.b16 %v3728, %v3720
    %v5009 = vpack.c.b16 %v3737, %v3729
    %v5010 = vpack.c.b16 %v3738, %v3730
    %v5011 = vpack.c.b16 %v3739, %v3731
    %v5012 = vpack.c.b16 %v3740, %v3732
    %v5013 = vpack.c.b16 %v3741, %v3733
    %v5014 = vpack.c.b16 %v3742, %v3734
    %v5015 = vpack.c.b16 %v3743, %v3735
    %v5016 = vpack.c.b16 %v3744, %v3736
    %v5017 = vpack.c.b16 %v3753, %v3745
    %v5018 = vpack.c.b16 %v3754, %v3746
    %v5019 = vpack.c.b16 %v3755, %v3747
    %v5020 = vpack.c.b16 %v3756, %v3748
    %v5021 = vpack.c.b16 %v3757, %v3749
    %v5022 = vpack.c.b16 %v3758, %v3750
    %v5023 = vpack.c.b16 %v3759, %v3751
    %v5024 = vpack.c.b16 %v3760, %v3752
    %v5025 = vpack.c.b16 %v3769, %v3761
    %v5026 = vpack.c.b16 %v3770, %v3762
    %v5027 = vpack.c.b16 %v3771, %v3763
    %v5028 = vpack.c.b16 %v3772, %v3764
    %v5029 = vpack.c.b16 %v3773, %v3765
    %v5030 = vpack.c.b16 %v3774, %v3766
    %v5031 = vpack.c.b16 %v3775, %v3767
    %v5032 = vpack.c.b16 %v3776, %v3768
    %v5033 = vpack.c.b16 %v3785, %v3777
    %v5034 = vpack.c.b16 %v3786, %v3778
    %v5035 = vpack.c.b16 %v3787, %v3779
    %v5036 = vpack.c.b16 %v3788, %v3780
    %v5037 = vpack.c.b16 %v3789, %v3781
    %v5038 = vpack.c.b16 %v3790, %v3782
    %v5039 = vpack.c.b16 %v3791, %v3783
    %v5040 = vpack.c.b16 %v3792, %v3784
    %v5041 = vpack.c.b16 %v3801, %v3793
    %v5042 = vpack.c.b16 %v3802, %v3794
    %v5043 = vpack.c.b16 %v3803, %v3795
    %v5044 = vpack.c.b16 %v3804, %v3796
    %v5045 = vpack.c.b16 %v3805, %v3797
    %v5046 = vpack.c.b16 %v3806, %v3798
    %v5047 = vpack.c.b16 %v3807, %v3799
    %v5048 = vpack.c.b16 %v3808, %v3800
    %v5049 = vpack.c.b16 %v3817, %v3809
    %v5050 = vpack.c.b16 %v3818, %v3810
    %v5051 = vpack.c.b16 %v3819, %v3811
    %v5052 = vpack.c.b16 %v3820, %v3812
    %v5053 = vpack.c.b16 %v3821, %v3813
    %v5054 = vpack.c.b16 %v3822, %v3814
    %v5055 = vpack.c.b16 %v3823, %v3815
    %v5056 = vpack.c.b16 %v3824, %v3816
    %v5057 = vpack.c.b16 %v3833, %v3825
    %v5058 = vpack.c.b16 %v3834, %v3826
    %v5059 = vpack.c.b16 %v3835, %v3827
    %v5060 = vpack.c.b16 %v3836, %v3828
    %v5061 = vpack.c.b16 %v3837, %v3829
    %v5062 = vpack.c.b16 %v3838, %v3830
    %v5063 = vpack.c.b16 %v3839, %v3831
    %v5064 = vpack.c.b16 %v3840, %v3832
    %v5065 = vpack.c.b16 %v3849, %v3841
    %v5066 = vpack.c.b16 %v3850, %v3842
    %v5067 = vpack.c.b16 %v3851, %v3843
    %v5068 = vpack.c.b16 %v3852, %v3844
    %v5069 = vpack.c.b16 %v3853, %v3845
    %v5070 = vpack.c.b16 %v3854, %v3846
    %v5071 = vpack.c.b16 %v3855, %v3847
    %v5072 = vpack.c.b16 %v3856, %v3848
    %v5073 = vpack.c.b16 %v3865, %v3857
    %v5074 = vpack.c.b16 %v3866, %v3858
    %v5075 = vpack.c.b16 %v3867, %v3859
    %v5076 = vpack.c.b16 %v3868, %v3860
    %v5077 = vpack.c.b16 %v3869, %v3861
    %v5078 = vpack.c.b16 %v3870, %v3862
    %v5079 = vpack.c.b16 %v3871, %v3863
    %v5080 = vpack.c.b16 %v3872, %v3864
    %v5081 = vpack.c.b16 %v3881, %v3873
    %v5082 = vpack.c.b16 %v3882, %v3874
    %v5083 = vpack.c.b16 %v3883, %v3875
    %v5084 = vpack.c.b16 %v3884, %v3876
    %v5085 = vpack.c.b16 %v3885, %v3877
    %v5086 = vpack.c.b16 %v3886, %v3878
    %v5087 = vpack.c.b16 %v3887, %v3879
    %v5088 = vpack.c.b16 %v3888, %v3880
    %v5089 = vpack.c.b16 %v3897, %v3889
    %v5090 = vpack.c.b16 %v3898, %v3890
    %v5091 = vpack.c.b16 %v3899, %v3891
    %v5092 = vpack.c.b16 %v3900, %v3892
    %v5093 = vpack.c.b16 %v3901, %v3893
    %v5094 = vpack.c.b16 %v3902, %v3894
    %v5095 = vpack.c.b16 %v3903, %v3895
    %v5096 = vpack.c.b16 %v3904, %v3896
    %v5097 = vpack.c.b16 %v3913, %v3905
    %v5098 = vpack.c.b16 %v3914, %v3906
    %v5099 = vpack.c.b16 %v3915, %v3907
    %v5100 = vpack.c.b16 %v3916, %v3908
    %v5101 = vpack.c.b16 %v3917, %v3909
    %v5102 = vpack.c.b16 %v3918, %v3910
    %v5103 = vpack.c.b16 %v3919, %v3911
    %v5104 = vpack.c.b16 %v3920, %v3912
    %v5105 = vpack.c.b16 %v3929, %v3921
    %v5106 = vpack.c.b16 %v3930, %v3922
    %v5107 = vpack.c.b16 %v3931, %v3923
    %v5108 = vpack.c.b16 %v3932, %v3924
    %v5109 = vpack.c.b16 %v3933, %v3925
    %v5110 = vpack.c.b16 %v3934, %v3926
    %v5111 = vpack.c.b16 %v3935, %v3927
    %v5112 = vpack.c.b16 %v3936, %v3928
    %v5113 = vpack.c.b16 %v3945, %v3937
    %v5114 = vpack.c.b16 %v3946, %v3938
    %v5115 = vpack.c.b16 %v3947, %v3939
    %v5116 = vpack.c.b16 %v3948, %v3940
    %v5117 = vpack.c.b16 %v3949, %v3941
    %v5118 = vpack.c.b16 %v3950, %v3942
    %v5119 = vpack.c.b16 %v3951, %v3943
    %v5120 = vpack.c.b16 %v3952, %v3944
    %v5121 = vpack.c.b16 %v3961, %v3953
    %v5122 = vpack.c.b16 %v3962, %v3954
    %v5123 = vpack.c.b16 %v3963, %v3955
    %v5124 = vpack.c.b16 %v3964, %v3956
    %v5125 = vpack.c.b16 %v3965, %v3957
    %v5126 = vpack.c.b16 %v3966, %v3958
    %v5127 = vpack.c.b16 %v3967, %v3959
    %v5128 = vpack.c.b16 %v3968, %v3960
    %v5129 = vpack.c.b16 %v3977, %v3969
    %v5130 = vpack.c.b16 %v3978, %v3970
    %v5131 = vpack.c.b16 %v3979, %v3971
    %v5132 = vpack.c.b16 %v3980, %v3972
    %v5133 = vpack.c.b16 %v3981, %v3973
    %v5134 = vpack.c.b16 %v3982, %v3974
    %v5135 = vpack.c.b16 %v3983, %v3975
    %v5136 = vpack.c.b16 %v3984, %v3976
    %v5137 = vpack.c.b16 %v3993, %v3985
    %v5138 = vpack.c.b16 %v3994, %v3986
    %v5139 = vpack.c.b16 %v3995, %v3987
    %v5140 = vpack.c.b16 %v3996, %v3988
    %v5141 = vpack.c.b16 %v3997, %v3989
    %v5142 = vpack.c.b16 %v3998, %v3990
    %v5143 = vpack.c.b16 %v3999, %v3991
    %v5144 = vpack.c.b16 %v4000, %v3992
    %v5145 = vpack.c.b16 %v4009, %v4001
    %v5146 = vpack.c.b16 %v4010, %v4002
    %v5147 = vpack.c.b16 %v4011, %v4003
    %v5148 = vpack.c.b16 %v4012, %v4004
    %v5149 = vpack.c.b16 %v4013, %v4005
    %v5150 = vpack.c.b16 %v4014, %v4006
    %v5151 = vpack.c.b16 %v4015, %v4007
    %v5152 = vpack.c.b16 %v4016, %v4008
    %v5153 = vpack.c.b16 %v4025, %v4017
    %v5154 = vpack.c.b16 %v4026, %v4018
    %v5155 = vpack.c.b16 %v4027, %v4019
    %v5156 = vpack.c.b16 %v4028, %v4020
    %v5157 = vpack.c.b16 %v4029, %v4021
    %v5158 = vpack.c.b16 %v4030, %v4022
    %v5159 = vpack.c.b16 %v4031, %v4023
    %v5160 = vpack.c.b16 %v4032, %v4024
    %v5161 = vpack.c.b16 %v4041, %v4033
    %v5162 = vpack.c.b16 %v4042, %v4034
    %v5163 = vpack.c.b16 %v4043, %v4035
    %v5164 = vpack.c.b16 %v4044, %v4036
    %v5165 = vpack.c.b16 %v4045, %v4037
    %v5166 = vpack.c.b16 %v4046, %v4038
    %v5167 = vpack.c.b16 %v4047, %v4039
    %v5168 = vpack.c.b16 %v4048, %v4040
    %v5169 = vpack.c.b16 %v4057, %v4049
    %v5170 = vpack.c.b16 %v4058, %v4050
    %v5171 = vpack.c.b16 %v4059, %v4051
    %v5172 = vpack.c.b16 %v4060, %v4052
    %v5173 = vpack.c.b16 %v4061, %v4053
    %v5174 = vpack.c.b16 %v4062, %v4054
    %v5175 = vpack.c.b16 %v4063, %v4055
    %v5176 = vpack.c.b16 %v4064, %v4056
    %v5177 = vpack.c.b16 %v4073, %v4065
    %v5178 = vpack.c.b16 %v4074, %v4066
    %v5179 = vpack.c.b16 %v4075, %v4067
    %v5180 = vpack.c.b16 %v4076, %v4068
    %v5181 = vpack.c.b16 %v4077, %v4069
    %v5182 = vpack.c.b16 %v4078, %v4070
    %v5183 = vpack.c.b16 %v4079, %v4071
    %v5184 = vpack.c.b16 %v4080, %v4072
    %v5185 = vpack.c.b16 %v4089, %v4081
    %v5186 = vpack.c.b16 %v4090, %v4082
    %v5187 = vpack.c.b16 %v4091, %v4083
    %v5188 = vpack.c.b16 %v4092, %v4084
    %v5189 = vpack.c.b16 %v4093, %v4085
    %v5190 = vpack.c.b16 %v4094, %v4086
    %v5191 = vpack.c.b16 %v4095, %v4087
    %v5192 = vpack.c.b16 %v4096, %v4088
    %v5193 = vpack.c.b16 %v4105, %v4097
    %v5194 = vpack.c.b16 %v4106, %v4098
    %v5195 = vpack.c.b16 %v4107, %v4099
    %v5196 = vpack.c.b16 %v4108, %v4100
    %v5197 = vpack.c.b16 %v4109, %v4101
    %v5198 = vpack.c.b16 %v4110, %v4102
    %v5199 = vpack.c.b16 %v4111, %v4103
    %v5200 = vpack.c.b16 %v4112, %v4104
    %v5201 = vpack.c.b16 %v4121, %v4113
    %v5202 = vpack.c.b16 %v4122, %v4114
    %v5203 = vpack.c.b16 %v4123, %v4115
    %v5204 = vpack.c.b16 %v4124, %v4116
    %v5205 = vpack.c.b16 %v4125, %v4117
    %v5206 = vpack.c.b16 %v4126, %v4118
    %v5207 = vpack.c.b16 %v4127, %v4119
    %v5208 = vpack.c.b16 %v4128, %v4120
    %v5209 = vpack.c.b16 %v4137, %v4129
    %v5210 = vpack.c.b16 %v4138, %v4130
    %v5211 = vpack.c.b16 %v4139, %v4131
    %v5212 = vpack.c.b16 %v4140, %v4132
    %v5213 = vpack.c.b16 %v4141, %v4133
    %v5214 = vpack.c.b16 %v4142, %v4134
    %v5215 = vpack.c.b16 %v4143, %v4135
    %v5216 = vpack.c.b16 %v4144, %v4136
    %v5217 = vpack.c.b16 %v4153, %v4145
    %v5218 = vpack.c.b16 %v4154, %v4146
    %v5219 = vpack.c.b16 %v4155, %v4147
    %v5220 = vpack.c.b16 %v4156, %v4148
    %v5221 = vpack.c.b16 %v4157, %v4149
    %v5222 = vpack.c.b16 %v4158, %v4150
    %v5223 = vpack.c.b16 %v4159, %v4151
    %v5224 = vpack.c.b16 %v4160, %v4152
    %v5225 = vpack.c.b16 %v4169, %v4161
    %v5226 = vpack.c.b16 %v4170, %v4162
    %v5227 = vpack.c.b16 %v4171, %v4163
    %v5228 = vpack.c.b16 %v4172, %v4164
    %v5229 = vpack.c.b16 %v4173, %v4165
    %v5230 = vpack.c.b16 %v4174, %v4166
    %v5231 = vpack.c.b16 %v4175, %v4167
    %v5232 = vpack.c.b16 %v4176, %v4168
    %v5233 = vpack.c.b16 %v4185, %v4177
    %v5234 = vpack.c.b16 %v4186, %v4178
    %v5235 = vpack.c.b16 %v4187, %v4179
    %v5236 = vpack.c.b16 %v4188, %v4180
    %v5237 = vpack.c.b16 %v4189, %v4181
    %v5238 = vpack.c.b16 %v4190, %v4182
    %v5239 = vpack.c.b16 %v4191, %v4183
    %v5240 = vpack.c.b16 %v4192, %v4184
    %v5241 = vpack.c.b16 %v4201, %v4193
    %v5242 = vpack.c.b16 %v4202, %v4194
    %v5243 = vpack.c.b16 %v4203, %v4195
    %v5244 = vpack.c.b16 %v4204, %v4196
    %v5245 = vpack.c.b16 %v4205, %v4197
    %v5246 = vpack.c.b16 %v4206, %v4198
    %v5247 = vpack.c.b16 %v4207, %v4199
    %v5248 = vpack.c.b16 %v4208, %v4200
    %v5249 = vpack.c.b16 %v4217, %v4209
    %v5250 = vpack.c.b16 %v4218, %v4210
    %v5251 = vpack.c.b16 %v4219, %v4211
    %v5252 = vpack.c.b16 %v4220, %v4212
    %v5253 = vpack.c.b16 %v4221, %v4213
    %v5254 = vpack.c.b16 %v4222, %v4214
    %v5255 = vpack.c.b16 %v4223, %v4215
    %v5256 = vpack.c.b16 %v4224, %v4216
    %v5257 = vpack.c.b16 %v4233, %v4225
    %v5258 = vpack.c.b16 %v4234, %v4226
    %v5259 = vpack.c.b16 %v4235, %v4227
    %v5260 = vpack.c.b16 %v4236, %v4228
    %v5261 = vpack.c.b16 %v4237, %v4229
    %v5262 = vpack.c.b16 %v4238, %v4230
    %v5263 = vpack.c.b16 %v4239, %v4231
    %v5264 = vpack.c.b16 %v4240, %v4232
    %v5265 = vpack.c.b16 %v4249, %v4241
    %v5266 = vpack.c.b16 %v4250, %v4242
    %v5267 = vpack.c.b16 %v4251, %v4243
    %v5268 = vpack.c.b16 %v4252, %v4244
    %v5269 = vpack.c.b16 %v4253, %v4245
    %v5270 = vpack.c.b16 %v4254, %v4246
    %v5271 = vpack.c.b16 %v4255, %v4247
    %v5272 = vpack.c.b16 %v4256, %v4248
    %v5273 = vpack.c.b16 %v4265, %v4257
    %v5274 = vpack.c.b16 %v4266, %v4258
    %v5275 = vpack.c.b16 %v4267, %v4259
    %v5276 = vpack.c.b16 %v4268, %v4260
    %v5277 = vpack.c.b16 %v4269, %v4261
    %v5278 = vpack.c.b16 %v4270, %v4262
    %v5279 = vpack.c.b16 %v4271, %v4263
    %v5280 = vpack.c.b16 %v4272, %v4264
    %v5281 = vpack.c.b16 %v4281, %v4273
    %v5282 = vpack.c.b16 %v4282, %v4274
    %v5283 = vpack.c.b16 %v4283, %v4275
    %v5284 = vpack.c.b16 %v4284, %v4276
    %v5285 = vpack.c.b16 %v4285, %v4277
    %v5286 = vpack.c.b16 %v4286, %v4278
    %v5287 = vpack.c.b16 %v4287, %v4279
    %v5288 = vpack.c.b16 %v4288, %v4280
    %v5289 = vpack.c.b16 %v4297, %v4289
    %v5290 = vpack.c.b16 %v4298, %v4290
    %v5291 = vpack.c.b16 %v4299, %v4291
    %v5292 = vpack.c.b16 %v4300, %v4292
    %v5293 = vpack.c.b16 %v4301, %v4293
    %v5294 = vpack.c.b16 %v4302, %v4294
    %v5295 = vpack.c.b16 %v4303, %v4295
    %v5296 = vpack.c.b16 %v4304, %v4296
    %v5297 = vpack.c.b16 %v4313, %v4305
    %v5298 = vpack.c.b16 %v4314, %v4306
    %v5299 = vpack.c.b16 %v4315, %v4307
    %v5300 = vpack.c.b16 %v4316, %v4308
    %v5301 = vpack.c.b16 %v4317, %v4309
    %v5302 = vpack.c.b16 %v4318, %v4310
    %v5303 = vpack.c.b16 %v4319, %v4311
    %v5304 = vpack.c.b16 %v4320, %v4312
    %v5305 = vpack.c.b16 %v4329, %v4321
    %v5306 = vpack.c.b16 %v4330, %v4322
    %v5307 = vpack.c.b16 %v4331, %v4323
    %v5308 = vpack.c.b16 %v4332, %v4324
    %v5309 = vpack.c.b16 %v4333, %v4325
    %v5310 = vpack.c.b16 %v4334, %v4326
    %v5311 = vpack.c.b16 %v4335, %v4327
    %v5312 = vpack.c.b16 %v4336, %v4328
    %v5313 = vpack.c.b16 %v4345, %v4337
    %v5314 = vpack.c.b16 %v4346, %v4338
    %v5315 = vpack.c.b16 %v4347, %v4339
    %v5316 = vpack.c.b16 %v4348, %v4340
    %v5317 = vpack.c.b16 %v4349, %v4341
    %v5318 = vpack.c.b16 %v4350, %v4342
    %v5319 = vpack.c.b16 %v4351, %v4343
    %v5320 = vpack.c.b16 %v4352, %v4344
    %v5321 = vpack.c.b16 %v4361, %v4353
    %v5322 = vpack.c.b16 %v4362, %v4354
    %v5323 = vpack.c.b16 %v4363, %v4355
    %v5324 = vpack.c.b16 %v4364, %v4356
    %v5325 = vpack.c.b16 %v4365, %v4357
    %v5326 = vpack.c.b16 %v4366, %v4358
    %v5327 = vpack.c.b16 %v4367, %v4359
    %v5328 = vpack.c.b16 %v4368, %v4360
    %v5329 = vpack.c.b16 %v4377, %v4369
    %v5330 = vpack.c.b16 %v4378, %v4370
    %v5331 = vpack.c.b16 %v4379, %v4371
    %v5332 = vpack.c.b16 %v4380, %v4372
    %v5333 = vpack.c.b16 %v4381, %v4373
    %v5334 = vpack.c.b16 %v4382, %v4374
    %v5335 = vpack.c.b16 %v4383, %v4375
    %v5336 = vpack.c.b16 %v4384, %v4376
    %v5337 = vpack.c.b16 %v4393, %v4385
    %v5338 = vpack.c.b16 %v4394, %v4386
    %v5339 = vpack.c.b16 %v4395, %v4387
    %v5340 = vpack.c.b16 %v4396, %v4388
    %v5341 = vpack.c.b16 %v4397, %v4389
    %v5342 = vpack.c.b16 %v4398, %v4390
    %v5343 = vpack.c.b16 %v4399, %v4391
    %v5344 = vpack.c.b16 %v4400, %v4392
    %v5345 = vpack.c.b16 %v4409, %v4401
    %v5346 = vpack.c.b16 %v4410, %v4402
    %v5347 = vpack.c.b16 %v4411, %v4403
    %v5348 = vpack.c.b16 %v4412, %v4404
    %v5349 = vpack.c.b16 %v4413, %v4405
    %v5350 = vpack.c.b16 %v4414, %v4406
    %v5351 = vpack.c.b16 %v4415, %v4407
    %v5352 = vpack.c.b16 %v4416, %v4408
    %v5353 = vpack.c.b16 %v4425, %v4417
    %v5354 = vpack.c.b16 %v4426, %v4418
    %v5355 = vpack.c.b16 %v4427, %v4419
    %v5356 = vpack.c.b16 %v4428, %v4420
    %v5357 = vpack.c.b16 %v4429, %v4421
    %v5358 = vpack.c.b16 %v4430, %v4422
    %v5359 = vpack.c.b16 %v4431, %v4423
    %v5360 = vpack.c.b16 %v4432, %v4424
    %v5361 = vpack.c.b16 %v4441, %v4433
    %v5362 = vpack.c.b16 %v4442, %v4434
    %v5363 = vpack.c.b16 %v4443, %v4435
    %v5364 = vpack.c.b16 %v4444, %v4436
    %v5365 = vpack.c.b16 %v4445, %v4437
    %v5366 = vpack.c.b16 %v4446, %v4438
    %v5367 = vpack.c.b16 %v4447, %v4439
    %v5368 = vpack.c.b16 %v4448, %v4440
    %v5369 = vpack.c.b16 %v4457, %v4449
    %v5370 = vpack.c.b16 %v4458, %v4450
    %v5371 = vpack.c.b16 %v4459, %v4451
    %v5372 = vpack.c.b16 %v4460, %v4452
    %v5373 = vpack.c.b16 %v4461, %v4453
    %v5374 = vpack.c.b16 %v4462, %v4454
    %v5375 = vpack.c.b16 %v4463, %v4455
    %v5376 = vpack.c.b16 %v4464, %v4456
    %v5377 = vpack.c.b16 %v4473, %v4465
    %v5378 = vpack.c.b16 %v4474, %v4466
    %v5379 = vpack.c.b16 %v4475, %v4467
    %v5380 = vpack.c.b16 %v4476, %v4468
    %v5381 = vpack.c.b16 %v4477, %v4469
    %v5382 = vpack.c.b16 %v4478, %v4470
    %v5383 = vpack.c.b16 %v4479, %v4471
    %v5384 = vpack.c.b16 %v4480, %v4472
    %v5385 = vpack.c.b16 %v4489, %v4481
    %v5386 = vpack.c.b16 %v4490, %v4482
    %v5387 = vpack.c.b16 %v4491, %v4483
    %v5388 = vpack.c.b16 %v4492, %v4484
    %v5389 = vpack.c.b16 %v4493, %v4485
    %v5390 = vpack.c.b16 %v4494, %v4486
    %v5391 = vpack.c.b16 %v4495, %v4487
    %v5392 = vpack.c.b16 %v4496, %v4488
    %v5393 = vpack.c.b16 %v4505, %v4497
    %v5394 = vpack.c.b16 %v4506, %v4498
    %v5395 = vpack.c.b16 %v4507, %v4499
    %v5396 = vpack.c.b16 %v4508, %v4500
    %v5397 = vpack.c.b16 %v4509, %v4501
    %v5398 = vpack.c.b16 %v4510, %v4502
    %v5399 = vpack.c.b16 %v4511, %v4503
    %v5400 = vpack.c.b16 %v4512, %v4504
    %v5401 = vpack.c.b16 %v4521, %v4513
    %v5402 = vpack.c.b16 %v4522, %v4514
    %v5403 = vpack.c.b16 %v4523, %v4515
    %v5404 = vpack.c.b16 %v4524, %v4516
    %v5405 = vpack.c.b16 %v4525, %v4517
    %v5406 = vpack.c.b16 %v4526, %v4518
    %v5407 = vpack.c.b16 %v4527, %v4519
    %v5408 = vpack.c.b16 %v4528, %v4520
    %v5409 = vpack.c.b16 %v4537, %v4529
    %v5410 = vpack.c.b16 %v4538, %v4530
    %v5411 = vpack.c.b16 %v4539, %v4531
    %v5412 = vpack.c.b16 %v4540, %v4532
    %v5413 = vpack.c.b16 %v4541, %v4533
    %v5414 = vpack.c.b16 %v4542, %v4534
    %v5415 = vpack.c.b16 %v4543, %v4535
    %v5416 = vpack.c.b16 %v4544, %v4536
    %v5417 = vpack.c.b16 %v4553, %v4545
    %v5418 = vpack.c.b16 %v4554, %v4546
    %v5419 = vpack.c.b16 %v4555, %v4547
    %v5420 = vpack.c.b16 %v4556, %v4548
    %v5421 = vpack.c.b16 %v4557, %v4549
    %v5422 = vpack.c.b16 %v4558, %v4550
    %v5423 = vpack.c.b16 %v4559, %v4551
    %v5424 = vpack.c.b16 %v4560, %v4552
    %v5425 = vpack.c.b16 %v4569, %v4561
    %v5426 = vpack.c.b16 %v4570, %v4562
    %v5427 = vpack.c.b16 %v4571, %v4563
    %v5428 = vpack.c.b16 %v4572, %v4564
    %v5429 = vpack.c.b16 %v4573, %v4565
    %v5430 = vpack.c.b16 %v4574, %v4566
    %v5431 = vpack.c.b16 %v4575, %v4567
    %v5432 = vpack.c.b16 %v4576, %v4568
    %v5433 = vpack.c.b16 %v4585, %v4577
    %v5434 = vpack.c.b16 %v4586, %v4578
    %v5435 = vpack.c.b16 %v4587, %v4579
    %v5436 = vpack.c.b16 %v4588, %v4580
    %v5437 = vpack.c.b16 %v4589, %v4581
    %v5438 = vpack.c.b16 %v4590, %v4582
    %v5439 = vpack.c.b16 %v4591, %v4583
    %v5440 = vpack.c.b16 %v4592, %v4584
    %v5441 = vpack.c.b16 %v4601, %v4593
    %v5442 = vpack.c.b16 %v4602, %v4594
    %v5443 = vpack.c.b16 %v4603, %v4595
    %v5444 = vpack.c.b16 %v4604, %v4596
    %v5445 = vpack.c.b16 %v4605, %v4597
    %v5446 = vpack.c.b16 %v4606, %v4598
    %v5447 = vpack.c.b16 %v4607, %v4599
    %v5448 = vpack.c.b16 %v4608, %v4600
    %v5449 = vpack.c.b16 %v4617, %v4609
    %v5450 = vpack.c.b16 %v4618, %v4610
    %v5451 = vpack.c.b16 %v4619, %v4611
    %v5452 = vpack.c.b16 %v4620, %v4612
    %v5453 = vpack.c.b16 %v4621, %v4613
    %v5454 = vpack.c.b16 %v4622, %v4614
    %v5455 = vpack.c.b16 %v4623, %v4615
    %v5456 = vpack.c.b16 %v4624, %v4616
    %v5457 = vpack.c.b16 %v4633, %v4625
    %v5458 = vpack.c.b16 %v4634, %v4626
    %v5459 = vpack.c.b16 %v4635, %v4627
    %v5460 = vpack.c.b16 %v4636, %v4628
    %v5461 = vpack.c.b16 %v4637, %v4629
    %v5462 = vpack.c.b16 %v4638, %v4630
    %v5463 = vpack.c.b16 %v4639, %v4631
    %v5464 = vpack.c.b16 %v4640, %v4632
    %v5465 = vpack.c.b16 %v4649, %v4641
    %v5466 = vpack.c.b16 %v4650, %v4642
    %v5467 = vpack.c.b16 %v4651, %v4643
    %v5468 = vpack.c.b16 %v4652, %v4644
    %v5469 = vpack.c.b16 %v4653, %v4645
    %v5470 = vpack.c.b16 %v4654, %v4646
    %v5471 = vpack.c.b16 %v4655, %v4647
    %v5472 = vpack.c.b16 %v4656, %v4648
    %v5473 = vpack.c.b16 %v4665, %v4657
    %v5474 = vpack.c.b16 %v4666, %v4658
    %v5475 = vpack.c.b16 %v4667, %v4659
    %v5476 = vpack.c.b16 %v4668, %v4660
    %v5477 = vpack.c.b16 %v4669, %v4661
    %v5478 = vpack.c.b16 %v4670, %v4662
    %v5479 = vpack.c.b16 %v4671, %v4663
    %v5480 = vpack.c.b16 %v4672, %v4664
    %v5481 = vpack.c.b16 %v4681, %v4673
    %v5482 = vpack.c.b16 %v4682, %v4674
    %v5483 = vpack.c.b16 %v4683, %v4675
    %v5484 = vpack.c.b16 %v4684, %v4676
    %v5485 = vpack.c.b16 %v4685, %v4677
    %v5486 = vpack.c.b16 %v4686, %v4678
    %v5487 = vpack.c.b16 %v4687, %v4679
    %v5488 = vpack.c.b16 %v4688, %v4680
    %v5489 = vpack.c.b16 %v4697, %v4689
    %v5490 = vpack.c.b16 %v4698, %v4690
    %v5491 = vpack.c.b16 %v4699, %v4691
    %v5492 = vpack.c.b16 %v4700, %v4692
    %v5493 = vpack.c.b16 %v4701, %v4693
    %v5494 = vpack.c.b16 %v4702, %v4694
    %v5495 = vpack.c.b16 %v4703, %v4695
    %v5496 = vpack.c.b16 %v4704, %v4696
    %v5497 = vpack.c.b16 %v4713, %v4705
    %v5498 = vpack.c.b16 %v4714, %v4706
    %v5499 = vpack.c.b16 %v4715, %v4707
    %v5500 = vpack.c.b16 %v4716, %v4708
    %v5501 = vpack.c.b16 %v4717, %v4709
    %v5502 = vpack.c.b16 %v4718, %v4710
    %v5503 = vpack.c.b16 %v4719, %v4711
    %v5504 = vpack.c.b16 %v4720, %v4712
    %v5505 = vpack.c.b16 %v4729, %v4721
    %v5506 = vpack.c.b16 %v4730, %v4722
    %v5507 = vpack.c.b16 %v4731, %v4723
    %v5508 = vpack.c.b16 %v4732, %v4724
    %v5509 = vpack.c.b16 %v4733, %v4725
    %v5510 = vpack.c.b16 %v4734, %v4726
    %v5511 = vpack.c.b16 %v4735, %v4727
    %v5512 = vpack.c.b16 %v4736, %v4728
    %v5513 = vpack.c.b16 %v4745, %v4737
    %v5514 = vpack.c.b16 %v4746, %v4738
    %v5515 = vpack.c.b16 %v4747, %v4739
    %v5516 = vpack.c.b16 %v4748, %v4740
    %v5517 = vpack.c.b16 %v4749, %v4741
    %v5518 = vpack.c.b16 %v4750, %v4742
    %v5519 = vpack.c.b16 %v4751, %v4743
    %v5520 = vpack.c.b16 %v4752, %v4744
    %6289 = vmatprep.subr.bf16.mxu0 %v4754
    %6290 = vmatpush1.bf16.msra.mxu0 %v4753
    %6291 = vmatprep.subr.bf16.mxu0 %v4762
    %6292 = vmatpush1.bf16.msra.mxu0 %v4761
    %6293 = vmatprep.subr.bf16.mxu0 %v4770
    %6294 = vmatpush1.bf16.msra.mxu0 %v4769
    %6295 = vmatprep.subr.bf16.mxu0 %v4778
    %6296 = vmatpush1.bf16.msra.mxu0 %v4777
    %6297 = vmatprep.subr.bf16.mxu0 %v4786
    %6298 = vmatpush1.bf16.msra.mxu0 %v4785
    %6299 = vmatprep.subr.bf16.mxu0 %v4794
    %6300 = vmatpush1.bf16.msra.mxu0 %v4793
    %6301 = vmatprep.subr.bf16.mxu0 %v4802
    %6302 = vmatpush1.bf16.msra.mxu0 %v4801
    %6303 = vmatprep.subr.bf16.mxu0 %v4810
    %6304 = vmatpush1.bf16.msra.mxu0 %v4809
    %6305 = vmatprep.subr.bf16.mxu0 %v4818
    %6306 = vmatpush1.bf16.msra.mxu0 %v4817
    %6307 = vmatprep.subr.bf16.mxu0 %v4826
    %6308 = vmatpush1.bf16.msra.mxu0 %v4825
    %6309 = vmatprep.subr.bf16.mxu0 %v4834
    %6310 = vmatpush1.bf16.msra.mxu0 %v4833
    %6311 = vmatprep.subr.bf16.mxu0 %v4842
    %6312 = vmatpush1.bf16.msra.mxu0 %v4841
    %6313 = vmatprep.subr.bf16.mxu0 %v4850
    %6314 = vmatpush1.bf16.msra.mxu0 %v4849
    %6315 = vmatprep.subr.bf16.mxu0 %v4858
    %6316 = vmatpush1.bf16.msra.mxu0 %v4857
    %6317 = vmatprep.subr.bf16.mxu0 %v4866
    %6318 = vmatpush1.bf16.msra.mxu0 %v4865
    %6319 = vmatprep.subr.bf16.mxu0 %v4874
    %6320 = vmatpush1.bf16.msra.mxu0 %v4873
    %6321 = vmatprep.mubr.bf16.mxu0 %v1619
    %6322 = vmatmul.mubr.bf16.gmra.mrb[0].mxu0 %v1616
    %v6323 = vpop.f32.mrb[0].mxu0
    %v6324 = vadd.f32 0.0, %v6323
    %v6325 = vpop.f32.mrb[0].mxu0
    %v6326 = vadd.f32 0.0, %v6325
    %v6327 = vpop.f32.mrb[0].mxu0
    %v6328 = vadd.f32 0.0, %v6327
    %v6329 = vpop.f32.mrb[0].mxu0
    %v6330 = vadd.f32 0.0, %v6329
    %6331 = vmatprep.mubr.bf16.mxu0 %v1599
    %6332 = vmatmul.mubr.bf16.gmra.mrb[0].mxu0 %v1597
    %v6333 = vpop.f32.mrb[0].mxu0
    %v6334 = vadd.f32 0.0, %v6333
    %v6335 = vpop.f32.mrb[0].mxu0
    %v6336 = vadd.f32 0.0, %v6335
    %v6337 = vpop.f32.mrb[0].mxu0
    %v6338 = vadd.f32 0.0, %v6337
    %v6339 = vpop.f32.mrb[0].mxu0
    %v6340 = vadd.f32 0.0, %v6339
    %6341 = vmatprep.mubr.bf16.mxu0 %v1603
    %6342 = vmatmul.mubr.bf16.gmra.mrb[0].mxu0 %v1601
    %v6343 = vpop.f32.mrb[0].mxu0
    %v6344 = vadd.f32 0.0, %v6343
    %v6345 = vpop.f32.mrb[0].mxu0
    %v6346 = vadd.f32 0.0, %v6345
    %v6347 = vpop.f32.mrb[0].mxu0
    %v6348 = vadd.f32 0.0, %v6347
    %v6349 = vpop.f32.mrb[0].mxu0
    %v6350 = vadd.f32 0.0, %v6349
    %6351 = vmatprep.mubr.bf16.mxu0 %v1607
    %6352 = vmatmul.mubr.bf16.gmra.mrb[0].mxu0 %v1605
    %v6353 = vpop.f32.mrb[0].mxu0
    %v6354 = vadd.f32 0.0, %v6353
    %v6355 = vpop.f32.mrb[0].mxu0
    %v6356 = vadd.f32 0.0, %v6355
    %v6357 = vpop.f32.mrb[0].mxu0
    %v6358 = vpop.f32.mrb[0].mxu0
    %6359 = vdwg.mxu0
    %6360 = vmatprep.subr.bf16.mxu0 %v4882
    %6361 = vmatpush1.bf16.msra.mxu0 %v4881
    %6362 = vmatprep.subr.bf16.mxu0 %v4890
    %6363 = vmatpush1.bf16.msra.mxu0 %v4889
    %6364 = vmatprep.subr.bf16.mxu0 %v4898
    %6365 = vmatpush1.bf16.msra.mxu0 %v4897
    %6366 = vmatprep.subr.bf16.mxu0 %v4906
    %6367 = vmatpush1.bf16.msra.mxu0 %v4905
    %6368 = vmatprep.subr.bf16.mxu0 %v4914
    %6369 = vmatpush1.bf16.msra.mxu0 %v4913
    %6370 = vmatprep.subr.bf16.mxu0 %v4922
    %6371 = vmatpush1.bf16.msra.mxu0 %v4921
    %6372 = vmatprep.subr.bf16.mxu0 %v4930
    %6373 = vmatpush1.bf16.msra.mxu0 %v4929
    %6374 = vmatprep.subr.bf16.mxu0 %v4938
    %6375 = vmatpush1.bf16.msra.mxu0 %v4937
    %6376 = vmatprep.subr.bf16.mxu0 %v4946
    %6377 = vmatpush1.bf16.msra.mxu0 %v4945
    %6378 = vmatprep.subr.bf16.mxu0 %v4954
    %6379 = vmatpush1.bf16.msra.mxu0 %v4953
    %6380 = vmatprep.subr.bf16.mxu0 %v4962
    %6381 = vmatpush1.bf16.msra.mxu0 %v4961
    %6382 = vmatprep.subr.bf16.mxu0 %v4970
    %6383 = vmatpush1.bf16.msra.mxu0 %v4969
    %6384 = vmatprep.subr.bf16.mxu0 %v4978
    %6385 = vmatpush1.bf16.msra.mxu0 %v4977
    %6386 = vmatprep.subr.bf16.mxu0 %v4986
    %6387 = vmatpush1.bf16.msra.mxu0 %v4985
    %6388 = vmatprep.subr.bf16.mxu0 %v4994
    %6389 = vmatpush1.bf16.msra.mxu0 %v4993
    %6390 = vmatprep.subr.bf16.mxu0 %v5002
    %6391 = vmatpush1.bf16.msra.mxu0 %v5001
    %6392 = vmatprep.mubr.bf16.mxu0 %v1625
    %6393 = vmatmul.mubr.bf16.gmra.mrb[0].mxu0 %v1622
    %v6394 = vpop.f32.mrb[0].mxu0
    %v6395 = vadd.f32 %v6324, %v6394
    %v6396 = vpop.f32.mrb[0].mxu0
    %v6397 = vadd.f32 %v6326, %v6396
    %v6398 = vpop.f32.mrb[0].mxu0
    %v6399 = vadd.f32 %v6328, %v6398
    %v6400 = vpop.f32.mrb[0].mxu0
    %v6401 = vadd.f32 %v6330, %v6400
    %6402 = vmatprep.mubr.bf16.mxu0 %v1581
    %6403 = vmatmul.mubr.bf16.gmra.mrb[0].mxu0 %v1580
    %v6404 = vpop.f32.mrb[0].mxu0
    %v6405 = vadd.f32 %v6334, %v6404
    %v6406 = vpop.f32.mrb[0].mxu0
    %v6407 = vadd.f32 %v6336, %v6406
    %v6408 = vpop.f32.mrb[0].mxu0
    %v6409 = vadd.f32 %v6338, %v6408
    %v6410 = vpop.f32.mrb[0].mxu0
    %v6411 = vadd.f32 %v6340, %v6410
    %6412 = vmatprep.mubr.bf16.mxu0 %v1583
    %6413 = vmatmul.mubr.bf16.gmra.mrb[0].mxu0 %v1582
    %v6414 = vpop.f32.mrb[0].mxu0
    %v6415 = vadd.f32 %v6344, %v6414
    %v6416 = vpop.f32.mrb[0].mxu0
    %v6417 = vadd.f32 %v6346, %v6416
    %v6418 = vpop.f32.mrb[0].mxu0
    %v6419 = vadd.f32 %v6348, %v6418
    %v6420 = vpop.f32.mrb[0].mxu0
    %v6421 = vadd.f32 %v6350, %v6420
    %6422 = vmatprep.mubr.bf16.mxu0 %v1585
    %6423 = vmatmul.mubr.bf16.gmra.mrb[0].mxu0 %v1584
    %v6424 = vpop.f32.mrb[0].mxu0
    %v6425 = vadd.f32 %v6354, %v6424
    %v6426 = vpop.f32.mrb[0].mxu0
    %v6427 = vadd.f32 %v6356, %v6426
    %v6428 = vpop.f32.mrb[0].mxu0
    %v6429 = vpop.f32.mrb[0].mxu0
    %6430 = vdwg.mxu0
    %6431 = vmatprep.subr.bf16.mxu0 %v5010
    %6432 = vmatpush1.bf16.msra.mxu0 %v5009
    %6433 = vmatprep.subr.bf16.mxu0 %v5018
    %6434 = vmatpush1.bf16.msra.mxu0 %v5017
    %6435 = vmatprep.subr.bf16.mxu0 %v5026
    %6436 = vmatpush1.bf16.msra.mxu0 %v5025
    %6437 = vmatprep.subr.bf16.mxu0 %v5034
    %6438 = vmatpush1.bf16.msra.mxu0 %v5033
    %6439 = vmatprep.subr.bf16.mxu0 %v5042
    %6440 = vmatpush1.bf16.msra.mxu0 %v5041
    %6441 = vmatprep.subr.bf16.mxu0 %v5050
    %6442 = vmatpush1.bf16.msra.mxu0 %v5049
    %6443 = vmatprep.subr.bf16.mxu0 %v5058
    %6444 = vmatpush1.bf16.msra.mxu0 %v5057
    %6445 = vmatprep.subr.bf16.mxu0 %v5066
    %6446 = vmatpush1.bf16.msra.mxu0 %v5065
    %6447 = vmatprep.subr.bf16.mxu0 %v5074
    %6448 = vmatpush1.bf16.msra.mxu0 %v5073
    %6449 = vmatprep.subr.bf16.mxu0 %v5082
    %6450 = vmatpush1.bf16.msra.mxu0 %v5081
    %6451 = vmatprep.subr.bf16.mxu0 %v5090
    %6452 = vmatpush1.bf16.msra.mxu0 %v5089
    %6453 = vmatprep.subr.bf16.mxu0 %v5098
    %6454 = vmatpush1.bf16.msra.mxu0 %v5097
    %6455 = vmatprep.subr.bf16.mxu0 %v5106
    %6456 = vmatpush1.bf16.msra.mxu0 %v5105
    %6457 = vmatprep.subr.bf16.mxu0 %v5114
    %6458 = vmatpush1.bf16.msra.mxu0 %v5113
    %6459 = vmatprep.subr.bf16.mxu0 %v5122
    %6460 = vmatpush1.bf16.msra.mxu0 %v5121
    %6461 = vmatprep.subr.bf16.mxu0 %v5130
    %6462 = vmatpush1.bf16.msra.mxu0 %v5129
    %6463 = vmatprep.mubr.bf16.mxu0 %v1634
    %6464 = vmatmul.mubr.bf16.gmra.mrb[0].mxu0 %v1631
    %v6465 = vpop.f32.mrb[0].mxu0
    %v6466 = vadd.f32 %v6395, %v6465
    %v6467 = vpop.f32.mrb[0].mxu0
    %v6468 = vadd.f32 %v6397, %v6467
    %v6469 = vpop.f32.mrb[0].mxu0
    %v6470 = vadd.f32 %v6399, %v6469
    %v6471 = vpop.f32.mrb[0].mxu0
    %v6472 = vadd.f32 %v6401, %v6471
    %6473 = vmatprep.mubr.bf16.mxu0 %v1638
    %6474 = vmatmul.mubr.bf16.gmra.mrb[0].mxu0 %v1636
    %v6475 = vpop.f32.mrb[0].mxu0
    %v6476 = vadd.f32 %v6405, %v6475
    %v6477 = vpop.f32.mrb[0].mxu0
    %v6478 = vadd.f32 %v6407, %v6477
    %v6479 = vpop.f32.mrb[0].mxu0
    %v6480 = vadd.f32 %v6409, %v6479
    %v6481 = vpop.f32.mrb[0].mxu0
    %v6482 = vadd.f32 %v6411, %v6481
    %6483 = vmatprep.mubr.bf16.mxu0 %v1642
    %6484 = vmatmul.mubr.bf16.gmra.mrb[0].mxu0 %v1640
    %v6485 = vpop.f32.mrb[0].mxu0
    %v6486 = vadd.f32 %v6415, %v6485
    %v6487 = vpop.f32.mrb[0].mxu0
    %v6488 = vadd.f32 %v6417, %v6487
    %v6489 = vpop.f32.mrb[0].mxu0
    %v6490 = vadd.f32 %v6419, %v6489
    %v6491 = vpop.f32.mrb[0].mxu0
    %v6492 = vadd.f32 %v6421, %v6491
    %6493 = vmatprep.mubr.bf16.mxu0 %v1641
    %6494 = vmatmul.mubr.bf16.gmra.mrb[0].mxu0 %v1639
    %v6495 = vpop.f32.mrb[0].mxu0
    %v6496 = vadd.f32 %v6425, %v6495
    %v6497 = vpop.f32.mrb[0].mxu0
    %v6498 = vadd.f32 %v6427, %v6497
    %v6499 = vpop.f32.mrb[0].mxu0
    %v6500 = vpop.f32.mrb[0].mxu0
    %6501 = vdwg.mxu0
    %6502 = vmatprep.subr.bf16.mxu0 %v5138
    %6503 = vmatpush1.bf16.msra.mxu0 %v5137
    %6504 = vmatprep.subr.bf16.mxu0 %v5146
    %6505 = vmatpush1.bf16.msra.mxu0 %v5145
    %6506 = vmatprep.subr.bf16.mxu0 %v5154
    %6507 = vmatpush1.bf16.msra.mxu0 %v5153
    %6508 = vmatprep.subr.bf16.mxu0 %v5162
    %6509 = vmatpush1.bf16.msra.mxu0 %v5161
    %6510 = vmatprep.subr.bf16.mxu0 %v5170
    %6511 = vmatpush1.bf16.msra.mxu0 %v5169
    %6512 = vmatprep.subr.bf16.mxu0 %v5178
    %6513 = vmatpush1.bf16.msra.mxu0 %v5177
    %6514 = vmatprep.subr.bf16.mxu0 %v5186
    %6515 = vmatpush1.bf16.msra.mxu0 %v5185
    %6516 = vmatprep.subr.bf16.mxu0 %v5194
    %6517 = vmatpush1.bf16.msra.mxu0 %v5193
    %6518 = vmatprep.subr.bf16.mxu0 %v5202
    %6519 = vmatpush1.bf16.msra.mxu0 %v5201
    %6520 = vmatprep.subr.bf16.mxu0 %v5210
    %6521 = vmatpush1.bf16.msra.mxu0 %v5209
    %6522 = vmatprep.subr.bf16.mxu0 %v5218
    %6523 = vmatpush1.bf16.msra.mxu0 %v5217
    %6524 = vmatprep.subr.bf16.mxu0 %v5226
    %6525 = vmatpush1.bf16.msra.mxu0 %v5225
    %6526 = vmatprep.subr.bf16.mxu0 %v5234
    %6527 = vmatpush1.bf16.msra.mxu0 %v5233
    %6528 = vmatprep.subr.bf16.mxu0 %v5242
    %6529 = vmatpush1.bf16.msra.mxu0 %v5241
    %6530 = vmatprep.subr.bf16.mxu0 %v5250
    %6531 = vmatpush1.bf16.msra.mxu0 %v5249
    %6532 = vmatprep.subr.bf16.mxu0 %v5258
    %6533 = vmatpush1.bf16.msra.mxu0 %v5257
    %6534 = vmatprep.mubr.bf16.mxu0 %v1664
    %6535 = vmatmul.mubr.bf16.gmra.mrb[0].mxu0 %v1661
    %v6536 = vpop.f32.mrb[0].mxu0
    %v6537 = vadd.f32 %v6466, %v6536
    %v6538 = vpop.f32.mrb[0].mxu0
    %v6539 = vadd.f32 %v6468, %v6538
    %v6540 = vpop.f32.mrb[0].mxu0
    %v6541 = vadd.f32 %v6470, %v6540
    %v6542 = vpop.f32.mrb[0].mxu0
    %v6543 = vadd.f32 %v6472, %v6542
    %6544 = vmatprep.mubr.bf16.mxu0 %v1668
    %6545 = vmatmul.mubr.bf16.gmra.mrb[0].mxu0 %v1666
    %v6546 = vpop.f32.mrb[0].mxu0
    %v6547 = vadd.f32 %v6476, %v6546
    %v6548 = vpop.f32.mrb[0].mxu0
    %v6549 = vadd.f32 %v6478, %v6548
    %v6550 = vpop.f32.mrb[0].mxu0
    %v6551 = vadd.f32 %v6480, %v6550
    %v6552 = vpop.f32.mrb[0].mxu0
    %v6553 = vadd.f32 %v6482, %v6552
    %6554 = vmatprep.mubr.bf16.mxu0 %v1672
    %6555 = vmatmul.mubr.bf16.gmra.mrb[0].mxu0 %v1670
    %v6556 = vpop.f32.mrb[0].mxu0
    %v6557 = vadd.f32 %v6486, %v6556
    %v6558 = vpop.f32.mrb[0].mxu0
    %v6559 = vadd.f32 %v6488, %v6558
    %v6560 = vpop.f32.mrb[0].mxu0
    %v6561 = vadd.f32 %v6490, %v6560
    %v6562 = vpop.f32.mrb[0].mxu0
    %v6563 = vadd.f32 %v6492, %v6562
    %6564 = vmatprep.mubr.bf16.mxu0 %v1671
    %6565 = vmatmul.mubr.bf16.gmra.mrb[0].mxu0 %v1669
    %v6566 = vpop.f32.mrb[0].mxu0
    %v6567 = vadd.f32 %v6496, %v6566
    %v6568 = vpop.f32.mrb[0].mxu0
    %v6569 = vadd.f32 %v6498, %v6568
    %v6570 = vpop.f32.mrb[0].mxu0
    %v6571 = vpop.f32.mrb[0].mxu0
    %6572 = vdwg.mxu0
    %6573 = vmatprep.subr.bf16.mxu0 %v5266
    %6574 = vmatpush1.bf16.msra.mxu0 %v5265
    %6575 = vmatprep.subr.bf16.mxu0 %v5274
    %6576 = vmatpush1.bf16.msra.mxu0 %v5273
    %6577 = vmatprep.subr.bf16.mxu0 %v5282
    %6578 = vmatpush1.bf16.msra.mxu0 %v5281
    %6579 = vmatprep.subr.bf16.mxu0 %v5290
    %6580 = vmatpush1.bf16.msra.mxu0 %v5289
    %6581 = vmatprep.subr.bf16.mxu0 %v5298
    %6582 = vmatpush1.bf16.msra.mxu0 %v5297
    %6583 = vmatprep.subr.bf16.mxu0 %v5306
    %6584 = vmatpush1.bf16.msra.mxu0 %v5305
    %6585 = vmatprep.subr.bf16.mxu0 %v5314
    %6586 = vmatpush1.bf16.msra.mxu0 %v5313
    %6587 = vmatprep.subr.bf16.mxu0 %v5322
    %6588 = vmatpush1.bf16.msra.mxu0 %v5321
    %6589 = vmatprep.subr.bf16.mxu0 %v5330
    %6590 = vmatpush1.bf16.msra.mxu0 %v5329
    %6591 = vmatprep.subr.bf16.mxu0 %v5338
    %6592 = vmatpush1.bf16.msra.mxu0 %v5337
    %6593 = vmatprep.subr.bf16.mxu0 %v5346
    %6594 = vmatpush1.bf16.msra.mxu0 %v5345
    %6595 = vmatprep.subr.bf16.mxu0 %v5354
    %6596 = vmatpush1.bf16.msra.mxu0 %v5353
    %6597 = vmatprep.subr.bf16.mxu0 %v5362
    %6598 = vmatpush1.bf16.msra.mxu0 %v5361
    %6599 = vmatprep.subr.bf16.mxu0 %v5370
    %6600 = vmatpush1.bf16.msra.mxu0 %v5369
    %6601 = vmatprep.subr.bf16.mxu0 %v5378
    %6602 = vmatpush1.bf16.msra.mxu0 %v5377
    %6603 = vmatprep.subr.bf16.mxu0 %v5386
    %6604 = vmatpush1.bf16.msra.mxu0 %v5385
    %6605 = vmatprep.mubr.bf16.mxu0 %v1599
    %6606 = vmatmul.mubr.bf16.gmra.mrb[0].mxu0 %v1597
    %v6607 = vpop.f32.mrb[0].mxu0
    %v6608 = vadd.f32 %v6537, %v6607
    %v6609 = vpop.f32.mrb[0].mxu0
    %v6610 = vadd.f32 %v6539, %v6609
    %v6611 = vpop.f32.mrb[0].mxu0
    %v6612 = vadd.f32 %v6541, %v6611
    %v6613 = vpop.f32.mrb[0].mxu0
    %v6614 = vadd.f32 %v6543, %v6613
    %6615 = vmatprep.mubr.bf16.mxu0 %v1603
    %6616 = vmatmul.mubr.bf16.gmra.mrb[0].mxu0 %v1601
    %v6617 = vpop.f32.mrb[0].mxu0
    %v6618 = vadd.f32 %v6547, %v6617
    %v6619 = vpop.f32.mrb[0].mxu0
    %v6620 = vadd.f32 %v6549, %v6619
    %v6621 = vpop.f32.mrb[0].mxu0
    %v6622 = vadd.f32 %v6551, %v6621
    %v6623 = vpop.f32.mrb[0].mxu0
    %v6624 = vadd.f32 %v6553, %v6623
    %6625 = vmatprep.mubr.bf16.mxu0 %v1607
    %6626 = vmatmul.mubr.bf16.gmra.mrb[0].mxu0 %v1605
    %v6627 = vpop.f32.mrb[0].mxu0
    %v6628 = vadd.f32 %v6557, %v6627
    %v6629 = vpop.f32.mrb[0].mxu0
    %v6630 = vadd.f32 %v6559, %v6629
    %v6631 = vpop.f32.mrb[0].mxu0
    %v6632 = vadd.f32 %v6561, %v6631
    %v6633 = vpop.f32.mrb[0].mxu0
    %v6634 = vadd.f32 %v6563, %v6633
    %6635 = vmatprep.mubr.bf16.mxu0 0
    %6636 = vmatmul.mubr.bf16.gmra.mrb[0].mxu0 0
    %v6637 = vpop.f32.mrb[0].mxu0
    %v6638 = vadd.f32 %v6567, %v6637
    %v6639 = vpop.f32.mrb[0].mxu0
    %v6640 = vadd.f32 %v6569, %v6639
    %v6641 = vpop.f32.mrb[0].mxu0
    %v6642 = vpop.f32.mrb[0].mxu0
    %6643 = vdwg.mxu0
    %6644 = vmatprep.subr.bf16.mxu0 %v5394
    %6645 = vmatpush1.bf16.msra.mxu0 %v5393
    %6646 = vmatprep.subr.bf16.mxu0 %v5402
    %6647 = vmatpush1.bf16.msra.mxu0 %v5401
    %6648 = vmatprep.subr.bf16.mxu0 %v5410
    %6649 = vmatpush1.bf16.msra.mxu0 %v5409
    %6650 = vmatprep.subr.bf16.mxu0 %v5418
    %6651 = vmatpush1.bf16.msra.mxu0 %v5417
    %6652 = vmatprep.subr.bf16.mxu0 %v5426
    %6653 = vmatpush1.bf16.msra.mxu0 %v5425
    %6654 = vmatprep.subr.bf16.mxu0 %v5434
    %6655 = vmatpush1.bf16.msra.mxu0 %v5433
    %6656 = vmatprep.subr.bf16.mxu0 %v5442
    %6657 = vmatpush1.bf16.msra.mxu0 %v5441
    %6658 = vmatprep.subr.bf16.mxu0 %v5450
    %6659 = vmatpush1.bf16.msra.mxu0 %v5449
    %6660 = vmatprep.subr.bf16.mxu0 %v5458
    %6661 = vmatpush1.bf16.msra.mxu0 %v5457
    %6662 = vmatprep.subr.bf16.mxu0 %v5466
    %6663 = vmatpush1.bf16.msra.mxu0 %v5465
    %6664 = vmatprep.subr.bf16.mxu0 %v5474
    %6665 = vmatpush1.bf16.msra.mxu0 %v5473
    %6666 = vmatprep.subr.bf16.mxu0 %v5482
    %6667 = vmatpush1.bf16.msra.mxu0 %v5481
    %6668 = vmatprep.subr.bf16.mxu0 %v5490
    %6669 = vmatpush1.bf16.msra.mxu0 %v5489
    %6670 = vmatprep.subr.bf16.mxu0 %v5498
    %6671 = vmatpush1.bf16.msra.mxu0 %v5497
    %6672 = vmatprep.subr.bf16.mxu0 %v5506
    %6673 = vmatpush1.bf16.msra.mxu0 %v5505
    %6674 = vmatprep.subr.bf16.mxu0 %v5514
    %6675 = vmatpush1.bf16.msra.mxu0 %v5513
    %6676 = vmatprep.mubr.bf16.mxu0 %v1581
    %6677 = vmatmul.mubr.bf16.gmra.mrb[0].mxu0 %v1580
    %v6678 = vpop.f32.mrb[0].mxu0
    %v6679 = vadd.f32 %v6608, %v6678
    %v6680 = vpop.f32.mrb[0].mxu0
    %v6681 = vadd.f32 %v6610, %v6680
    %v6682 = vpop.f32.mrb[0].mxu0
    %v6683 = vadd.f32 %v6612, %v6682
    %v6684 = vpop.f32.mrb[0].mxu0
    %v6685 = vadd.f32 %v6614, %v6684
    %6686 = vmatprep.mubr.bf16.mxu0 %v1583
    %6687 = vmatmul.mubr.bf16.gmra.mrb[0].mxu0 %v1582
    %v6688 = vpop.f32.mrb[0].mxu0
    %v6689 = vadd.f32 %v6618, %v6688
    %v6690 = vpop.f32.mrb[0].mxu0
    %v6691 = vadd.f32 %v6620, %v6690
    %v6692 = vpop.f32.mrb[0].mxu0
    %v6693 = vadd.f32 %v6622, %v6692
    %v6694 = vpop.f32.mrb[0].mxu0
    %v6695 = vadd.f32 %v6624, %v6694
    %6696 = vmatprep.mubr.bf16.mxu0 %v1585
    %6697 = vmatmul.mubr.bf16.gmra.mrb[0].mxu0 %v1584
    %v6698 = vpop.f32.mrb[0].mxu0
    %v6699 = vadd.f32 %v6628, %v6698
    %v6700 = vpop.f32.mrb[0].mxu0
    %v6701 = vadd.f32 %v6630, %v6700
    %v6702 = vpop.f32.mrb[0].mxu0
    %v6703 = vadd.f32 %v6632, %v6702
    %v6704 = vpop.f32.mrb[0].mxu0
    %v6705 = vadd.f32 %v6634, %v6704
    %6706 = vmatprep.mubr.bf16.mxu0 0
    %6707 = vmatmul.mubr.bf16.gmra.mrb[0].mxu0 0
    %v6708 = vpop.f32.mrb[0].mxu0
    %v6709 = vadd.f32 %v6638, %v6708
    %v6710 = vpop.f32.mrb[0].mxu0
    %v6711 = vadd.f32 %v6640, %v6710
    %v6712 = vpop.f32.mrb[0].mxu0
    %v6713 = vpop.f32.mrb[0].mxu0
    %6714 = vdwg.mxu0
    %6715 = vmatprep.subr.bf16.mxu0 %v4756
    %6716 = vmatpush1.bf16.msra.mxu0 %v4755
    %6717 = vmatprep.subr.bf16.mxu0 %v4764
    %6718 = vmatpush1.bf16.msra.mxu0 %v4763
    %6719 = vmatprep.subr.bf16.mxu0 %v4772
    %6720 = vmatpush1.bf16.msra.mxu0 %v4771
    %6721 = vmatprep.subr.bf16.mxu0 %v4780
    %6722 = vmatpush1.bf16.msra.mxu0 %v4779
    %6723 = vmatprep.subr.bf16.mxu0 %v4788
    %6724 = vmatpush1.bf16.msra.mxu0 %v4787
    %6725 = vmatprep.subr.bf16.mxu0 %v4796
    %6726 = vmatpush1.bf16.msra.mxu0 %v4795
    %6727 = vmatprep.subr.bf16.mxu0 %v4804
    %6728 = vmatpush1.bf16.msra.mxu0 %v4803
    %6729 = vmatprep.subr.bf16.mxu0 %v4812
    %6730 = vmatpush1.bf16.msra.mxu0 %v4811
    %6731 = vmatprep.subr.bf16.mxu0 %v4820
    %6732 = vmatpush1.bf16.msra.mxu0 %v4819
    %6733 = vmatprep.subr.bf16.mxu0 %v4828
    %6734 = vmatpush1.bf16.msra.mxu0 %v4827
    %6735 = vmatprep.subr.bf16.mxu0 %v4836
    %6736 = vmatpush1.bf16.msra.mxu0 %v4835
    %6737 = vmatprep.subr.bf16.mxu0 %v4844
    %6738 = vmatpush1.bf16.msra.mxu0 %v4843
    %6739 = vmatprep.subr.bf16.mxu0 %v4852
    %6740 = vmatpush1.bf16.msra.mxu0 %v4851
    %6741 = vmatprep.subr.bf16.mxu0 %v4860
    %6742 = vmatpush1.bf16.msra.mxu0 %v4859
    %6743 = vmatprep.subr.bf16.mxu0 %v4868
    %6744 = vmatpush1.bf16.msra.mxu0 %v4867
    %6745 = vmatprep.subr.bf16.mxu0 %v4876
    %6746 = vmatpush1.bf16.msra.mxu0 %v4875
    %6747 = vmatprep.mubr.bf16.mxu0 %v1619
    %6748 = vmatmul.mubr.bf16.gmra.mrb[0].mxu0 %v1616
    %v6749 = vpop.f32.mrb[0].mxu0
    %v6750 = vadd.f32 0.0, %v6749
    %v6751 = vpop.f32.mrb[0].mxu0
    %v6752 = vadd.f32 0.0, %v6751
    %v6753 = vpop.f32.mrb[0].mxu0
    %v6754 = vadd.f32 0.0, %v6753
    %v6755 = vpop.f32.mrb[0].mxu0
    %v6756 = vadd.f32 0.0, %v6755
    %6757 = vmatprep.mubr.bf16.mxu0 %v1599
    %6758 = vmatmul.mubr.bf16.gmra.mrb[0].mxu0 %v1597
    %v6759 = vpop.f32.mrb[0].mxu0
    %v6760 = vadd.f32 0.0, %v6759
    %v6761 = vpop.f32.mrb[0].mxu0
    %v6762 = vadd.f32 0.0, %v6761
    %v6763 = vpop.f32.mrb[0].mxu0
    %v6764 = vadd.f32 0.0, %v6763
    %v6765 = vpop.f32.mrb[0].mxu0
    %v6766 = vadd.f32 0.0, %v6765
    %6767 = vmatprep.mubr.bf16.mxu0 %v1603
    %6768 = vmatmul.mubr.bf16.gmra.mrb[0].mxu0 %v1601
    %v6769 = vpop.f32.mrb[0].mxu0
    %v6770 = vadd.f32 0.0, %v6769
    %v6771 = vpop.f32.mrb[0].mxu0
    %v6772 = vadd.f32 0.0, %v6771
    %v6773 = vpop.f32.mrb[0].mxu0
    %v6774 = vadd.f32 0.0, %v6773
    %v6775 = vpop.f32.mrb[0].mxu0
    %v6776 = vadd.f32 0.0, %v6775
    %6777 = vmatprep.mubr.bf16.mxu0 %v1607
    %6778 = vmatmul.mubr.bf16.gmra.mrb[0].mxu0 %v1605
    %v6779 = vpop.f32.mrb[0].mxu0
    %v6780 = vadd.f32 0.0, %v6779
    %v6781 = vpop.f32.mrb[0].mxu0
    %v6782 = vadd.f32 0.0, %v6781
    %v6783 = vpop.f32.mrb[0].mxu0
    %v6784 = vpop.f32.mrb[0].mxu0
    %6785 = vdwg.mxu0
    %6786 = vmatprep.subr.bf16.mxu0 %v4884
    %6787 = vmatpush1.bf16.msra.mxu0 %v4883
    %6788 = vmatprep.subr.bf16.mxu0 %v4892
    %6789 = vmatpush1.bf16.msra.mxu0 %v4891
    %6790 = vmatprep.subr.bf16.mxu0 %v4900
    %6791 = vmatpush1.bf16.msra.mxu0 %v4899
    %6792 = vmatprep.subr.bf16.mxu0 %v4908
    %6793 = vmatpush1.bf16.msra.mxu0 %v4907
    %6794 = vmatprep.subr.bf16.mxu0 %v4916
    %6795 = vmatpush1.bf16.msra.mxu0 %v4915
    %6796 = vmatprep.subr.bf16.mxu0 %v4924
    %6797 = vmatpush1.bf16.msra.mxu0 %v4923
    %6798 = vmatprep.subr.bf16.mxu0 %v4932
    %6799 = vmatpush1.bf16.msra.mxu0 %v4931
    %6800 = vmatprep.subr.bf16.mxu0 %v4940
    %6801 = vmatpush1.bf16.msra.mxu0 %v4939
    %6802 = vmatprep.subr.bf16.mxu0 %v4948
    %6803 = vmatpush1.bf16.msra.mxu0 %v4947
    %6804 = vmatprep.subr.bf16.mxu0 %v4956
    %6805 = vmatpush1.bf16.msra.mxu0 %v4955
    %6806 = vmatprep.subr.bf16.mxu0 %v4964
    %6807 = vmatpush1.bf16.msra.mxu0 %v4963
    %6808 = vmatprep.subr.bf16.mxu0 %v4972
    %6809 = vmatpush1.bf16.msra.mxu0 %v4971
    %6810 = vmatprep.subr.bf16.mxu0 %v4980
    %6811 = vmatpush1.bf16.msra.mxu0 %v4979
    %6812 = vmatprep.subr.bf16.mxu0 %v4988
    %6813 = vmatpush1.bf16.msra.mxu0 %v4987
    %6814 = vmatprep.subr.bf16.mxu0 %v4996
    %6815 = vmatpush1.bf16.msra.mxu0 %v4995
    %6816 = vmatprep.subr.bf16.mxu0 %v5004
    %6817 = vmatpush1.bf16.msra.mxu0 %v5003
    %6818 = vmatprep.mubr.bf16.mxu0 %v1625
    %6819 = vmatmul.mubr.bf16.gmra.mrb[0].mxu0 %v1622
    %v6820 = vpop.f32.mrb[0].mxu0
    %v6821 = vadd.f32 %v6750, %v6820
    %v6822 = vpop.f32.mrb[0].mxu0
    %v6823 = vadd.f32 %v6752, %v6822
    %v6824 = vpop.f32.mrb[0].mxu0
    %v6825 = vadd.f32 %v6754, %v6824
    %v6826 = vpop.f32.mrb[0].mxu0
    %v6827 = vadd.f32 %v6756, %v6826
    %6828 = vmatprep.mubr.bf16.mxu0 %v1581
    %6829 = vmatmul.mubr.bf16.gmra.mrb[0].mxu0 %v1580
    %v6830 = vpop.f32.mrb[0].mxu0
    %v6831 = vadd.f32 %v6760, %v6830
    %v6832 = vpop.f32.mrb[0].mxu0
    %v6833 = vadd.f32 %v6762, %v6832
    %v6834 = vpop.f32.mrb[0].mxu0
    %v6835 = vadd.f32 %v6764, %v6834
    %v6836 = vpop.f32.mrb[0].mxu0
    %v6837 = vadd.f32 %v6766, %v6836
    %6838 = vmatprep.mubr.bf16.mxu0 %v1583
    %6839 = vmatmul.mubr.bf16.gmra.mrb[0].mxu0 %v1582
    %v6840 = vpop.f32.mrb[0].mxu0
    %v6841 = vadd.f32 %v6770, %v6840
    %v6842 = vpop.f32.mrb[0].mxu0
    %v6843 = vadd.f32 %v6772, %v6842
    %v6844 = vpop.f32.mrb[0].mxu0
    %v6845 = vadd.f32 %v6774, %v6844
    %v6846 = vpop.f32.mrb[0].mxu0
    %v6847 = vadd.f32 %v6776, %v6846
    %6848 = vmatprep.mubr.bf16.mxu0 %v1585
    %6849 = vmatmul.mubr.bf16.gmra.mrb[0].mxu0 %v1584
    %v6850 = vpop.f32.mrb[0].mxu0
    %v6851 = vadd.f32 %v6780, %v6850
    %v6852 = vpop.f32.mrb[0].mxu0
    %v6853 = vadd.f32 %v6782, %v6852
    %v6854 = vpop.f32.mrb[0].mxu0
    %v6855 = vpop.f32.mrb[0].mxu0
    %6856 = vdwg.mxu0
    %6857 = vmatprep.subr.bf16.mxu0 %v5012
    %6858 = vmatpush1.bf16.msra.mxu0 %v5011
    %6859 = vmatprep.subr.bf16.mxu0 %v5020
    %6860 = vmatpush1.bf16.msra.mxu0 %v5019
    %6861 = vmatprep.subr.bf16.mxu0 %v5028
    %6862 = vmatpush1.bf16.msra.mxu0 %v5027
    %6863 = vmatprep.subr.bf16.mxu0 %v5036
    %6864 = vmatpush1.bf16.msra.mxu0 %v5035
    %6865 = vmatprep.subr.bf16.mxu0 %v5044
    %6866 = vmatpush1.bf16.msra.mxu0 %v5043
    %6867 = vmatprep.subr.bf16.mxu0 %v5052
    %6868 = vmatpush1.bf16.msra.mxu0 %v5051
    %6869 = vmatprep.subr.bf16.mxu0 %v5060
    %6870 = vmatpush1.bf16.msra.mxu0 %v5059
    %6871 = vmatprep.subr.bf16.mxu0 %v5068
    %6872 = vmatpush1.bf16.msra.mxu0 %v5067
    %6873 = vmatprep.subr.bf16.mxu0 %v5076
    %6874 = vmatpush1.bf16.msra.mxu0 %v5075
    %6875 = vmatprep.subr.bf16.mxu0 %v5084
    %6876 = vmatpush1.bf16.msra.mxu0 %v5083
    %6877 = vmatprep.subr.bf16.mxu0 %v5092
    %6878 = vmatpush1.bf16.msra.mxu0 %v5091
    %6879 = vmatprep.subr.bf16.mxu0 %v5100
    %6880 = vmatpush1.bf16.msra.mxu0 %v5099
    %6881 = vmatprep.subr.bf16.mxu0 %v5108
    %6882 = vmatpush1.bf16.msra.mxu0 %v5107
    %6883 = vmatprep.subr.bf16.mxu0 %v5116
    %6884 = vmatpush1.bf16.msra.mxu0 %v5115
    %6885 = vmatprep.subr.bf16.mxu0 %v5124
    %6886 = vmatpush1.bf16.msra.mxu0 %v5123
    %6887 = vmatprep.subr.bf16.mxu0 %v5132
    %6888 = vmatpush1.bf16.msra.mxu0 %v5131
    %6889 = vmatprep.mubr.bf16.mxu0 %v1634
    %6890 = vmatmul.mubr.bf16.gmra.mrb[0].mxu0 %v1631
    %v6891 = vpop.f32.mrb[0].mxu0
    %v6892 = vadd.f32 %v6821, %v6891
    %v6893 = vpop.f32.mrb[0].mxu0
    %v6894 = vadd.f32 %v6823, %v6893
    %v6895 = vpop.f32.mrb[0].mxu0
    %v6896 = vadd.f32 %v6825, %v6895
    %v6897 = vpop.f32.mrb[0].mxu0
    %v6898 = vadd.f32 %v6827, %v6897
    %6899 = vmatprep.mubr.bf16.mxu0 %v1638
    %6900 = vmatmul.mubr.bf16.gmra.mrb[0].mxu0 %v1636
    %v6901 = vpop.f32.mrb[0].mxu0
    %v6902 = vadd.f32 %v6831, %v6901
    %v6903 = vpop.f32.mrb[0].mxu0
    %v6904 = vadd.f32 %v6833, %v6903
    %v6905 = vpop.f32.mrb[0].mxu0
    %v6906 = vadd.f32 %v6835, %v6905
    %v6907 = vpop.f32.mrb[0].mxu0
    %v6908 = vadd.f32 %v6837, %v6907
    %6909 = vmatprep.mubr.bf16.mxu0 %v1642
    %6910 = vmatmul.mubr.bf16.gmra.mrb[0].mxu0 %v1640
    %v6911 = vpop.f32.mrb[0].mxu0
    %v6912 = vadd.f32 %v6841, %v6911
    %v6913 = vpop.f32.mrb[0].mxu0
    %v6914 = vadd.f32 %v6843, %v6913
    %v6915 = vpop.f32.mrb[0].mxu0
    %v6916 = vadd.f32 %v6845, %v6915
    %v6917 = vpop.f32.mrb[0].mxu0
    %v6918 = vadd.f32 %v6847, %v6917
    %6919 = vmatprep.mubr.bf16.mxu0 %v1641
    %6920 = vmatmul.mubr.bf16.gmra.mrb[0].mxu0 %v1639
    %v6921 = vpop.f32.mrb[0].mxu0
    %v6922 = vadd.f32 %v6851, %v6921
    %v6923 = vpop.f32.mrb[0].mxu0
    %v6924 = vadd.f32 %v6853, %v6923
    %v6925 = vpop.f32.mrb[0].mxu0
    %v6926 = vpop.f32.mrb[0].mxu0
    %6927 = vdwg.mxu0
    %6928 = vmatprep.subr.bf16.mxu0 %v5140
    %6929 = vmatpush1.bf16.msra.mxu0 %v5139
    %6930 = vmatprep.subr.bf16.mxu0 %v5148
    %6931 = vmatpush1.bf16.msra.mxu0 %v5147
    %6932 = vmatprep.subr.bf16.mxu0 %v5156
    %6933 = vmatpush1.bf16.msra.mxu0 %v5155
    %6934 = vmatprep.subr.bf16.mxu0 %v5164
    %6935 = vmatpush1.bf16.msra.mxu0 %v5163
    %6936 = vmatprep.subr.bf16.mxu0 %v5172
    %6937 = vmatpush1.bf16.msra.mxu0 %v5171
    %6938 = vmatprep.subr.bf16.mxu0 %v5180
    %6939 = vmatpush1.bf16.msra.mxu0 %v5179
    %6940 = vmatprep.subr.bf16.mxu0 %v5188
    %6941 = vmatpush1.bf16.msra.mxu0 %v5187
    %6942 = vmatprep.subr.bf16.mxu0 %v5196
    %6943 = vmatpush1.bf16.msra.mxu0 %v5195
    %6944 = vmatprep.subr.bf16.mxu0 %v5204
    %6945 = vmatpush1.bf16.msra.mxu0 %v5203
    %6946 = vmatprep.subr.bf16.mxu0 %v5212
    %6947 = vmatpush1.bf16.msra.mxu0 %v5211
    %6948 = vmatprep.subr.bf16.mxu0 %v5220
    %6949 = vmatpush1.bf16.msra.mxu0 %v5219
    %6950 = vmatprep.subr.bf16.mxu0 %v5228
    %6951 = vmatpush1.bf16.msra.mxu0 %v5227
    %6952 = vmatprep.subr.bf16.mxu0 %v5236
    %6953 = vmatpush1.bf16.msra.mxu0 %v5235
    %6954 = vmatprep.subr.bf16.mxu0 %v5244
    %6955 = vmatpush1.bf16.msra.mxu0 %v5243
    %6956 = vmatprep.subr.bf16.mxu0 %v5252
    %6957 = vmatpush1.bf16.msra.mxu0 %v5251
    %6958 = vmatprep.subr.bf16.mxu0 %v5260
    %6959 = vmatpush1.bf16.msra.mxu0 %v5259
    %6960 = vmatprep.mubr.bf16.mxu0 %v1664
    %6961 = vmatmul.mubr.bf16.gmra.mrb[0].mxu0 %v1661
    %v6962 = vpop.f32.mrb[0].mxu0
    %v6963 = vadd.f32 %v6892, %v6962
    %v6964 = vpop.f32.mrb[0].mxu0
    %v6965 = vadd.f32 %v6894, %v6964
    %v6966 = vpop.f32.mrb[0].mxu0
    %v6967 = vadd.f32 %v6896, %v6966
    %v6968 = vpop.f32.mrb[0].mxu0
    %v6969 = vadd.f32 %v6898, %v6968
    %6970 = vmatprep.mubr.bf16.mxu0 %v1668
    %6971 = vmatmul.mubr.bf16.gmra.mrb[0].mxu0 %v1666
    %v6972 = vpop.f32.mrb[0].mxu0
    %v6973 = vadd.f32 %v6902, %v6972
    %v6974 = vpop.f32.mrb[0].mxu0
    %v6975 = vadd.f32 %v6904, %v6974
    %v6976 = vpop.f32.mrb[0].mxu0
    %v6977 = vadd.f32 %v6906, %v6976
    %v6978 = vpop.f32.mrb[0].mxu0
    %v6979 = vadd.f32 %v6908, %v6978
    %6980 = vmatprep.mubr.bf16.mxu0 %v1672
    %6981 = vmatmul.mubr.bf16.gmra.mrb[0].mxu0 %v1670
    %v6982 = vpop.f32.mrb[0].mxu0
    %v6983 = vadd.f32 %v6912, %v6982
    %v6984 = vpop.f32.mrb[0].mxu0
    %v6985 = vadd.f32 %v6914, %v6984
    %v6986 = vpop.f32.mrb[0].mxu0
    %v6987 = vadd.f32 %v6916, %v6986
    %v6988 = vpop.f32.mrb[0].mxu0
    %v6989 = vadd.f32 %v6918, %v6988
    %6990 = vmatprep.mubr.bf16.mxu0 %v1671
    %6991 = vmatmul.mubr.bf16.gmra.mrb[0].mxu0 %v1669
    %v6992 = vpop.f32.mrb[0].mxu0
    %v6993 = vadd.f32 %v6922, %v6992
    %v6994 = vpop.f32.mrb[0].mxu0
    %v6995 = vadd.f32 %v6924, %v6994
    %v6996 = vpop.f32.mrb[0].mxu0
    %v6997 = vpop.f32.mrb[0].mxu0
    %6998 = vdwg.mxu0
    %6999 = vmatprep.subr.bf16.mxu0 %v5268
    %7000 = vmatpush1.bf16.msra.mxu0 %v5267
    %7001 = vmatprep.subr.bf16.mxu0 %v5276
    %7002 = vmatpush1.bf16.msra.mxu0 %v5275
    %7003 = vmatprep.subr.bf16.mxu0 %v5284
    %7004 = vmatpush1.bf16.msra.mxu0 %v5283
    %7005 = vmatprep.subr.bf16.mxu0 %v5292
    %7006 = vmatpush1.bf16.msra.mxu0 %v5291
    %7007 = vmatprep.subr.bf16.mxu0 %v5300
    %7008 = vmatpush1.bf16.msra.mxu0 %v5299
    %7009 = vmatprep.subr.bf16.mxu0 %v5308
    %7010 = vmatpush1.bf16.msra.mxu0 %v5307
    %7011 = vmatprep.subr.bf16.mxu0 %v5316
    %7012 = vmatpush1.bf16.msra.mxu0 %v5315
    %7013 = vmatprep.subr.bf16.mxu0 %v5324
    %7014 = vmatpush1.bf16.msra.mxu0 %v5323
    %7015 = vmatprep.subr.bf16.mxu0 %v5332
    %7016 = vmatpush1.bf16.msra.mxu0 %v5331
    %7017 = vmatprep.subr.bf16.mxu0 %v5340
    %7018 = vmatpush1.bf16.msra.mxu0 %v5339
    %7019 = vmatprep.subr.bf16.mxu0 %v5348
    %7020 = vmatpush1.bf16.msra.mxu0 %v5347
    %7021 = vmatprep.subr.bf16.mxu0 %v5356
    %7022 = vmatpush1.bf16.msra.mxu0 %v5355
    %7023 = vmatprep.subr.bf16.mxu0 %v5364
    %7024 = vmatpush1.bf16.msra.mxu0 %v5363
    %7025 = vmatprep.subr.bf16.mxu0 %v5372
    %7026 = vmatpush1.bf16.msra.mxu0 %v5371
    %7027 = vmatprep.subr.bf16.mxu0 %v5380
    %7028 = vmatpush1.bf16.msra.mxu0 %v5379
    %7029 = vmatprep.subr.bf16.mxu0 %v5388
    %7030 = vmatpush1.bf16.msra.mxu0 %v5387
    %7031 = vmatprep.mubr.bf16.mxu0 %v1599
    %7032 = vmatmul.mubr.bf16.gmra.mrb[0].mxu0 %v1597
    %v7033 = vpop.f32.mrb[0].mxu0
    %v7034 = vadd.f32 %v6963, %v7033
    %v7035 = vpop.f32.mrb[0].mxu0
    %v7036 = vadd.f32 %v6965, %v7035
    %v7037 = vpop.f32.mrb[0].mxu0
    %v7038 = vadd.f32 %v6967, %v7037
    %v7039 = vpop.f32.mrb[0].mxu0
    %v7040 = vadd.f32 %v6969, %v7039
    %7041 = vmatprep.mubr.bf16.mxu0 %v1603
    %7042 = vmatmul.mubr.bf16.gmra.mrb[0].mxu0 %v1601
    %v7043 = vpop.f32.mrb[0].mxu0
    %v7044 = vadd.f32 %v6973, %v7043
    %v7045 = vpop.f32.mrb[0].mxu0
    %v7046 = vadd.f32 %v6975, %v7045
    %v7047 = vpop.f32.mrb[0].mxu0
    %v7048 = vadd.f32 %v6977, %v7047
    %v7049 = vpop.f32.mrb[0].mxu0
    %v7050 = vadd.f32 %v6979, %v7049
    %7051 = vmatprep.mubr.bf16.mxu0 %v1607
    %7052 = vmatmul.mubr.bf16.gmra.mrb[0].mxu0 %v1605
    %v7053 = vpop.f32.mrb[0].mxu0
    %v7054 = vadd.f32 %v6983, %v7053
    %v7055 = vpop.f32.mrb[0].mxu0
    %v7056 = vadd.f32 %v6985, %v7055
    %v7057 = vpop.f32.mrb[0].mxu0
    %v7058 = vadd.f32 %v6987, %v7057
    %v7059 = vpop.f32.mrb[0].mxu0
    %v7060 = vadd.f32 %v6989, %v7059
    %7061 = vmatprep.mubr.bf16.mxu0 0
    %7062 = vmatmul.mubr.bf16.gmra.mrb[0].mxu0 0
    %v7063 = vpop.f32.mrb[0].mxu0
    %v7064 = vadd.f32 %v6993, %v7063
    %v7065 = vpop.f32.mrb[0].mxu0
    %v7066 = vadd.f32 %v6995, %v7065
    %v7067 = vpop.f32.mrb[0].mxu0
    %v7068 = vpop.f32.mrb[0].mxu0
    %7069 = vdwg.mxu0
    %7070 = vmatprep.subr.bf16.mxu0 %v5396
    %7071 = vmatpush1.bf16.msra.mxu0 %v5395
    %7072 = vmatprep.subr.bf16.mxu0 %v5404
    %7073 = vmatpush1.bf16.msra.mxu0 %v5403
    %7074 = vmatprep.subr.bf16.mxu0 %v5412
    %7075 = vmatpush1.bf16.msra.mxu0 %v5411
    %7076 = vmatprep.subr.bf16.mxu0 %v5420
    %7077 = vmatpush1.bf16.msra.mxu0 %v5419
    %7078 = vmatprep.subr.bf16.mxu0 %v5428
    %7079 = vmatpush1.bf16.msra.mxu0 %v5427
    %7080 = vmatprep.subr.bf16.mxu0 %v5436
    %7081 = vmatpush1.bf16.msra.mxu0 %v5435
    %7082 = vmatprep.subr.bf16.mxu0 %v5444
    %7083 = vmatpush1.bf16.msra.mxu0 %v5443
    %7084 = vmatprep.subr.bf16.mxu0 %v5452
    %7085 = vmatpush1.bf16.msra.mxu0 %v5451
    %7086 = vmatprep.subr.bf16.mxu0 %v5460
    %7087 = vmatpush1.bf16.msra.mxu0 %v5459
    %7088 = vmatprep.subr.bf16.mxu0 %v5468
    %7089 = vmatpush1.bf16.msra.mxu0 %v5467
    %7090 = vmatprep.subr.bf16.mxu0 %v5476
    %7091 = vmatpush1.bf16.msra.mxu0 %v5475
    %7092 = vmatprep.subr.bf16.mxu0 %v5484
    %7093 = vmatpush1.bf16.msra.mxu0 %v5483
    %7094 = vmatprep.subr.bf16.mxu0 %v5492
    %7095 = vmatpush1.bf16.msra.mxu0 %v5491
    %7096 = vmatprep.subr.bf16.mxu0 %v5500
    %7097 = vmatpush1.bf16.msra.mxu0 %v5499
    %7098 = vmatprep.subr.bf16.mxu0 %v5508
    %7099 = vmatpush1.bf16.msra.mxu0 %v5507
    %7100 = vmatprep.subr.bf16.mxu0 %v5516
    %7101 = vmatpush1.bf16.msra.mxu0 %v5515
    %7102 = vmatprep.mubr.bf16.mxu0 %v1581
    %7103 = vmatmul.mubr.bf16.gmra.mrb[0].mxu0 %v1580
    %v7104 = vpop.f32.mrb[0].mxu0
    %v7105 = vadd.f32 %v7034, %v7104
    %v7106 = vpop.f32.mrb[0].mxu0
    %v7107 = vadd.f32 %v7036, %v7106
    %v7108 = vpop.f32.mrb[0].mxu0
    %v7109 = vadd.f32 %v7038, %v7108
    %v7110 = vpop.f32.mrb[0].mxu0
    %v7111 = vadd.f32 %v7040, %v7110
    %7112 = vmatprep.mubr.bf16.mxu0 %v1583
    %7113 = vmatmul.mubr.bf16.gmra.mrb[0].mxu0 %v1582
    %v7114 = vpop.f32.mrb[0].mxu0
    %v7115 = vadd.f32 %v7044, %v7114
    %v7116 = vpop.f32.mrb[0].mxu0
    %v7117 = vadd.f32 %v7046, %v7116
    %v7118 = vpop.f32.mrb[0].mxu0
    %v7119 = vadd.f32 %v7048, %v7118
    %v7120 = vpop.f32.mrb[0].mxu0
    %v7121 = vadd.f32 %v7050, %v7120
    %7122 = vmatprep.mubr.bf16.mxu0 %v1585
    %7123 = vmatmul.mubr.bf16.gmra.mrb[0].mxu0 %v1584
    %v7124 = vpop.f32.mrb[0].mxu0
    %v7125 = vadd.f32 %v7054, %v7124
    %v7126 = vpop.f32.mrb[0].mxu0
    %v7127 = vadd.f32 %v7056, %v7126
    %v7128 = vpop.f32.mrb[0].mxu0
    %v7129 = vadd.f32 %v7058, %v7128
    %v7130 = vpop.f32.mrb[0].mxu0
    %v7131 = vadd.f32 %v7060, %v7130
    %7132 = vmatprep.mubr.bf16.mxu0 0
    %7133 = vmatmul.mubr.bf16.gmra.mrb[0].mxu0 0
    %v7134 = vpop.f32.mrb[0].mxu0
    %v7135 = vadd.f32 %v7064, %v7134
    %v7136 = vpop.f32.mrb[0].mxu0
    %v7137 = vadd.f32 %v7066, %v7136
    %v7138 = vpop.f32.mrb[0].mxu0
    %v7139 = vpop.f32.mrb[0].mxu0
    %7140 = vdwg.mxu0
    %7141 = vmatprep.subr.bf16.mxu0 %v4758
    %7142 = vmatpush1.bf16.msra.mxu0 %v4757
    %7143 = vmatprep.subr.bf16.mxu0 %v4766
    %7144 = vmatpush1.bf16.msra.mxu0 %v4765
    %7145 = vmatprep.subr.bf16.mxu0 %v4774
    %7146 = vmatpush1.bf16.msra.mxu0 %v4773
    %7147 = vmatprep.subr.bf16.mxu0 %v4782
    %7148 = vmatpush1.bf16.msra.mxu0 %v4781
    %7149 = vmatprep.subr.bf16.mxu0 %v4790
    %7150 = vmatpush1.bf16.msra.mxu0 %v4789
    %7151 = vmatprep.subr.bf16.mxu0 %v4798
    %7152 = vmatpush1.bf16.msra.mxu0 %v4797
    %7153 = vmatprep.subr.bf16.mxu0 %v4806
    %7154 = vmatpush1.bf16.msra.mxu0 %v4805
    %7155 = vmatprep.subr.bf16.mxu0 %v4814
    %7156 = vmatpush1.bf16.msra.mxu0 %v4813
    %7157 = vmatprep.subr.bf16.mxu0 %v4822
    %7158 = vmatpush1.bf16.msra.mxu0 %v4821
    %7159 = vmatprep.subr.bf16.mxu0 %v4830
    %7160 = vmatpush1.bf16.msra.mxu0 %v4829
    %7161 = vmatprep.subr.bf16.mxu0 %v4838
    %7162 = vmatpush1.bf16.msra.mxu0 %v4837
    %7163 = vmatprep.subr.bf16.mxu0 %v4846
    %7164 = vmatpush1.bf16.msra.mxu0 %v4845
    %7165 = vmatprep.subr.bf16.mxu0 %v4854
    %7166 = vmatpush1.bf16.msra.mxu0 %v4853
    %7167 = vmatprep.subr.bf16.mxu0 %v4862
    %7168 = vmatpush1.bf16.msra.mxu0 %v4861
    %7169 = vmatprep.subr.bf16.mxu0 %v4870
    %7170 = vmatpush1.bf16.msra.mxu0 %v4869
    %7171 = vmatprep.subr.bf16.mxu0 %v4878
    %7172 = vmatpush1.bf16.msra.mxu0 %v4877
    %7173 = vmatprep.mubr.bf16.mxu0 %v1619
    %7174 = vmatmul.mubr.bf16.gmra.mrb[0].mxu0 %v1616
    %v7175 = vpop.f32.mrb[0].mxu0
    %v7176 = vadd.f32 0.0, %v7175
    %v7177 = vpop.f32.mrb[0].mxu0
    %v7178 = vadd.f32 0.0, %v7177
    %v7179 = vpop.f32.mrb[0].mxu0
    %v7180 = vadd.f32 0.0, %v7179
    %v7181 = vpop.f32.mrb[0].mxu0
    %v7182 = vadd.f32 0.0, %v7181
    %7183 = vmatprep.mubr.bf16.mxu0 %v1599
    %7184 = vmatmul.mubr.bf16.gmra.mrb[0].mxu0 %v1597
    %v7185 = vpop.f32.mrb[0].mxu0
    %v7186 = vadd.f32 0.0, %v7185
    %v7187 = vpop.f32.mrb[0].mxu0
    %v7188 = vadd.f32 0.0, %v7187
    %v7189 = vpop.f32.mrb[0].mxu0
    %v7190 = vadd.f32 0.0, %v7189
    %v7191 = vpop.f32.mrb[0].mxu0
    %v7192 = vadd.f32 0.0, %v7191
    %7193 = vmatprep.mubr.bf16.mxu0 %v1603
    %7194 = vmatmul.mubr.bf16.gmra.mrb[0].mxu0 %v1601
    %v7195 = vpop.f32.mrb[0].mxu0
    %v7196 = vadd.f32 0.0, %v7195
    %v7197 = vpop.f32.mrb[0].mxu0
    %v7198 = vadd.f32 0.0, %v7197
    %v7199 = vpop.f32.mrb[0].mxu0
    %v7200 = vadd.f32 0.0, %v7199
    %v7201 = vpop.f32.mrb[0].mxu0
    %v7202 = vadd.f32 0.0, %v7201
    %7203 = vmatprep.mubr.bf16.mxu0 %v1607
    %7204 = vmatmul.mubr.bf16.gmra.mrb[0].mxu0 %v1605
    %v7205 = vpop.f32.mrb[0].mxu0
    %v7206 = vadd.f32 0.0, %v7205
    %v7207 = vpop.f32.mrb[0].mxu0
    %v7208 = vadd.f32 0.0, %v7207
    %v7209 = vpop.f32.mrb[0].mxu0
    %v7210 = vpop.f32.mrb[0].mxu0
    %7211 = vdwg.mxu0
    %7212 = vmatprep.subr.bf16.mxu0 %v4886
    %7213 = vmatpush1.bf16.msra.mxu0 %v4885
    %7214 = vmatprep.subr.bf16.mxu0 %v4894
    %7215 = vmatpush1.bf16.msra.mxu0 %v4893
    %7216 = vmatprep.subr.bf16.mxu0 %v4902
    %7217 = vmatpush1.bf16.msra.mxu0 %v4901
    %7218 = vmatprep.subr.bf16.mxu0 %v4910
    %7219 = vmatpush1.bf16.msra.mxu0 %v4909
    %7220 = vmatprep.subr.bf16.mxu0 %v4918
    %7221 = vmatpush1.bf16.msra.mxu0 %v4917
    %7222 = vmatprep.subr.bf16.mxu0 %v4926
    %7223 = vmatpush1.bf16.msra.mxu0 %v4925
    %7224 = vmatprep.subr.bf16.mxu0 %v4934
    %7225 = vmatpush1.bf16.msra.mxu0 %v4933
    %7226 = vmatprep.subr.bf16.mxu0 %v4942
    %7227 = vmatpush1.bf16.msra.mxu0 %v4941
    %7228 = vmatprep.subr.bf16.mxu0 %v4950
    %7229 = vmatpush1.bf16.msra.mxu0 %v4949
    %7230 = vmatprep.subr.bf16.mxu0 %v4958
    %7231 = vmatpush1.bf16.msra.mxu0 %v4957
    %7232 = vmatprep.subr.bf16.mxu0 %v4966
    %7233 = vmatpush1.bf16.msra.mxu0 %v4965
    %7234 = vmatprep.subr.bf16.mxu0 %v4974
    %7235 = vmatpush1.bf16.msra.mxu0 %v4973
    %7236 = vmatprep.subr.bf16.mxu0 %v4982
    %7237 = vmatpush1.bf16.msra.mxu0 %v4981
    %7238 = vmatprep.subr.bf16.mxu0 %v4990
    %7239 = vmatpush1.bf16.msra.mxu0 %v4989
    %7240 = vmatprep.subr.bf16.mxu0 %v4998
    %7241 = vmatpush1.bf16.msra.mxu0 %v4997
    %7242 = vmatprep.subr.bf16.mxu0 %v5006
    %7243 = vmatpush1.bf16.msra.mxu0 %v5005
    %7244 = vmatprep.mubr.bf16.mxu0 %v1625
    %7245 = vmatmul.mubr.bf16.gmra.mrb[0].mxu0 %v1622
    %v7246 = vpop.f32.mrb[0].mxu0
    %v7247 = vadd.f32 %v7176, %v7246
    %v7248 = vpop.f32.mrb[0].mxu0
    %v7249 = vadd.f32 %v7178, %v7248
    %v7250 = vpop.f32.mrb[0].mxu0
    %v7251 = vadd.f32 %v7180, %v7250
    %v7252 = vpop.f32.mrb[0].mxu0
    %v7253 = vadd.f32 %v7182, %v7252
    %7254 = vmatprep.mubr.bf16.mxu0 %v1581
    %7255 = vmatmul.mubr.bf16.gmra.mrb[0].mxu0 %v1580
    %v7256 = vpop.f32.mrb[0].mxu0
    %v7257 = vadd.f32 %v7186, %v7256
    %v7258 = vpop.f32.mrb[0].mxu0
    %v7259 = vadd.f32 %v7188, %v7258
    %v7260 = vpop.f32.mrb[0].mxu0
    %v7261 = vadd.f32 %v7190, %v7260
    %v7262 = vpop.f32.mrb[0].mxu0
    %v7263 = vadd.f32 %v7192, %v7262
    %7264 = vmatprep.mubr.bf16.mxu0 %v1583
    %7265 = vmatmul.mubr.bf16.gmra.mrb[0].mxu0 %v1582
    %v7266 = vpop.f32.mrb[0].mxu0
    %v7267 = vadd.f32 %v7196, %v7266
    %v7268 = vpop.f32.mrb[0].mxu0
    %v7269 = vadd.f32 %v7198, %v7268
    %v7270 = vpop.f32.mrb[0].mxu0
    %v7271 = vadd.f32 %v7200, %v7270
    %v7272 = vpop.f32.mrb[0].mxu0
    %v7273 = vadd.f32 %v7202, %v7272
    %7274 = vmatprep.mubr.bf16.mxu0 %v1585
    %7275 = vmatmul.mubr.bf16.gmra.mrb[0].mxu0 %v1584
    %v7276 = vpop.f32.mrb[0].mxu0
    %v7277 = vadd.f32 %v7206, %v7276
    %v7278 = vpop.f32.mrb[0].mxu0
    %v7279 = vadd.f32 %v7208, %v7278
    %v7280 = vpop.f32.mrb[0].mxu0
    %v7281 = vpop.f32.mrb[0].mxu0
    %7282 = vdwg.mxu0
    %7283 = vmatprep.subr.bf16.mxu0 %v5014
    %7284 = vmatpush1.bf16.msra.mxu0 %v5013
    %7285 = vmatprep.subr.bf16.mxu0 %v5022
    %7286 = vmatpush1.bf16.msra.mxu0 %v5021
    %7287 = vmatprep.subr.bf16.mxu0 %v5030
    %7288 = vmatpush1.bf16.msra.mxu0 %v5029
    %7289 = vmatprep.subr.bf16.mxu0 %v5038
    %7290 = vmatpush1.bf16.msra.mxu0 %v5037
    %7291 = vmatprep.subr.bf16.mxu0 %v5046
    %7292 = vmatpush1.bf16.msra.mxu0 %v5045
    %7293 = vmatprep.subr.bf16.mxu0 %v5054
    %7294 = vmatpush1.bf16.msra.mxu0 %v5053
    %7295 = vmatprep.subr.bf16.mxu0 %v5062
    %7296 = vmatpush1.bf16.msra.mxu0 %v5061
    %7297 = vmatprep.subr.bf16.mxu0 %v5070
    %7298 = vmatpush1.bf16.msra.mxu0 %v5069
    %7299 = vmatprep.subr.bf16.mxu0 %v5078
    %7300 = vmatpush1.bf16.msra.mxu0 %v5077
    %7301 = vmatprep.subr.bf16.mxu0 %v5086
    %7302 = vmatpush1.bf16.msra.mxu0 %v5085
    %7303 = vmatprep.subr.bf16.mxu0 %v5094
    %7304 = vmatpush1.bf16.msra.mxu0 %v5093
    %7305 = vmatprep.subr.bf16.mxu0 %v5102
    %7306 = vmatpush1.bf16.msra.mxu0 %v5101
    %7307 = vmatprep.subr.bf16.mxu0 %v5110
    %7308 = vmatpush1.bf16.msra.mxu0 %v5109
    %7309 = vmatprep.subr.bf16.mxu0 %v5118
    %7310 = vmatpush1.bf16.msra.mxu0 %v5117
    %7311 = vmatprep.subr.bf16.mxu0 %v5126
    %7312 = vmatpush1.bf16.msra.mxu0 %v5125
    %7313 = vmatprep.subr.bf16.mxu0 %v5134
    %7314 = vmatpush1.bf16.msra.mxu0 %v5133
    %7315 = vmatprep.mubr.bf16.mxu0 %v1634
    %7316 = vmatmul.mubr.bf16.gmra.mrb[0].mxu0 %v1631
    %v7317 = vpop.f32.mrb[0].mxu0
    %v7318 = vadd.f32 %v7247, %v7317
    %v7319 = vpop.f32.mrb[0].mxu0
    %v7320 = vadd.f32 %v7249, %v7319
    %v7321 = vpop.f32.mrb[0].mxu0
    %v7322 = vadd.f32 %v7251, %v7321
    %v7323 = vpop.f32.mrb[0].mxu0
    %v7324 = vadd.f32 %v7253, %v7323
    %7325 = vmatprep.mubr.bf16.mxu0 %v1638
    %7326 = vmatmul.mubr.bf16.gmra.mrb[0].mxu0 %v1636
    %v7327 = vpop.f32.mrb[0].mxu0
    %v7328 = vadd.f32 %v7257, %v7327
    %v7329 = vpop.f32.mrb[0].mxu0
    %v7330 = vadd.f32 %v7259, %v7329
    %v7331 = vpop.f32.mrb[0].mxu0
    %v7332 = vadd.f32 %v7261, %v7331
    %v7333 = vpop.f32.mrb[0].mxu0
    %v7334 = vadd.f32 %v7263, %v7333
    %7335 = vmatprep.mubr.bf16.mxu0 %v1642
    %7336 = vmatmul.mubr.bf16.gmra.mrb[0].mxu0 %v1640
    %v7337 = vpop.f32.mrb[0].mxu0
    %v7338 = vadd.f32 %v7267, %v7337
    %v7339 = vpop.f32.mrb[0].mxu0
    %v7340 = vadd.f32 %v7269, %v7339
    %v7341 = vpop.f32.mrb[0].mxu0
    %v7342 = vadd.f32 %v7271, %v7341
    %v7343 = vpop.f32.mrb[0].mxu0
    %v7344 = vadd.f32 %v7273, %v7343
    %7345 = vmatprep.mubr.bf16.mxu0 %v1641
    %7346 = vmatmul.mubr.bf16.gmra.mrb[0].mxu0 %v1639
    %v7347 = vpop.f32.mrb[0].mxu0
    %v7348 = vadd.f32 %v7277, %v7347
    %v7349 = vpop.f32.mrb[0].mxu0
    %v7350 = vadd.f32 %v7279, %v7349
    %v7351 = vpop.f32.mrb[0].mxu0
    %v7352 = vpop.f32.mrb[0].mxu0
    %7353 = vdwg.mxu0
    %7354 = vmatprep.subr.bf16.mxu0 %v5142
    %7355 = vmatpush1.bf16.msra.mxu0 %v5141
    %7356 = vmatprep.subr.bf16.mxu0 %v5150
    %7357 = vmatpush1.bf16.msra.mxu0 %v5149
    %7358 = vmatprep.subr.bf16.mxu0 %v5158
    %7359 = vmatpush1.bf16.msra.mxu0 %v5157
    %7360 = vmatprep.subr.bf16.mxu0 %v5166
    %7361 = vmatpush1.bf16.msra.mxu0 %v5165
    %7362 = vmatprep.subr.bf16.mxu0 %v5174
    %7363 = vmatpush1.bf16.msra.mxu0 %v5173
    %7364 = vmatprep.subr.bf16.mxu0 %v5182
    %7365 = vmatpush1.bf16.msra.mxu0 %v5181
    %7366 = vmatprep.subr.bf16.mxu0 %v5190
    %7367 = vmatpush1.bf16.msra.mxu0 %v5189
    %7368 = vmatprep.subr.bf16.mxu0 %v5198
    %7369 = vmatpush1.bf16.msra.mxu0 %v5197
    %7370 = vmatprep.subr.bf16.mxu0 %v5206
    %7371 = vmatpush1.bf16.msra.mxu0 %v5205
    %7372 = vmatprep.subr.bf16.mxu0 %v5214
    %7373 = vmatpush1.bf16.msra.mxu0 %v5213
    %7374 = vmatprep.subr.bf16.mxu0 %v5222
    %7375 = vmatpush1.bf16.msra.mxu0 %v5221
    %7376 = vmatprep.subr.bf16.mxu0 %v5230
    %7377 = vmatpush1.bf16.msra.mxu0 %v5229
    %7378 = vmatprep.subr.bf16.mxu0 %v5238
    %7379 = vmatpush1.bf16.msra.mxu0 %v5237
    %7380 = vmatprep.subr.bf16.mxu0 %v5246
    %7381 = vmatpush1.bf16.msra.mxu0 %v5245
    %7382 = vmatprep.subr.bf16.mxu0 %v5254
    %7383 = vmatpush1.bf16.msra.mxu0 %v5253
    %7384 = vmatprep.subr.bf16.mxu0 %v5262
    %7385 = vmatpush1.bf16.msra.mxu0 %v5261
    %7386 = vmatprep.mubr.bf16.mxu0 %v1664
    %7387 = vmatmul.mubr.bf16.gmra.mrb[0].mxu0 %v1661
    %v7388 = vpop.f32.mrb[0].mxu0
    %v7389 = vadd.f32 %v7318, %v7388
    %v7390 = vpop.f32.mrb[0].mxu0
    %v7391 = vadd.f32 %v7320, %v7390
    %v7392 = vpop.f32.mrb[0].mxu0
    %v7393 = vadd.f32 %v7322, %v7392
    %v7394 = vpop.f32.mrb[0].mxu0
    %v7395 = vadd.f32 %v7324, %v7394
    %7396 = vmatprep.mubr.bf16.mxu0 %v1668
    %7397 = vmatmul.mubr.bf16.gmra.mrb[0].mxu0 %v1666
    %v7398 = vpop.f32.mrb[0].mxu0
    %v7399 = vadd.f32 %v7328, %v7398
    %v7400 = vpop.f32.mrb[0].mxu0
    %v7401 = vadd.f32 %v7330, %v7400
    %v7402 = vpop.f32.mrb[0].mxu0
    %v7403 = vadd.f32 %v7332, %v7402
    %v7404 = vpop.f32.mrb[0].mxu0
    %v7405 = vadd.f32 %v7334, %v7404
    %7406 = vmatprep.mubr.bf16.mxu0 %v1672
    %7407 = vmatmul.mubr.bf16.gmra.mrb[0].mxu0 %v1670
    %v7408 = vpop.f32.mrb[0].mxu0
    %v7409 = vadd.f32 %v7338, %v7408
    %v7410 = vpop.f32.mrb[0].mxu0
    %v7411 = vadd.f32 %v7340, %v7410
    %v7412 = vpop.f32.mrb[0].mxu0
    %v7413 = vadd.f32 %v7342, %v7412
    %v7414 = vpop.f32.mrb[0].mxu0
    %v7415 = vadd.f32 %v7344, %v7414
    %7416 = vmatprep.mubr.bf16.mxu0 %v1671
    %7417 = vmatmul.mubr.bf16.gmra.mrb[0].mxu0 %v1669
    %v7418 = vpop.f32.mrb[0].mxu0
    %v7419 = vadd.f32 %v7348, %v7418
    %v7420 = vpop.f32.mrb[0].mxu0
    %v7421 = vadd.f32 %v7350, %v7420
    %v7422 = vpop.f32.mrb[0].mxu0
    %v7423 = vpop.f32.mrb[0].mxu0
    %7424 = vdwg.mxu0
    %7425 = vmatprep.subr.bf16.mxu0 %v5270
    %7426 = vmatpush1.bf16.msra.mxu0 %v5269
    %7427 = vmatprep.subr.bf16.mxu0 %v5278
    %7428 = vmatpush1.bf16.msra.mxu0 %v5277
    %7429 = vmatprep.subr.bf16.mxu0 %v5286
    %7430 = vmatpush1.bf16.msra.mxu0 %v5285
    %7431 = vmatprep.subr.bf16.mxu0 %v5294
    %7432 = vmatpush1.bf16.msra.mxu0 %v5293
    %7433 = vmatprep.subr.bf16.mxu0 %v5302
    %7434 = vmatpush1.bf16.msra.mxu0 %v5301
    %7435 = vmatprep.subr.bf16.mxu0 %v5310
    %7436 = vmatpush1.bf16.msra.mxu0 %v5309
    %7437 = vmatprep.subr.bf16.mxu0 %v5318
    %7438 = vmatpush1.bf16.msra.mxu0 %v5317
    %7439 = vmatprep.subr.bf16.mxu0 %v5326
    %7440 = vmatpush1.bf16.msra.mxu0 %v5325
    %7441 = vmatprep.subr.bf16.mxu0 %v5334
    %7442 = vmatpush1.bf16.msra.mxu0 %v5333
    %7443 = vmatprep.subr.bf16.mxu0 %v5342
    %7444 = vmatpush1.bf16.msra.mxu0 %v5341
    %7445 = vmatprep.subr.bf16.mxu0 %v5350
    %7446 = vmatpush1.bf16.msra.mxu0 %v5349
    %7447 = vmatprep.subr.bf16.mxu0 %v5358
    %7448 = vmatpush1.bf16.msra.mxu0 %v5357
    %7449 = vmatprep.subr.bf16.mxu0 %v5366
    %7450 = vmatpush1.bf16.msra.mxu0 %v5365
    %7451 = vmatprep.subr.bf16.mxu0 %v5374
    %7452 = vmatpush1.bf16.msra.mxu0 %v5373
    %7453 = vmatprep.subr.bf16.mxu0 %v5382
    %7454 = vmatpush1.bf16.msra.mxu0 %v5381
    %7455 = vmatprep.subr.bf16.mxu0 %v5390
    %7456 = vmatpush1.bf16.msra.mxu0 %v5389
    %7457 = vmatprep.mubr.bf16.mxu0 %v1599
    %7458 = vmatmul.mubr.bf16.gmra.mrb[0].mxu0 %v1597
    %v7459 = vpop.f32.mrb[0].mxu0
    %v7460 = vadd.f32 %v7389, %v7459
    %v7461 = vpop.f32.mrb[0].mxu0
    %v7462 = vadd.f32 %v7391, %v7461
    %v7463 = vpop.f32.mrb[0].mxu0
    %v7464 = vadd.f32 %v7393, %v7463
    %v7465 = vpop.f32.mrb[0].mxu0
    %v7466 = vadd.f32 %v7395, %v7465
    %7467 = vmatprep.mubr.bf16.mxu0 %v1603
    %7468 = vmatmul.mubr.bf16.gmra.mrb[0].mxu0 %v1601
    %v7469 = vpop.f32.mrb[0].mxu0
    %v7470 = vadd.f32 %v7399, %v7469
    %v7471 = vpop.f32.mrb[0].mxu0
    %v7472 = vadd.f32 %v7401, %v7471
    %v7473 = vpop.f32.mrb[0].mxu0
    %v7474 = vadd.f32 %v7403, %v7473
    %v7475 = vpop.f32.mrb[0].mxu0
    %v7476 = vadd.f32 %v7405, %v7475
    %7477 = vmatprep.mubr.bf16.mxu0 %v1607
    %7478 = vmatmul.mubr.bf16.gmra.mrb[0].mxu0 %v1605
    %v7479 = vpop.f32.mrb[0].mxu0
    %v7480 = vadd.f32 %v7409, %v7479
    %v7481 = vpop.f32.mrb[0].mxu0
    %v7482 = vadd.f32 %v7411, %v7481
    %v7483 = vpop.f32.mrb[0].mxu0
    %v7484 = vadd.f32 %v7413, %v7483
    %v7485 = vpop.f32.mrb[0].mxu0
    %v7486 = vadd.f32 %v7415, %v7485
    %7487 = vmatprep.mubr.bf16.mxu0 0
    %7488 = vmatmul.mubr.bf16.gmra.mrb[0].mxu0 0
    %v7489 = vpop.f32.mrb[0].mxu0
    %v7490 = vadd.f32 %v7419, %v7489
    %v7491 = vpop.f32.mrb[0].mxu0
    %v7492 = vadd.f32 %v7421, %v7491
    %v7493 = vpop.f32.mrb[0].mxu0
    %v7494 = vpop.f32.mrb[0].mxu0
    %7495 = vdwg.mxu0
    %7496 = vmatprep.subr.bf16.mxu0 %v5398
    %7497 = vmatpush1.bf16.msra.mxu0 %v5397
    %7498 = vmatprep.subr.bf16.mxu0 %v5406
    %7499 = vmatpush1.bf16.msra.mxu0 %v5405
    %7500 = vmatprep.subr.bf16.mxu0 %v5414
    %7501 = vmatpush1.bf16.msra.mxu0 %v5413
    %7502 = vmatprep.subr.bf16.mxu0 %v5422
    %7503 = vmatpush1.bf16.msra.mxu0 %v5421
    %7504 = vmatprep.subr.bf16.mxu0 %v5430
    %7505 = vmatpush1.bf16.msra.mxu0 %v5429
    %7506 = vmatprep.subr.bf16.mxu0 %v5438
    %7507 = vmatpush1.bf16.msra.mxu0 %v5437
    %7508 = vmatprep.subr.bf16.mxu0 %v5446
    %7509 = vmatpush1.bf16.msra.mxu0 %v5445
    %7510 = vmatprep.subr.bf16.mxu0 %v5454
    %7511 = vmatpush1.bf16.msra.mxu0 %v5453
    %7512 = vmatprep.subr.bf16.mxu0 %v5462
    %7513 = vmatpush1.bf16.msra.mxu0 %v5461
    %7514 = vmatprep.subr.bf16.mxu0 %v5470
    %7515 = vmatpush1.bf16.msra.mxu0 %v5469
    %7516 = vmatprep.subr.bf16.mxu0 %v5478
    %7517 = vmatpush1.bf16.msra.mxu0 %v5477
    %7518 = vmatprep.subr.bf16.mxu0 %v5486
    %7519 = vmatpush1.bf16.msra.mxu0 %v5485
    %7520 = vmatprep.subr.bf16.mxu0 %v5494
    %7521 = vmatpush1.bf16.msra.mxu0 %v5493
    %7522 = vmatprep.subr.bf16.mxu0 %v5502
    %7523 = vmatpush1.bf16.msra.mxu0 %v5501
    %7524 = vmatprep.subr.bf16.mxu0 %v5510
    %7525 = vmatpush1.bf16.msra.mxu0 %v5509
    %7526 = vmatprep.subr.bf16.mxu0 %v5518
    %7527 = vmatpush1.bf16.msra.mxu0 %v5517
    %7528 = vmatprep.mubr.bf16.mxu0 %v1581
    %7529 = vmatmul.mubr.bf16.gmra.mrb[0].mxu0 %v1580
    %v7530 = vpop.f32.mrb[0].mxu0
    %v7531 = vadd.f32 %v7460, %v7530
    %v7532 = vpop.f32.mrb[0].mxu0
    %v7533 = vadd.f32 %v7462, %v7532
    %v7534 = vpop.f32.mrb[0].mxu0
    %v7535 = vadd.f32 %v7464, %v7534
    %v7536 = vpop.f32.mrb[0].mxu0
    %v7537 = vadd.f32 %v7466, %v7536
    %7538 = vmatprep.mubr.bf16.mxu0 %v1583
    %7539 = vmatmul.mubr.bf16.gmra.mrb[0].mxu0 %v1582
    %v7540 = vpop.f32.mrb[0].mxu0
    %v7541 = vadd.f32 %v7470, %v7540
    %v7542 = vpop.f32.mrb[0].mxu0
    %v7543 = vadd.f32 %v7472, %v7542
    %v7544 = vpop.f32.mrb[0].mxu0
    %v7545 = vadd.f32 %v7474, %v7544
    %v7546 = vpop.f32.mrb[0].mxu0
    %v7547 = vadd.f32 %v7476, %v7546
    %7548 = vmatprep.mubr.bf16.mxu0 %v1585
    %7549 = vmatmul.mubr.bf16.gmra.mrb[0].mxu0 %v1584
    %v7550 = vpop.f32.mrb[0].mxu0
    %v7551 = vadd.f32 %v7480, %v7550
    %v7552 = vpop.f32.mrb[0].mxu0
    %v7553 = vadd.f32 %v7482, %v7552
    %v7554 = vpop.f32.mrb[0].mxu0
    %v7555 = vadd.f32 %v7484, %v7554
    %v7556 = vpop.f32.mrb[0].mxu0
    %v7557 = vadd.f32 %v7486, %v7556
    %7558 = vmatprep.mubr.bf16.mxu0 0
    %7559 = vmatmul.mubr.bf16.gmra.mrb[0].mxu0 0
    %v7560 = vpop.f32.mrb[0].mxu0
    %v7561 = vadd.f32 %v7490, %v7560
    %v7562 = vpop.f32.mrb[0].mxu0
    %v7563 = vadd.f32 %v7492, %v7562
    %v7564 = vpop.f32.mrb[0].mxu0
    %v7565 = vpop.f32.mrb[0].mxu0
    %7566 = vdwg.mxu0
    %7567 = vmatprep.subr.bf16.mxu0 %v4760
    %7568 = vmatpush1.bf16.msra.mxu0 %v4759
    %7569 = vmatprep.subr.bf16.mxu0 %v4768
    %7570 = vmatpush1.bf16.msra.mxu0 %v4767
    %7571 = vmatprep.subr.bf16.mxu0 %v4776
    %7572 = vmatpush1.bf16.msra.mxu0 %v4775
    %7573 = vmatprep.subr.bf16.mxu0 %v4784
    %7574 = vmatpush1.bf16.msra.mxu0 %v4783
    %7575 = vmatprep.subr.bf16.mxu0 %v4792
    %7576 = vmatpush1.bf16.msra.mxu0 %v4791
    %7577 = vmatprep.subr.bf16.mxu0 %v4800
    %7578 = vmatpush1.bf16.msra.mxu0 %v4799
    %7579 = vmatprep.subr.bf16.mxu0 %v4808
    %7580 = vmatpush1.bf16.msra.mxu0 %v4807
    %7581 = vmatprep.subr.bf16.mxu0 %v4816
    %7582 = vmatpush1.bf16.msra.mxu0 %v4815
    %7583 = vmatprep.subr.bf16.mxu0 %v4824
    %7584 = vmatpush1.bf16.msra.mxu0 %v4823
    %7585 = vmatprep.subr.bf16.mxu0 %v4832
    %7586 = vmatpush1.bf16.msra.mxu0 %v4831
    %7587 = vmatprep.subr.bf16.mxu0 %v4840
    %7588 = vmatpush1.bf16.msra.mxu0 %v4839
    %7589 = vmatprep.subr.bf16.mxu0 %v4848
    %7590 = vmatpush1.bf16.msra.mxu0 %v4847
    %7591 = vmatprep.subr.bf16.mxu0 %v4856
    %7592 = vmatpush1.bf16.msra.mxu0 %v4855
    %7593 = vmatprep.subr.bf16.mxu0 %v4864
    %7594 = vmatpush1.bf16.msra.mxu0 %v4863
    %7595 = vmatprep.subr.bf16.mxu0 %v4872
    %7596 = vmatpush1.bf16.msra.mxu0 %v4871
    %7597 = vmatprep.subr.bf16.mxu0 %v4880
    %7598 = vmatpush1.bf16.msra.mxu0 %v4879
    %7599 = vmatprep.mubr.bf16.mxu0 %v1619
    %7600 = vmatmul.mubr.bf16.gmra.mrb[0].mxu0 %v1616
    %v7601 = vpop.f32.mrb[0].mxu0
    %v7602 = vadd.f32 0.0, %v7601
    %v7603 = vpop.f32.mrb[0].mxu0
    %v7604 = vadd.f32 0.0, %v7603
    %v7605 = vpop.f32.mrb[0].mxu0
    %v7606 = vadd.f32 0.0, %v7605
    %v7607 = vpop.f32.mrb[0].mxu0
    %v7608 = vadd.f32 0.0, %v7607
    %7609 = vmatprep.mubr.bf16.mxu0 %v1599
    %7610 = vmatmul.mubr.bf16.gmra.mrb[0].mxu0 %v1597
    %v7611 = vpop.f32.mrb[0].mxu0
    %v7612 = vadd.f32 0.0, %v7611
    %v7613 = vpop.f32.mrb[0].mxu0
    %v7614 = vadd.f32 0.0, %v7613
    %v7615 = vpop.f32.mrb[0].mxu0
    %v7616 = vadd.f32 0.0, %v7615
    %v7617 = vpop.f32.mrb[0].mxu0
    %v7618 = vadd.f32 0.0, %v7617
    %7619 = vmatprep.mubr.bf16.mxu0 %v1603
    %7620 = vmatmul.mubr.bf16.gmra.mrb[0].mxu0 %v1601
    %v7621 = vpop.f32.mrb[0].mxu0
    %v7622 = vadd.f32 0.0, %v7621
    %v7623 = vpop.f32.mrb[0].mxu0
    %v7624 = vadd.f32 0.0, %v7623
    %v7625 = vpop.f32.mrb[0].mxu0
    %v7626 = vadd.f32 0.0, %v7625
    %v7627 = vpop.f32.mrb[0].mxu0
    %v7628 = vadd.f32 0.0, %v7627
    %7629 = vmatprep.mubr.bf16.mxu0 %v1607
    %7630 = vmatmul.mubr.bf16.gmra.mrb[0].mxu0 %v1605
    %v7631 = vpop.f32.mrb[0].mxu0
    %v7632 = vadd.f32 0.0, %v7631
    %v7633 = vpop.f32.mrb[0].mxu0
    %v7634 = vadd.f32 0.0, %v7633
    %v7635 = vpop.f32.mrb[0].mxu0
    %v7636 = vpop.f32.mrb[0].mxu0
    %7637 = vdwg.mxu0
    %7638 = vmatprep.subr.bf16.mxu0 %v4888
    %7639 = vmatpush1.bf16.msra.mxu0 %v4887
    %7640 = vmatprep.subr.bf16.mxu0 %v4896
    %7641 = vmatpush1.bf16.msra.mxu0 %v4895
    %7642 = vmatprep.subr.bf16.mxu0 %v4904
    %7643 = vmatpush1.bf16.msra.mxu0 %v4903
    %7644 = vmatprep.subr.bf16.mxu0 %v4912
    %7645 = vmatpush1.bf16.msra.mxu0 %v4911
    %7646 = vmatprep.subr.bf16.mxu0 %v4920
    %7647 = vmatpush1.bf16.msra.mxu0 %v4919
    %7648 = vmatprep.subr.bf16.mxu0 %v4928
    %7649 = vmatpush1.bf16.msra.mxu0 %v4927
    %7650 = vmatprep.subr.bf16.mxu0 %v4936
    %7651 = vmatpush1.bf16.msra.mxu0 %v4935
    %7652 = vmatprep.subr.bf16.mxu0 %v4944
    %7653 = vmatpush1.bf16.msra.mxu0 %v4943
    %7654 = vmatprep.subr.bf16.mxu0 %v4952
    %7655 = vmatpush1.bf16.msra.mxu0 %v4951
    %7656 = vmatprep.subr.bf16.mxu0 %v4960
    %7657 = vmatpush1.bf16.msra.mxu0 %v4959
    %7658 = vmatprep.subr.bf16.mxu0 %v4968
    %7659 = vmatpush1.bf16.msra.mxu0 %v4967
    %7660 = vmatprep.subr.bf16.mxu0 %v4976
    %7661 = vmatpush1.bf16.msra.mxu0 %v4975
    %7662 = vmatprep.subr.bf16.mxu0 %v4984
    %7663 = vmatpush1.bf16.msra.mxu0 %v4983
    %7664 = vmatprep.subr.bf16.mxu0 %v4992
    %7665 = vmatpush1.bf16.msra.mxu0 %v4991
    %7666 = vmatprep.subr.bf16.mxu0 %v5000
    %7667 = vmatpush1.bf16.msra.mxu0 %v4999
    %7668 = vmatprep.subr.bf16.mxu0 %v5008
    %7669 = vmatpush1.bf16.msra.mxu0 %v5007
    %7670 = vmatprep.mubr.bf16.mxu0 %v1625
    %7671 = vmatmul.mubr.bf16.gmra.mrb[0].mxu0 %v1622
    %v7672 = vpop.f32.mrb[0].mxu0
    %v7673 = vadd.f32 %v7602, %v7672
    %v7674 = vpop.f32.mrb[0].mxu0
    %v7675 = vadd.f32 %v7604, %v7674
    %v7676 = vpop.f32.mrb[0].mxu0
    %v7677 = vadd.f32 %v7606, %v7676
    %v7678 = vpop.f32.mrb[0].mxu0
    %v7679 = vadd.f32 %v7608, %v7678
    %7680 = vmatprep.mubr.bf16.mxu0 %v1581
    %7681 = vmatmul.mubr.bf16.gmra.mrb[0].mxu0 %v1580
    %v7682 = vpop.f32.mrb[0].mxu0
    %v7683 = vadd.f32 %v7612, %v7682
    %v7684 = vpop.f32.mrb[0].mxu0
    %v7685 = vadd.f32 %v7614, %v7684
    %v7686 = vpop.f32.mrb[0].mxu0
    %v7687 = vadd.f32 %v7616, %v7686
    %v7688 = vpop.f32.mrb[0].mxu0
    %v7689 = vadd.f32 %v7618, %v7688
    %7690 = vmatprep.mubr.bf16.mxu0 %v1583
    %7691 = vmatmul.mubr.bf16.gmra.mrb[0].mxu0 %v1582
    %v7692 = vpop.f32.mrb[0].mxu0
    %v7693 = vadd.f32 %v7622, %v7692
    %v7694 = vpop.f32.mrb[0].mxu0
    %v7695 = vadd.f32 %v7624, %v7694
    %v7696 = vpop.f32.mrb[0].mxu0
    %v7697 = vadd.f32 %v7626, %v7696
    %v7698 = vpop.f32.mrb[0].mxu0
    %v7699 = vadd.f32 %v7628, %v7698
    %7700 = vmatprep.mubr.bf16.mxu0 %v1585
    %7701 = vmatmul.mubr.bf16.gmra.mrb[0].mxu0 %v1584
    %v7702 = vpop.f32.mrb[0].mxu0
    %v7703 = vadd.f32 %v7632, %v7702
    %v7704 = vpop.f32.mrb[0].mxu0
    %v7705 = vadd.f32 %v7634, %v7704
    %v7706 = vpop.f32.mrb[0].mxu0
    %v7707 = vpop.f32.mrb[0].mxu0
    %7708 = vdwg.mxu0
    %7709 = vmatprep.subr.bf16.mxu0 %v5016
    %7710 = vmatpush1.bf16.msra.mxu0 %v5015
    %7711 = vmatprep.subr.bf16.mxu0 %v5024
    %7712 = vmatpush1.bf16.msra.mxu0 %v5023
    %7713 = vmatprep.subr.bf16.mxu0 %v5032
    %7714 = vmatpush1.bf16.msra.mxu0 %v5031
    %7715 = vmatprep.subr.bf16.mxu0 %v5040
    %7716 = vmatpush1.bf16.msra.mxu0 %v5039
    %7717 = vmatprep.subr.bf16.mxu0 %v5048
    %7718 = vmatpush1.bf16.msra.mxu0 %v5047
    %7719 = vmatprep.subr.bf16.mxu0 %v5056
    %7720 = vmatpush1.bf16.msra.mxu0 %v5055
    %7721 = vmatprep.subr.bf16.mxu0 %v5064
    %7722 = vmatpush1.bf16.msra.mxu0 %v5063
    %7723 = vmatprep.subr.bf16.mxu0 %v5072
    %7724 = vmatpush1.bf16.msra.mxu0 %v5071
    %7725 = vmatprep.subr.bf16.mxu0 %v5080
    %7726 = vmatpush1.bf16.msra.mxu0 %v5079
    %7727 = vmatprep.subr.bf16.mxu0 %v5088
    %7728 = vmatpush1.bf16.msra.mxu0 %v5087
    %7729 = vmatprep.subr.bf16.mxu0 %v5096
    %7730 = vmatpush1.bf16.msra.mxu0 %v5095
    %7731 = vmatprep.subr.bf16.mxu0 %v5104
    %7732 = vmatpush1.bf16.msra.mxu0 %v5103
    %7733 = vmatprep.subr.bf16.mxu0 %v5112
    %7734 = vmatpush1.bf16.msra.mxu0 %v5111
    %7735 = vmatprep.subr.bf16.mxu0 %v5120
    %7736 = vmatpush1.bf16.msra.mxu0 %v5119
    %7737 = vmatprep.subr.bf16.mxu0 %v5128
    %7738 = vmatpush1.bf16.msra.mxu0 %v5127
    %7739 = vmatprep.subr.bf16.mxu0 %v5136
    %7740 = vmatpush1.bf16.msra.mxu0 %v5135
    %7741 = vmatprep.mubr.bf16.mxu0 %v1634
    %7742 = vmatmul.mubr.bf16.gmra.mrb[0].mxu0 %v1631
    %v7743 = vpop.f32.mrb[0].mxu0
    %v7744 = vadd.f32 %v7673, %v7743
    %v7745 = vpop.f32.mrb[0].mxu0
    %v7746 = vadd.f32 %v7675, %v7745
    %v7747 = vpop.f32.mrb[0].mxu0
    %v7748 = vadd.f32 %v7677, %v7747
    %v7749 = vpop.f32.mrb[0].mxu0
    %v7750 = vadd.f32 %v7679, %v7749
    %7751 = vmatprep.mubr.bf16.mxu0 %v1638
    %7752 = vmatmul.mubr.bf16.gmra.mrb[0].mxu0 %v1636
    %v7753 = vpop.f32.mrb[0].mxu0
    %v7754 = vadd.f32 %v7683, %v7753
    %v7755 = vpop.f32.mrb[0].mxu0
    %v7756 = vadd.f32 %v7685, %v7755
    %v7757 = vpop.f32.mrb[0].mxu0
    %v7758 = vadd.f32 %v7687, %v7757
    %v7759 = vpop.f32.mrb[0].mxu0
    %v7760 = vadd.f32 %v7689, %v7759
    %7761 = vmatprep.mubr.bf16.mxu0 %v1642
    %7762 = vmatmul.mubr.bf16.gmra.mrb[0].mxu0 %v1640
    %v7763 = vpop.f32.mrb[0].mxu0
    %v7764 = vadd.f32 %v7693, %v7763
    %v7765 = vpop.f32.mrb[0].mxu0
    %v7766 = vadd.f32 %v7695, %v7765
    %v7767 = vpop.f32.mrb[0].mxu0
    %v7768 = vadd.f32 %v7697, %v7767
    %v7769 = vpop.f32.mrb[0].mxu0
    %v7770 = vadd.f32 %v7699, %v7769
    %7771 = vmatprep.mubr.bf16.mxu0 %v1641
    %7772 = vmatmul.mubr.bf16.gmra.mrb[0].mxu0 %v1639
    %v7773 = vpop.f32.mrb[0].mxu0
    %v7774 = vadd.f32 %v7703, %v7773
    %v7775 = vpop.f32.mrb[0].mxu0
    %v7776 = vadd.f32 %v7705, %v7775
    %v7777 = vpop.f32.mrb[0].mxu0
    %v7778 = vpop.f32.mrb[0].mxu0
    %7779 = vdwg.mxu0
    %7780 = vmatprep.subr.bf16.mxu0 %v5144
    %7781 = vmatpush1.bf16.msra.mxu0 %v5143
    %7782 = vmatprep.subr.bf16.mxu0 %v5152
    %7783 = vmatpush1.bf16.msra.mxu0 %v5151
    %7784 = vmatprep.subr.bf16.mxu0 %v5160
    %7785 = vmatpush1.bf16.msra.mxu0 %v5159
    %7786 = vmatprep.subr.bf16.mxu0 %v5168
    %7787 = vmatpush1.bf16.msra.mxu0 %v5167
    %7788 = vmatprep.subr.bf16.mxu0 %v5176
    %7789 = vmatpush1.bf16.msra.mxu0 %v5175
    %7790 = vmatprep.subr.bf16.mxu0 %v5184
    %7791 = vmatpush1.bf16.msra.mxu0 %v5183
    %7792 = vmatprep.subr.bf16.mxu0 %v5192
    %7793 = vmatpush1.bf16.msra.mxu0 %v5191
    %7794 = vmatprep.subr.bf16.mxu0 %v5200
    %7795 = vmatpush1.bf16.msra.mxu0 %v5199
    %7796 = vmatprep.subr.bf16.mxu0 %v5208
    %7797 = vmatpush1.bf16.msra.mxu0 %v5207
    %7798 = vmatprep.subr.bf16.mxu0 %v5216
    %7799 = vmatpush1.bf16.msra.mxu0 %v5215
    %7800 = vmatprep.subr.bf16.mxu0 %v5224
    %7801 = vmatpush1.bf16.msra.mxu0 %v5223
    %7802 = vmatprep.subr.bf16.mxu0 %v5232
    %7803 = vmatpush1.bf16.msra.mxu0 %v5231
    %7804 = vmatprep.subr.bf16.mxu0 %v5240
    %7805 = vmatpush1.bf16.msra.mxu0 %v5239
    %7806 = vmatprep.subr.bf16.mxu0 %v5248
    %7807 = vmatpush1.bf16.msra.mxu0 %v5247
    %7808 = vmatprep.subr.bf16.mxu0 %v5256
    %7809 = vmatpush1.bf16.msra.mxu0 %v5255
    %7810 = vmatprep.subr.bf16.mxu0 %v5264
    %7811 = vmatpush1.bf16.msra.mxu0 %v5263
    %7812 = vmatprep.mubr.bf16.mxu0 %v1664
    %7813 = vmatmul.mubr.bf16.gmra.mrb[0].mxu0 %v1661
    %v7814 = vpop.f32.mrb[0].mxu0
    %v7815 = vadd.f32 %v7744, %v7814
    %v7816 = vpop.f32.mrb[0].mxu0
    %v7817 = vadd.f32 %v7746, %v7816
    %v7818 = vpop.f32.mrb[0].mxu0
    %v7819 = vadd.f32 %v7748, %v7818
    %v7820 = vpop.f32.mrb[0].mxu0
    %v7821 = vadd.f32 %v7750, %v7820
    %7822 = vmatprep.mubr.bf16.mxu0 %v1668
    %7823 = vmatmul.mubr.bf16.gmra.mrb[0].mxu0 %v1666
    %v7824 = vpop.f32.mrb[0].mxu0
    %v7825 = vadd.f32 %v7754, %v7824
    %v7826 = vpop.f32.mrb[0].mxu0
    %v7827 = vadd.f32 %v7756, %v7826
    %v7828 = vpop.f32.mrb[0].mxu0
    %v7829 = vadd.f32 %v7758, %v7828
    %v7830 = vpop.f32.mrb[0].mxu0
    %v7831 = vadd.f32 %v7760, %v7830
    %7832 = vmatprep.mubr.bf16.mxu0 %v1672
    %7833 = vmatmul.mubr.bf16.gmra.mrb[0].mxu0 %v1670
    %v7834 = vpop.f32.mrb[0].mxu0
    %v7835 = vadd.f32 %v7764, %v7834
    %v7836 = vpop.f32.mrb[0].mxu0
    %v7837 = vadd.f32 %v7766, %v7836
    %v7838 = vpop.f32.mrb[0].mxu0
    %v7839 = vadd.f32 %v7768, %v7838
    %v7840 = vpop.f32.mrb[0].mxu0
    %v7841 = vadd.f32 %v7770, %v7840
    %7842 = vmatprep.mubr.bf16.mxu0 %v1671
    %7843 = vmatmul.mubr.bf16.gmra.mrb[0].mxu0 %v1669
    %v7844 = vpop.f32.mrb[0].mxu0
    %v7845 = vadd.f32 %v7774, %v7844
    %v7846 = vpop.f32.mrb[0].mxu0
    %v7847 = vadd.f32 %v7776, %v7846
    %v7848 = vpop.f32.mrb[0].mxu0
    %v7849 = vpop.f32.mrb[0].mxu0
    %7850 = vdwg.mxu0
    %7851 = vmatprep.subr.bf16.mxu0 %v5272
    %7852 = vmatpush1.bf16.msra.mxu0 %v5271
    %7853 = vmatprep.subr.bf16.mxu0 %v5280
    %7854 = vmatpush1.bf16.msra.mxu0 %v5279
    %7855 = vmatprep.subr.bf16.mxu0 %v5288
    %7856 = vmatpush1.bf16.msra.mxu0 %v5287
    %7857 = vmatprep.subr.bf16.mxu0 %v5296
    %7858 = vmatpush1.bf16.msra.mxu0 %v5295
    %7859 = vmatprep.subr.bf16.mxu0 %v5304
    %7860 = vmatpush1.bf16.msra.mxu0 %v5303
    %7861 = vmatprep.subr.bf16.mxu0 %v5312
    %7862 = vmatpush1.bf16.msra.mxu0 %v5311
    %7863 = vmatprep.subr.bf16.mxu0 %v5320
    %7864 = vmatpush1.bf16.msra.mxu0 %v5319
    %7865 = vmatprep.subr.bf16.mxu0 %v5328
    %7866 = vmatpush1.bf16.msra.mxu0 %v5327
    %7867 = vmatprep.subr.bf16.mxu0 %v5336
    %7868 = vmatpush1.bf16.msra.mxu0 %v5335
    %7869 = vmatprep.subr.bf16.mxu0 %v5344
    %7870 = vmatpush1.bf16.msra.mxu0 %v5343
    %7871 = vmatprep.subr.bf16.mxu0 %v5352
    %7872 = vmatpush1.bf16.msra.mxu0 %v5351
    %7873 = vmatprep.subr.bf16.mxu0 %v5360
    %7874 = vmatpush1.bf16.msra.mxu0 %v5359
    %7875 = vmatprep.subr.bf16.mxu0 %v5368
    %7876 = vmatpush1.bf16.msra.mxu0 %v5367
    %7877 = vmatprep.subr.bf16.mxu0 %v5376
    %7878 = vmatpush1.bf16.msra.mxu0 %v5375
    %7879 = vmatprep.subr.bf16.mxu0 %v5384
    %7880 = vmatpush1.bf16.msra.mxu0 %v5383
    %7881 = vmatprep.subr.bf16.mxu0 %v5392
    %7882 = vmatpush1.bf16.msra.mxu0 %v5391
    %7883 = vmatprep.mubr.bf16.mxu0 %v1599
    %7884 = vmatmul.mubr.bf16.gmra.mrb[0].mxu0 %v1597
    %v7885 = vpop.f32.mrb[0].mxu0
    %v7886 = vadd.f32 %v7815, %v7885
    %v7887 = vpop.f32.mrb[0].mxu0
    %v7888 = vadd.f32 %v7817, %v7887
    %v7889 = vpop.f32.mrb[0].mxu0
    %v7890 = vadd.f32 %v7819, %v7889
    %v7891 = vpop.f32.mrb[0].mxu0
    %v7892 = vadd.f32 %v7821, %v7891
    %7893 = vmatprep.mubr.bf16.mxu0 %v1603
    %7894 = vmatmul.mubr.bf16.gmra.mrb[0].mxu0 %v1601
    %v7895 = vpop.f32.mrb[0].mxu0
    %v7896 = vadd.f32 %v7825, %v7895
    %v7897 = vpop.f32.mrb[0].mxu0
    %v7898 = vadd.f32 %v7827, %v7897
    %v7899 = vpop.f32.mrb[0].mxu0
    %v7900 = vadd.f32 %v7829, %v7899
    %v7901 = vpop.f32.mrb[0].mxu0
    %v7902 = vadd.f32 %v7831, %v7901
    %7903 = vmatprep.mubr.bf16.mxu0 %v1607
    %7904 = vmatmul.mubr.bf16.gmra.mrb[0].mxu0 %v1605
    %v7905 = vpop.f32.mrb[0].mxu0
    %v7906 = vadd.f32 %v7835, %v7905
    %v7907 = vpop.f32.mrb[0].mxu0
    %v7908 = vadd.f32 %v7837, %v7907
    %v7909 = vpop.f32.mrb[0].mxu0
    %v7910 = vadd.f32 %v7839, %v7909
    %v7911 = vpop.f32.mrb[0].mxu0
    %v7912 = vadd.f32 %v7841, %v7911
    %7913 = vmatprep.mubr.bf16.mxu0 0
    %7914 = vmatmul.mubr.bf16.gmra.mrb[0].mxu0 0
    %v7915 = vpop.f32.mrb[0].mxu0
    %v7916 = vadd.f32 %v7845, %v7915
    %v7917 = vpop.f32.mrb[0].mxu0
    %v7918 = vadd.f32 %v7847, %v7917
    %v7919 = vpop.f32.mrb[0].mxu0
    %v7920 = vpop.f32.mrb[0].mxu0
    %7921 = vdwg.mxu0
    %7922 = vmatprep.subr.bf16.mxu0 %v5400
    %7923 = vmatpush1.bf16.msra.mxu0 %v5399
    %7924 = vmatprep.subr.bf16.mxu0 %v5408
    %7925 = vmatpush1.bf16.msra.mxu0 %v5407
    %7926 = vmatprep.subr.bf16.mxu0 %v5416
    %7927 = vmatpush1.bf16.msra.mxu0 %v5415
    %7928 = vmatprep.subr.bf16.mxu0 %v5424
    %7929 = vmatpush1.bf16.msra.mxu0 %v5423
    %7930 = vmatprep.subr.bf16.mxu0 %v5432
    %7931 = vmatpush1.bf16.msra.mxu0 %v5431
    %7932 = vmatprep.subr.bf16.mxu0 %v5440
    %7933 = vmatpush1.bf16.msra.mxu0 %v5439
    %7934 = vmatprep.subr.bf16.mxu0 %v5448
    %7935 = vmatpush1.bf16.msra.mxu0 %v5447
    %7936 = vmatprep.subr.bf16.mxu0 %v5456
    %7937 = vmatpush1.bf16.msra.mxu0 %v5455
    %7938 = vmatprep.subr.bf16.mxu0 %v5464
    %7939 = vmatpush1.bf16.msra.mxu0 %v5463
    %7940 = vmatprep.subr.bf16.mxu0 %v5472
    %7941 = vmatpush1.bf16.msra.mxu0 %v5471
    %7942 = vmatprep.subr.bf16.mxu0 %v5480
    %7943 = vmatpush1.bf16.msra.mxu0 %v5479
    %7944 = vmatprep.subr.bf16.mxu0 %v5488
    %7945 = vmatpush1.bf16.msra.mxu0 %v5487
    %7946 = vmatprep.subr.bf16.mxu0 %v5496
    %7947 = vmatpush1.bf16.msra.mxu0 %v5495
    %7948 = vmatprep.subr.bf16.mxu0 %v5504
    %7949 = vmatpush1.bf16.msra.mxu0 %v5503
    %7950 = vmatprep.subr.bf16.mxu0 %v5512
    %7951 = vmatpush1.bf16.msra.mxu0 %v5511
    %7952 = vmatprep.subr.bf16.mxu0 %v5520
    %7953 = vmatpush1.bf16.msra.mxu0 %v5519
    %7954 = vmatprep.mubr.bf16.mxu0 %v1581
    %7955 = vmatmul.mubr.bf16.gmra.mrb[0].mxu0 %v1580
    %v7956 = vpop.f32.mrb[0].mxu0
    %v7957 = vadd.f32 %v7886, %v7956
    %v7958 = vpop.f32.mrb[0].mxu0
    %v7959 = vadd.f32 %v7888, %v7958
    %v7960 = vpop.f32.mrb[0].mxu0
    %v7961 = vadd.f32 %v7890, %v7960
    %v7962 = vpop.f32.mrb[0].mxu0
    %v7963 = vadd.f32 %v7892, %v7962
    %7964 = vmatprep.mubr.bf16.mxu0 %v1583
    %7965 = vmatmul.mubr.bf16.gmra.mrb[0].mxu0 %v1582
    %v7966 = vpop.f32.mrb[0].mxu0
    %v7967 = vadd.f32 %v7896, %v7966
    %v7968 = vpop.f32.mrb[0].mxu0
    %v7969 = vadd.f32 %v7898, %v7968
    %v7970 = vpop.f32.mrb[0].mxu0
    %v7971 = vadd.f32 %v7900, %v7970
    %v7972 = vpop.f32.mrb[0].mxu0
    %v7973 = vadd.f32 %v7902, %v7972
    %7974 = vmatprep.mubr.bf16.mxu0 %v1585
    %7975 = vmatmul.mubr.bf16.gmra.mrb[0].mxu0 %v1584
    %v7976 = vpop.f32.mrb[0].mxu0
    %v7977 = vadd.f32 %v7906, %v7976
    %v7978 = vpop.f32.mrb[0].mxu0
    %v7979 = vadd.f32 %v7908, %v7978
    %v7980 = vpop.f32.mrb[0].mxu0
    %v7981 = vadd.f32 %v7910, %v7980
    %v7982 = vpop.f32.mrb[0].mxu0
    %v7983 = vadd.f32 %v7912, %v7982
    %7984 = vmatprep.mubr.bf16.mxu0 0
    %7985 = vmatmul.mubr.bf16.gmra.mrb[0].mxu0 0
    %v7986 = vpop.f32.mrb[0].mxu0
    %v7987 = vadd.f32 %v7916, %v7986
    %v7988 = vpop.f32.mrb[0].mxu0
    %v7989 = vadd.f32 %v7918, %v7988
    %v7990 = vpop.f32.mrb[0].mxu0
    %v7991 = vpop.f32.mrb[0].mxu0
    %7992 = vdwg.mxu0
    %v7993 = vmax.f32 %v6679, %v7105
    %v7994 = vmax.f32 %v6681, %v7107
    %v7995 = vmax.f32 %v6683, %v7109
    %v7996 = vmax.f32 %v6685, %v7111
    %v7997 = vmax.f32 %v6689, %v7115
    %v7998 = vmax.f32 %v6691, %v7117
    %v7999 = vmax.f32 %v6693, %v7119
    %v8000 = vmax.f32 %v6695, %v7121
    %v8001 = vmax.f32 %v6699, %v7125
    %v8002 = vmax.f32 %v6701, %v7127
    %v8003 = vmax.f32 %v6703, %v7129
    %v8004 = vmax.f32 %v6705, %v7131
    %v8005 = vmax.f32 %v6709, %v7135
    %v8006 = vmax.f32 %v6711, %v7137
    %v8007 = vmax.f32 %v7531, %v7957
    %v8008 = vmax.f32 %v7533, %v7959
    %v8009 = vmax.f32 %v7535, %v7961
    %v8010 = vmax.f32 %v7537, %v7963
    %v8011 = vmax.f32 %v7541, %v7967
    %v8012 = vmax.f32 %v7543, %v7969
    %v8013 = vmax.f32 %v7545, %v7971
    %v8014 = vmax.f32 %v7547, %v7973
    %v8015 = vmax.f32 %v7551, %v7977
    %v8016 = vmax.f32 %v7553, %v7979
    %v8017 = vmax.f32 %v7555, %v7981
    %v8018 = vmax.f32 %v7557, %v7983
    %v8019 = vmax.f32 %v7561, %v7987
    %v8020 = vmax.f32 %v7563, %v7989
    %v8021 = vmax.f32 %v7993, %v8007
    %v8022 = vmax.f32 %v7994, %v8008
    %v8023 = vmax.f32 %v7995, %v8009
    %v8024 = vmax.f32 %v7996, %v8010
    %v8025 = vmax.f32 %v7997, %v8011
    %v8026 = vmax.f32 %v7998, %v8012
    %v8027 = vmax.f32 %v7999, %v8013
    %v8028 = vmax.f32 %v8000, %v8014
    %v8029 = vmax.f32 %v8001, %v8015
    %v8030 = vmax.f32 %v8002, %v8016
    %v8031 = vmax.f32 %v8003, %v8017
    %v8032 = vmax.f32 %v8004, %v8018
    %v8033 = vmax.f32 %v8005, %v8019
    %v8034 = vmax.f32 %v8006, %v8020
    %v8035 = vld [vmem:[#allocation7] sm:$0x3]
    %v8037 = vlaneseq
    %v8038 = vshrl.u32 %v8037, 7
    %v8039 = vsub.s32 0, %v8038
    %v8040 = vrot.slane %v8035, %v8039
    %v8041 = vlaneseq
    %v8042 = vshrl.u32 %v8041, 7
    %v8043 = vsub.s32 1, %v8042
    %v8044 = vrot.slane %v8035, %v8043
    %v8047 = vadd.f32 %v8021, %v8040
    %v8048 = vadd.f32 %v8022, %v8044
    %v8049 = vadd.f32 %v8023, %v8040
    %v8050 = vadd.f32 %v8024, %v8044
    %v8051 = vadd.f32 %v8025, %v8040
    %v8052 = vadd.f32 %v8026, %v8044
    %v8053 = vadd.f32 %v8027, %v8040
    %v8054 = vadd.f32 %v8028, %v8044
    %v8055 = vadd.f32 %v8029, %v8040
    %v8056 = vadd.f32 %v8030, %v8044
    %v8057 = vadd.f32 %v8031, %v8040
    %v8058 = vadd.f32 %v8032, %v8044
    %v8059 = vadd.f32 %v8033, %v8040
    %v8060 = vadd.f32 %v8034, %v8044
    %v8061 = vmax.f32 %v8047, 0.0
    %v8062 = vmax.f32 %v8048, 0.0
    %v8063 = vmax.f32 %v8049, 0.0
    %v8064 = vmax.f32 %v8050, 0.0
    %v8065 = vmax.f32 %v8051, 0.0
    %v8066 = vmax.f32 %v8052, 0.0
    %v8067 = vmax.f32 %v8053, 0.0
    %v8068 = vmax.f32 %v8054, 0.0
    %v8069 = vmax.f32 %v8055, 0.0
    %v8070 = vmax.f32 %v8056, 0.0
    %v8071 = vmax.f32 %v8057, 0.0
    %v8072 = vmax.f32 %v8058, 0.0
    %v8073 = vmax.f32 %v8059, 0.0
    %v8074 = vmax.f32 %v8060, 0.0
    %8075 = vst [vmem:[%s8] sm:$0xff] %v8061
    %8076 = vst [vmem:[%s8 + $0x8] sm:$0xff] %v8062
    %8077 = vst [vmem:[%s8 + $0x10] sm:$0xff] %v8063
    %8078 = vst [vmem:[%s8 + $0x18] sm:$0xff] %v8064
    %8079 = vst [vmem:[%s8 + $0x20] sm:$0xff] %v8065
    %8080 = vst [vmem:[%s8 + $0x28] sm:$0xff] %v8066
    %8081 = vst [vmem:[%s8 + $0x30] sm:$0xff] %v8067
    %8082 = vst [vmem:[%s8 + $0x38] sm:$0xff] %v8068
    %8083 = vst [vmem:[%s8 + $0x40] sm:$0xff] %v8069
    %8084 = vst [vmem:[%s8 + $0x48] sm:$0xff] %v8070
    %8085 = vst [vmem:[%s8 + $0x50] sm:$0xff] %v8071
    %8086 = vst [vmem:[%s8 + $0x58] sm:$0xff] %v8072
    %8087 = vst [vmem:[%s8 + $0x60] sm:$0xff] %v8073
    %8088 = vst [vmem:[%s8 + $0x68] sm:$0xff] %v8074
    %v8089 = vpack.c.bf16 %v8063, %v8061
    %v8090 = vpack.c.bf16 %v8064, %v8062
    %v8091 = vpack.c.bf16 %v8067, %v8065
    %v8092 = vpack.c.bf16 %v8068, %v8066
    %v8093 = vpack.c.bf16 %v8071, %v8069
    %v8094 = vpack.c.bf16 %v8072, %v8070
    %v8095 = vpack.c.bf16 %v8073, %v8073
    %v8096 = vpack.c.bf16 %v8074, %v8074
    %v8099 = vrot.slane %v8089, 4
    %v8100 = vrot.slane %v8090, 4
    %v8105 = vrot.slane %v8091, 4
    %v8106 = vrot.slane %v8092, 4
    %v8111 = vrot.slane %v8093, 4
    %v8112 = vrot.slane %v8094, 4
    %v8115 = vld [vmem:[#allocation9] sm:$0xf]
    %v8116 = vld [vmem:[#allocation9 + $0x4] sm:$0xf]
    %v8117 = vld [vmem:[#allocation9 + $0x8] sm:$0xf]
    %v8118 = vld [vmem:[#allocation9 + $0xc] sm:$0xf]
    %v8119 = vld [vmem:[#allocation9 + $0x10] sm:$0xf]
    %v8120 = vld [vmem:[#allocation9 + $0x14] sm:$0xf]
    %v8121 = vld [vmem:[#allocation9 + $0x18] sm:$0xf]
    %v8122 = vld [vmem:[#allocation9 + $0x1c] sm:$0xf]
    %v8123 = vld [vmem:[#allocation9 + $0x20] sm:$0xf]
    %v8124 = vld [vmem:[#allocation9 + $0x24] sm:$0xf]
    %v8125 = vld [vmem:[#allocation9 + $0x28] sm:$0xf]
    %v8126 = vld [vmem:[#allocation9 + $0x2c] sm:$0xf]
    %v8127 = vld [vmem:[#allocation9 + $0x30] sm:$0xf]
    %v8128 = vld [vmem:[#allocation9 + $0x34] sm:$0xf]
    %v8129 = vld [vmem:[#allocation9 + $0x38] sm:$0xf]
    %v8130 = vld [vmem:[#allocation9 + $0x3c] sm:$0xf]
    %v8131 = vld [vmem:[#allocation9 + $0x40] sm:$0xf]
    %v8132 = vld [vmem:[#allocation9 + $0x44] sm:$0xf]
    %v8133 = vld [vmem:[#allocation9 + $0x48] sm:$0xf]
    %v8134 = vld [vmem:[#allocation9 + $0x4c] sm:$0xf]
    %v8135 = vld [vmem:[#allocation9 + $0x50] sm:$0xf]
    %v8136 = vld [vmem:[#allocation9 + $0x54] sm:$0xf]
    %v8137 = vld [vmem:[#allocation9 + $0x58] sm:$0xf]
    %v8138 = vld [vmem:[#allocation9 + $0x5c] sm:$0xf]
    %v8139 = vld [vmem:[#allocation9 + $0x60] sm:$0xf]
    %v8140 = vld [vmem:[#allocation9 + $0x64] sm:$0xf]
    %v8141 = vld [vmem:[#allocation9 + $0x68] sm:$0xf]
    %v8142 = vld [vmem:[#allocation9 + $0x6c] sm:$0xf]
    %v8143 = vld [vmem:[#allocation9 + $0x70] sm:$0xf]
    %v8144 = vld [vmem:[#allocation9 + $0x74] sm:$0xf]
    %v8145 = vld [vmem:[#allocation9 + $0x78] sm:$0xf]
    %v8146 = vld [vmem:[#allocation9 + $0x7c] sm:$0xf]
    %v8147 = vld [vmem:[#allocation9 + $0x80] sm:$0xf]
    %v8148 = vld [vmem:[#allocation9 + $0x84] sm:$0xf]
    %v8149 = vld [vmem:[#allocation9 + $0x88] sm:$0xf]
    %v8150 = vld [vmem:[#allocation9 + $0x8c] sm:$0xf]
    %v8151 = vld [vmem:[#allocation9 + $0x90] sm:$0xf]
    %v8152 = vld [vmem:[#allocation9 + $0x94] sm:$0xf]
    %v8153 = vld [vmem:[#allocation9 + $0x98] sm:$0xf]
    %v8154 = vld [vmem:[#allocation9 + $0x9c] sm:$0xf]
    %v8155 = vld [vmem:[#allocation9 + $0xa0] sm:$0xf]
    %v8156 = vld [vmem:[#allocation9 + $0xa4] sm:$0xf]
    %v8157 = vld [vmem:[#allocation9 + $0xa8] sm:$0xf]
    %v8158 = vld [vmem:[#allocation9 + $0xac] sm:$0xf]
    %v8159 = vld [vmem:[#allocation9 + $0xb0] sm:$0xf]
    %v8160 = vld [vmem:[#allocation9 + $0xb4] sm:$0xf]
    %v8161 = vld [vmem:[#allocation9 + $0xb8] sm:$0xf]
    %v8162 = vld [vmem:[#allocation9 + $0xbc] sm:$0xf]
    %v8163 = vld [vmem:[#allocation9 + $0xc0] sm:$0xf]
    %v8164 = vld [vmem:[#allocation9 + $0xc4] sm:$0xf]
    %v8165 = vld [vmem:[#allocation9 + $0xc8] sm:$0xf]
    %v8166 = vld [vmem:[#allocation9 + $0xcc] sm:$0xf]
    %v8167 = vld [vmem:[#allocation9 + $0xd0] sm:$0xf]
    %v8168 = vld [vmem:[#allocation9 + $0xd4] sm:$0xf]
    %v8169 = vld [vmem:[#allocation9 + $0xd8] sm:$0xf]
    %v8170 = vld [vmem:[#allocation9 + $0xdc] sm:$0xf]
    %v8171 = vld [vmem:[#allocation9 + $0xe0] sm:$0xf]
    %v8172 = vld [vmem:[#allocation9 + $0xe4] sm:$0xf]
    %v8173 = vld [vmem:[#allocation9 + $0xe8] sm:$0xf]
    %v8174 = vld [vmem:[#allocation9 + $0xec] sm:$0xf]
    %v8175 = vld [vmem:[#allocation9 + $0xf0] sm:$0xf]
    %v8176 = vld [vmem:[#allocation9 + $0xf4] sm:$0xf]
    %v8177 = vld [vmem:[#allocation9 + $0xf8] sm:$0xf]
    %v8178 = vld [vmem:[#allocation9 + $0xfc] sm:$0xf]
    %v8179 = vld [vmem:[#allocation9 + $0x100] sm:$0xf]
    %v8180 = vld [vmem:[#allocation9 + $0x104] sm:$0xf]
    %v8181 = vld [vmem:[#allocation9 + $0x108] sm:$0xf]
    %v8182 = vld [vmem:[#allocation9 + $0x10c] sm:$0xf]
    %v8183 = vld [vmem:[#allocation9 + $0x110] sm:$0xf]
    %v8184 = vld [vmem:[#allocation9 + $0x114] sm:$0xf]
    %v8185 = vld [vmem:[#allocation9 + $0x118] sm:$0xf]
    %v8186 = vld [vmem:[#allocation9 + $0x11c] sm:$0xf]
    %v8187 = vld [vmem:[#allocation9 + $0x120] sm:$0xf]
    %v8188 = vld [vmem:[#allocation9 + $0x124] sm:$0xf]
    %v8189 = vld [vmem:[#allocation9 + $0x128] sm:$0xf]
    %v8190 = vld [vmem:[#allocation9 + $0x12c] sm:$0xf]
    %v8191 = vld [vmem:[#allocation9 + $0x130] sm:$0xf]
    %v8192 = vld [vmem:[#allocation9 + $0x134] sm:$0xf]
    %v8193 = vld [vmem:[#allocation9 + $0x138] sm:$0xf]
    %v8194 = vld [vmem:[#allocation9 + $0x13c] sm:$0xf]
    %v8195 = vld [vmem:[#allocation9 + $0x140] sm:$0xf]
    %v8196 = vld [vmem:[#allocation9 + $0x144] sm:$0xf]
    %v8197 = vld [vmem:[#allocation9 + $0x148] sm:$0xf]
    %v8198 = vld [vmem:[#allocation9 + $0x14c] sm:$0xf]
    %v8199 = vld [vmem:[#allocation9 + $0x150] sm:$0xf]
    %v8200 = vld [vmem:[#allocation9 + $0x154] sm:$0xf]
    %v8201 = vld [vmem:[#allocation9 + $0x158] sm:$0xf]
    %v8202 = vld [vmem:[#allocation9 + $0x15c] sm:$0xf]
    %v8203 = vld [vmem:[#allocation9 + $0x160] sm:$0xf]
    %v8204 = vld [vmem:[#allocation9 + $0x164] sm:$0xf]
    %v8205 = vld [vmem:[#allocation9 + $0x168] sm:$0xf]
    %v8206 = vld [vmem:[#allocation9 + $0x16c] sm:$0xf]
    %v8207 = vld [vmem:[#allocation9 + $0x170] sm:$0xf]
    %v8208 = vld [vmem:[#allocation9 + $0x174] sm:$0xf]
    %v8209 = vld [vmem:[#allocation9 + $0x178] sm:$0xf]
    %v8210 = vld [vmem:[#allocation9 + $0x17c] sm:$0xf]
    %v8211 = vld [vmem:[#allocation9 + $0x180] sm:$0xf]
    %v8212 = vld [vmem:[#allocation9 + $0x184] sm:$0xf]
    %v8213 = vld [vmem:[#allocation9 + $0x188] sm:$0xf]
    %v8214 = vld [vmem:[#allocation9 + $0x18c] sm:$0xf]
    %v8215 = vld [vmem:[#allocation9 + $0x190] sm:$0xf]
    %v8216 = vld [vmem:[#allocation9 + $0x194] sm:$0xf]
    %v8217 = vld [vmem:[#allocation9 + $0x198] sm:$0xf]
    %v8218 = vld [vmem:[#allocation9 + $0x19c] sm:$0xf]
    %v8219 = vld [vmem:[#allocation9 + $0x1a0] sm:$0xf]
    %v8220 = vld [vmem:[#allocation9 + $0x1a4] sm:$0xf]
    %v8221 = vld [vmem:[#allocation9 + $0x1a8] sm:$0xf]
    %v8222 = vld [vmem:[#allocation9 + $0x1ac] sm:$0xf]
    %v8223 = vld [vmem:[#allocation9 + $0x1b0] sm:$0xf]
    %v8224 = vld [vmem:[#allocation9 + $0x1b4] sm:$0xf]
    %v8225 = vld [vmem:[#allocation9 + $0x1b8] sm:$0xf]
    %v8226 = vld [vmem:[#allocation9 + $0x1bc] sm:$0xf]
    %v8227 = vld [vmem:[#allocation9 + $0x1c0] sm:$0xf]
    %v8228 = vld [vmem:[#allocation9 + $0x1c4] sm:$0xf]
    %v8229 = vld [vmem:[#allocation9 + $0x1c8] sm:$0xf]
    %v8230 = vld [vmem:[#allocation9 + $0x1cc] sm:$0xf]
    %v8231 = vld [vmem:[#allocation9 + $0x1d0] sm:$0xf]
    %v8232 = vld [vmem:[#allocation9 + $0x1d4] sm:$0xf]
    %v8233 = vld [vmem:[#allocation9 + $0x1d8] sm:$0xf]
    %v8234 = vld [vmem:[#allocation9 + $0x1dc] sm:$0xf]
    %v8235 = vld [vmem:[#allocation9 + $0x1e0] sm:$0xf]
    %v8236 = vld [vmem:[#allocation9 + $0x1e4] sm:$0xf]
    %v8237 = vld [vmem:[#allocation9 + $0x1e8] sm:$0xf]
    %v8238 = vld [vmem:[#allocation9 + $0x1ec] sm:$0xf]
    %v8239 = vld [vmem:[#allocation9 + $0x1f0] sm:$0xf]
    %v8240 = vld [vmem:[#allocation9 + $0x1f4] sm:$0xf]
    %v8241 = vld [vmem:[#allocation9 + $0x1f8] sm:$0xf]
    %v8242 = vld [vmem:[#allocation9 + $0x1fc] sm:$0xf]
    %v8243 = vld [vmem:[#allocation9 + $0x200] sm:$0xf]
    %v8244 = vld [vmem:[#allocation9 + $0x204] sm:$0xf]
    %v8245 = vld [vmem:[#allocation9 + $0x208] sm:$0xf]
    %v8246 = vld [vmem:[#allocation9 + $0x20c] sm:$0xf]
    %v8247 = vld [vmem:[#allocation9 + $0x210] sm:$0xf]
    %v8248 = vld [vmem:[#allocation9 + $0x214] sm:$0xf]
    %v8249 = vld [vmem:[#allocation9 + $0x218] sm:$0xf]
    %v8250 = vld [vmem:[#allocation9 + $0x21c] sm:$0xf]
    %v8251 = vld [vmem:[#allocation9 + $0x220] sm:$0xf]
    %v8252 = vld [vmem:[#allocation9 + $0x224] sm:$0xf]
    %v8253 = vld [vmem:[#allocation9 + $0x228] sm:$0xf]
    %v8254 = vld [vmem:[#allocation9 + $0x22c] sm:$0xf]
    %v8255 = vld [vmem:[#allocation9 + $0x230] sm:$0xf]
    %v8256 = vld [vmem:[#allocation9 + $0x234] sm:$0xf]
    %v8257 = vld [vmem:[#allocation9 + $0x238] sm:$0xf]
    %v8258 = vld [vmem:[#allocation9 + $0x23c] sm:$0xf]
    %v8259 = vld [vmem:[#allocation9 + $0x240] sm:$0xf]
    %v8260 = vld [vmem:[#allocation9 + $0x244] sm:$0xf]
    %v8261 = vld [vmem:[#allocation9 + $0x248] sm:$0xf]
    %v8262 = vld [vmem:[#allocation9 + $0x24c] sm:$0xf]
    %v8263 = vld [vmem:[#allocation9 + $0x250] sm:$0xf]
    %v8264 = vld [vmem:[#allocation9 + $0x254] sm:$0xf]
    %v8265 = vld [vmem:[#allocation9 + $0x258] sm:$0xf]
    %v8266 = vld [vmem:[#allocation9 + $0x25c] sm:$0xf]
    %v8267 = vld [vmem:[#allocation9 + $0x260] sm:$0xf]
    %v8268 = vld [vmem:[#allocation9 + $0x264] sm:$0xf]
    %v8269 = vld [vmem:[#allocation9 + $0x268] sm:$0xf]
    %v8270 = vld [vmem:[#allocation9 + $0x26c] sm:$0xf]
    %v8271 = vld [vmem:[#allocation9 + $0x270] sm:$0xf]
    %v8272 = vld [vmem:[#allocation9 + $0x274] sm:$0xf]
    %v8273 = vld [vmem:[#allocation9 + $0x278] sm:$0xf]
    %v8274 = vld [vmem:[#allocation9 + $0x27c] sm:$0xf]
    %v8275 = vld [vmem:[#allocation9 + $0x280] sm:$0xf]
    %v8276 = vld [vmem:[#allocation9 + $0x284] sm:$0xf]
    %v8277 = vld [vmem:[#allocation9 + $0x288] sm:$0xf]
    %v8278 = vld [vmem:[#allocation9 + $0x28c] sm:$0xf]
    %v8279 = vld [vmem:[#allocation9 + $0x290] sm:$0xf]
    %v8280 = vld [vmem:[#allocation9 + $0x294] sm:$0xf]
    %v8281 = vld [vmem:[#allocation9 + $0x298] sm:$0xf]
    %v8282 = vld [vmem:[#allocation9 + $0x29c] sm:$0xf]
    %v8283 = vld [vmem:[#allocation9 + $0x2a0] sm:$0xf]
    %v8284 = vld [vmem:[#allocation9 + $0x2a4] sm:$0xf]
    %v8285 = vld [vmem:[#allocation9 + $0x2a8] sm:$0xf]
    %v8286 = vld [vmem:[#allocation9 + $0x2ac] sm:$0xf]
    %v8287 = vld [vmem:[#allocation9 + $0x2b0] sm:$0xf]
    %v8288 = vld [vmem:[#allocation9 + $0x2b4] sm:$0xf]
    %v8289 = vld [vmem:[#allocation9 + $0x2b8] sm:$0xf]
    %v8290 = vld [vmem:[#allocation9 + $0x2bc] sm:$0xf]
    %v8291 = vld [vmem:[#allocation9 + $0x2c0] sm:$0xf]
    %v8292 = vld [vmem:[#allocation9 + $0x2c4] sm:$0xf]
    %v8293 = vld [vmem:[#allocation9 + $0x2c8] sm:$0xf]
    %v8294 = vld [vmem:[#allocation9 + $0x2cc] sm:$0xf]
    %v8295 = vld [vmem:[#allocation9 + $0x2d0] sm:$0xf]
    %v8296 = vld [vmem:[#allocation9 + $0x2d4] sm:$0xf]
    %v8297 = vld [vmem:[#allocation9 + $0x2d8] sm:$0xf]
    %v8298 = vld [vmem:[#allocation9 + $0x2dc] sm:$0xf]
    %v8299 = vld [vmem:[#allocation9 + $0x2e0] sm:$0xf]
    %v8300 = vld [vmem:[#allocation9 + $0x2e4] sm:$0xf]
    %v8301 = vld [vmem:[#allocation9 + $0x2e8] sm:$0xf]
    %v8302 = vld [vmem:[#allocation9 + $0x2ec] sm:$0xf]
    %v8303 = vld [vmem:[#allocation9 + $0x2f0] sm:$0xf]
    %v8304 = vld [vmem:[#allocation9 + $0x2f4] sm:$0xf]
    %v8305 = vld [vmem:[#allocation9 + $0x2f8] sm:$0xf]
    %v8306 = vld [vmem:[#allocation9 + $0x2fc] sm:$0xf]
    %v8307 = vld [vmem:[#allocation9 + $0x300] sm:$0xf]
    %v8308 = vld [vmem:[#allocation9 + $0x304] sm:$0xf]
    %v8309 = vld [vmem:[#allocation9 + $0x308] sm:$0xf]
    %v8310 = vld [vmem:[#allocation9 + $0x30c] sm:$0xf]
    %v8311 = vld [vmem:[#allocation9 + $0x310] sm:$0xf]
    %v8312 = vld [vmem:[#allocation9 + $0x314] sm:$0xf]
    %v8313 = vld [vmem:[#allocation9 + $0x318] sm:$0xf]
    %v8314 = vld [vmem:[#allocation9 + $0x31c] sm:$0xf]
    %v8315 = vld [vmem:[#allocation9 + $0x320] sm:$0xf]
    %v8316 = vld [vmem:[#allocation9 + $0x324] sm:$0xf]
    %v8317 = vld [vmem:[#allocation9 + $0x328] sm:$0xf]
    %v8318 = vld [vmem:[#allocation9 + $0x32c] sm:$0xf]
    %v8319 = vld [vmem:[#allocation9 + $0x330] sm:$0xf]
    %v8320 = vld [vmem:[#allocation9 + $0x334] sm:$0xf]
    %v8321 = vld [vmem:[#allocation9 + $0x338] sm:$0xf]
    %v8322 = vld [vmem:[#allocation9 + $0x33c] sm:$0xf]
    %v8323 = vld [vmem:[#allocation9 + $0x340] sm:$0xf]
    %v8324 = vld [vmem:[#allocation9 + $0x344] sm:$0xf]
    %v8325 = vld [vmem:[#allocation9 + $0x348] sm:$0xf]
    %v8326 = vld [vmem:[#allocation9 + $0x34c] sm:$0xf]
    %v8327 = vld [vmem:[#allocation9 + $0x350] sm:$0xf]
    %v8328 = vld [vmem:[#allocation9 + $0x354] sm:$0xf]
    %v8329 = vld [vmem:[#allocation9 + $0x358] sm:$0xf]
    %v8330 = vld [vmem:[#allocation9 + $0x35c] sm:$0xf]
    %v8331 = vld [vmem:[#allocation9 + $0x360] sm:$0xf]
    %v8332 = vld [vmem:[#allocation9 + $0x364] sm:$0xf]
    %v8333 = vld [vmem:[#allocation9 + $0x368] sm:$0xf]
    %v8334 = vld [vmem:[#allocation9 + $0x36c] sm:$0xf]
    %v8335 = vld [vmem:[#allocation9 + $0x370] sm:$0xf]
    %v8336 = vld [vmem:[#allocation9 + $0x374] sm:$0xf]
    %v8337 = vld [vmem:[#allocation9 + $0x378] sm:$0xf]
    %v8338 = vld [vmem:[#allocation9 + $0x37c] sm:$0xf]
    %v8339 = vld [vmem:[#allocation10] sm:$0x1]
    %v8341 = vlaneseq
    %v8342 = vshrl.u32 %v8341, 7
    %v8343 = vsub.s32 0, %v8342
    %v8344 = vrot.slane %v8339, %v8343
    %v8570 = vunpack.c.l.b16 %v8115
    %v8571 = vunpack.c.l.b16 %v8116
    %v8572 = vunpack.c.l.b16 %v8117
    %v8573 = vunpack.c.l.b16 %v8118
    %v8574 = vunpack.c.l.b16 %v8119
    %v8575 = vunpack.c.l.b16 %v8120
    %v8576 = vunpack.c.l.b16 %v8121
    %v8577 = vunpack.c.l.b16 %v8122
    %v8578 = vunpack.c.l.b16 %v8123
    %v8579 = vunpack.c.l.b16 %v8124
    %v8580 = vunpack.c.l.b16 %v8125
    %v8581 = vunpack.c.l.b16 %v8126
    %v8582 = vunpack.c.l.b16 %v8127
    %v8583 = vunpack.c.l.b16 %v8128
    %v8584 = vunpack.c.l.b16 %v8129
    %v8585 = vunpack.c.l.b16 %v8130
    %v8586 = vunpack.c.l.b16 %v8131
    %v8587 = vunpack.c.l.b16 %v8132
    %v8588 = vunpack.c.l.b16 %v8133
    %v8589 = vunpack.c.l.b16 %v8134
    %v8590 = vunpack.c.l.b16 %v8135
    %v8591 = vunpack.c.l.b16 %v8136
    %v8592 = vunpack.c.l.b16 %v8137
    %v8593 = vunpack.c.l.b16 %v8138
    %v8594 = vunpack.c.l.b16 %v8139
    %v8595 = vunpack.c.l.b16 %v8140
    %v8596 = vunpack.c.l.b16 %v8141
    %v8597 = vunpack.c.l.b16 %v8142
    %v8598 = vunpack.c.l.b16 %v8143
    %v8599 = vunpack.c.l.b16 %v8144
    %v8600 = vunpack.c.l.b16 %v8145
    %v8601 = vunpack.c.l.b16 %v8146
    %v8602 = vunpack.c.l.b16 %v8147
    %v8603 = vunpack.c.l.b16 %v8148
    %v8604 = vunpack.c.l.b16 %v8149
    %v8605 = vunpack.c.l.b16 %v8150
    %v8606 = vunpack.c.l.b16 %v8151
    %v8607 = vunpack.c.l.b16 %v8152
    %v8608 = vunpack.c.l.b16 %v8153
    %v8609 = vunpack.c.l.b16 %v8154
    %v8610 = vunpack.c.l.b16 %v8155
    %v8611 = vunpack.c.l.b16 %v8156
    %v8612 = vunpack.c.l.b16 %v8157
    %v8613 = vunpack.c.l.b16 %v8158
    %v8614 = vunpack.c.l.b16 %v8159
    %v8615 = vunpack.c.l.b16 %v8160
    %v8616 = vunpack.c.l.b16 %v8161
    %v8617 = vunpack.c.l.b16 %v8162
    %v8618 = vunpack.c.l.b16 %v8163
    %v8619 = vunpack.c.l.b16 %v8164
    %v8620 = vunpack.c.l.b16 %v8165
    %v8621 = vunpack.c.l.b16 %v8166
    %v8622 = vunpack.c.l.b16 %v8167
    %v8623 = vunpack.c.l.b16 %v8168
    %v8624 = vunpack.c.l.b16 %v8169
    %v8625 = vunpack.c.l.b16 %v8170
    %v8626 = vunpack.c.l.b16 %v8171
    %v8627 = vunpack.c.l.b16 %v8172
    %v8628 = vunpack.c.l.b16 %v8173
    %v8629 = vunpack.c.l.b16 %v8174
    %v8630 = vunpack.c.l.b16 %v8175
    %v8631 = vunpack.c.l.b16 %v8176
    %v8632 = vunpack.c.l.b16 %v8177
    %v8633 = vunpack.c.l.b16 %v8178
    %v8634 = vunpack.c.l.b16 %v8179
    %v8635 = vunpack.c.l.b16 %v8180
    %v8636 = vunpack.c.l.b16 %v8181
    %v8637 = vunpack.c.l.b16 %v8182
    %v8638 = vunpack.c.l.b16 %v8183
    %v8639 = vunpack.c.l.b16 %v8184
    %v8640 = vunpack.c.l.b16 %v8185
    %v8641 = vunpack.c.l.b16 %v8186
    %v8642 = vunpack.c.l.b16 %v8187
    %v8643 = vunpack.c.l.b16 %v8188
    %v8644 = vunpack.c.l.b16 %v8189
    %v8645 = vunpack.c.l.b16 %v8190
    %v8646 = vunpack.c.l.b16 %v8191
    %v8647 = vunpack.c.l.b16 %v8192
    %v8648 = vunpack.c.l.b16 %v8193
    %v8649 = vunpack.c.l.b16 %v8194
    %v8650 = vunpack.c.l.b16 %v8195
    %v8651 = vunpack.c.l.b16 %v8196
    %v8652 = vunpack.c.l.b16 %v8197
    %v8653 = vunpack.c.l.b16 %v8198
    %v8654 = vunpack.c.l.b16 %v8199
    %v8655 = vunpack.c.l.b16 %v8200
    %v8656 = vunpack.c.l.b16 %v8201
    %v8657 = vunpack.c.l.b16 %v8202
    %v8658 = vunpack.c.l.b16 %v8203
    %v8659 = vunpack.c.l.b16 %v8204
    %v8660 = vunpack.c.l.b16 %v8205
    %v8661 = vunpack.c.l.b16 %v8206
    %v8662 = vunpack.c.l.b16 %v8207
    %v8663 = vunpack.c.l.b16 %v8208
    %v8664 = vunpack.c.l.b16 %v8209
    %v8665 = vunpack.c.l.b16 %v8210
    %v8666 = vunpack.c.l.b16 %v8211
    %v8667 = vunpack.c.l.b16 %v8212
    %v8668 = vunpack.c.l.b16 %v8213
    %v8669 = vunpack.c.l.b16 %v8214
    %v8670 = vunpack.c.l.b16 %v8215
    %v8671 = vunpack.c.l.b16 %v8216
    %v8672 = vunpack.c.l.b16 %v8217
    %v8673 = vunpack.c.l.b16 %v8218
    %v8674 = vunpack.c.l.b16 %v8219
    %v8675 = vunpack.c.l.b16 %v8220
    %v8676 = vunpack.c.l.b16 %v8221
    %v8677 = vunpack.c.l.b16 %v8222
    %v8678 = vunpack.c.l.b16 %v8223
    %v8679 = vunpack.c.l.b16 %v8224
    %v8680 = vunpack.c.l.b16 %v8225
    %v8681 = vunpack.c.l.b16 %v8226
    %v8682 = vunpack.c.l.b16 %v8227
    %v8683 = vunpack.c.l.b16 %v8228
    %v8684 = vunpack.c.l.b16 %v8229
    %v8685 = vunpack.c.l.b16 %v8230
    %v8686 = vunpack.c.l.b16 %v8231
    %v8687 = vunpack.c.l.b16 %v8232
    %v8688 = vunpack.c.l.b16 %v8233
    %v8689 = vunpack.c.l.b16 %v8234
    %v8690 = vunpack.c.l.b16 %v8235
    %v8691 = vunpack.c.l.b16 %v8236
    %v8692 = vunpack.c.l.b16 %v8237
    %v8693 = vunpack.c.l.b16 %v8238
    %v8694 = vunpack.c.l.b16 %v8239
    %v8695 = vunpack.c.l.b16 %v8240
    %v8696 = vunpack.c.l.b16 %v8241
    %v8697 = vunpack.c.l.b16 %v8242
    %v8698 = vunpack.c.l.b16 %v8243
    %v8699 = vunpack.c.l.b16 %v8244
    %v8700 = vunpack.c.l.b16 %v8245
    %v8701 = vunpack.c.l.b16 %v8246
    %v8702 = vunpack.c.l.b16 %v8247
    %v8703 = vunpack.c.l.b16 %v8248
    %v8704 = vunpack.c.l.b16 %v8249
    %v8705 = vunpack.c.l.b16 %v8250
    %v8706 = vunpack.c.l.b16 %v8251
    %v8707 = vunpack.c.l.b16 %v8252
    %v8708 = vunpack.c.l.b16 %v8253
    %v8709 = vunpack.c.l.b16 %v8254
    %v8710 = vunpack.c.l.b16 %v8255
    %v8711 = vunpack.c.l.b16 %v8256
    %v8712 = vunpack.c.l.b16 %v8257
    %v8713 = vunpack.c.l.b16 %v8258
    %v8714 = vunpack.c.l.b16 %v8259
    %v8715 = vunpack.c.l.b16 %v8260
    %v8716 = vunpack.c.l.b16 %v8261
    %v8717 = vunpack.c.l.b16 %v8262
    %v8718 = vunpack.c.l.b16 %v8263
    %v8719 = vunpack.c.l.b16 %v8264
    %v8720 = vunpack.c.l.b16 %v8265
    %v8721 = vunpack.c.l.b16 %v8266
    %v8722 = vunpack.c.l.b16 %v8267
    %v8723 = vunpack.c.l.b16 %v8268
    %v8724 = vunpack.c.l.b16 %v8269
    %v8725 = vunpack.c.l.b16 %v8270
    %v8726 = vunpack.c.l.b16 %v8271
    %v8727 = vunpack.c.l.b16 %v8272
    %v8728 = vunpack.c.l.b16 %v8273
    %v8729 = vunpack.c.l.b16 %v8274
    %v8730 = vunpack.c.l.b16 %v8275
    %v8731 = vunpack.c.l.b16 %v8276
    %v8732 = vunpack.c.l.b16 %v8277
    %v8733 = vunpack.c.l.b16 %v8278
    %v8734 = vunpack.c.l.b16 %v8279
    %v8735 = vunpack.c.l.b16 %v8280
    %v8736 = vunpack.c.l.b16 %v8281
    %v8737 = vunpack.c.l.b16 %v8282
    %v8738 = vunpack.c.l.b16 %v8283
    %v8739 = vunpack.c.l.b16 %v8284
    %v8740 = vunpack.c.l.b16 %v8285
    %v8741 = vunpack.c.l.b16 %v8286
    %v8742 = vunpack.c.l.b16 %v8287
    %v8743 = vunpack.c.l.b16 %v8288
    %v8744 = vunpack.c.l.b16 %v8289
    %v8745 = vunpack.c.l.b16 %v8290
    %v8746 = vunpack.c.l.b16 %v8291
    %v8747 = vunpack.c.l.b16 %v8292
    %v8748 = vunpack.c.l.b16 %v8293
    %v8749 = vunpack.c.l.b16 %v8294
    %v8750 = vunpack.c.l.b16 %v8295
    %v8751 = vunpack.c.l.b16 %v8296
    %v8752 = vunpack.c.l.b16 %v8297
    %v8753 = vunpack.c.l.b16 %v8298
    %v8754 = vunpack.c.l.b16 %v8299
    %v8755 = vunpack.c.l.b16 %v8300
    %v8756 = vunpack.c.l.b16 %v8301
    %v8757 = vunpack.c.l.b16 %v8302
    %v8758 = vunpack.c.l.b16 %v8303
    %v8759 = vunpack.c.l.b16 %v8304
    %v8760 = vunpack.c.l.b16 %v8305
    %v8761 = vunpack.c.l.b16 %v8306
    %v8762 = vunpack.c.l.b16 %v8307
    %v8763 = vunpack.c.l.b16 %v8308
    %v8764 = vunpack.c.l.b16 %v8309
    %v8765 = vunpack.c.l.b16 %v8310
    %v8766 = vunpack.c.l.b16 %v8311
    %v8767 = vunpack.c.l.b16 %v8312
    %v8768 = vunpack.c.l.b16 %v8313
    %v8769 = vunpack.c.l.b16 %v8314
    %v8770 = vunpack.c.l.b16 %v8315
    %v8771 = vunpack.c.l.b16 %v8316
    %v8772 = vunpack.c.l.b16 %v8317
    %v8773 = vunpack.c.l.b16 %v8318
    %v8774 = vunpack.c.l.b16 %v8319
    %v8775 = vunpack.c.l.b16 %v8320
    %v8776 = vunpack.c.l.b16 %v8321
    %v8777 = vunpack.c.l.b16 %v8322
    %v8778 = vunpack.c.l.b16 %v8323
    %v8779 = vunpack.c.l.b16 %v8324
    %v8780 = vunpack.c.l.b16 %v8325
    %v8781 = vunpack.c.l.b16 %v8326
    %v8782 = vunpack.c.l.b16 %v8327
    %v8783 = vunpack.c.l.b16 %v8328
    %v8784 = vunpack.c.l.b16 %v8329
    %v8785 = vunpack.c.l.b16 %v8330
    %v8786 = vunpack.c.l.b16 %v8331
    %v8787 = vunpack.c.l.b16 %v8332
    %v8788 = vunpack.c.l.b16 %v8333
    %v8789 = vunpack.c.l.b16 %v8334
    %v8790 = vunpack.c.l.b16 %v8335
    %v8791 = vunpack.c.l.b16 %v8336
    %v8792 = vunpack.c.l.b16 %v8337
    %v8793 = vunpack.c.l.b16 %v8338
    %v8794 = vpack.c.b16 %v8571, %v8570
    %v8795 = vpack.c.b16 %v8573, %v8572
    %v8796 = vpack.c.b16 %v8575, %v8574
    %v8797 = vpack.c.b16 %v8577, %v8576
    %v8798 = vpack.c.b16 %v8579, %v8578
    %v8799 = vpack.c.b16 %v8581, %v8580
    %v8800 = vpack.c.b16 %v8583, %v8582
    %v8801 = vpack.c.b16 %v8585, %v8584
    %v8802 = vpack.c.b16 %v8587, %v8586
    %v8803 = vpack.c.b16 %v8589, %v8588
    %v8804 = vpack.c.b16 %v8591, %v8590
    %v8805 = vpack.c.b16 %v8593, %v8592
    %v8806 = vpack.c.b16 %v8595, %v8594
    %v8807 = vpack.c.b16 %v8597, %v8596
    %v8808 = vpack.c.b16 %v8599, %v8598
    %v8809 = vpack.c.b16 %v8601, %v8600
    %v8810 = vpack.c.b16 %v8603, %v8602
    %v8811 = vpack.c.b16 %v8605, %v8604
    %v8812 = vpack.c.b16 %v8607, %v8606
    %v8813 = vpack.c.b16 %v8609, %v8608
    %v8814 = vpack.c.b16 %v8611, %v8610
    %v8815 = vpack.c.b16 %v8613, %v8612
    %v8816 = vpack.c.b16 %v8615, %v8614
    %v8817 = vpack.c.b16 %v8617, %v8616
    %v8818 = vpack.c.b16 %v8619, %v8618
    %v8819 = vpack.c.b16 %v8621, %v8620
    %v8820 = vpack.c.b16 %v8623, %v8622
    %v8821 = vpack.c.b16 %v8625, %v8624
    %v8822 = vpack.c.b16 %v8627, %v8626
    %v8823 = vpack.c.b16 %v8629, %v8628
    %v8824 = vpack.c.b16 %v8631, %v8630
    %v8825 = vpack.c.b16 %v8633, %v8632
    %v8826 = vpack.c.b16 %v8635, %v8634
    %v8827 = vpack.c.b16 %v8637, %v8636
    %v8828 = vpack.c.b16 %v8639, %v8638
    %v8829 = vpack.c.b16 %v8641, %v8640
    %v8830 = vpack.c.b16 %v8643, %v8642
    %v8831 = vpack.c.b16 %v8645, %v8644
    %v8832 = vpack.c.b16 %v8647, %v8646
    %v8833 = vpack.c.b16 %v8649, %v8648
    %v8834 = vpack.c.b16 %v8651, %v8650
    %v8835 = vpack.c.b16 %v8653, %v8652
    %v8836 = vpack.c.b16 %v8655, %v8654
    %v8837 = vpack.c.b16 %v8657, %v8656
    %v8838 = vpack.c.b16 %v8659, %v8658
    %v8839 = vpack.c.b16 %v8661, %v8660
    %v8840 = vpack.c.b16 %v8663, %v8662
    %v8841 = vpack.c.b16 %v8665, %v8664
    %v8842 = vpack.c.b16 %v8667, %v8666
    %v8843 = vpack.c.b16 %v8669, %v8668
    %v8844 = vpack.c.b16 %v8671, %v8670
    %v8845 = vpack.c.b16 %v8673, %v8672
    %v8846 = vpack.c.b16 %v8675, %v8674
    %v8847 = vpack.c.b16 %v8677, %v8676
    %v8848 = vpack.c.b16 %v8679, %v8678
    %v8849 = vpack.c.b16 %v8681, %v8680
    %v8850 = vpack.c.b16 %v8683, %v8682
    %v8851 = vpack.c.b16 %v8685, %v8684
    %v8852 = vpack.c.b16 %v8687, %v8686
    %v8853 = vpack.c.b16 %v8689, %v8688
    %v8854 = vpack.c.b16 %v8691, %v8690
    %v8855 = vpack.c.b16 %v8693, %v8692
    %v8856 = vpack.c.b16 %v8695, %v8694
    %v8857 = vpack.c.b16 %v8697, %v8696
    %v8858 = vpack.c.b16 %v8699, %v8698
    %v8859 = vpack.c.b16 %v8701, %v8700
    %v8860 = vpack.c.b16 %v8703, %v8702
    %v8861 = vpack.c.b16 %v8705, %v8704
    %v8862 = vpack.c.b16 %v8707, %v8706
    %v8863 = vpack.c.b16 %v8709, %v8708
    %v8864 = vpack.c.b16 %v8711, %v8710
    %v8865 = vpack.c.b16 %v8713, %v8712
    %v8866 = vpack.c.b16 %v8715, %v8714
    %v8867 = vpack.c.b16 %v8717, %v8716
    %v8868 = vpack.c.b16 %v8719, %v8718
    %v8869 = vpack.c.b16 %v8721, %v8720
    %v8870 = vpack.c.b16 %v8723, %v8722
    %v8871 = vpack.c.b16 %v8725, %v8724
    %v8872 = vpack.c.b16 %v8727, %v8726
    %v8873 = vpack.c.b16 %v8729, %v8728
    %v8874 = vpack.c.b16 %v8731, %v8730
    %v8875 = vpack.c.b16 %v8733, %v8732
    %v8876 = vpack.c.b16 %v8735, %v8734
    %v8877 = vpack.c.b16 %v8737, %v8736
    %v8878 = vpack.c.b16 %v8739, %v8738
    %v8879 = vpack.c.b16 %v8741, %v8740
    %v8880 = vpack.c.b16 %v8743, %v8742
    %v8881 = vpack.c.b16 %v8745, %v8744
    %v8882 = vpack.c.b16 %v8747, %v8746
    %v8883 = vpack.c.b16 %v8749, %v8748
    %v8884 = vpack.c.b16 %v8751, %v8750
    %v8885 = vpack.c.b16 %v8753, %v8752
    %v8886 = vpack.c.b16 %v8755, %v8754
    %v8887 = vpack.c.b16 %v8757, %v8756
    %v8888 = vpack.c.b16 %v8759, %v8758
    %v8889 = vpack.c.b16 %v8761, %v8760
    %v8890 = vpack.c.b16 %v8763, %v8762
    %v8891 = vpack.c.b16 %v8765, %v8764
    %v8892 = vpack.c.b16 %v8767, %v8766
    %v8893 = vpack.c.b16 %v8769, %v8768
    %v8894 = vpack.c.b16 %v8771, %v8770
    %v8895 = vpack.c.b16 %v8773, %v8772
    %v8896 = vpack.c.b16 %v8775, %v8774
    %v8897 = vpack.c.b16 %v8777, %v8776
    %v8898 = vpack.c.b16 %v8779, %v8778
    %v8899 = vpack.c.b16 %v8781, %v8780
    %v8900 = vpack.c.b16 %v8783, %v8782
    %v8901 = vpack.c.b16 %v8785, %v8784
    %v8902 = vpack.c.b16 %v8787, %v8786
    %v8903 = vpack.c.b16 %v8789, %v8788
    %v8904 = vpack.c.b16 %v8791, %v8790
    %v8905 = vpack.c.b16 %v8793, %v8792
    %9018 = vmatprep.subr.bf16.mxu0 0
    %9019 = vmatpush1.bf16.msra.mxu0 %v8794
    %9020 = vmatprep.subr.bf16.mxu0 0
    %9021 = vmatpush1.bf16.msra.mxu0 %v8795
    %9022 = vmatprep.subr.bf16.mxu0 0
    %9023 = vmatpush1.bf16.msra.mxu0 %v8796
    %9024 = vmatprep.subr.bf16.mxu0 0
    %9025 = vmatpush1.bf16.msra.mxu0 %v8797
    %9026 = vmatprep.subr.bf16.mxu0 0
    %9027 = vmatpush1.bf16.msra.mxu0 %v8798
    %9028 = vmatprep.subr.bf16.mxu0 0
    %9029 = vmatpush1.bf16.msra.mxu0 %v8799
    %9030 = vmatprep.subr.bf16.mxu0 0
    %9031 = vmatpush1.bf16.msra.mxu0 %v8800
    %9032 = vmatprep.subr.bf16.mxu0 0
    %9033 = vmatpush1.bf16.msra.mxu0 %v8801
    %9034 = vmatprep.subr.bf16.mxu0 0
    %9035 = vmatpush1.bf16.msra.mxu0 %v8802
    %9036 = vmatprep.subr.bf16.mxu0 0
    %9037 = vmatpush1.bf16.msra.mxu0 %v8803
    %9038 = vmatprep.subr.bf16.mxu0 0
    %9039 = vmatpush1.bf16.msra.mxu0 %v8804
    %9040 = vmatprep.subr.bf16.mxu0 0
    %9041 = vmatpush1.bf16.msra.mxu0 %v8805
    %9042 = vmatprep.subr.bf16.mxu0 0
    %9043 = vmatpush1.bf16.msra.mxu0 %v8806
    %9044 = vmatprep.subr.bf16.mxu0 0
    %9045 = vmatpush1.bf16.msra.mxu0 %v8807
    %9046 = vmatprep.subr.bf16.mxu0 0
    %9047 = vmatpush1.bf16.msra.mxu0 %v8808
    %9048 = vmatprep.subr.bf16.mxu0 0
    %9049 = vmatpush1.bf16.msra.mxu0 %v8809
    %9050 = vmatprep.mubr.bf16.mxu0 %v8090
    %9051 = vmatmul.mubr.bf16.gmra.mrb[0].mxu0 %v8089
    %v9052 = vpop.f32.mrb[0].mxu0
    %v9053 = vadd.f32 %v8344, %v9052
    %v9054 = vpop.f32.mrb[0].mxu0
    %v9055 = vpop.f32.mrb[0].mxu0
    %v9056 = vpop.f32.mrb[0].mxu0
    %9057 = vdwg.mxu0
    %9058 = vmatprep.subr.bf16.mxu0 0
    %9059 = vmatpush1.bf16.msra.mxu0 %v8810
    %9060 = vmatprep.subr.bf16.mxu0 0
    %9061 = vmatpush1.bf16.msra.mxu0 %v8811
    %9062 = vmatprep.subr.bf16.mxu0 0
    %9063 = vmatpush1.bf16.msra.mxu0 %v8812
    %9064 = vmatprep.subr.bf16.mxu0 0
    %9065 = vmatpush1.bf16.msra.mxu0 %v8813
    %9066 = vmatprep.subr.bf16.mxu0 0
    %9067 = vmatpush1.bf16.msra.mxu0 %v8814
    %9068 = vmatprep.subr.bf16.mxu0 0
    %9069 = vmatpush1.bf16.msra.mxu0 %v8815
    %9070 = vmatprep.subr.bf16.mxu0 0
    %9071 = vmatpush1.bf16.msra.mxu0 %v8816
    %9072 = vmatprep.subr.bf16.mxu0 0
    %9073 = vmatpush1.bf16.msra.mxu0 %v8817
    %9074 = vmatprep.subr.bf16.mxu0 0
    %9075 = vmatpush1.bf16.msra.mxu0 %v8818
    %9076 = vmatprep.subr.bf16.mxu0 0
    %9077 = vmatpush1.bf16.msra.mxu0 %v8819
    %9078 = vmatprep.subr.bf16.mxu0 0
    %9079 = vmatpush1.bf16.msra.mxu0 %v8820
    %9080 = vmatprep.subr.bf16.mxu0 0
    %9081 = vmatpush1.bf16.msra.mxu0 %v8821
    %9082 = vmatprep.subr.bf16.mxu0 0
    %9083 = vmatpush1.bf16.msra.mxu0 %v8822
    %9084 = vmatprep.subr.bf16.mxu0 0
    %9085 = vmatpush1.bf16.msra.mxu0 %v8823
    %9086 = vmatprep.subr.bf16.mxu0 0
    %9087 = vmatpush1.bf16.msra.mxu0 %v8824
    %9088 = vmatprep.subr.bf16.mxu0 0
    %9089 = vmatpush1.bf16.msra.mxu0 %v8825
    %9090 = vmatprep.mubr.bf16.mxu0 %v8100
    %9091 = vmatmul.mubr.bf16.gmra.mrb[0].mxu0 %v8099
    %v9092 = vpop.f32.mrb[0].mxu0
    %v9093 = vadd.f32 %v9053, %v9092
    %v9094 = vpop.f32.mrb[0].mxu0
    %v9095 = vpop.f32.mrb[0].mxu0
    %v9096 = vpop.f32.mrb[0].mxu0
    %9097 = vdwg.mxu0
    %9098 = vmatprep.subr.bf16.mxu0 0
    %9099 = vmatpush1.bf16.msra.mxu0 %v8826
    %9100 = vmatprep.subr.bf16.mxu0 0
    %9101 = vmatpush1.bf16.msra.mxu0 %v8827
    %9102 = vmatprep.subr.bf16.mxu0 0
    %9103 = vmatpush1.bf16.msra.mxu0 %v8828
    %9104 = vmatprep.subr.bf16.mxu0 0
    %9105 = vmatpush1.bf16.msra.mxu0 %v8829
    %9106 = vmatprep.subr.bf16.mxu0 0
    %9107 = vmatpush1.bf16.msra.mxu0 %v8830
    %9108 = vmatprep.subr.bf16.mxu0 0
    %9109 = vmatpush1.bf16.msra.mxu0 %v8831
    %9110 = vmatprep.subr.bf16.mxu0 0
    %9111 = vmatpush1.bf16.msra.mxu0 %v8832
    %9112 = vmatprep.subr.bf16.mxu0 0
    %9113 = vmatpush1.bf16.msra.mxu0 %v8833
    %9114 = vmatprep.subr.bf16.mxu0 0
    %9115 = vmatpush1.bf16.msra.mxu0 %v8834
    %9116 = vmatprep.subr.bf16.mxu0 0
    %9117 = vmatpush1.bf16.msra.mxu0 %v8835
    %9118 = vmatprep.subr.bf16.mxu0 0
    %9119 = vmatpush1.bf16.msra.mxu0 %v8836
    %9120 = vmatprep.subr.bf16.mxu0 0
    %9121 = vmatpush1.bf16.msra.mxu0 %v8837
    %9122 = vmatprep.subr.bf16.mxu0 0
    %9123 = vmatpush1.bf16.msra.mxu0 %v8838
    %9124 = vmatprep.subr.bf16.mxu0 0
    %9125 = vmatpush1.bf16.msra.mxu0 %v8839
    %9126 = vmatprep.subr.bf16.mxu0 0
    %9127 = vmatpush1.bf16.msra.mxu0 %v8840
    %9128 = vmatprep.subr.bf16.mxu0 0
    %9129 = vmatpush1.bf16.msra.mxu0 %v8841
    %9130 = vmatprep.mubr.bf16.mxu0 %v8092
    %9131 = vmatmul.mubr.bf16.gmra.mrb[0].mxu0 %v8091
    %v9132 = vpop.f32.mrb[0].mxu0
    %v9133 = vadd.f32 %v9093, %v9132
    %v9134 = vpop.f32.mrb[0].mxu0
    %v9135 = vpop.f32.mrb[0].mxu0
    %v9136 = vpop.f32.mrb[0].mxu0
    %9137 = vdwg.mxu0
    %9138 = vmatprep.subr.bf16.mxu0 0
    %9139 = vmatpush1.bf16.msra.mxu0 %v8842
    %9140 = vmatprep.subr.bf16.mxu0 0
    %9141 = vmatpush1.bf16.msra.mxu0 %v8843
    %9142 = vmatprep.subr.bf16.mxu0 0
    %9143 = vmatpush1.bf16.msra.mxu0 %v8844
    %9144 = vmatprep.subr.bf16.mxu0 0
    %9145 = vmatpush1.bf16.msra.mxu0 %v8845
    %9146 = vmatprep.subr.bf16.mxu0 0
    %9147 = vmatpush1.bf16.msra.mxu0 %v8846
    %9148 = vmatprep.subr.bf16.mxu0 0
    %9149 = vmatpush1.bf16.msra.mxu0 %v8847
    %9150 = vmatprep.subr.bf16.mxu0 0
    %9151 = vmatpush1.bf16.msra.mxu0 %v8848
    %9152 = vmatprep.subr.bf16.mxu0 0
    %9153 = vmatpush1.bf16.msra.mxu0 %v8849
    %9154 = vmatprep.subr.bf16.mxu0 0
    %9155 = vmatpush1.bf16.msra.mxu0 %v8850
    %9156 = vmatprep.subr.bf16.mxu0 0
    %9157 = vmatpush1.bf16.msra.mxu0 %v8851
    %9158 = vmatprep.subr.bf16.mxu0 0
    %9159 = vmatpush1.bf16.msra.mxu0 %v8852
    %9160 = vmatprep.subr.bf16.mxu0 0
    %9161 = vmatpush1.bf16.msra.mxu0 %v8853
    %9162 = vmatprep.subr.bf16.mxu0 0
    %9163 = vmatpush1.bf16.msra.mxu0 %v8854
    %9164 = vmatprep.subr.bf16.mxu0 0
    %9165 = vmatpush1.bf16.msra.mxu0 %v8855
    %9166 = vmatprep.subr.bf16.mxu0 0
    %9167 = vmatpush1.bf16.msra.mxu0 %v8856
    %9168 = vmatprep.subr.bf16.mxu0 0
    %9169 = vmatpush1.bf16.msra.mxu0 %v8857
    %9170 = vmatprep.mubr.bf16.mxu0 %v8106
    %9171 = vmatmul.mubr.bf16.gmra.mrb[0].mxu0 %v8105
    %v9172 = vpop.f32.mrb[0].mxu0
    %v9173 = vadd.f32 %v9133, %v9172
    %v9174 = vpop.f32.mrb[0].mxu0
    %v9175 = vpop.f32.mrb[0].mxu0
    %v9176 = vpop.f32.mrb[0].mxu0
    %9177 = vdwg.mxu0
    %9178 = vmatprep.subr.bf16.mxu0 0
    %9179 = vmatpush1.bf16.msra.mxu0 %v8858
    %9180 = vmatprep.subr.bf16.mxu0 0
    %9181 = vmatpush1.bf16.msra.mxu0 %v8859
    %9182 = vmatprep.subr.bf16.mxu0 0
    %9183 = vmatpush1.bf16.msra.mxu0 %v8860
    %9184 = vmatprep.subr.bf16.mxu0 0
    %9185 = vmatpush1.bf16.msra.mxu0 %v8861
    %9186 = vmatprep.subr.bf16.mxu0 0
    %9187 = vmatpush1.bf16.msra.mxu0 %v8862
    %9188 = vmatprep.subr.bf16.mxu0 0
    %9189 = vmatpush1.bf16.msra.mxu0 %v8863
    %9190 = vmatprep.subr.bf16.mxu0 0
    %9191 = vmatpush1.bf16.msra.mxu0 %v8864
    %9192 = vmatprep.subr.bf16.mxu0 0
    %9193 = vmatpush1.bf16.msra.mxu0 %v8865
    %9194 = vmatprep.subr.bf16.mxu0 0
    %9195 = vmatpush1.bf16.msra.mxu0 %v8866
    %9196 = vmatprep.subr.bf16.mxu0 0
    %9197 = vmatpush1.bf16.msra.mxu0 %v8867
    %9198 = vmatprep.subr.bf16.mxu0 0
    %9199 = vmatpush1.bf16.msra.mxu0 %v8868
    %9200 = vmatprep.subr.bf16.mxu0 0
    %9201 = vmatpush1.bf16.msra.mxu0 %v8869
    %9202 = vmatprep.subr.bf16.mxu0 0
    %9203 = vmatpush1.bf16.msra.mxu0 %v8870
    %9204 = vmatprep.subr.bf16.mxu0 0
    %9205 = vmatpush1.bf16.msra.mxu0 %v8871
    %9206 = vmatprep.subr.bf16.mxu0 0
    %9207 = vmatpush1.bf16.msra.mxu0 %v8872
    %9208 = vmatprep.subr.bf16.mxu0 0
    %9209 = vmatpush1.bf16.msra.mxu0 %v8873
    %9210 = vmatprep.mubr.bf16.mxu0 %v8094
    %9211 = vmatmul.mubr.bf16.gmra.mrb[0].mxu0 %v8093
    %v9212 = vpop.f32.mrb[0].mxu0
    %v9213 = vadd.f32 %v9173, %v9212
    %v9214 = vpop.f32.mrb[0].mxu0
    %v9215 = vpop.f32.mrb[0].mxu0
    %v9216 = vpop.f32.mrb[0].mxu0
    %9217 = vdwg.mxu0
    %9218 = vmatprep.subr.bf16.mxu0 0
    %9219 = vmatpush1.bf16.msra.mxu0 %v8874
    %9220 = vmatprep.subr.bf16.mxu0 0
    %9221 = vmatpush1.bf16.msra.mxu0 %v8875
    %9222 = vmatprep.subr.bf16.mxu0 0
    %9223 = vmatpush1.bf16.msra.mxu0 %v8876
    %9224 = vmatprep.subr.bf16.mxu0 0
    %9225 = vmatpush1.bf16.msra.mxu0 %v8877
    %9226 = vmatprep.subr.bf16.mxu0 0
    %9227 = vmatpush1.bf16.msra.mxu0 %v8878
    %9228 = vmatprep.subr.bf16.mxu0 0
    %9229 = vmatpush1.bf16.msra.mxu0 %v8879
    %9230 = vmatprep.subr.bf16.mxu0 0
    %9231 = vmatpush1.bf16.msra.mxu0 %v8880
    %9232 = vmatprep.subr.bf16.mxu0 0
    %9233 = vmatpush1.bf16.msra.mxu0 %v8881
    %9234 = vmatprep.subr.bf16.mxu0 0
    %9235 = vmatpush1.bf16.msra.mxu0 %v8882
    %9236 = vmatprep.subr.bf16.mxu0 0
    %9237 = vmatpush1.bf16.msra.mxu0 %v8883
    %9238 = vmatprep.subr.bf16.mxu0 0
    %9239 = vmatpush1.bf16.msra.mxu0 %v8884
    %9240 = vmatprep.subr.bf16.mxu0 0
    %9241 = vmatpush1.bf16.msra.mxu0 %v8885
    %9242 = vmatprep.subr.bf16.mxu0 0
    %9243 = vmatpush1.bf16.msra.mxu0 %v8886
    %9244 = vmatprep.subr.bf16.mxu0 0
    %9245 = vmatpush1.bf16.msra.mxu0 %v8887
    %9246 = vmatprep.subr.bf16.mxu0 0
    %9247 = vmatpush1.bf16.msra.mxu0 %v8888
    %9248 = vmatprep.subr.bf16.mxu0 0
    %9249 = vmatpush1.bf16.msra.mxu0 %v8889
    %9250 = vmatprep.mubr.bf16.mxu0 %v8112
    %9251 = vmatmul.mubr.bf16.gmra.mrb[0].mxu0 %v8111
    %v9252 = vpop.f32.mrb[0].mxu0
    %v9253 = vadd.f32 %v9213, %v9252
    %v9254 = vpop.f32.mrb[0].mxu0
    %v9255 = vpop.f32.mrb[0].mxu0
    %v9256 = vpop.f32.mrb[0].mxu0
    %9257 = vdwg.mxu0
    %9258 = vmatprep.subr.bf16.mxu0 0
    %9259 = vmatpush1.bf16.msra.mxu0 %v8890
    %9260 = vmatprep.subr.bf16.mxu0 0
    %9261 = vmatpush1.bf16.msra.mxu0 %v8891
    %9262 = vmatprep.subr.bf16.mxu0 0
    %9263 = vmatpush1.bf16.msra.mxu0 %v8892
    %9264 = vmatprep.subr.bf16.mxu0 0
    %9265 = vmatpush1.bf16.msra.mxu0 %v8893
    %9266 = vmatprep.subr.bf16.mxu0 0
    %9267 = vmatpush1.bf16.msra.mxu0 %v8894
    %9268 = vmatprep.subr.bf16.mxu0 0
    %9269 = vmatpush1.bf16.msra.mxu0 %v8895
    %9270 = vmatprep.subr.bf16.mxu0 0
    %9271 = vmatpush1.bf16.msra.mxu0 %v8896
    %9272 = vmatprep.subr.bf16.mxu0 0
    %9273 = vmatpush1.bf16.msra.mxu0 %v8897
    %9274 = vmatprep.subr.bf16.mxu0 0
    %9275 = vmatpush1.bf16.msra.mxu0 %v8898
    %9276 = vmatprep.subr.bf16.mxu0 0
    %9277 = vmatpush1.bf16.msra.mxu0 %v8899
    %9278 = vmatprep.subr.bf16.mxu0 0
    %9279 = vmatpush1.bf16.msra.mxu0 %v8900
    %9280 = vmatprep.subr.bf16.mxu0 0
    %9281 = vmatpush1.bf16.msra.mxu0 %v8901
    %9282 = vmatprep.subr.bf16.mxu0 0
    %9283 = vmatpush1.bf16.msra.mxu0 %v8902
    %9284 = vmatprep.subr.bf16.mxu0 0
    %9285 = vmatpush1.bf16.msra.mxu0 %v8903
    %9286 = vmatprep.subr.bf16.mxu0 0
    %9287 = vmatpush1.bf16.msra.mxu0 %v8904
    %9288 = vmatprep.subr.bf16.mxu0 0
    %9289 = vmatpush1.bf16.msra.mxu0 %v8905
    %9290 = vmatprep.mubr.bf16.mxu0 %v8096
    %9291 = vmatmul.mubr.bf16.gmra.mrb[0].mxu0 %v8095
    %v9292 = vpop.f32.mrb[0].mxu0
    %v9293 = vadd.f32 %v9253, %v9292
    %v9294 = vpop.f32.mrb[0].mxu0
    %v9295 = vpop.f32.mrb[0].mxu0
    %v9296 = vpop.f32.mrb[0].mxu0
    %9297 = vdwg.mxu0
    %9298 = vst [vmem:[%s7] sm:$0xff] %v9293
    // Predicated region
    $region54: #{cnn_forward.1} parent=1 // pred_check
      _
    $region55: #{cnn_forward.1} parent=1 // pred_check_branch
      %9300 = sbr.rel (0) target = $region57
    $region56: #{cnn_forward.1} parent=1 // pred_region
      _
    $region57: #{cnn_forward.1} parent=1 // pred_fallthru
      _
    // Predicated region
    $region58: #{cnn_forward.1} parent=1 // pred_check
      _
    $region59: #{cnn_forward.1} parent=1 // pred_check_branch
      %9302 = sbr.rel (0) target = $region61
    $region60: #{cnn_forward.1} parent=1 // pred_region
      _
    $region61: #{cnn_forward.1} parent=1 // pred_fallthru
      _
    // Predicated region
    $region62: #{cnn_forward.1} parent=1 // pred_check
      _
    $region63: #{cnn_forward.1} parent=1 // pred_check_branch
      %9304 = sbr.rel (0) target = $region65
    $region64: #{cnn_forward.1} parent=1 // pred_region
      _
    $region65: #{cnn_forward.1} parent=1 // pred_fallthru
      _
    // Predicated region
    $region66: #{cnn_forward.1} parent=1 // pred_check
      _
    $region67: #{cnn_forward.1} parent=1 // pred_check_branch
      %9306 = sbr.rel (0) target = $region69
    $region68: #{cnn_forward.1} parent=1 // pred_region
      _
    $region69: #{cnn_forward.1} parent=1 // pred_fallthru
      _
    %9307 = vsyncpa [#allocation3], 1
    %9308 = vsyncpa [#allocation5], 1
    %9309 = vsyncpa [#allocation8], 1
    %9310 = vsyncpa [#allocation11], 1

</llo_original>
